<compile_context>
chip_gen: v7x
topology: tpu7x:2x2x1
jax: 0.10.0
libtpu: 0.0.40
codegen_flags: <defaults>
</compile_context>

<pallas_src>
import functools
import math

import jax
import jax.numpy as jnp
from jax.experimental import pallas as pl
from jax.experimental.pallas import tpu as pltpu

BN_EPS = 1e-5
_MXU_DTYPE = jnp.bfloat16          # MXU operand dtype (f32 accumulation everywhere)

# conv configs: (KH, KW, ((pad_top, pad_bottom), (pad_left, pad_right)))
_DOWN_SHIFT = (2, 3, ((1, 0), (1, 1)))
_DOWN_RIGHT_SHIFT = (2, 2, ((1, 0), (1, 0)))
_SAME_3x3 = (3, 3, ((1, 1), (1, 1)))


def _taps(conv_cfg):
    """Static (dh, dw) read-offsets per kernel tap: out[h,w] += W[t] @ x[h+dh, w+dw]."""
    kh, kw, pad = conv_cfg
    pt, pl_ = pad[0][0], pad[1][0]
    return tuple((i - pt, j - pl_) for i in range(kh) for j in range(kw))


# --------------------------- in-kernel helpers -----------------------------

def _concat_elu(x):
    """concat_elu with a single exp per element: [elu(x), elu(-x)] along channels."""
    em1 = jnp.exp(-jnp.abs(x)) - 1.0          # == elu(x) for x<=0 and elu(-x) for x>=0
    pos = x > 0
    return jnp.concatenate([jnp.where(pos, x, em1), jnp.where(pos, em1, -x)], axis=-1)


def _shift2d(x, dh, dw):
    """shifted[h, w] = x[h + dh, w + dw] (zeros outside bounds); dh/dw are static.

    Zero fill commutes with concat_elu (elu(+-0) == 0), so shifting E is identical
    to convolving the zero-padded pre-activation.
    """
    h, w, c = x.shape
    if dh > 0:
        x = jnp.concatenate([x[dh:], jnp.zeros((dh, w, c), x.dtype)], axis=0)
    elif dh < 0:
        x = jnp.concatenate([jnp.zeros((-dh, w, c), x.dtype), x[:h + dh]], axis=0)
    if dw > 0:
        x = jnp.concatenate([x[:, dw:], jnp.zeros((h, dw, c), x.dtype)], axis=1)
    elif dw < 0:
        x = jnp.concatenate([jnp.zeros((h, -dw, c), x.dtype), x[:, :w + dw]], axis=1)
    return x


def _shifted_conv(e, taps, w_refs):
    """In-kernel conv as shifted dots.

    e: (H, W, K) activation; w_refs: list of (len(taps)*K, Cout) stacked weight refs.
    Returns one f32 (H*W, Cout) accumulator per weight ref; each shifted tile is
    built once and reused for every weight ref (conv_out a/b halves share shifts).
    """
    h, w, k = e.shape
    hw = h * w
    accs = [None] * len(w_refs)
    for t, (dh, dw) in enumerate(taps):
        sh = _shift2d(e, dh, dw).reshape(hw, k).astype(_MXU_DTYPE)
        for j, w_ref in enumerate(w_refs):
            d = jnp.dot(sh, w_ref[t * k:(t + 1) * k, :],
                        preferred_element_type=jnp.float32)
            accs[j] = d if accs[j] is None else accs[j] + d
    return accs


# ----------------------------- Pallas kernels ------------------------------

def _gated_resnet_kernel(*refs, taps, n_skip, has_c):
    """Whole gated_resnet block, fully fused (one image per grid step).

    s = conv_in(concat_elu(og)) + sum_i nin_i(concat_elu(skip_i)) [+ c]
    (a, b) = chunk(conv_out(concat_elu(s)), 2);  out = og + a * sigmoid(b)
    `s` stays in VMEM/vregs; the conv is KH*KW shifted dots (no im2col).
    """
    idx = 0
    og_ref = refs[idx]; idx += 1
    skip_refs = refs[idx:idx + n_skip]; idx += n_skip
    if has_c:
        c_ref = refs[idx]; idx += 1
    else:
        c_ref = None
    w_in_ref = refs[idx]; idx += 1
    w_sk_refs = refs[idx:idx + n_skip]; idx += n_skip
    b1_ref, w_oa_ref, w_ob_ref, b2a_ref, b2b_ref, o_ref = refs[idx:]

    og = og_ref[0]                                    # (H, W, F) f32
    h, w, f = og.shape
    hw = h * w

    # ---- part 1: s = conv_in(concat_elu(og)) + nin_skip(concat_elu(skips)) [+ c]
    (acc,) = _shifted_conv(_concat_elu(og), taps, [w_in_ref])
    for s_i in range(n_skip):
        e_sk = _concat_elu(skip_refs[s_i][0]).reshape(hw, -1).astype(_MXU_DTYPE)
        acc = acc + jnp.dot(e_sk, w_sk_refs[s_i][...],
                            preferred_element_type=jnp.float32)
    acc = acc + b1_ref[...]                           # conv_in bias + nin bias (folded)
    if c_ref is not None:
        acc = acc + c_ref[0].reshape(hw, f)
    # TODO(synk): nn.Dropout2d(0.5) treated as identity (eval mode).

    # ---- part 2: (a, b) = chunk(conv_out(concat_elu(s)), 2); out = og + a*sigmoid(b)
    ha, hb = _shifted_conv(_concat_elu(acc.reshape(h, w, f)), taps,
                           [w_oa_ref, w_ob_ref])
    ha = ha + b2a_ref[...]
    hb = hb + b2b_ref[...]
    out = og.reshape(hw, f) + ha * jax.nn.sigmoid(hb)
    o_ref[0] = out.reshape(h, w, f).astype(o_ref.dtype)


def _uc_kernel(uc_ref, prev_ref, wc_ref, wn_ref, scale_ref, shift_ref, o_ref, *, taps):
    """uc = relu(BN(conv3x3(uc) + nin(uc_prev))); BN affine + biases folded."""
    x = uc_ref[0]                                     # (H, W, F) f32
    h, w, f = x.shape
    hw = h * w
    (acc,) = _shifted_conv(x, taps, [wc_ref])         # 3x3 conv, 9 shifted dots
    acc = acc + jnp.dot(prev_ref[0].reshape(hw, f).astype(_MXU_DTYPE), wn_ref[...],
                        preferred_element_type=jnp.float32)
    y = acc * scale_ref[...] + shift_ref[...]         # folded BatchNorm + biases
    o_ref[0] = jnp.maximum(y, 0.0).reshape(h, w, f).astype(o_ref.dtype)


# --------------------------- pallas_call wrapper ----------------------------

def _image_call(kernel, n, h, w, f, act_args, param_args):
    """Launch `kernel` over the batch grid; one (1, H, W, C) image block per step.

    act_args:   (N, H, W, C) activation tensors (blocked along batch).
    param_args: 2-D weights / biases, whole-array blocks (constant index map).
    """
    act_specs = [pl.BlockSpec((1,) + a.shape[1:], lambda i: (i, 0, 0, 0))
                 for a in act_args]
    par_specs = [pl.BlockSpec(p.shape, lambda i: (0, 0)) for p in param_args]

    # Derive the VMEM limit from the real footprint (double-buffered blocks +
    # params + headroom for concat_elu / shifted-copy temporaries), clamped to
    # v7x's 64 MiB physical VMEM (v5e/v6e have 128 MiB, so this is always safe).
    blk = sum(math.prod(a.shape[1:]) * a.dtype.itemsize for a in act_args)
    blk += h * w * f * 4                                    # f32 output block
    par = sum(math.prod(p.shape) * p.dtype.itemsize for p in param_args)
    need = 2 * (blk + par) + 12 * blk + (4 << 20)
    vmem_limit = max(16 << 20, min(int(need), 64 << 20))

    return pl.pallas_call(
        kernel,
        out_shape=jax.ShapeDtypeStruct((n, h, w, f), jnp.float32),
        grid=(n,),                                          # >= 2 steps for N >= 2
        in_specs=act_specs + par_specs,
        out_specs=pl.BlockSpec((1, h, w, f), lambda i: (i, 0, 0, 0)),
        compiler_params=pltpu.CompilerParams(
            dimension_semantics=("parallel",),              # megacore sharding on v7x
            vmem_limit_bytes=vmem_limit),
    )(*act_args, *param_args)


# ------------------------------ module logic -------------------------------

def gated_resnet_fused(og, skips, c, p, conv_cfg):
    """gated_resnet(nr_filters, conv_op, concat_elu, skip_connection=len(skips))."""
    n, h, w, f = og.shape
    acts = [og] + list(skips) + ([] if c is None else [c])
    params = [p['w_in']] + list(p['w_sk']) + [p['b1'], p['w_out_a'], p['w_out_b'],
                                              p['b2a'], p['b2b']]
    kernel = functools.partial(_gated_resnet_kernel, taps=_taps(conv_cfg),
                               n_skip=len(skips), has_c=c is not None)
    return _image_call(kernel, n, h, w, f, acts, params)


def uc_stream_step(uc, uc_prev, p):
    n, h, w, f = uc.shape
    kernel = functools.partial(_uc_kernel, taps=_taps(_SAME_3x3))
    return _image_call(kernel, n, h, w, f, [uc, uc_prev],
                       [p['w_conv'], p['w_nin'], p['scale'], p['shift']])


def pixelcnn_layer_down(prepared, u, ul, u_list, ul_list, uc_list=None, uc=None):
    """Inputs/outputs are NCHW (PyTorch convention); one NHWC layout pass at entry/exit."""
    to_nhwc = lambda t: jnp.transpose(t, (0, 2, 3, 1))
    to_nchw = lambda t: jnp.transpose(t, (0, 3, 1, 2))
    u, ul = to_nhwc(u), to_nhwc(ul)
    u_list = [to_nhwc(t) for t in u_list]
    ul_list = [to_nhwc(t) for t in ul_list]
    if uc_list is not None:
        uc_list = [to_nhwc(t) for t in uc_list]
    if uc is not None:
        uc = to_nhwc(uc)

    nr_resnet = len(prepared['u_stream'])
    for i in range(nr_resnet):
        if uc_list is not None:
            uc = uc_stream_step(uc, uc_list.pop(), prepared['uc'][i])
        u = gated_resnet_fused(u, [u_list.pop()], uc, prepared['u_stream'][i],
                               _DOWN_SHIFT)
        # cat([u, ul_list.pop()]) is never materialized: both skip sources go to
        # the kernel separately with a per-source split nin_skip weight.
        ul = gated_resnet_fused(ul, [u, ul_list.pop()], uc,
                                prepared['ul_stream'][i], _DOWN_RIGHT_SHIFT)

    if uc_list is not None:
        return to_nchw(u), to_nchw(ul), to_nchw(uc)
    return to_nchw(u), to_nchw(ul)


# -------------------- one-time parameter preparation ------------------------

def _stack_taps(w_oihw):
    """torch conv weight (Cout, Cin, KH, KW) -> (KH*KW*Cin, Cout) bf16, tap-major rows.

    Row block t = kh*KW + kw holds the (Cin, Cout) matrix for tap (kh, kw); within a
    block, Cin ordering is torch's input-channel order ([elu(x); elu(-x)] halves for
    concat_elu inputs), matching the kernel's E = [elu(x), elu(-x)] layout.
    """
    cout, cin, kh, kw = w_oihw.shape
    return (jnp.transpose(w_oihw, (2, 3, 1, 0))
            .reshape(kh * kw * cin, cout).astype(_MXU_DTYPE))


def _split_nin_skip(w_lin, src_channels):
    """torch nin Linear weight (Cout, 2*sum(ch)) -> per-source (2*ch_s, Cout) bf16.

    concat_elu(cat(sources)) channel order is [elu(s0)..elu(sk), elu(-s0)..elu(-sk)];
    each per-source weight stacks its elu(x) rows over its elu(-x) rows so it can be
    applied to that source's own E = [elu, elu(-.)] without concatenating sources.
    """
    wt = w_lin.T
    tot = sum(src_channels)
    out, off = [], 0
    for ch in src_channels:
        blk = jnp.concatenate([wt[off:off + ch], wt[tot + off:tot + off + ch]], axis=0)
        out.append(blk.astype(_MXU_DTYPE))
        off += ch
    return out


def _prep_gated(raw, f, n_skip):
    w_out = _stack_taps(raw['conv_out_w'])                      # (KH*KW*2F, 2F)
    b_out = raw['conv_out_b']
    return {
        'w_in': _stack_taps(raw['conv_in_w']),                  # (KH*KW*2F, F)
        'w_sk': _split_nin_skip(raw['nin_skip_w'], [f] * n_skip),
        'b1': (raw['conv_in_b'] + raw['nin_skip_b']).reshape(1, f).astype(jnp.float32),
        'w_out_a': w_out[:, :f], 'w_out_b': w_out[:, f:],       # gate a/b halves
        'b2a': b_out[:f].reshape(1, f).astype(jnp.float32),
        'b2b': b_out[f:].reshape(1, f).astype(jnp.float32),
    }


def _prep_uc(conv, ninp, bn, f):
    scale = bn['gamma'] / jnp.sqrt(bn['var'] + BN_EPS)
    shift = bn['beta'] + scale * (conv['b'] + ninp['b'] - bn['mean'])
    return {'w_conv': _stack_taps(conv['w']),                   # (9F, F)
            'w_nin': ninp['w'].T.astype(_MXU_DTYPE),
            'scale': scale.reshape(1, f).astype(jnp.float32),
            'shift': shift.reshape(1, f).astype(jnp.float32)}


def prepare_params(raw, f):
    """One-time conversion of PyTorch-layout weights to matmul-ready layout."""
    nr = len(raw['u_stream'])
    return {
        'u_stream': [_prep_gated(raw['u_stream'][i], f, 1) for i in range(nr)],
        'ul_stream': [_prep_gated(raw['ul_stream'][i], f, 2) for i in range(nr)],
        'uc': [_prep_uc(raw['uc_stream'][i], raw['uc_stream_'][i],
                        raw['uc_stream_bn'][i], f) for i in range(nr)],
    }


# ------------------------- deterministic parameters -------------------------

def init_params(key, nr_resnet, F):
    def nrm(k, shape, scale=0.05):
        return scale * jax.random.normal(k, shape, jnp.float32)

    params = {'u_stream': [], 'uc_stream': [], 'uc_stream_': [],
              'uc_stream_bn': [], 'ul_stream': []}
    for i in range(nr_resnet):
        ks = jax.random.split(jax.random.fold_in(key, i), 16)
        params['uc_stream'].append({'w': nrm(ks[0], (F, F, 3, 3)), 'b': nrm(ks[1], (F,))})
        params['uc_stream_'].append({'w': nrm(ks[2], (F, F)), 'b': nrm(ks[3], (F,))})
        params['uc_stream_bn'].append({'gamma': jnp.ones((F,), jnp.float32),
                                       'beta': jnp.full((F,), 0.1, jnp.float32),
                                       'mean': jnp.zeros((F,), jnp.float32),
                                       'var': jnp.ones((F,), jnp.float32)})
        params['u_stream'].append({      # down_shifted_conv2d, skip_connection=1
            'conv_in_w': nrm(ks[4], (F, 2 * F, 2, 3)), 'conv_in_b': nrm(ks[5], (F,)),
            'nin_skip_w': nrm(ks[6], (F, 2 * F)), 'nin_skip_b': nrm(ks[7], (F,)),
            'conv_out_w': nrm(ks[8], (2 * F, 2 * F, 2, 3)), 'conv_out_b': nrm(ks[9], (2 * F,))})
        params['ul_stream'].append({     # down_right_shifted_conv2d, skip_connection=2
            'conv_in_w': nrm(ks[10], (F, 2 * F, 2, 2)), 'conv_in_b': nrm(ks[11], (F,)),
            'nin_skip_w': nrm(ks[12], (F, 4 * F)), 'nin_skip_b': nrm(ks[13], (F,)),
            'conv_out_w': nrm(ks[14], (2 * F, 2 * F, 2, 2)), 'conv_out_b': nrm(ks[15], (2 * F,))})
    return params


if __name__ == "__main__":
    key = jax.random.PRNGKey(0)
    N, F, H, W = 2, 32, 8, 8
    nr_resnet = 2

    pkey, dkey = jax.random.split(key)
    raw_params = init_params(pkey, nr_resnet, F)
    params = prepare_params(raw_params, F)      # weight reshapes / folding done once

    shape = (N, F, H, W)  # NCHW, like the PyTorch module
    dkeys = jax.random.split(dkey, 3 + 3 * nr_resnet)
    u = jax.random.normal(dkeys[0], shape, jnp.float32)
    ul = jax.random.normal(dkeys[1], shape, jnp.float32)
    uc = jax.random.normal(dkeys[2], shape, jnp.float32)
    u_list = [jax.random.normal(dkeys[3 + i], shape, jnp.float32)
              for i in range(nr_resnet)]
    ul_list = [jax.random.normal(dkeys[3 + nr_resnet + i], shape, jnp.float32)
               for i in range(nr_resnet)]
    uc_list = [jax.random.normal(dkeys[3 + 2 * nr_resnet + i], shape, jnp.float32)
               for i in range(nr_resnet)]

    fwd = jax.jit(pixelcnn_layer_down)
    u_out, ul_out, uc_out = fwd(params, u, ul, list(u_list), list(ul_list),
                                list(uc_list), uc)
    jax.block_until_ready((u_out, ul_out, uc_out))

    assert u_out.shape == shape and ul_out.shape == shape and uc_out.shape == shape
    assert u_out.dtype == jnp.float32
    print("KERNEL_OK")
</pallas_src>

<mosaic_0001>
module attributes {stable_mosaic.version = 11 : i64} {
  func.func @_uc_kernel(%arg0: i32, %arg1: memref<1x8x8x32xf32, #tpu.memory_space<vmem>>, %arg2: memref<1x8x8x32xf32, #tpu.memory_space<vmem>>, %arg3: memref<288x32xbf16, #tpu.memory_space<vmem>>, %arg4: memref<32x32xbf16, #tpu.memory_space<vmem>>, %arg5: memref<1x32xf32, #tpu.memory_space<vmem>>, %arg6: memref<1x32xf32, #tpu.memory_space<vmem>>, %arg7: memref<1x8x8x32xf32, #tpu.memory_space<vmem>>) attributes {dimension_semantics = [#tpu.dimension_semantics<parallel>], iteration_bounds = array<i64: 2>, scalar_prefetch = 0 : i64, scratch_operands = 0 : i64, tpu.core_type = #tpu.core_type<tc>, window_params = [{transform_indices = @transform_0, window_bounds = array<i64: 1, 8, 8, 32>}, {transform_indices = @transform_1, window_bounds = array<i64: 1, 8, 8, 32>}, {pipeline_mode = #tpu.pipeline_mode<synchronous>, transform_indices = @transform_2, window_bounds = array<i64: 288, 32>}, {pipeline_mode = #tpu.pipeline_mode<synchronous>, transform_indices = @transform_3, window_bounds = array<i64: 32, 32>}, {pipeline_mode = #tpu.pipeline_mode<synchronous>, transform_indices = @transform_4, window_bounds = array<i64: 1, 32>}, {pipeline_mode = #tpu.pipeline_mode<synchronous>, transform_indices = @transform_5, window_bounds = array<i64: 1, 32>}, {transform_indices = @transform_6, window_bounds = array<i64: 1, 8, 8, 32>}]} {
    %c0 = arith.constant 0 : index
    %c0_0 = arith.constant 0 : index
    %c0_1 = arith.constant 0 : index
    %c0_2 = arith.constant 0 : index
    %0 = vector.load %arg1[%c0, %c0_0, %c0_1, %c0_2] : memref<1x8x8x32xf32, #tpu.memory_space<vmem>>, vector<1x8x8x32xf32>
    %1 = vector.shape_cast %0 : vector<1x8x8x32xf32> to vector<8x8x32xf32>
    %cst = arith.constant 0.000000e+00 : f32
    %2 = vector.broadcast %cst : f32 to vector<1x8x32xf32>
    %3 = vector.extract_strided_slice %1 {offsets = [0, 0, 0], sizes = [7, 8, 32], strides = [1, 1, 1]} : vector<8x8x32xf32> to vector<7x8x32xf32>
    %4 = tpu.concatenate %2, %3 in 0 : vector<1x8x32xf32>, vector<7x8x32xf32> -> vector<8x8x32xf32>
    %cst_3 = arith.constant 0.000000e+00 : f32
    %5 = vector.broadcast %cst_3 : f32 to vector<8x1x32xf32>
    %6 = vector.extract_strided_slice %4 {offsets = [0, 0, 0], sizes = [8, 7, 32], strides = [1, 1, 1]} : vector<8x8x32xf32> to vector<8x7x32xf32>
    %7 = tpu.concatenate %5, %6 in 1 : vector<8x1x32xf32>, vector<8x7x32xf32> -> vector<8x8x32xf32>
    %8 = vector.shape_cast %7 : vector<8x8x32xf32> to vector<64x32xf32>
    %9 = arith.truncf %8 : vector<64x32xf32> to vector<64x32xbf16>
    %c0_4 = arith.constant 0 : index
    %c0_5 = arith.constant 0 : index
    %10 = vector.load %arg3[%c0_4, %c0_5] : memref<288x32xbf16, #tpu.memory_space<vmem>>, vector<32x32xbf16>
    %cst_6 = arith.constant dense<0.000000e+00> : vector<64x32xf32>
    %11 = tpu.matmul %9, %10, %cst_6 {dimension_numbers = #tpu.dot_dimension_numbers<[1], [0], [0], [1], [0, 0, 1, 1], [], []>} : vector<64x32xbf16>, vector<32x32xbf16>, vector<64x32xf32> -> vector<64x32xf32>
    %cst_7 = arith.constant 0.000000e+00 : f32
    %12 = vector.broadcast %cst_7 : f32 to vector<1x8x32xf32>
    %13 = vector.extract_strided_slice %1 {offsets = [0, 0, 0], sizes = [7, 8, 32], strides = [1, 1, 1]} : vector<8x8x32xf32> to vector<7x8x32xf32>
    %14 = tpu.concatenate %12, %13 in 0 : vector<1x8x32xf32>, vector<7x8x32xf32> -> vector<8x8x32xf32>
    %15 = vector.shape_cast %14 : vector<8x8x32xf32> to vector<64x32xf32>
    %16 = arith.truncf %15 : vector<64x32xf32> to vector<64x32xbf16>
    %c32 = arith.constant 32 : index
    %c0_8 = arith.constant 0 : index
    %17 = vector.load %arg3[%c32, %c0_8] : memref<288x32xbf16, #tpu.memory_space<vmem>>, vector<32x32xbf16>
    %cst_9 = arith.constant dense<0.000000e+00> : vector<64x32xf32>
    %18 = tpu.matmul %16, %17, %cst_9 {dimension_numbers = #tpu.dot_dimension_numbers<[1], [0], [0], [1], [0, 0, 1, 1], [], []>} : vector<64x32xbf16>, vector<32x32xbf16>, vector<64x32xf32> -> vector<64x32xf32>
    %19 = arith.addf %11, %18 : vector<64x32xf32>
    %cst_10 = arith.constant 0.000000e+00 : f32
    %20 = vector.broadcast %cst_10 : f32 to vector<1x8x32xf32>
    %21 = vector.extract_strided_slice %1 {offsets = [0, 0, 0], sizes = [7, 8, 32], strides = [1, 1, 1]} : vector<8x8x32xf32> to vector<7x8x32xf32>
    %22 = tpu.concatenate %20, %21 in 0 : vector<1x8x32xf32>, vector<7x8x32xf32> -> vector<8x8x32xf32>
    %23 = vector.extract_strided_slice %22 {offsets = [0, 1, 0], sizes = [8, 7, 32], strides = [1, 1, 1]} : vector<8x8x32xf32> to vector<8x7x32xf32>
    %cst_11 = arith.constant 0.000000e+00 : f32
    %24 = vector.broadcast %cst_11 : f32 to vector<8x1x32xf32>
    %25 = tpu.concatenate %23, %24 in 1 : vector<8x7x32xf32>, vector<8x1x32xf32> -> vector<8x8x32xf32>
    %26 = vector.shape_cast %25 : vector<8x8x32xf32> to vector<64x32xf32>
    %27 = arith.truncf %26 : vector<64x32xf32> to vector<64x32xbf16>
    %c64 = arith.constant 64 : index
    %c0_12 = arith.constant 0 : index
    %28 = vector.load %arg3[%c64, %c0_12] : memref<288x32xbf16, #tpu.memory_space<vmem>>, vector<32x32xbf16>
    %cst_13 = arith.constant dense<0.000000e+00> : vector<64x32xf32>
    %29 = tpu.matmul %27, %28, %cst_13 {dimension_numbers = #tpu.dot_dimension_numbers<[1], [0], [0], [1], [0, 0, 1, 1], [], []>} : vector<64x32xbf16>, vector<32x32xbf16>, vector<64x32xf32> -> vector<64x32xf32>
    %30 = arith.addf %19, %29 : vector<64x32xf32>
    %cst_14 = arith.constant 0.000000e+00 : f32
    %31 = vector.broadcast %cst_14 : f32 to vector<8x1x32xf32>
    %32 = vector.extract_strided_slice %1 {offsets = [0, 0, 0], sizes = [8, 7, 32], strides = [1, 1, 1]} : vector<8x8x32xf32> to vector<8x7x32xf32>
    %33 = tpu.concatenate %31, %32 in 1 : vector<8x1x32xf32>, vector<8x7x32xf32> -> vector<8x8x32xf32>
    %34 = vector.shape_cast %33 : vector<8x8x32xf32> to vector<64x32xf32>
    %35 = arith.truncf %34 : vector<64x32xf32> to vector<64x32xbf16>
    %c96 = arith.constant 96 : index
    %c0_15 = arith.constant 0 : index
    %36 = vector.load %arg3[%c96, %c0_15] : memref<288x32xbf16, #tpu.memory_space<vmem>>, vector<32x32xbf16>
    %cst_16 = arith.constant dense<0.000000e+00> : vector<64x32xf32>
    %37 = tpu.matmul %35, %36, %cst_16 {dimension_numbers = #tpu.dot_dimension_numbers<[1], [0], [0], [1], [0, 0, 1, 1], [], []>} : vector<64x32xbf16>, vector<32x32xbf16>, vector<64x32xf32> -> vector<64x32xf32>
    %38 = arith.addf %30, %37 : vector<64x32xf32>
    %39 = vector.shape_cast %1 : vector<8x8x32xf32> to vector<64x32xf32>
    %40 = arith.truncf %39 : vector<64x32xf32> to vector<64x32xbf16>
    %c128 = arith.constant 128 : index
    %c0_17 = arith.constant 0 : index
    %41 = vector.load %arg3[%c128, %c0_17] : memref<288x32xbf16, #tpu.memory_space<vmem>>, vector<32x32xbf16>
    %cst_18 = arith.constant dense<0.000000e+00> : vector<64x32xf32>
    %42 = tpu.matmul %40, %41, %cst_18 {dimension_numbers = #tpu.dot_dimension_numbers<[1], [0], [0], [1], [0, 0, 1, 1], [], []>} : vector<64x32xbf16>, vector<32x32xbf16>, vector<64x32xf32> -> vector<64x32xf32>
    %43 = arith.addf %38, %42 : vector<64x32xf32>
    %44 = vector.extract_strided_slice %1 {offsets = [0, 1, 0], sizes = [8, 7, 32], strides = [1, 1, 1]} : vector<8x8x32xf32> to vector<8x7x32xf32>
    %cst_19 = arith.constant 0.000000e+00 : f32
    %45 = vector.broadcast %cst_19 : f32 to vector<8x1x32xf32>
    %46 = tpu.concatenate %44, %45 in 1 : vector<8x7x32xf32>, vector<8x1x32xf32> -> vector<8x8x32xf32>
    %47 = vector.shape_cast %46 : vector<8x8x32xf32> to vector<64x32xf32>
    %48 = arith.truncf %47 : vector<64x32xf32> to vector<64x32xbf16>
    %c160 = arith.constant 160 : index
    %c0_20 = arith.constant 0 : index
    %49 = vector.load %arg3[%c160, %c0_20] : memref<288x32xbf16, #tpu.memory_space<vmem>>, vector<32x32xbf16>
    %cst_21 = arith.constant dense<0.000000e+00> : vector<64x32xf32>
    %50 = tpu.matmul %48, %49, %cst_21 {dimension_numbers = #tpu.dot_dimension_numbers<[1], [0], [0], [1], [0, 0, 1, 1], [], []>} : vector<64x32xbf16>, vector<32x32xbf16>, vector<64x32xf32> -> vector<64x32xf32>
    %51 = arith.addf %43, %50 : vector<64x32xf32>
    %52 = vector.extract_strided_slice %1 {offsets = [1, 0, 0], sizes = [7, 8, 32], strides = [1, 1, 1]} : vector<8x8x32xf32> to vector<7x8x32xf32>
    %cst_22 = arith.constant 0.000000e+00 : f32
    %53 = vector.broadcast %cst_22 : f32 to vector<1x8x32xf32>
    %54 = tpu.concatenate %52, %53 in 0 : vector<7x8x32xf32>, vector<1x8x32xf32> -> vector<8x8x32xf32>
    %cst_23 = arith.constant 0.000000e+00 : f32
    %55 = vector.broadcast %cst_23 : f32 to vector<8x1x32xf32>
    %56 = vector.extract_strided_slice %54 {offsets = [0, 0, 0], sizes = [8, 7, 32], strides = [1, 1, 1]} : vector<8x8x32xf32> to vector<8x7x32xf32>
    %57 = tpu.concatenate %55, %56 in 1 : vector<8x1x32xf32>, vector<8x7x32xf32> -> vector<8x8x32xf32>
    %58 = vector.shape_cast %57 : vector<8x8x32xf32> to vector<64x32xf32>
    %59 = arith.truncf %58 : vector<64x32xf32> to vector<64x32xbf16>
    %c192 = arith.constant 192 : index
    %c0_24 = arith.constant 0 : index
    %60 = vector.load %arg3[%c192, %c0_24] : memref<288x32xbf16, #tpu.memory_space<vmem>>, vector<32x32xbf16>
    %cst_25 = arith.constant dense<0.000000e+00> : vector<64x32xf32>
    %61 = tpu.matmul %59, %60, %cst_25 {dimension_numbers = #tpu.dot_dimension_numbers<[1], [0], [0], [1], [0, 0, 1, 1], [], []>} : vector<64x32xbf16>, vector<32x32xbf16>, vector<64x32xf32> -> vector<64x32xf32>
    %62 = arith.addf %51, %61 : vector<64x32xf32>
    %63 = vector.extract_strided_slice %1 {offsets = [1, 0, 0], sizes = [7, 8, 32], strides = [1, 1, 1]} : vector<8x8x32xf32> to vector<7x8x32xf32>
    %cst_26 = arith.constant 0.000000e+00 : f32
    %64 = vector.broadcast %cst_26 : f32 to vector<1x8x32xf32>
    %65 = tpu.concatenate %63, %64 in 0 : vector<7x8x32xf32>, vector<1x8x32xf32> -> vector<8x8x32xf32>
    %66 = vector.shape_cast %65 : vector<8x8x32xf32> to vector<64x32xf32>
    %67 = arith.truncf %66 : vector<64x32xf32> to vector<64x32xbf16>
    %c224 = arith.constant 224 : index
    %c0_27 = arith.constant 0 : index
    %68 = vector.load %arg3[%c224, %c0_27] : memref<288x32xbf16, #tpu.memory_space<vmem>>, vector<32x32xbf16>
    %cst_28 = arith.constant dense<0.000000e+00> : vector<64x32xf32>
    %69 = tpu.matmul %67, %68, %cst_28 {dimension_numbers = #tpu.dot_dimension_numbers<[1], [0], [0], [1], [0, 0, 1, 1], [], []>} : vector<64x32xbf16>, vector<32x32xbf16>, vector<64x32xf32> -> vector<64x32xf32>
    %70 = arith.addf %62, %69 : vector<64x32xf32>
    %71 = vector.extract_strided_slice %1 {offsets = [1, 0, 0], sizes = [7, 8, 32], strides = [1, 1, 1]} : vector<8x8x32xf32> to vector<7x8x32xf32>
    %cst_29 = arith.constant 0.000000e+00 : f32
    %72 = vector.broadcast %cst_29 : f32 to vector<1x8x32xf32>
    %73 = tpu.concatenate %71, %72 in 0 : vector<7x8x32xf32>, vector<1x8x32xf32> -> vector<8x8x32xf32>
    %74 = vector.extract_strided_slice %73 {offsets = [0, 1, 0], sizes = [8, 7, 32], strides = [1, 1, 1]} : vector<8x8x32xf32> to vector<8x7x32xf32>
    %cst_30 = arith.constant 0.000000e+00 : f32
    %75 = vector.broadcast %cst_30 : f32 to vector<8x1x32xf32>
    %76 = tpu.concatenate %74, %75 in 1 : vector<8x7x32xf32>, vector<8x1x32xf32> -> vector<8x8x32xf32>
    %77 = vector.shape_cast %76 : vector<8x8x32xf32> to vector<64x32xf32>
    %78 = arith.truncf %77 : vector<64x32xf32> to vector<64x32xbf16>
    %c256 = arith.constant 256 : index
    %c0_31 = arith.constant 0 : index
    %79 = vector.load %arg3[%c256, %c0_31] : memref<288x32xbf16, #tpu.memory_space<vmem>>, vector<32x32xbf16>
    %cst_32 = arith.constant dense<0.000000e+00> : vector<64x32xf32>
    %80 = tpu.matmul %78, %79, %cst_32 {dimension_numbers = #tpu.dot_dimension_numbers<[1], [0], [0], [1], [0, 0, 1, 1], [], []>} : vector<64x32xbf16>, vector<32x32xbf16>, vector<64x32xf32> -> vector<64x32xf32>
    %81 = arith.addf %70, %80 : vector<64x32xf32>
    %c0_33 = arith.constant 0 : index
    %c0_34 = arith.constant 0 : index
    %c0_35 = arith.constant 0 : index
    %c0_36 = arith.constant 0 : index
    %82 = vector.load %arg2[%c0_33, %c0_34, %c0_35, %c0_36] : memref<1x8x8x32xf32, #tpu.memory_space<vmem>>, vector<1x8x8x32xf32>
    %83 = vector.shape_cast %82 : vector<1x8x8x32xf32> to vector<8x8x32xf32>
    %84 = vector.shape_cast %83 : vector<8x8x32xf32> to vector<64x32xf32>
    %85 = arith.truncf %84 : vector<64x32xf32> to vector<64x32xbf16>
    %c0_37 = arith.constant 0 : index
    %c0_38 = arith.constant 0 : index
    %86 = vector.load %arg4[%c0_37, %c0_38] : memref<32x32xbf16, #tpu.memory_space<vmem>>, vector<32x32xbf16>
    %cst_39 = arith.constant dense<0.000000e+00> : vector<64x32xf32>
    %87 = tpu.matmul %85, %86, %cst_39 {dimension_numbers = #tpu.dot_dimension_numbers<[1], [0], [0], [1], [0, 0, 1, 1], [], []>} : vector<64x32xbf16>, vector<32x32xbf16>, vector<64x32xf32> -> vector<64x32xf32>
    %88 = arith.addf %81, %87 : vector<64x32xf32>
    %c0_40 = arith.constant 0 : index
    %c0_41 = arith.constant 0 : index
    %89 = vector.load %arg5[%c0_40, %c0_41] : memref<1x32xf32, #tpu.memory_space<vmem>>, vector<1x32xf32>
    %90 = vector.broadcast %89 : vector<1x32xf32> to vector<64x32xf32>
    %91 = arith.mulf %88, %90 : vector<64x32xf32>
    %c0_42 = arith.constant 0 : index
    %c0_43 = arith.constant 0 : index
    %92 = vector.load %arg6[%c0_42, %c0_43] : memref<1x32xf32, #tpu.memory_space<vmem>>, vector<1x32xf32>
    %93 = vector.broadcast %92 : vector<1x32xf32> to vector<64x32xf32>
    %94 = arith.addf %91, %93 : vector<64x32xf32>
    %cst_44 = arith.constant 0.000000e+00 : f32
    %95 = vector.broadcast %cst_44 : f32 to vector<64x32xf32>
    %96 = arith.maximumf %94, %95 : vector<64x32xf32>
    %97 = vector.shape_cast %96 : vector<64x32xf32> to vector<8x8x32xf32>
    %c0_45 = arith.constant 0 : index
    %c0_46 = arith.constant 0 : index
    %c0_47 = arith.constant 0 : index
    %c0_48 = arith.constant 0 : index
    %98 = vector.load %arg7[%c0_45, %c0_46, %c0_47, %c0_48] : memref<1x8x8x32xf32, #tpu.memory_space<vmem>>, vector<1x8x8x32xf32>
    %99 = vector.shape_cast %98 : vector<1x8x8x32xf32> to vector<8x8x32xf32>
    %100 = vector.shape_cast %97 : vector<8x8x32xf32> to vector<1x8x8x32xf32>
    tpu.vector_store %arg7[%c0_45, %c0_46, %c0_47, %c0_48], %100 {strides = array<i32>} : memref<1x8x8x32xf32, #tpu.memory_space<vmem>>, vector<1x8x8x32xf32>,
    return
  }
  func.func @transform_0(%arg0: i32) -> (i32, i32, i32, i32) {
    %c0_i32 = arith.constant 0 : i32
    %c0_i32_0 = arith.constant 0 : i32
    %c0_i32_1 = arith.constant 0 : i32
    %c0_i32_2 = arith.constant 0 : i32
    return %arg0, %c0_i32, %c0_i32_0, %c0_i32_1 : i32, i32, i32, i32
  }
  func.func @transform_1(%arg0: i32) -> (i32, i32, i32, i32) {
    %c0_i32 = arith.constant 0 : i32
    %c0_i32_0 = arith.constant 0 : i32
    %c0_i32_1 = arith.constant 0 : i32
    %c0_i32_2 = arith.constant 0 : i32
    return %arg0, %c0_i32, %c0_i32_0, %c0_i32_1 : i32, i32, i32, i32
  }
  func.func @transform_2(%arg0: i32) -> (i32, i32) {
    %c0_i32 = arith.constant 0 : i32
    %c0_i32_0 = arith.constant 0 : i32
    %c0_i32_1 = arith.constant 0 : i32
    return %c0_i32, %c0_i32_0 : i32, i32
  }
  func.func @transform_3(%arg0: i32) -> (i32, i32) {
    %c0_i32 = arith.constant 0 : i32
    %c0_i32_0 = arith.constant 0 : i32
    %c0_i32_1 = arith.constant 0 : i32
    return %c0_i32, %c0_i32_0 : i32, i32
  }
  func.func @transform_4(%arg0: i32) -> (i32, i32) {
    %c0_i32 = arith.constant 0 : i32
    %c0_i32_0 = arith.constant 0 : i32
    %c0_i32_1 = arith.constant 0 : i32
    return %c0_i32, %c0_i32_0 : i32, i32
  }
  func.func @transform_5(%arg0: i32) -> (i32, i32) {
    %c0_i32 = arith.constant 0 : i32
    %c0_i32_0 = arith.constant 0 : i32
    %c0_i32_1 = arith.constant 0 : i32
    return %c0_i32, %c0_i32_0 : i32, i32
  }
  func.func @transform_6(%arg0: i32) -> (i32, i32, i32, i32) {
    %c0_i32 = arith.constant 0 : i32
    %c0_i32_0 = arith.constant 0 : i32
    %c0_i32_1 = arith.constant 0 : i32
    %c0_i32_2 = arith.constant 0 : i32
    return %arg0, %c0_i32, %c0_i32_0, %c0_i32_1 : i32, i32, i32, i32
  }
}

module attributes {stable_mosaic.version = 11 : i64} {
  func.func @_gated_resnet_kernel(%arg0: i32, %arg1: memref<1x8x8x32xf32, #tpu.memory_space<vmem>>, %arg2: memref<1x8x8x32xf32, #tpu.memory_space<vmem>>, %arg3: memref<1x8x8x32xf32, #tpu.memory_space<vmem>>, %arg4: memref<384x32xbf16, #tpu.memory_space<vmem>>, %arg5: memref<64x32xbf16, #tpu.memory_space<vmem>>, %arg6: memref<1x32xf32, #tpu.memory_space<vmem>>, %arg7: memref<384x32xbf16, #tpu.memory_space<vmem>>, %arg8: memref<384x32xbf16, #tpu.memory_space<vmem>>, %arg9: memref<1x32xf32, #tpu.memory_space<vmem>>, %arg10: memref<1x32xf32, #tpu.memory_space<vmem>>, %arg11: memref<1x8x8x32xf32, #tpu.memory_space<vmem>>) attributes {dimension_semantics = [#tpu.dimension_semantics<parallel>], iteration_bounds = array<i64: 2>, scalar_prefetch = 0 : i64, scratch_operands = 0 : i64, tpu.core_type = #tpu.core_type<tc>, window_params = [{transform_indices = @transform_0, window_bounds = array<i64: 1, 8, 8, 32>}, {transform_indices = @transform_1, window_bounds = array<i64: 1, 8, 8, 32>}, {transform_indices = @transform_2, window_bounds = array<i64: 1, 8, 8, 32>}, {pipeline_mode = #tpu.pipeline_mode<synchronous>, transform_indices = @transform_3, window_bounds = array<i64: 384, 32>}, {pipeline_mode = #tpu.pipeline_mode<synchronous>, transform_indices = @transform_4, window_bounds = array<i64: 64, 32>}, {pipeline_mode = #tpu.pipeline_mode<synchronous>, transform_indices = @transform_5, window_bounds = array<i64: 1, 32>}, {pipeline_mode = #tpu.pipeline_mode<synchronous>, transform_indices = @transform_6, window_bounds = array<i64: 384, 32>}, {pipeline_mode = #tpu.pipeline_mode<synchronous>, transform_indices = @transform_7, window_bounds = array<i64: 384, 32>}, {pipeline_mode = #tpu.pipeline_mode<synchronous>, transform_indices = @transform_8, window_bounds = array<i64: 1, 32>}, {pipeline_mode = #tpu.pipeline_mode<synchronous>, transform_indices = @transform_9, window_bounds = array<i64: 1, 32>}, {transform_indices = @transform_10, window_bounds = array<i64: 1, 8, 8, 32>}]} {
    %c0 = arith.constant 0 : index
    %c0_0 = arith.constant 0 : index
    %c0_1 = arith.constant 0 : index
    %c0_2 = arith.constant 0 : index
    %0 = vector.load %arg1[%c0, %c0_0, %c0_1, %c0_2] : memref<1x8x8x32xf32, #tpu.memory_space<vmem>>, vector<1x8x8x32xf32>
    %1 = vector.shape_cast %0 : vector<1x8x8x32xf32> to vector<8x8x32xf32>
    %2 = math.absf %1 : vector<8x8x32xf32>
    %cst = arith.constant 0.000000e+00 : f32
    %3 = vector.broadcast %cst : f32 to vector<8x8x32xf32>
    %4 = arith.subf %3, %2 : vector<8x8x32xf32>
    %5 = math.exp %4 : vector<8x8x32xf32>
    %cst_3 = arith.constant 1.000000e+00 : f32
    %6 = vector.broadcast %cst_3 : f32 to vector<8x8x32xf32>
    %7 = arith.subf %5, %6 : vector<8x8x32xf32>
    %cst_4 = arith.constant 0.000000e+00 : f32
    %8 = vector.broadcast %cst_4 : f32 to vector<8x8x32xf32>
    %9 = arith.cmpf ogt, %1, %8 : vector<8x8x32xf32>
    %10 = arith.select %9, %1, %7 : vector<8x8x32xi1>, vector<8x8x32xf32>
    %cst_5 = arith.constant 0.000000e+00 : f32
    %11 = vector.broadcast %cst_5 : f32 to vector<8x8x32xf32>
    %12 = arith.subf %11, %1 : vector<8x8x32xf32>
    %13 = arith.select %9, %7, %12 : vector<8x8x32xi1>, vector<8x8x32xf32>
    %14 = tpu.concatenate %10, %13 in 2 : vector<8x8x32xf32>, vector<8x8x32xf32> -> vector<8x8x64xf32>
    %cst_6 = arith.constant 0.000000e+00 : f32
    %15 = vector.broadcast %cst_6 : f32 to vector<1x8x64xf32>
    %16 = vector.extract_strided_slice %14 {offsets = [0, 0, 0], sizes = [7, 8, 64], strides = [1, 1, 1]} : vector<8x8x64xf32> to vector<7x8x64xf32>
    %17 = tpu.concatenate %15, %16 in 0 : vector<1x8x64xf32>, vector<7x8x64xf32> -> vector<8x8x64xf32>
    %cst_7 = arith.constant 0.000000e+00 : f32
    %18 = vector.broadcast %cst_7 : f32 to vector<8x1x64xf32>
    %19 = vector.extract_strided_slice %17 {offsets = [0, 0, 0], sizes = [8, 7, 64], strides = [1, 1, 1]} : vector<8x8x64xf32> to vector<8x7x64xf32>
    %20 = tpu.concatenate %18, %19 in 1 : vector<8x1x64xf32>, vector<8x7x64xf32> -> vector<8x8x64xf32>
    %21 = vector.shape_cast %20 : vector<8x8x64xf32> to vector<64x64xf32>
    %22 = arith.truncf %21 : vector<64x64xf32> to vector<64x64xbf16>
    %c0_8 = arith.constant 0 : index
    %c0_9 = arith.constant 0 : index
    %23 = vector.load %arg4[%c0_8, %c0_9] : memref<384x32xbf16, #tpu.memory_space<vmem>>, vector<64x32xbf16>
    %cst_10 = arith.constant dense<0.000000e+00> : vector<64x32xf32>
    %24 = tpu.matmul %22, %23, %cst_10 {dimension_numbers = #tpu.dot_dimension_numbers<[1], [0], [0], [1], [0, 0, 1, 1], [], []>} : vector<64x64xbf16>, vector<64x32xbf16>, vector<64x32xf32> -> vector<64x32xf32>
    %cst_11 = arith.constant 0.000000e+00 : f32
    %25 = vector.broadcast %cst_11 : f32 to vector<1x8x64xf32>
    %26 = vector.extract_strided_slice %14 {offsets = [0, 0, 0], sizes = [7, 8, 64], strides = [1, 1, 1]} : vector<8x8x64xf32> to vector<7x8x64xf32>
    %27 = tpu.concatenate %25, %26 in 0 : vector<1x8x64xf32>, vector<7x8x64xf32> -> vector<8x8x64xf32>
    %28 = vector.shape_cast %27 : vector<8x8x64xf32> to vector<64x64xf32>
    %29 = arith.truncf %28 : vector<64x64xf32> to vector<64x64xbf16>
    %c64 = arith.constant 64 : index
    %c0_12 = arith.constant 0 : index
    %30 = vector.load %arg4[%c64, %c0_12] : memref<384x32xbf16, #tpu.memory_space<vmem>>, vector<64x32xbf16>
    %cst_13 = arith.constant dense<0.000000e+00> : vector<64x32xf32>
    %31 = tpu.matmul %29, %30, %cst_13 {dimension_numbers = #tpu.dot_dimension_numbers<[1], [0], [0], [1], [0, 0, 1, 1], [], []>} : vector<64x64xbf16>, vector<64x32xbf16>, vector<64x32xf32> -> vector<64x32xf32>
    %32 = arith.addf %24, %31 : vector<64x32xf32>
    %cst_14 = arith.constant 0.000000e+00 : f32
    %33 = vector.broadcast %cst_14 : f32 to vector<1x8x64xf32>
    %34 = vector.extract_strided_slice %14 {offsets = [0, 0, 0], sizes = [7, 8, 64], strides = [1, 1, 1]} : vector<8x8x64xf32> to vector<7x8x64xf32>
    %35 = tpu.concatenate %33, %34 in 0 : vector<1x8x64xf32>, vector<7x8x64xf32> -> vector<8x8x64xf32>
    %36 = vector.extract_strided_slice %35 {offsets = [0, 1, 0], sizes = [8, 7, 64], strides = [1, 1, 1]} : vector<8x8x64xf32> to vector<8x7x64xf32>
    %cst_15 = arith.constant 0.000000e+00 : f32
    %37 = vector.broadcast %cst_15 : f32 to vector<8x1x64xf32>
    %38 = tpu.concatenate %36, %37 in 1 : vector<8x7x64xf32>, vector<8x1x64xf32> -> vector<8x8x64xf32>
    %39 = vector.shape_cast %38 : vector<8x8x64xf32> to vector<64x64xf32>
    %40 = arith.truncf %39 : vector<64x64xf32> to vector<64x64xbf16>
    %c128 = arith.constant 128 : index
    %c0_16 = arith.constant 0 : index
    %41 = vector.load %arg4[%c128, %c0_16] : memref<384x32xbf16, #tpu.memory_space<vmem>>, vector<64x32xbf16>
    %cst_17 = arith.constant dense<0.000000e+00> : vector<64x32xf32>
    %42 = tpu.matmul %40, %41, %cst_17 {dimension_numbers = #tpu.dot_dimension_numbers<[1], [0], [0], [1], [0, 0, 1, 1], [], []>} : vector<64x64xbf16>, vector<64x32xbf16>, vector<64x32xf32> -> vector<64x32xf32>
    %43 = arith.addf %32, %42 : vector<64x32xf32>
    %cst_18 = arith.constant 0.000000e+00 : f32
    %44 = vector.broadcast %cst_18 : f32 to vector<8x1x64xf32>
    %45 = vector.extract_strided_slice %14 {offsets = [0, 0, 0], sizes = [8, 7, 64], strides = [1, 1, 1]} : vector<8x8x64xf32> to vector<8x7x64xf32>
    %46 = tpu.concatenate %44, %45 in 1 : vector<8x1x64xf32>, vector<8x7x64xf32> -> vector<8x8x64xf32>
    %47 = vector.shape_cast %46 : vector<8x8x64xf32> to vector<64x64xf32>
    %48 = arith.truncf %47 : vector<64x64xf32> to vector<64x64xbf16>
    %c192 = arith.constant 192 : index
    %c0_19 = arith.constant 0 : index
    %49 = vector.load %arg4[%c192, %c0_19] : memref<384x32xbf16, #tpu.memory_space<vmem>>, vector<64x32xbf16>
    %cst_20 = arith.constant dense<0.000000e+00> : vector<64x32xf32>
    %50 = tpu.matmul %48, %49, %cst_20 {dimension_numbers = #tpu.dot_dimension_numbers<[1], [0], [0], [1], [0, 0, 1, 1], [], []>} : vector<64x64xbf16>, vector<64x32xbf16>, vector<64x32xf32> -> vector<64x32xf32>
    %51 = arith.addf %43, %50 : vector<64x32xf32>
    %52 = vector.shape_cast %14 : vector<8x8x64xf32> to vector<64x64xf32>
    %53 = arith.truncf %52 : vector<64x64xf32> to vector<64x64xbf16>
    %c256 = arith.constant 256 : index
    %c0_21 = arith.constant 0 : index
    %54 = vector.load %arg4[%c256, %c0_21] : memref<384x32xbf16, #tpu.memory_space<vmem>>, vector<64x32xbf16>
    %cst_22 = arith.constant dense<0.000000e+00> : vector<64x32xf32>
    %55 = tpu.matmul %53, %54, %cst_22 {dimension_numbers = #tpu.dot_dimension_numbers<[1], [0], [0], [1], [0, 0, 1, 1], [], []>} : vector<64x64xbf16>, vector<64x32xbf16>, vector<64x32xf32> -> vector<64x32xf32>
    %56 = arith.addf %51, %55 : vector<64x32xf32>
    %57 = vector.extract_strided_slice %14 {offsets = [0, 1, 0], sizes = [8, 7, 64], strides = [1, 1, 1]} : vector<8x8x64xf32> to vector<8x7x64xf32>
    %cst_23 = arith.constant 0.000000e+00 : f32
    %58 = vector.broadcast %cst_23 : f32 to vector<8x1x64xf32>
    %59 = tpu.concatenate %57, %58 in 1 : vector<8x7x64xf32>, vector<8x1x64xf32> -> vector<8x8x64xf32>
    %60 = vector.shape_cast %59 : vector<8x8x64xf32> to vector<64x64xf32>
    %61 = arith.truncf %60 : vector<64x64xf32> to vector<64x64xbf16>
    %c320 = arith.constant 320 : index
    %c0_24 = arith.constant 0 : index
    %62 = vector.load %arg4[%c320, %c0_24] : memref<384x32xbf16, #tpu.memory_space<vmem>>, vector<64x32xbf16>
    %cst_25 = arith.constant dense<0.000000e+00> : vector<64x32xf32>
    %63 = tpu.matmul %61, %62, %cst_25 {dimension_numbers = #tpu.dot_dimension_numbers<[1], [0], [0], [1], [0, 0, 1, 1], [], []>} : vector<64x64xbf16>, vector<64x32xbf16>, vector<64x32xf32> -> vector<64x32xf32>
    %64 = arith.addf %56, %63 : vector<64x32xf32>
    %c0_26 = arith.constant 0 : index
    %c0_27 = arith.constant 0 : index
    %c0_28 = arith.constant 0 : index
    %c0_29 = arith.constant 0 : index
    %65 = vector.load %arg2[%c0_26, %c0_27, %c0_28, %c0_29] : memref<1x8x8x32xf32, #tpu.memory_space<vmem>>, vector<1x8x8x32xf32>
    %66 = vector.shape_cast %65 : vector<1x8x8x32xf32> to vector<8x8x32xf32>
    %67 = math.absf %66 : vector<8x8x32xf32>
    %cst_30 = arith.constant 0.000000e+00 : f32
    %68 = vector.broadcast %cst_30 : f32 to vector<8x8x32xf32>
    %69 = arith.subf %68, %67 : vector<8x8x32xf32>
    %70 = math.exp %69 : vector<8x8x32xf32>
    %cst_31 = arith.constant 1.000000e+00 : f32
    %71 = vector.broadcast %cst_31 : f32 to vector<8x8x32xf32>
    %72 = arith.subf %70, %71 : vector<8x8x32xf32>
    %cst_32 = arith.constant 0.000000e+00 : f32
    %73 = vector.broadcast %cst_32 : f32 to vector<8x8x32xf32>
    %74 = arith.cmpf ogt, %66, %73 : vector<8x8x32xf32>
    %75 = arith.select %74, %66, %72 : vector<8x8x32xi1>, vector<8x8x32xf32>
    %cst_33 = arith.constant 0.000000e+00 : f32
    %76 = vector.broadcast %cst_33 : f32 to vector<8x8x32xf32>
    %77 = arith.subf %76, %66 : vector<8x8x32xf32>
    %78 = arith.select %74, %72, %77 : vector<8x8x32xi1>, vector<8x8x32xf32>
    %79 = tpu.concatenate %75, %78 in 2 : vector<8x8x32xf32>, vector<8x8x32xf32> -> vector<8x8x64xf32>
    %80 = vector.shape_cast %79 : vector<8x8x64xf32> to vector<64x64xf32>
    %81 = arith.truncf %80 : vector<64x64xf32> to vector<64x64xbf16>
    %c0_34 = arith.constant 0 : index
    %c0_35 = arith.constant 0 : index
    %82 = vector.load %arg5[%c0_34, %c0_35] : memref<64x32xbf16, #tpu.memory_space<vmem>>, vector<64x32xbf16>
    %cst_36 = arith.constant dense<0.000000e+00> : vector<64x32xf32>
    %83 = tpu.matmul %81, %82, %cst_36 {dimension_numbers = #tpu.dot_dimension_numbers<[1], [0], [0], [1], [0, 0, 1, 1], [], []>} : vector<64x64xbf16>, vector<64x32xbf16>, vector<64x32xf32> -> vector<64x32xf32>
    %84 = arith.addf %64, %83 : vector<64x32xf32>
    %c0_37 = arith.constant 0 : index
    %c0_38 = arith.constant 0 : index
    %85 = vector.load %arg6[%c0_37, %c0_38] : memref<1x32xf32, #tpu.memory_space<vmem>>, vector<1x32xf32>
    %86 = vector.broadcast %85 : vector<1x32xf32> to vector<64x32xf32>
    %87 = arith.addf %84, %86 : vector<64x32xf32>
    %c0_39 = arith.constant 0 : index
    %c0_40 = arith.constant 0 : index
    %c0_41 = arith.constant 0 : index
    %c0_42 = arith.constant 0 : index
    %88 = vector.load %arg3[%c0_39, %c0_40, %c0_41, %c0_42] : memref<1x8x8x32xf32, #tpu.memory_space<vmem>>, vector<1x8x8x32xf32>
    %89 = vector.shape_cast %88 : vector<1x8x8x32xf32> to vector<8x8x32xf32>
    %90 = vector.shape_cast %89 : vector<8x8x32xf32> to vector<64x32xf32>
    %91 = arith.addf %87, %90 : vector<64x32xf32>
    %92 = vector.shape_cast %91 : vector<64x32xf32> to vector<8x8x32xf32>
    %93 = math.absf %92 : vector<8x8x32xf32>
    %cst_43 = arith.constant 0.000000e+00 : f32
    %94 = vector.broadcast %cst_43 : f32 to vector<8x8x32xf32>
    %95 = arith.subf %94, %93 : vector<8x8x32xf32>
    %96 = math.exp %95 : vector<8x8x32xf32>
    %cst_44 = arith.constant 1.000000e+00 : f32
    %97 = vector.broadcast %cst_44 : f32 to vector<8x8x32xf32>
    %98 = arith.subf %96, %97 : vector<8x8x32xf32>
    %cst_45 = arith.constant 0.000000e+00 : f32
    %99 = vector.broadcast %cst_45 : f32 to vector<8x8x32xf32>
    %100 = arith.cmpf ogt, %92, %99 : vector<8x8x32xf32>
    %101 = arith.select %100, %92, %98 : vector<8x8x32xi1>, vector<8x8x32xf32>
    %cst_46 = arith.constant 0.000000e+00 : f32
    %102 = vector.broadcast %cst_46 : f32 to vector<8x8x32xf32>
    %103 = arith.subf %102, %92 : vector<8x8x32xf32>
    %104 = arith.select %100, %98, %103 : vector<8x8x32xi1>, vector<8x8x32xf32>
    %105 = tpu.concatenate %101, %104 in 2 : vector<8x8x32xf32>, vector<8x8x32xf32> -> vector<8x8x64xf32>
    %cst_47 = arith.constant 0.000000e+00 : f32
    %106 = vector.broadcast %cst_47 : f32 to vector<1x8x64xf32>
    %107 = vector.extract_strided_slice %105 {offsets = [0, 0, 0], sizes = [7, 8, 64], strides = [1, 1, 1]} : vector<8x8x64xf32> to vector<7x8x64xf32>
    %108 = tpu.concatenate %106, %107 in 0 : vector<1x8x64xf32>, vector<7x8x64xf32> -> vector<8x8x64xf32>
    %cst_48 = arith.constant 0.000000e+00 : f32
    %109 = vector.broadcast %cst_48 : f32 to vector<8x1x64xf32>
    %110 = vector.extract_strided_slice %108 {offsets = [0, 0, 0], sizes = [8, 7, 64], strides = [1, 1, 1]} : vector<8x8x64xf32> to vector<8x7x64xf32>
    %111 = tpu.concatenate %109, %110 in 1 : vector<8x1x64xf32>, vector<8x7x64xf32> -> vector<8x8x64xf32>
    %112 = vector.shape_cast %111 : vector<8x8x64xf32> to vector<64x64xf32>
    %113 = arith.truncf %112 : vector<64x64xf32> to vector<64x64xbf16>
    %c0_49 = arith.constant 0 : index
    %c0_50 = arith.constant 0 : index
    %114 = vector.load %arg7[%c0_49, %c0_50] : memref<384x32xbf16, #tpu.memory_space<vmem>>, vector<64x32xbf16>
    %cst_51 = arith.constant dense<0.000000e+00> : vector<64x32xf32>
    %115 = tpu.matmul %113, %114, %cst_51 {dimension_numbers = #tpu.dot_dimension_numbers<[1], [0], [0], [1], [0, 0, 1, 1], [], []>} : vector<64x64xbf16>, vector<64x32xbf16>, vector<64x32xf32> -> vector<64x32xf32>
    %c0_52 = arith.constant 0 : index
    %c0_53 = arith.constant 0 : index
    %116 = vector.load %arg8[%c0_52, %c0_53] : memref<384x32xbf16, #tpu.memory_space<vmem>>, vector<64x32xbf16>
    %cst_54 = arith.constant dense<0.000000e+00> : vector<64x32xf32>
    %117 = tpu.matmul %113, %116, %cst_54 {dimension_numbers = #tpu.dot_dimension_numbers<[1], [0], [0], [1], [0, 0, 1, 1], [], []>} : vector<64x64xbf16>, vector<64x32xbf16>, vector<64x32xf32> -> vector<64x32xf32>
    %cst_55 = arith.constant 0.000000e+00 : f32
    %118 = vector.broadcast %cst_55 : f32 to vector<1x8x64xf32>
    %119 = vector.extract_strided_slice %105 {offsets = [0, 0, 0], sizes = [7, 8, 64], strides = [1, 1, 1]} : vector<8x8x64xf32> to vector<7x8x64xf32>
    %120 = tpu.concatenate %118, %119 in 0 : vector<1x8x64xf32>, vector<7x8x64xf32> -> vector<8x8x64xf32>
    %121 = vector.shape_cast %120 : vector<8x8x64xf32> to vector<64x64xf32>
    %122 = arith.truncf %121 : vector<64x64xf32> to vector<64x64xbf16>
    %c64_56 = arith.constant 64 : index
    %c0_57 = arith.constant 0 : index
    %123 = vector.load %arg7[%c64_56, %c0_57] : memref<384x32xbf16, #tpu.memory_space<vmem>>, vector<64x32xbf16>
    %cst_58 = arith.constant dense<0.000000e+00> : vector<64x32xf32>
    %124 = tpu.matmul %122, %123, %cst_58 {dimension_numbers = #tpu.dot_dimension_numbers<[1], [0], [0], [1], [0, 0, 1, 1], [], []>} : vector<64x64xbf16>, vector<64x32xbf16>, vector<64x32xf32> -> vector<64x32xf32>
    %125 = arith.addf %115, %124 : vector<64x32xf32>
    %c64_59 = arith.constant 64 : index
    %c0_60 = arith.constant 0 : index
    %126 = vector.load %arg8[%c64_59, %c0_60] : memref<384x32xbf16, #tpu.memory_space<vmem>>, vector<64x32xbf16>
    %cst_61 = arith.constant dense<0.000000e+00> : vector<64x32xf32>
    %127 = tpu.matmul %122, %126, %cst_61 {dimension_numbers = #tpu.dot_dimension_numbers<[1], [0], [0], [1], [0, 0, 1, 1], [], []>} : vector<64x64xbf16>, vector<64x32xbf16>, vector<64x32xf32> -> vector<64x32xf32>
    %128 = arith.addf %117, %127 : vector<64x32xf32>
    %cst_62 = arith.constant 0.000000e+00 : f32
    %129 = vector.broadcast %cst_62 : f32 to vector<1x8x64xf32>
    %130 = vector.extract_strided_slice %105 {offsets = [0, 0, 0], sizes = [7, 8, 64], strides = [1, 1, 1]} : vector<8x8x64xf32> to vector<7x8x64xf32>
    %131 = tpu.concatenate %129, %130 in 0 : vector<1x8x64xf32>, vector<7x8x64xf32> -> vector<8x8x64xf32>
    %132 = vector.extract_strided_slice %131 {offsets = [0, 1, 0], sizes = [8, 7, 64], strides = [1, 1, 1]} : vector<8x8x64xf32> to vector<8x7x64xf32>
    %cst_63 = arith.constant 0.000000e+00 : f32
    %133 = vector.broadcast %cst_63 : f32 to vector<8x1x64xf32>
    %134 = tpu.concatenate %132, %133 in 1 : vector<8x7x64xf32>, vector<8x1x64xf32> -> vector<8x8x64xf32>
    %135 = vector.shape_cast %134 : vector<8x8x64xf32> to vector<64x64xf32>
    %136 = arith.truncf %135 : vector<64x64xf32> to vector<64x64xbf16>
    %c128_64 = arith.constant 128 : index
    %c0_65 = arith.constant 0 : index
    %137 = vector.load %arg7[%c128_64, %c0_65] : memref<384x32xbf16, #tpu.memory_space<vmem>>, vector<64x32xbf16>
    %cst_66 = arith.constant dense<0.000000e+00> : vector<64x32xf32>
    %138 = tpu.matmul %136, %137, %cst_66 {dimension_numbers = #tpu.dot_dimension_numbers<[1], [0], [0], [1], [0, 0, 1, 1], [], []>} : vector<64x64xbf16>, vector<64x32xbf16>, vector<64x32xf32> -> vector<64x32xf32>
    %139 = arith.addf %125, %138 : vector<64x32xf32>
    %c128_67 = arith.constant 128 : index
    %c0_68 = arith.constant 0 : index
    %140 = vector.load %arg8[%c128_67, %c0_68] : memref<384x32xbf16, #tpu.memory_space<vmem>>, vector<64x32xbf16>
    %cst_69 = arith.constant dense<0.000000e+00> : vector<64x32xf32>
    %141 = tpu.matmul %136, %140, %cst_69 {dimension_numbers = #tpu.dot_dimension_numbers<[1], [0], [0], [1], [0, 0, 1, 1], [], []>} : vector<64x64xbf16>, vector<64x32xbf16>, vector<64x32xf32> -> vector<64x32xf32>
    %142 = arith.addf %128, %141 : vector<64x32xf32>
    %cst_70 = arith.constant 0.000000e+00 : f32
    %143 = vector.broadcast %cst_70 : f32 to vector<8x1x64xf32>
    %144 = vector.extract_strided_slice %105 {offsets = [0, 0, 0], sizes = [8, 7, 64], strides = [1, 1, 1]} : vector<8x8x64xf32> to vector<8x7x64xf32>
    %145 = tpu.concatenate %143, %144 in 1 : vector<8x1x64xf32>, vector<8x7x64xf32> -> vector<8x8x64xf32>
    %146 = vector.shape_cast %145 : vector<8x8x64xf32> to vector<64x64xf32>
    %147 = arith.truncf %146 : vector<64x64xf32> to vector<64x64xbf16>
    %c192_71 = arith.constant 192 : index
    %c0_72 = arith.constant 0 : index
    %148 = vector.load %arg7[%c192_71, %c0_72] : memref<384x32xbf16, #tpu.memory_space<vmem>>, vector<64x32xbf16>
    %cst_73 = arith.constant dense<0.000000e+00> : vector<64x32xf32>
    %149 = tpu.matmul %147, %148, %cst_73 {dimension_numbers = #tpu.dot_dimension_numbers<[1], [0], [0], [1], [0, 0, 1, 1], [], []>} : vector<64x64xbf16>, vector<64x32xbf16>, vector<64x32xf32> -> vector<64x32xf32>
    %150 = arith.addf %139, %149 : vector<64x32xf32>
    %c192_74 = arith.constant 192 : index
    %c0_75 = arith.constant 0 : index
    %151 = vector.load %arg8[%c192_74, %c0_75] : memref<384x32xbf16, #tpu.memory_space<vmem>>, vector<64x32xbf16>
    %cst_76 = arith.constant dense<0.000000e+00> : vector<64x32xf32>
    %152 = tpu.matmul %147, %151, %cst_76 {dimension_numbers = #tpu.dot_dimension_numbers<[1], [0], [0], [1], [0, 0, 1, 1], [], []>} : vector<64x64xbf16>, vector<64x32xbf16>, vector<64x32xf32> -> vector<64x32xf32>
    %153 = arith.addf %142, %152 : vector<64x32xf32>
    %154 = vector.shape_cast %105 : vector<8x8x64xf32> to vector<64x64xf32>
    %155 = arith.truncf %154 : vector<64x64xf32> to vector<64x64xbf16>
    %c256_77 = arith.constant 256 : index
    %c0_78 = arith.constant 0 : index
    %156 = vector.load %arg7[%c256_77, %c0_78] : memref<384x32xbf16, #tpu.memory_space<vmem>>, vector<64x32xbf16>
    %cst_79 = arith.constant dense<0.000000e+00> : vector<64x32xf32>
    %157 = tpu.matmul %155, %156, %cst_79 {dimension_numbers = #tpu.dot_dimension_numbers<[1], [0], [0], [1], [0, 0, 1, 1], [], []>} : vector<64x64xbf16>, vector<64x32xbf16>, vector<64x32xf32> -> vector<64x32xf32>
    %158 = arith.addf %150, %157 : vector<64x32xf32>
    %c256_80 = arith.constant 256 : index
    %c0_81 = arith.constant 0 : index
    %159 = vector.load %arg8[%c256_80, %c0_81] : memref<384x32xbf16, #tpu.memory_space<vmem>>, vector<64x32xbf16>
    %cst_82 = arith.constant dense<0.000000e+00> : vector<64x32xf32>
    %160 = tpu.matmul %155, %159, %cst_82 {dimension_numbers = #tpu.dot_dimension_numbers<[1], [0], [0], [1], [0, 0, 1, 1], [], []>} : vector<64x64xbf16>, vector<64x32xbf16>, vector<64x32xf32> -> vector<64x32xf32>
    %161 = arith.addf %153, %160 : vector<64x32xf32>
    %162 = vector.extract_strided_slice %105 {offsets = [0, 1, 0], sizes = [8, 7, 64], strides = [1, 1, 1]} : vector<8x8x64xf32> to vector<8x7x64xf32>
    %cst_83 = arith.constant 0.000000e+00 : f32
    %163 = vector.broadcast %cst_83 : f32 to vector<8x1x64xf32>
    %164 = tpu.concatenate %162, %163 in 1 : vector<8x7x64xf32>, vector<8x1x64xf32> -> vector<8x8x64xf32>
    %165 = vector.shape_cast %164 : vector<8x8x64xf32> to vector<64x64xf32>
    %166 = arith.truncf %165 : vector<64x64xf32> to vector<64x64xbf16>
    %c320_84 = arith.constant 320 : index
    %c0_85 = arith.constant 0 : index
    %167 = vector.load %arg7[%c320_84, %c0_85] : memref<384x32xbf16, #tpu.memory_space<vmem>>, vector<64x32xbf16>
    %cst_86 = arith.constant dense<0.000000e+00> : vector<64x32xf32>
    %168 = tpu.matmul %166, %167, %cst_86 {dimension_numbers = #tpu.dot_dimension_numbers<[1], [0], [0], [1], [0, 0, 1, 1], [], []>} : vector<64x64xbf16>, vector<64x32xbf16>, vector<64x32xf32> -> vector<64x32xf32>
    %169 = arith.addf %158, %168 : vector<64x32xf32>
    %c320_87 = arith.constant 320 : index
    %c0_88 = arith.constant 0 : index
    %170 = vector.load %arg8[%c320_87, %c0_88] : memref<384x32xbf16, #tpu.memory_space<vmem>>, vector<64x32xbf16>
    %cst_89 = arith.constant dense<0.000000e+00> : vector<64x32xf32>
    %171 = tpu.matmul %166, %170, %cst_89 {dimension_numbers = #tpu.dot_dimension_numbers<[1], [0], [0], [1], [0, 0, 1, 1], [], []>} : vector<64x64xbf16>, vector<64x32xbf16>, vector<64x32xf32> -> vector<64x32xf32>
    %172 = arith.addf %161, %171 : vector<64x32xf32>
    %c0_90 = arith.constant 0 : index
    %c0_91 = arith.constant 0 : index
    %173 = vector.load %arg9[%c0_90, %c0_91] : memref<1x32xf32, #tpu.memory_space<vmem>>, vector<1x32xf32>
    %174 = vector.broadcast %173 : vector<1x32xf32> to vector<64x32xf32>
    %175 = arith.addf %169, %174 : vector<64x32xf32>
    %c0_92 = arith.constant 0 : index
    %c0_93 = arith.constant 0 : index
    %176 = vector.load %arg10[%c0_92, %c0_93] : memref<1x32xf32, #tpu.memory_space<vmem>>, vector<1x32xf32>
    %177 = vector.broadcast %176 : vector<1x32xf32> to vector<64x32xf32>
    %178 = arith.addf %172, %177 : vector<64x32xf32>
    %179 = vector.shape_cast %1 : vector<8x8x32xf32> to vector<64x32xf32>
    %180 = arith.negf %178 : vector<64x32xf32>
    %181 = math.exp %180 : vector<64x32xf32>
    %cst_94 = arith.constant 1.000000e+00 : f32
    %182 = vector.broadcast %cst_94 : f32 to vector<64x32xf32>
    %183 = arith.addf %182, %181 : vector<64x32xf32>
    %184 = arith.divf %182, %183 : vector<64x32xf32>
    %185 = arith.mulf %175, %184 : vector<64x32xf32>
    %186 = arith.addf %179, %185 : vector<64x32xf32>
    %187 = vector.shape_cast %186 : vector<64x32xf32> to vector<8x8x32xf32>
    %c0_95 = arith.constant 0 : index
    %c0_96 = arith.constant 0 : index
    %c0_97 = arith.constant 0 : index
    %c0_98 = arith.constant 0 : index
    %188 = vector.load %arg11[%c0_95, %c0_96, %c0_97, %c0_98] : memref<1x8x8x32xf32, #tpu.memory_space<vmem>>, vector<1x8x8x32xf32>
    %189 = vector.shape_cast %188 : vector<1x8x8x32xf32> to vector<8x8x32xf32>
    %190 = vector.shape_cast %187 : vector<8x8x32xf32> to vector<1x8x8x32xf32>
    tpu.vector_store %arg11[%c0_95, %c0_96, %c0_97, %c0_98], %190 {strides = array<i32>} : memref<1x8x8x32xf32, #tpu.memory_space<vmem>>, vector<1x8x8x32xf32>,
    return
  }
  func.func @transform_0(%arg0: i32) -> (i32, i32, i32, i32) {
    %c0_i32 = arith.constant 0 : i32
    %c0_i32_0 = arith.constant 0 : i32
    %c0_i32_1 = arith.constant 0 : i32
    %c0_i32_2 = arith.constant 0 : i32
    return %arg0, %c0_i32, %c0_i32_0, %c0_i32_1 : i32, i32, i32, i32
  }
  func.func @transform_1(%arg0: i32) -> (i32, i32, i32, i32) {
    %c0_i32 = arith.constant 0 : i32
    %c0_i32_0 = arith.constant 0 : i32
    %c0_i32_1 = arith.constant 0 : i32
    %c0_i32_2 = arith.constant 0 : i32
    return %arg0, %c0_i32, %c0_i32_0, %c0_i32_1 : i32, i32, i32, i32
  }
  func.func @transform_2(%arg0: i32) -> (i32, i32, i32, i32) {
    %c0_i32 = arith.constant 0 : i32
    %c0_i32_0 = arith.constant 0 : i32
    %c0_i32_1 = arith.constant 0 : i32
    %c0_i32_2 = arith.constant 0 : i32
    return %arg0, %c0_i32, %c0_i32_0, %c0_i32_1 : i32, i32, i32, i32
  }
  func.func @transform_3(%arg0: i32) -> (i32, i32) {
    %c0_i32 = arith.constant 0 : i32
    %c0_i32_0 = arith.constant 0 : i32
    %c0_i32_1 = arith.constant 0 : i32
    return %c0_i32, %c0_i32_0 : i32, i32
  }
  func.func @transform_4(%arg0: i32) -> (i32, i32) {
    %c0_i32 = arith.constant 0 : i32
    %c0_i32_0 = arith.constant 0 : i32
    %c0_i32_1 = arith.constant 0 : i32
    return %c0_i32, %c0_i32_0 : i32, i32
  }
  func.func @transform_5(%arg0: i32) -> (i32, i32) {
    %c0_i32 = arith.constant 0 : i32
    %c0_i32_0 = arith.constant 0 : i32
    %c0_i32_1 = arith.constant 0 : i32
    return %c0_i32, %c0_i32_0 : i32, i32
  }
  func.func @transform_6(%arg0: i32) -> (i32, i32) {
    %c0_i32 = arith.constant 0 : i32
    %c0_i32_0 = arith.constant 0 : i32
    %c0_i32_1 = arith.constant 0 : i32
    return %c0_i32, %c0_i32_0 : i32, i32
  }
  func.func @transform_7(%arg0: i32) -> (i32, i32) {
    %c0_i32 = arith.constant 0 : i32
    %c0_i32_0 = arith.constant 0 : i32
    %c0_i32_1 = arith.constant 0 : i32
    return %c0_i32, %c0_i32_0 : i32, i32
  }
  func.func @transform_8(%arg0: i32) -> (i32, i32) {
    %c0_i32 = arith.constant 0 : i32
    %c0_i32_0 = arith.constant 0 : i32
    %c0_i32_1 = arith.constant 0 : i32
    return %c0_i32, %c0_i32_0 : i32, i32
  }
  func.func @transform_9(%arg0: i32) -> (i32, i32) {
    %c0_i32 = arith.constant 0 : i32
    %c0_i32_0 = arith.constant 0 : i32
    %c0_i32_1 = arith.constant 0 : i32
    return %c0_i32, %c0_i32_0 : i32, i32
  }
  func.func @transform_10(%arg0: i32) -> (i32, i32, i32, i32) {
    %c0_i32 = arith.constant 0 : i32
    %c0_i32_0 = arith.constant 0 : i32
    %c0_i32_1 = arith.constant 0 : i32
    %c0_i32_2 = arith.constant 0 : i32
    return %arg0, %c0_i32, %c0_i32_0, %c0_i32_1 : i32, i32, i32, i32
  }
}

module attributes {stable_mosaic.version = 11 : i64} {
  func.func @_gated_resnet_kernel(%arg0: i32, %arg1: memref<1x8x8x32xf32, #tpu.memory_space<vmem>>, %arg2: memref<1x8x8x32xf32, #tpu.memory_space<vmem>>, %arg3: memref<1x8x8x32xf32, #tpu.memory_space<vmem>>, %arg4: memref<1x8x8x32xf32, #tpu.memory_space<vmem>>, %arg5: memref<256x32xbf16, #tpu.memory_space<vmem>>, %arg6: memref<64x32xbf16, #tpu.memory_space<vmem>>, %arg7: memref<64x32xbf16, #tpu.memory_space<vmem>>, %arg8: memref<1x32xf32, #tpu.memory_space<vmem>>, %arg9: memref<256x32xbf16, #tpu.memory_space<vmem>>, %arg10: memref<256x32xbf16, #tpu.memory_space<vmem>>, %arg11: memref<1x32xf32, #tpu.memory_space<vmem>>, %arg12: memref<1x32xf32, #tpu.memory_space<vmem>>, %arg13: memref<1x8x8x32xf32, #tpu.memory_space<vmem>>) attributes {dimension_semantics = [#tpu.dimension_semantics<parallel>], iteration_bounds = array<i64: 2>, scalar_prefetch = 0 : i64, scratch_operands = 0 : i64, tpu.core_type = #tpu.core_type<tc>, window_params = [{transform_indices = @transform_0, window_bounds = array<i64: 1, 8, 8, 32>}, {transform_indices = @transform_1, window_bounds = array<i64: 1, 8, 8, 32>}, {transform_indices = @transform_2, window_bounds = array<i64: 1, 8, 8, 32>}, {transform_indices = @transform_3, window_bounds = array<i64: 1, 8, 8, 32>}, {pipeline_mode = #tpu.pipeline_mode<synchronous>, transform_indices = @transform_4, window_bounds = array<i64: 256, 32>}, {pipeline_mode = #tpu.pipeline_mode<synchronous>, transform_indices = @transform_5, window_bounds = array<i64: 64, 32>}, {pipeline_mode = #tpu.pipeline_mode<synchronous>, transform_indices = @transform_6, window_bounds = array<i64: 64, 32>}, {pipeline_mode = #tpu.pipeline_mode<synchronous>, transform_indices = @transform_7, window_bounds = array<i64: 1, 32>}, {pipeline_mode = #tpu.pipeline_mode<synchronous>, transform_indices = @transform_8, window_bounds = array<i64: 256, 32>}, {pipeline_mode = #tpu.pipeline_mode<synchronous>, transform_indices = @transform_9, window_bounds = array<i64: 256, 32>}, {pipeline_mode = #tpu.pipeline_mode<synchronous>, transform_indices = @transform_10, window_bounds = array<i64: 1, 32>}, {pipeline_mode = #tpu.pipeline_mode<synchronous>, transform_indices = @transform_11, window_bounds = array<i64: 1, 32>}, {transform_indices = @transform_12, window_bounds = array<i64: 1, 8, 8, 32>}]} {
    %c0 = arith.constant 0 : index
    %c0_0 = arith.constant 0 : index
    %c0_1 = arith.constant 0 : index
    %c0_2 = arith.constant 0 : index
    %0 = vector.load %arg1[%c0, %c0_0, %c0_1, %c0_2] : memref<1x8x8x32xf32, #tpu.memory_space<vmem>>, vector<1x8x8x32xf32>
    %1 = vector.shape_cast %0 : vector<1x8x8x32xf32> to vector<8x8x32xf32>
    %2 = math.absf %1 : vector<8x8x32xf32>
    %cst = arith.constant 0.000000e+00 : f32
    %3 = vector.broadcast %cst : f32 to vector<8x8x32xf32>
    %4 = arith.subf %3, %2 : vector<8x8x32xf32>
    %5 = math.exp %4 : vector<8x8x32xf32>
    %cst_3 = arith.constant 1.000000e+00 : f32
    %6 = vector.broadcast %cst_3 : f32 to vector<8x8x32xf32>
    %7 = arith.subf %5, %6 : vector<8x8x32xf32>
    %cst_4 = arith.constant 0.000000e+00 : f32
    %8 = vector.broadcast %cst_4 : f32 to vector<8x8x32xf32>
    %9 = arith.cmpf ogt, %1, %8 : vector<8x8x32xf32>
    %10 = arith.select %9, %1, %7 : vector<8x8x32xi1>, vector<8x8x32xf32>
    %cst_5 = arith.constant 0.000000e+00 : f32
    %11 = vector.broadcast %cst_5 : f32 to vector<8x8x32xf32>
    %12 = arith.subf %11, %1 : vector<8x8x32xf32>
    %13 = arith.select %9, %7, %12 : vector<8x8x32xi1>, vector<8x8x32xf32>
    %14 = tpu.concatenate %10, %13 in 2 : vector<8x8x32xf32>, vector<8x8x32xf32> -> vector<8x8x64xf32>
    %cst_6 = arith.constant 0.000000e+00 : f32
    %15 = vector.broadcast %cst_6 : f32 to vector<1x8x64xf32>
    %16 = vector.extract_strided_slice %14 {offsets = [0, 0, 0], sizes = [7, 8, 64], strides = [1, 1, 1]} : vector<8x8x64xf32> to vector<7x8x64xf32>
    %17 = tpu.concatenate %15, %16 in 0 : vector<1x8x64xf32>, vector<7x8x64xf32> -> vector<8x8x64xf32>
    %cst_7 = arith.constant 0.000000e+00 : f32
    %18 = vector.broadcast %cst_7 : f32 to vector<8x1x64xf32>
    %19 = vector.extract_strided_slice %17 {offsets = [0, 0, 0], sizes = [8, 7, 64], strides = [1, 1, 1]} : vector<8x8x64xf32> to vector<8x7x64xf32>
    %20 = tpu.concatenate %18, %19 in 1 : vector<8x1x64xf32>, vector<8x7x64xf32> -> vector<8x8x64xf32>
    %21 = vector.shape_cast %20 : vector<8x8x64xf32> to vector<64x64xf32>
    %22 = arith.truncf %21 : vector<64x64xf32> to vector<64x64xbf16>
    %c0_8 = arith.constant 0 : index
    %c0_9 = arith.constant 0 : index
    %23 = vector.load %arg5[%c0_8, %c0_9] : memref<256x32xbf16, #tpu.memory_space<vmem>>, vector<64x32xbf16>
    %cst_10 = arith.constant dense<0.000000e+00> : vector<64x32xf32>
    %24 = tpu.matmul %22, %23, %cst_10 {dimension_numbers = #tpu.dot_dimension_numbers<[1], [0], [0], [1], [0, 0, 1, 1], [], []>} : vector<64x64xbf16>, vector<64x32xbf16>, vector<64x32xf32> -> vector<64x32xf32>
    %cst_11 = arith.constant 0.000000e+00 : f32
    %25 = vector.broadcast %cst_11 : f32 to vector<1x8x64xf32>
    %26 = vector.extract_strided_slice %14 {offsets = [0, 0, 0], sizes = [7, 8, 64], strides = [1, 1, 1]} : vector<8x8x64xf32> to vector<7x8x64xf32>
    %27 = tpu.concatenate %25, %26 in 0 : vector<1x8x64xf32>, vector<7x8x64xf32> -> vector<8x8x64xf32>
    %28 = vector.shape_cast %27 : vector<8x8x64xf32> to vector<64x64xf32>
    %29 = arith.truncf %28 : vector<64x64xf32> to vector<64x64xbf16>
    %c64 = arith.constant 64 : index
    %c0_12 = arith.constant 0 : index
    %30 = vector.load %arg5[%c64, %c0_12] : memref<256x32xbf16, #tpu.memory_space<vmem>>, vector<64x32xbf16>
    %cst_13 = arith.constant dense<0.000000e+00> : vector<64x32xf32>
    %31 = tpu.matmul %29, %30, %cst_13 {dimension_numbers = #tpu.dot_dimension_numbers<[1], [0], [0], [1], [0, 0, 1, 1], [], []>} : vector<64x64xbf16>, vector<64x32xbf16>, vector<64x32xf32> -> vector<64x32xf32>
    %32 = arith.addf %24, %31 : vector<64x32xf32>
    %cst_14 = arith.constant 0.000000e+00 : f32
    %33 = vector.broadcast %cst_14 : f32 to vector<8x1x64xf32>
    %34 = vector.extract_strided_slice %14 {offsets = [0, 0, 0], sizes = [8, 7, 64], strides = [1, 1, 1]} : vector<8x8x64xf32> to vector<8x7x64xf32>
    %35 = tpu.concatenate %33, %34 in 1 : vector<8x1x64xf32>, vector<8x7x64xf32> -> vector<8x8x64xf32>
    %36 = vector.shape_cast %35 : vector<8x8x64xf32> to vector<64x64xf32>
    %37 = arith.truncf %36 : vector<64x64xf32> to vector<64x64xbf16>
    %c128 = arith.constant 128 : index
    %c0_15 = arith.constant 0 : index
    %38 = vector.load %arg5[%c128, %c0_15] : memref<256x32xbf16, #tpu.memory_space<vmem>>, vector<64x32xbf16>
    %cst_16 = arith.constant dense<0.000000e+00> : vector<64x32xf32>
    %39 = tpu.matmul %37, %38, %cst_16 {dimension_numbers = #tpu.dot_dimension_numbers<[1], [0], [0], [1], [0, 0, 1, 1], [], []>} : vector<64x64xbf16>, vector<64x32xbf16>, vector<64x32xf32> -> vector<64x32xf32>
    %40 = arith.addf %32, %39 : vector<64x32xf32>
    %41 = vector.shape_cast %14 : vector<8x8x64xf32> to vector<64x64xf32>
    %42 = arith.truncf %41 : vector<64x64xf32> to vector<64x64xbf16>
    %c192 = arith.constant 192 : index
    %c0_17 = arith.constant 0 : index
    %43 = vector.load %arg5[%c192, %c0_17] : memref<256x32xbf16, #tpu.memory_space<vmem>>, vector<64x32xbf16>
    %cst_18 = arith.constant dense<0.000000e+00> : vector<64x32xf32>
    %44 = tpu.matmul %42, %43, %cst_18 {dimension_numbers = #tpu.dot_dimension_numbers<[1], [0], [0], [1], [0, 0, 1, 1], [], []>} : vector<64x64xbf16>, vector<64x32xbf16>, vector<64x32xf32> -> vector<64x32xf32>
    %45 = arith.addf %40, %44 : vector<64x32xf32>
    %c0_19 = arith.constant 0 : index
    %c0_20 = arith.constant 0 : index
    %c0_21 = arith.constant 0 : index
    %c0_22 = arith.constant 0 : index
    %46 = vector.load %arg2[%c0_19, %c0_20, %c0_21, %c0_22] : memref<1x8x8x32xf32, #tpu.memory_space<vmem>>, vector<1x8x8x32xf32>
    %47 = vector.shape_cast %46 : vector<1x8x8x32xf32> to vector<8x8x32xf32>
    %48 = math.absf %47 : vector<8x8x32xf32>
    %cst_23 = arith.constant 0.000000e+00 : f32
    %49 = vector.broadcast %cst_23 : f32 to vector<8x8x32xf32>
    %50 = arith.subf %49, %48 : vector<8x8x32xf32>
    %51 = math.exp %50 : vector<8x8x32xf32>
    %cst_24 = arith.constant 1.000000e+00 : f32
    %52 = vector.broadcast %cst_24 : f32 to vector<8x8x32xf32>
    %53 = arith.subf %51, %52 : vector<8x8x32xf32>
    %cst_25 = arith.constant 0.000000e+00 : f32
    %54 = vector.broadcast %cst_25 : f32 to vector<8x8x32xf32>
    %55 = arith.cmpf ogt, %47, %54 : vector<8x8x32xf32>
    %56 = arith.select %55, %47, %53 : vector<8x8x32xi1>, vector<8x8x32xf32>
    %cst_26 = arith.constant 0.000000e+00 : f32
    %57 = vector.broadcast %cst_26 : f32 to vector<8x8x32xf32>
    %58 = arith.subf %57, %47 : vector<8x8x32xf32>
    %59 = arith.select %55, %53, %58 : vector<8x8x32xi1>, vector<8x8x32xf32>
    %60 = tpu.concatenate %56, %59 in 2 : vector<8x8x32xf32>, vector<8x8x32xf32> -> vector<8x8x64xf32>
    %61 = vector.shape_cast %60 : vector<8x8x64xf32> to vector<64x64xf32>
    %62 = arith.truncf %61 : vector<64x64xf32> to vector<64x64xbf16>
    %c0_27 = arith.constant 0 : index
    %c0_28 = arith.constant 0 : index
    %63 = vector.load %arg6[%c0_27, %c0_28] : memref<64x32xbf16, #tpu.memory_space<vmem>>, vector<64x32xbf16>
    %cst_29 = arith.constant dense<0.000000e+00> : vector<64x32xf32>
    %64 = tpu.matmul %62, %63, %cst_29 {dimension_numbers = #tpu.dot_dimension_numbers<[1], [0], [0], [1], [0, 0, 1, 1], [], []>} : vector<64x64xbf16>, vector<64x32xbf16>, vector<64x32xf32> -> vector<64x32xf32>
    %65 = arith.addf %45, %64 : vector<64x32xf32>
    %c0_30 = arith.constant 0 : index
    %c0_31 = arith.constant 0 : index
    %c0_32 = arith.constant 0 : index
    %c0_33 = arith.constant 0 : index
    %66 = vector.load %arg3[%c0_30, %c0_31, %c0_32, %c0_33] : memref<1x8x8x32xf32, #tpu.memory_space<vmem>>, vector<1x8x8x32xf32>
    %67 = vector.shape_cast %66 : vector<1x8x8x32xf32> to vector<8x8x32xf32>
    %68 = math.absf %67 : vector<8x8x32xf32>
    %cst_34 = arith.constant 0.000000e+00 : f32
    %69 = vector.broadcast %cst_34 : f32 to vector<8x8x32xf32>
    %70 = arith.subf %69, %68 : vector<8x8x32xf32>
    %71 = math.exp %70 : vector<8x8x32xf32>
    %cst_35 = arith.constant 1.000000e+00 : f32
    %72 = vector.broadcast %cst_35 : f32 to vector<8x8x32xf32>
    %73 = arith.subf %71, %72 : vector<8x8x32xf32>
    %cst_36 = arith.constant 0.000000e+00 : f32
    %74 = vector.broadcast %cst_36 : f32 to vector<8x8x32xf32>
    %75 = arith.cmpf ogt, %67, %74 : vector<8x8x32xf32>
    %76 = arith.select %75, %67, %73 : vector<8x8x32xi1>, vector<8x8x32xf32>
    %cst_37 = arith.constant 0.000000e+00 : f32
    %77 = vector.broadcast %cst_37 : f32 to vector<8x8x32xf32>
    %78 = arith.subf %77, %67 : vector<8x8x32xf32>
    %79 = arith.select %75, %73, %78 : vector<8x8x32xi1>, vector<8x8x32xf32>
    %80 = tpu.concatenate %76, %79 in 2 : vector<8x8x32xf32>, vector<8x8x32xf32> -> vector<8x8x64xf32>
    %81 = vector.shape_cast %80 : vector<8x8x64xf32> to vector<64x64xf32>
    %82 = arith.truncf %81 : vector<64x64xf32> to vector<64x64xbf16>
    %c0_38 = arith.constant 0 : index
    %c0_39 = arith.constant 0 : index
    %83 = vector.load %arg7[%c0_38, %c0_39] : memref<64x32xbf16, #tpu.memory_space<vmem>>, vector<64x32xbf16>
    %cst_40 = arith.constant dense<0.000000e+00> : vector<64x32xf32>
    %84 = tpu.matmul %82, %83, %cst_40 {dimension_numbers = #tpu.dot_dimension_numbers<[1], [0], [0], [1], [0, 0, 1, 1], [], []>} : vector<64x64xbf16>, vector<64x32xbf16>, vector<64x32xf32> -> vector<64x32xf32>
    %85 = arith.addf %65, %84 : vector<64x32xf32>
    %c0_41 = arith.constant 0 : index
    %c0_42 = arith.constant 0 : index
    %86 = vector.load %arg8[%c0_41, %c0_42] : memref<1x32xf32, #tpu.memory_space<vmem>>, vector<1x32xf32>
    %87 = vector.broadcast %86 : vector<1x32xf32> to vector<64x32xf32>
    %88 = arith.addf %85, %87 : vector<64x32xf32>
    %c0_43 = arith.constant 0 : index
    %c0_44 = arith.constant 0 : index
    %c0_45 = arith.constant 0 : index
    %c0_46 = arith.constant 0 : index
    %89 = vector.load %arg4[%c0_43, %c0_44, %c0_45, %c0_46] : memref<1x8x8x32xf32, #tpu.memory_space<vmem>>, vector<1x8x8x32xf32>
    %90 = vector.shape_cast %89 : vector<1x8x8x32xf32> to vector<8x8x32xf32>
    %91 = vector.shape_cast %90 : vector<8x8x32xf32> to vector<64x32xf32>
    %92 = arith.addf %88, %91 : vector<64x32xf32>
    %93 = vector.shape_cast %92 : vector<64x32xf32> to vector<8x8x32xf32>
    %94 = math.absf %93 : vector<8x8x32xf32>
    %cst_47 = arith.constant 0.000000e+00 : f32
    %95 = vector.broadcast %cst_47 : f32 to vector<8x8x32xf32>
    %96 = arith.subf %95, %94 : vector<8x8x32xf32>
    %97 = math.exp %96 : vector<8x8x32xf32>
    %cst_48 = arith.constant 1.000000e+00 : f32
    %98 = vector.broadcast %cst_48 : f32 to vector<8x8x32xf32>
    %99 = arith.subf %97, %98 : vector<8x8x32xf32>
    %cst_49 = arith.constant 0.000000e+00 : f32
    %100 = vector.broadcast %cst_49 : f32 to vector<8x8x32xf32>
    %101 = arith.cmpf ogt, %93, %100 : vector<8x8x32xf32>
    %102 = arith.select %101, %93, %99 : vector<8x8x32xi1>, vector<8x8x32xf32>
    %cst_50 = arith.constant 0.000000e+00 : f32
    %103 = vector.broadcast %cst_50 : f32 to vector<8x8x32xf32>
    %104 = arith.subf %103, %93 : vector<8x8x32xf32>
    %105 = arith.select %101, %99, %104 : vector<8x8x32xi1>, vector<8x8x32xf32>
    %106 = tpu.concatenate %102, %105 in 2 : vector<8x8x32xf32>, vector<8x8x32xf32> -> vector<8x8x64xf32>
    %cst_51 = arith.constant 0.000000e+00 : f32
    %107 = vector.broadcast %cst_51 : f32 to vector<1x8x64xf32>
    %108 = vector.extract_strided_slice %106 {offsets = [0, 0, 0], sizes = [7, 8, 64], strides = [1, 1, 1]} : vector<8x8x64xf32> to vector<7x8x64xf32>
    %109 = tpu.concatenate %107, %108 in 0 : vector<1x8x64xf32>, vector<7x8x64xf32> -> vector<8x8x64xf32>
    %cst_52 = arith.constant 0.000000e+00 : f32
    %110 = vector.broadcast %cst_52 : f32 to vector<8x1x64xf32>
    %111 = vector.extract_strided_slice %109 {offsets = [0, 0, 0], sizes = [8, 7, 64], strides = [1, 1, 1]} : vector<8x8x64xf32> to vector<8x7x64xf32>
    %112 = tpu.concatenate %110, %111 in 1 : vector<8x1x64xf32>, vector<8x7x64xf32> -> vector<8x8x64xf32>
    %113 = vector.shape_cast %112 : vector<8x8x64xf32> to vector<64x64xf32>
    %114 = arith.truncf %113 : vector<64x64xf32> to vector<64x64xbf16>
    %c0_53 = arith.constant 0 : index
    %c0_54 = arith.constant 0 : index
    %115 = vector.load %arg9[%c0_53, %c0_54] : memref<256x32xbf16, #tpu.memory_space<vmem>>, vector<64x32xbf16>
    %cst_55 = arith.constant dense<0.000000e+00> : vector<64x32xf32>
    %116 = tpu.matmul %114, %115, %cst_55 {dimension_numbers = #tpu.dot_dimension_numbers<[1], [0], [0], [1], [0, 0, 1, 1], [], []>} : vector<64x64xbf16>, vector<64x32xbf16>, vector<64x32xf32> -> vector<64x32xf32>
    %c0_56 = arith.constant 0 : index
    %c0_57 = arith.constant 0 : index
    %117 = vector.load %arg10[%c0_56, %c0_57] : memref<256x32xbf16, #tpu.memory_space<vmem>>, vector<64x32xbf16>
    %cst_58 = arith.constant dense<0.000000e+00> : vector<64x32xf32>
    %118 = tpu.matmul %114, %117, %cst_58 {dimension_numbers = #tpu.dot_dimension_numbers<[1], [0], [0], [1], [0, 0, 1, 1], [], []>} : vector<64x64xbf16>, vector<64x32xbf16>, vector<64x32xf32> -> vector<64x32xf32>
    %cst_59 = arith.constant 0.000000e+00 : f32
    %119 = vector.broadcast %cst_59 : f32 to vector<1x8x64xf32>
    %120 = vector.extract_strided_slice %106 {offsets = [0, 0, 0], sizes = [7, 8, 64], strides = [1, 1, 1]} : vector<8x8x64xf32> to vector<7x8x64xf32>
    %121 = tpu.concatenate %119, %120 in 0 : vector<1x8x64xf32>, vector<7x8x64xf32> -> vector<8x8x64xf32>
    %122 = vector.shape_cast %121 : vector<8x8x64xf32> to vector<64x64xf32>
    %123 = arith.truncf %122 : vector<64x64xf32> to vector<64x64xbf16>
    %c64_60 = arith.constant 64 : index
    %c0_61 = arith.constant 0 : index
    %124 = vector.load %arg9[%c64_60, %c0_61] : memref<256x32xbf16, #tpu.memory_space<vmem>>, vector<64x32xbf16>
    %cst_62 = arith.constant dense<0.000000e+00> : vector<64x32xf32>
    %125 = tpu.matmul %123, %124, %cst_62 {dimension_numbers = #tpu.dot_dimension_numbers<[1], [0], [0], [1], [0, 0, 1, 1], [], []>} : vector<64x64xbf16>, vector<64x32xbf16>, vector<64x32xf32> -> vector<64x32xf32>
    %126 = arith.addf %116, %125 : vector<64x32xf32>
    %c64_63 = arith.constant 64 : index
    %c0_64 = arith.constant 0 : index
    %127 = vector.load %arg10[%c64_63, %c0_64] : memref<256x32xbf16, #tpu.memory_space<vmem>>, vector<64x32xbf16>
    %cst_65 = arith.constant dense<0.000000e+00> : vector<64x32xf32>
    %128 = tpu.matmul %123, %127, %cst_65 {dimension_numbers = #tpu.dot_dimension_numbers<[1], [0], [0], [1], [0, 0, 1, 1], [], []>} : vector<64x64xbf16>, vector<64x32xbf16>, vector<64x32xf32> -> vector<64x32xf32>
    %129 = arith.addf %118, %128 : vector<64x32xf32>
    %cst_66 = arith.constant 0.000000e+00 : f32
    %130 = vector.broadcast %cst_66 : f32 to vector<8x1x64xf32>
    %131 = vector.extract_strided_slice %106 {offsets = [0, 0, 0], sizes = [8, 7, 64], strides = [1, 1, 1]} : vector<8x8x64xf32> to vector<8x7x64xf32>
    %132 = tpu.concatenate %130, %131 in 1 : vector<8x1x64xf32>, vector<8x7x64xf32> -> vector<8x8x64xf32>
    %133 = vector.shape_cast %132 : vector<8x8x64xf32> to vector<64x64xf32>
    %134 = arith.truncf %133 : vector<64x64xf32> to vector<64x64xbf16>
    %c128_67 = arith.constant 128 : index
    %c0_68 = arith.constant 0 : index
    %135 = vector.load %arg9[%c128_67, %c0_68] : memref<256x32xbf16, #tpu.memory_space<vmem>>, vector<64x32xbf16>
    %cst_69 = arith.constant dense<0.000000e+00> : vector<64x32xf32>
    %136 = tpu.matmul %134, %135, %cst_69 {dimension_numbers = #tpu.dot_dimension_numbers<[1], [0], [0], [1], [0, 0, 1, 1], [], []>} : vector<64x64xbf16>, vector<64x32xbf16>, vector<64x32xf32> -> vector<64x32xf32>
    %137 = arith.addf %126, %136 : vector<64x32xf32>
    %c128_70 = arith.constant 128 : index
    %c0_71 = arith.constant 0 : index
    %138 = vector.load %arg10[%c128_70, %c0_71] : memref<256x32xbf16, #tpu.memory_space<vmem>>, vector<64x32xbf16>
    %cst_72 = arith.constant dense<0.000000e+00> : vector<64x32xf32>
    %139 = tpu.matmul %134, %138, %cst_72 {dimension_numbers = #tpu.dot_dimension_numbers<[1], [0], [0], [1], [0, 0, 1, 1], [], []>} : vector<64x64xbf16>, vector<64x32xbf16>, vector<64x32xf32> -> vector<64x32xf32>
    %140 = arith.addf %129, %139 : vector<64x32xf32>
    %141 = vector.shape_cast %106 : vector<8x8x64xf32> to vector<64x64xf32>
    %142 = arith.truncf %141 : vector<64x64xf32> to vector<64x64xbf16>
    %c192_73 = arith.constant 192 : index
    %c0_74 = arith.constant 0 : index
    %143 = vector.load %arg9[%c192_73, %c0_74] : memref<256x32xbf16, #tpu.memory_space<vmem>>, vector<64x32xbf16>
    %cst_75 = arith.constant dense<0.000000e+00> : vector<64x32xf32>
    %144 = tpu.matmul %142, %143, %cst_75 {dimension_numbers = #tpu.dot_dimension_numbers<[1], [0], [0], [1], [0, 0, 1, 1], [], []>} : vector<64x64xbf16>, vector<64x32xbf16>, vector<64x32xf32> -> vector<64x32xf32>
    %145 = arith.addf %137, %144 : vector<64x32xf32>
    %c192_76 = arith.constant 192 : index
    %c0_77 = arith.constant 0 : index
    %146 = vector.load %arg10[%c192_76, %c0_77] : memref<256x32xbf16, #tpu.memory_space<vmem>>, vector<64x32xbf16>
    %cst_78 = arith.constant dense<0.000000e+00> : vector<64x32xf32>
    %147 = tpu.matmul %142, %146, %cst_78 {dimension_numbers = #tpu.dot_dimension_numbers<[1], [0], [0], [1], [0, 0, 1, 1], [], []>} : vector<64x64xbf16>, vector<64x32xbf16>, vector<64x32xf32> -> vector<64x32xf32>
    %148 = arith.addf %140, %147 : vector<64x32xf32>
    %c0_79 = arith.constant 0 : index
    %c0_80 = arith.constant 0 : index
    %149 = vector.load %arg11[%c0_79, %c0_80] : memref<1x32xf32, #tpu.memory_space<vmem>>, vector<1x32xf32>
    %150 = vector.broadcast %149 : vector<1x32xf32> to vector<64x32xf32>
    %151 = arith.addf %145, %150 : vector<64x32xf32>
    %c0_81 = arith.constant 0 : index
    %c0_82 = arith.constant 0 : index
    %152 = vector.load %arg12[%c0_81, %c0_82] : memref<1x32xf32, #tpu.memory_space<vmem>>, vector<1x32xf32>
    %153 = vector.broadcast %152 : vector<1x32xf32> to vector<64x32xf32>
    %154 = arith.addf %148, %153 : vector<64x32xf32>
    %155 = vector.shape_cast %1 : vector<8x8x32xf32> to vector<64x32xf32>
    %156 = arith.negf %154 : vector<64x32xf32>
    %157 = math.exp %156 : vector<64x32xf32>
    %cst_83 = arith.constant 1.000000e+00 : f32
    %158 = vector.broadcast %cst_83 : f32 to vector<64x32xf32>
    %159 = arith.addf %158, %157 : vector<64x32xf32>
    %160 = arith.divf %158, %159 : vector<64x32xf32>
    %161 = arith.mulf %151, %160 : vector<64x32xf32>
    %162 = arith.addf %155, %161 : vector<64x32xf32>
    %163 = vector.shape_cast %162 : vector<64x32xf32> to vector<8x8x32xf32>
    %c0_84 = arith.constant 0 : index
    %c0_85 = arith.constant 0 : index
    %c0_86 = arith.constant 0 : index
    %c0_87 = arith.constant 0 : index
    %164 = vector.load %arg13[%c0_84, %c0_85, %c0_86, %c0_87] : memref<1x8x8x32xf32, #tpu.memory_space<vmem>>, vector<1x8x8x32xf32>
    %165 = vector.shape_cast %164 : vector<1x8x8x32xf32> to vector<8x8x32xf32>
    %166 = vector.shape_cast %163 : vector<8x8x32xf32> to vector<1x8x8x32xf32>
    tpu.vector_store %arg13[%c0_84, %c0_85, %c0_86, %c0_87], %166 {strides = array<i32>} : memref<1x8x8x32xf32, #tpu.memory_space<vmem>>, vector<1x8x8x32xf32>,
    return
  }
  func.func @transform_0(%arg0: i32) -> (i32, i32, i32, i32) {
    %c0_i32 = arith.constant 0 : i32
    %c0_i32_0 = arith.constant 0 : i32
    %c0_i32_1 = arith.constant 0 : i32
    %c0_i32_2 = arith.constant 0 : i32
    return %arg0, %c0_i32, %c0_i32_0, %c0_i32_1 : i32, i32, i32, i32
  }
  func.func @transform_1(%arg0: i32) -> (i32, i32, i32, i32) {
    %c0_i32 = arith.constant 0 : i32
    %c0_i32_0 = arith.constant 0 : i32
    %c0_i32_1 = arith.constant 0 : i32
    %c0_i32_2 = arith.constant 0 : i32
    return %arg0, %c0_i32, %c0_i32_0, %c0_i32_1 : i32, i32, i32, i32
  }
  func.func @transform_2(%arg0: i32) -> (i32, i32, i32, i32) {
    %c0_i32 = arith.constant 0 : i32
    %c0_i32_0 = arith.constant 0 : i32
    %c0_i32_1 = arith.constant 0 : i32
    %c0_i32_2 = arith.constant 0 : i32
    return %arg0, %c0_i32, %c0_i32_0, %c0_i32_1 : i32, i32, i32, i32
  }
  func.func @transform_3(%arg0: i32) -> (i32, i32, i32, i32) {
    %c0_i32 = arith.constant 0 : i32
    %c0_i32_0 = arith.constant 0 : i32
    %c0_i32_1 = arith.constant 0 : i32
    %c0_i32_2 = arith.constant 0 : i32
    return %arg0, %c0_i32, %c0_i32_0, %c0_i32_1 : i32, i32, i32, i32
  }
  func.func @transform_4(%arg0: i32) -> (i32, i32) {
    %c0_i32 = arith.constant 0 : i32
    %c0_i32_0 = arith.constant 0 : i32
    %c0_i32_1 = arith.constant 0 : i32
    return %c0_i32, %c0_i32_0 : i32, i32
  }
  func.func @transform_5(%arg0: i32) -> (i32, i32) {
    %c0_i32 = arith.constant 0 : i32
    %c0_i32_0 = arith.constant 0 : i32
    %c0_i32_1 = arith.constant 0 : i32
    return %c0_i32, %c0_i32_0 : i32, i32
  }
  func.func @transform_6(%arg0: i32) -> (i32, i32) {
    %c0_i32 = arith.constant 0 : i32
    %c0_i32_0 = arith.constant 0 : i32
    %c0_i32_1 = arith.constant 0 : i32
    return %c0_i32, %c0_i32_0 : i32, i32
  }
  func.func @transform_7(%arg0: i32) -> (i32, i32) {
    %c0_i32 = arith.constant 0 : i32
    %c0_i32_0 = arith.constant 0 : i32
    %c0_i32_1 = arith.constant 0 : i32
    return %c0_i32, %c0_i32_0 : i32, i32
  }
  func.func @transform_8(%arg0: i32) -> (i32, i32) {
    %c0_i32 = arith.constant 0 : i32
    %c0_i32_0 = arith.constant 0 : i32
    %c0_i32_1 = arith.constant 0 : i32
    return %c0_i32, %c0_i32_0 : i32, i32
  }
  func.func @transform_9(%arg0: i32) -> (i32, i32) {
    %c0_i32 = arith.constant 0 : i32
    %c0_i32_0 = arith.constant 0 : i32
    %c0_i32_1 = arith.constant 0 : i32
    return %c0_i32, %c0_i32_0 : i32, i32
  }
  func.func @transform_10(%arg0: i32) -> (i32, i32) {
    %c0_i32 = arith.constant 0 : i32
    %c0_i32_0 = arith.constant 0 : i32
    %c0_i32_1 = arith.constant 0 : i32
    return %c0_i32, %c0_i32_0 : i32, i32
  }
  func.func @transform_11(%arg0: i32) -> (i32, i32) {
    %c0_i32 = arith.constant 0 : i32
    %c0_i32_0 = arith.constant 0 : i32
    %c0_i32_1 = arith.constant 0 : i32
    return %c0_i32, %c0_i32_0 : i32, i32
  }
  func.func @transform_12(%arg0: i32) -> (i32, i32, i32, i32) {
    %c0_i32 = arith.constant 0 : i32
    %c0_i32_0 = arith.constant 0 : i32
    %c0_i32_1 = arith.constant 0 : i32
    %c0_i32_2 = arith.constant 0 : i32
    return %arg0, %c0_i32, %c0_i32_0, %c0_i32_1 : i32, i32, i32, i32
  }
}

module attributes {stable_mosaic.version = 11 : i64} {
  func.func @_gated_resnet_kernel(%arg0: i32, %arg1: memref<1x8x8x32xf32, #tpu.memory_space<vmem>>, %arg2: memref<1x8x8x32xf32, #tpu.memory_space<vmem>>, %arg3: memref<1x8x8x32xf32, #tpu.memory_space<vmem>>, %arg4: memref<1x8x8x32xf32, #tpu.memory_space<vmem>>, %arg5: memref<256x32xbf16, #tpu.memory_space<vmem>>, %arg6: memref<64x32xbf16, #tpu.memory_space<vmem>>, %arg7: memref<64x32xbf16, #tpu.memory_space<vmem>>, %arg8: memref<1x32xf32, #tpu.memory_space<vmem>>, %arg9: memref<256x32xbf16, #tpu.memory_space<vmem>>, %arg10: memref<256x32xbf16, #tpu.memory_space<vmem>>, %arg11: memref<1x32xf32, #tpu.memory_space<vmem>>, %arg12: memref<1x32xf32, #tpu.memory_space<vmem>>, %arg13: memref<1x8x8x32xf32, #tpu.memory_space<vmem>>) attributes {dimension_semantics = [#tpu.dimension_semantics<parallel>], iteration_bounds = array<i64: 2>, scalar_prefetch = 0 : i64, scratch_operands = 0 : i64, tpu.core_type = #tpu.core_type<tc>, window_params = [{transform_indices = @transform_0, window_bounds = array<i64: 1, 8, 8, 32>}, {transform_indices = @transform_1, window_bounds = array<i64: 1, 8, 8, 32>}, {transform_indices = @transform_2, window_bounds = array<i64: 1, 8, 8, 32>}, {transform_indices = @transform_3, window_bounds = array<i64: 1, 8, 8, 32>}, {pipeline_mode = #tpu.pipeline_mode<synchronous>, transform_indices = @transform_4, window_bounds = array<i64: 256, 32>}, {pipeline_mode = #tpu.pipeline_mode<synchronous>, transform_indices = @transform_5, window_bounds = array<i64: 64, 32>}, {pipeline_mode = #tpu.pipeline_mode<synchronous>, transform_indices = @transform_6, window_bounds = array<i64: 64, 32>}, {pipeline_mode = #tpu.pipeline_mode<synchronous>, transform_indices = @transform_7, window_bounds = array<i64: 1, 32>}, {pipeline_mode = #tpu.pipeline_mode<synchronous>, transform_indices = @transform_8, window_bounds = array<i64: 256, 32>}, {pipeline_mode = #tpu.pipeline_mode<synchronous>, transform_indices = @transform_9, window_bounds = array<i64: 256, 32>}, {pipeline_mode = #tpu.pipeline_mode<synchronous>, transform_indices = @transform_10, window_bounds = array<i64: 1, 32>}, {pipeline_mode = #tpu.pipeline_mode<synchronous>, transform_indices = @transform_11, window_bounds = array<i64: 1, 32>}, {transform_indices = @transform_12, window_bounds = array<i64: 1, 8, 8, 32>}]} {
    %c0 = arith.constant 0 : index
    %c0_0 = arith.constant 0 : index
    %c0_1 = arith.constant 0 : index
    %c0_2 = arith.constant 0 : index
    %0 = vector.load %arg1[%c0, %c0_0, %c0_1, %c0_2] : memref<1x8x8x32xf32, #tpu.memory_space<vmem>>, vector<1x8x8x32xf32>
    %1 = vector.shape_cast %0 : vector<1x8x8x32xf32> to vector<8x8x32xf32>
    %2 = math.absf %1 : vector<8x8x32xf32>
    %cst = arith.constant 0.000000e+00 : f32
    %3 = vector.broadcast %cst : f32 to vector<8x8x32xf32>
    %4 = arith.subf %3, %2 : vector<8x8x32xf32>
    %5 = math.exp %4 : vector<8x8x32xf32>
    %cst_3 = arith.constant 1.000000e+00 : f32
    %6 = vector.broadcast %cst_3 : f32 to vector<8x8x32xf32>
    %7 = arith.subf %5, %6 : vector<8x8x32xf32>
    %cst_4 = arith.constant 0.000000e+00 : f32
    %8 = vector.broadcast %cst_4 : f32 to vector<8x8x32xf32>
    %9 = arith.cmpf ogt, %1, %8 : vector<8x8x32xf32>
    %10 = arith.select %9, %1, %7 : vector<8x8x32xi1>, vector<8x8x32xf32>
    %cst_5 = arith.constant 0.000000e+00 : f32
    %11 = vector.broadcast %cst_5 : f32 to vector<8x8x32xf32>
    %12 = arith.subf %11, %1 : vector<8x8x32xf32>
    %13 = arith.select %9, %7, %12 : vector<8x8x32xi1>, vector<8x8x32xf32>
    %14 = tpu.concatenate %10, %13 in 2 : vector<8x8x32xf32>, vector<8x8x32xf32> -> vector<8x8x64xf32>
    %cst_6 = arith.constant 0.000000e+00 : f32
    %15 = vector.broadcast %cst_6 : f32 to vector<1x8x64xf32>
    %16 = vector.extract_strided_slice %14 {offsets = [0, 0, 0], sizes = [7, 8, 64], strides = [1, 1, 1]} : vector<8x8x64xf32> to vector<7x8x64xf32>
    %17 = tpu.concatenate %15, %16 in 0 : vector<1x8x64xf32>, vector<7x8x64xf32> -> vector<8x8x64xf32>
    %cst_7 = arith.constant 0.000000e+00 : f32
    %18 = vector.broadcast %cst_7 : f32 to vector<8x1x64xf32>
    %19 = vector.extract_strided_slice %17 {offsets = [0, 0, 0], sizes = [8, 7, 64], strides = [1, 1, 1]} : vector<8x8x64xf32> to vector<8x7x64xf32>
    %20 = tpu.concatenate %18, %19 in 1 : vector<8x1x64xf32>, vector<8x7x64xf32> -> vector<8x8x64xf32>
    %21 = vector.shape_cast %20 : vector<8x8x64xf32> to vector<64x64xf32>
    %22 = arith.truncf %21 : vector<64x64xf32> to vector<64x64xbf16>
    %c0_8 = arith.constant 0 : index
    %c0_9 = arith.constant 0 : index
    %23 = vector.load %arg5[%c0_8, %c0_9] : memref<256x32xbf16, #tpu.memory_space<vmem>>, vector<64x32xbf16>
    %cst_10 = arith.constant dense<0.000000e+00> : vector<64x32xf32>
    %24 = tpu.matmul %22, %23, %cst_10 {dimension_numbers = #tpu.dot_dimension_numbers<[1], [0], [0], [1], [0, 0, 1, 1], [], []>} : vector<64x64xbf16>, vector<64x32xbf16>, vector<64x32xf32> -> vector<64x32xf32>
    %cst_11 = arith.constant 0.000000e+00 : f32
    %25 = vector.broadcast %cst_11 : f32 to vector<1x8x64xf32>
    %26 = vector.extract_strided_slice %14 {offsets = [0, 0, 0], sizes = [7, 8, 64], strides = [1, 1, 1]} : vector<8x8x64xf32> to vector<7x8x64xf32>
    %27 = tpu.concatenate %25, %26 in 0 : vector<1x8x64xf32>, vector<7x8x64xf32> -> vector<8x8x64xf32>
    %28 = vector.shape_cast %27 : vector<8x8x64xf32> to vector<64x64xf32>
    %29 = arith.truncf %28 : vector<64x64xf32> to vector<64x64xbf16>
    %c64 = arith.constant 64 : index
    %c0_12 = arith.constant 0 : index
    %30 = vector.load %arg5[%c64, %c0_12] : memref<256x32xbf16, #tpu.memory_space<vmem>>, vector<64x32xbf16>
    %cst_13 = arith.constant dense<0.000000e+00> : vector<64x32xf32>
    %31 = tpu.matmul %29, %30, %cst_13 {dimension_numbers = #tpu.dot_dimension_numbers<[1], [0], [0], [1], [0, 0, 1, 1], [], []>} : vector<64x64xbf16>, vector<64x32xbf16>, vector<64x32xf32> -> vector<64x32xf32>
    %32 = arith.addf %24, %31 : vector<64x32xf32>
    %cst_14 = arith.constant 0.000000e+00 : f32
    %33 = vector.broadcast %cst_14 : f32 to vector<8x1x64xf32>
    %34 = vector.extract_strided_slice %14 {offsets = [0, 0, 0], sizes = [8, 7, 64], strides = [1, 1, 1]} : vector<8x8x64xf32> to vector<8x7x64xf32>
    %35 = tpu.concatenate %33, %34 in 1 : vector<8x1x64xf32>, vector<8x7x64xf32> -> vector<8x8x64xf32>
    %36 = vector.shape_cast %35 : vector<8x8x64xf32> to vector<64x64xf32>
    %37 = arith.truncf %36 : vector<64x64xf32> to vector<64x64xbf16>
    %c128 = arith.constant 128 : index
    %c0_15 = arith.constant 0 : index
    %38 = vector.load %arg5[%c128, %c0_15] : memref<256x32xbf16, #tpu.memory_space<vmem>>, vector<64x32xbf16>
    %cst_16 = arith.constant dense<0.000000e+00> : vector<64x32xf32>
    %39 = tpu.matmul %37, %38, %cst_16 {dimension_numbers = #tpu.dot_dimension_numbers<[1], [0], [0], [1], [0, 0, 1, 1], [], []>} : vector<64x64xbf16>, vector<64x32xbf16>, vector<64x32xf32> -> vector<64x32xf32>
    %40 = arith.addf %32, %39 : vector<64x32xf32>
    %41 = vector.shape_cast %14 : vector<8x8x64xf32> to vector<64x64xf32>
    %42 = arith.truncf %41 : vector<64x64xf32> to vector<64x64xbf16>
    %c192 = arith.constant 192 : index
    %c0_17 = arith.constant 0 : index
    %43 = vector.load %arg5[%c192, %c0_17] : memref<256x32xbf16, #tpu.memory_space<vmem>>, vector<64x32xbf16>
    %cst_18 = arith.constant dense<0.000000e+00> : vector<64x32xf32>
    %44 = tpu.matmul %42, %43, %cst_18 {dimension_numbers = #tpu.dot_dimension_numbers<[1], [0], [0], [1], [0, 0, 1, 1], [], []>} : vector<64x64xbf16>, vector<64x32xbf16>, vector<64x32xf32> -> vector<64x32xf32>
    %45 = arith.addf %40, %44 : vector<64x32xf32>
    %c0_19 = arith.constant 0 : index
    %c0_20 = arith.constant 0 : index
    %c0_21 = arith.constant 0 : index
    %c0_22 = arith.constant 0 : index
    %46 = vector.load %arg2[%c0_19, %c0_20, %c0_21, %c0_22] : memref<1x8x8x32xf32, #tpu.memory_space<vmem>>, vector<1x8x8x32xf32>
    %47 = vector.shape_cast %46 : vector<1x8x8x32xf32> to vector<8x8x32xf32>
    %48 = math.absf %47 : vector<8x8x32xf32>
    %cst_23 = arith.constant 0.000000e+00 : f32
    %49 = vector.broadcast %cst_23 : f32 to vector<8x8x32xf32>
    %50 = arith.subf %49, %48 : vector<8x8x32xf32>
    %51 = math.exp %50 : vector<8x8x32xf32>
    %cst_24 = arith.constant 1.000000e+00 : f32
    %52 = vector.broadcast %cst_24 : f32 to vector<8x8x32xf32>
    %53 = arith.subf %51, %52 : vector<8x8x32xf32>
    %cst_25 = arith.constant 0.000000e+00 : f32
    %54 = vector.broadcast %cst_25 : f32 to vector<8x8x32xf32>
    %55 = arith.cmpf ogt, %47, %54 : vector<8x8x32xf32>
    %56 = arith.select %55, %47, %53 : vector<8x8x32xi1>, vector<8x8x32xf32>
    %cst_26 = arith.constant 0.000000e+00 : f32
    %57 = vector.broadcast %cst_26 : f32 to vector<8x8x32xf32>
    %58 = arith.subf %57, %47 : vector<8x8x32xf32>
    %59 = arith.select %55, %53, %58 : vector<8x8x32xi1>, vector<8x8x32xf32>
    %60 = tpu.concatenate %56, %59 in 2 : vector<8x8x32xf32>, vector<8x8x32xf32> -> vector<8x8x64xf32>
    %61 = vector.shape_cast %60 : vector<8x8x64xf32> to vector<64x64xf32>
    %62 = arith.truncf %61 : vector<64x64xf32> to vector<64x64xbf16>
    %c0_27 = arith.constant 0 : index
    %c0_28 = arith.constant 0 : index
    %63 = vector.load %arg6[%c0_27, %c0_28] : memref<64x32xbf16, #tpu.memory_space<vmem>>, vector<64x32xbf16>
    %cst_29 = arith.constant dense<0.000000e+00> : vector<64x32xf32>
    %64 = tpu.matmul %62, %63, %cst_29 {dimension_numbers = #tpu.dot_dimension_numbers<[1], [0], [0], [1], [0, 0, 1, 1], [], []>} : vector<64x64xbf16>, vector<64x32xbf16>, vector<64x32xf32> -> vector<64x32xf32>
    %65 = arith.addf %45, %64 : vector<64x32xf32>
    %c0_30 = arith.constant 0 : index
    %c0_31 = arith.constant 0 : index
    %c0_32 = arith.constant 0 : index
    %c0_33 = arith.constant 0 : index
    %66 = vector.load %arg3[%c0_30, %c0_31, %c0_32, %c0_33] : memref<1x8x8x32xf32, #tpu.memory_space<vmem>>, vector<1x8x8x32xf32>
    %67 = vector.shape_cast %66 : vector<1x8x8x32xf32> to vector<8x8x32xf32>
    %68 = math.absf %67 : vector<8x8x32xf32>
    %cst_34 = arith.constant 0.000000e+00 : f32
    %69 = vector.broadcast %cst_34 : f32 to vector<8x8x32xf32>
    %70 = arith.subf %69, %68 : vector<8x8x32xf32>
    %71 = math.exp %70 : vector<8x8x32xf32>
    %cst_35 = arith.constant 1.000000e+00 : f32
    %72 = vector.broadcast %cst_35 : f32 to vector<8x8x32xf32>
    %73 = arith.subf %71, %72 : vector<8x8x32xf32>
    %cst_36 = arith.constant 0.000000e+00 : f32
    %74 = vector.broadcast %cst_36 : f32 to vector<8x8x32xf32>
    %75 = arith.cmpf ogt, %67, %74 : vector<8x8x32xf32>
    %76 = arith.select %75, %67, %73 : vector<8x8x32xi1>, vector<8x8x32xf32>
    %cst_37 = arith.constant 0.000000e+00 : f32
    %77 = vector.broadcast %cst_37 : f32 to vector<8x8x32xf32>
    %78 = arith.subf %77, %67 : vector<8x8x32xf32>
    %79 = arith.select %75, %73, %78 : vector<8x8x32xi1>, vector<8x8x32xf32>
    %80 = tpu.concatenate %76, %79 in 2 : vector<8x8x32xf32>, vector<8x8x32xf32> -> vector<8x8x64xf32>
    %81 = vector.shape_cast %80 : vector<8x8x64xf32> to vector<64x64xf32>
    %82 = arith.truncf %81 : vector<64x64xf32> to vector<64x64xbf16>
    %c0_38 = arith.constant 0 : index
    %c0_39 = arith.constant 0 : index
    %83 = vector.load %arg7[%c0_38, %c0_39] : memref<64x32xbf16, #tpu.memory_space<vmem>>, vector<64x32xbf16>
    %cst_40 = arith.constant dense<0.000000e+00> : vector<64x32xf32>
    %84 = tpu.matmul %82, %83, %cst_40 {dimension_numbers = #tpu.dot_dimension_numbers<[1], [0], [0], [1], [0, 0, 1, 1], [], []>} : vector<64x64xbf16>, vector<64x32xbf16>, vector<64x32xf32> -> vector<64x32xf32>
    %85 = arith.addf %65, %84 : vector<64x32xf32>
    %c0_41 = arith.constant 0 : index
    %c0_42 = arith.constant 0 : index
    %86 = vector.load %arg8[%c0_41, %c0_42] : memref<1x32xf32, #tpu.memory_space<vmem>>, vector<1x32xf32>
    %87 = vector.broadcast %86 : vector<1x32xf32> to vector<64x32xf32>
    %88 = arith.addf %85, %87 : vector<64x32xf32>
    %c0_43 = arith.constant 0 : index
    %c0_44 = arith.constant 0 : index
    %c0_45 = arith.constant 0 : index
    %c0_46 = arith.constant 0 : index
    %89 = vector.load %arg4[%c0_43, %c0_44, %c0_45, %c0_46] : memref<1x8x8x32xf32, #tpu.memory_space<vmem>>, vector<1x8x8x32xf32>
    %90 = vector.shape_cast %89 : vector<1x8x8x32xf32> to vector<8x8x32xf32>
    %91 = vector.shape_cast %90 : vector<8x8x32xf32> to vector<64x32xf32>
    %92 = arith.addf %88, %91 : vector<64x32xf32>
    %93 = vector.shape_cast %92 : vector<64x32xf32> to vector<8x8x32xf32>
    %94 = math.absf %93 : vector<8x8x32xf32>
    %cst_47 = arith.constant 0.000000e+00 : f32
    %95 = vector.broadcast %cst_47 : f32 to vector<8x8x32xf32>
    %96 = arith.subf %95, %94 : vector<8x8x32xf32>
    %97 = math.exp %96 : vector<8x8x32xf32>
    %cst_48 = arith.constant 1.000000e+00 : f32
    %98 = vector.broadcast %cst_48 : f32 to vector<8x8x32xf32>
    %99 = arith.subf %97, %98 : vector<8x8x32xf32>
    %cst_49 = arith.constant 0.000000e+00 : f32
    %100 = vector.broadcast %cst_49 : f32 to vector<8x8x32xf32>
    %101 = arith.cmpf ogt, %93, %100 : vector<8x8x32xf32>
    %102 = arith.select %101, %93, %99 : vector<8x8x32xi1>, vector<8x8x32xf32>
    %cst_50 = arith.constant 0.000000e+00 : f32
    %103 = vector.broadcast %cst_50 : f32 to vector<8x8x32xf32>
    %104 = arith.subf %103, %93 : vector<8x8x32xf32>
    %105 = arith.select %101, %99, %104 : vector<8x8x32xi1>, vector<8x8x32xf32>
    %106 = tpu.concatenate %102, %105 in 2 : vector<8x8x32xf32>, vector<8x8x32xf32> -> vector<8x8x64xf32>
    %cst_51 = arith.constant 0.000000e+00 : f32
    %107 = vector.broadcast %cst_51 : f32 to vector<1x8x64xf32>
    %108 = vector.extract_strided_slice %106 {offsets = [0, 0, 0], sizes = [7, 8, 64], strides = [1, 1, 1]} : vector<8x8x64xf32> to vector<7x8x64xf32>
    %109 = tpu.concatenate %107, %108 in 0 : vector<1x8x64xf32>, vector<7x8x64xf32> -> vector<8x8x64xf32>
    %cst_52 = arith.constant 0.000000e+00 : f32
    %110 = vector.broadcast %cst_52 : f32 to vector<8x1x64xf32>
    %111 = vector.extract_strided_slice %109 {offsets = [0, 0, 0], sizes = [8, 7, 64], strides = [1, 1, 1]} : vector<8x8x64xf32> to vector<8x7x64xf32>
    %112 = tpu.concatenate %110, %111 in 1 : vector<8x1x64xf32>, vector<8x7x64xf32> -> vector<8x8x64xf32>
    %113 = vector.shape_cast %112 : vector<8x8x64xf32> to vector<64x64xf32>
    %114 = arith.truncf %113 : vector<64x64xf32> to vector<64x64xbf16>
    %c0_53 = arith.constant 0 : index
    %c0_54 = arith.constant 0 : index
    %115 = vector.load %arg9[%c0_53, %c0_54] : memref<256x32xbf16, #tpu.memory_space<vmem>>, vector<64x32xbf16>
    %cst_55 = arith.constant dense<0.000000e+00> : vector<64x32xf32>
    %116 = tpu.matmul %114, %115, %cst_55 {dimension_numbers = #tpu.dot_dimension_numbers<[1], [0], [0], [1], [0, 0, 1, 1], [], []>} : vector<64x64xbf16>, vector<64x32xbf16>, vector<64x32xf32> -> vector<64x32xf32>
    %c0_56 = arith.constant 0 : index
    %c0_57 = arith.constant 0 : index
    %117 = vector.load %arg10[%c0_56, %c0_57] : memref<256x32xbf16, #tpu.memory_space<vmem>>, vector<64x32xbf16>
    %cst_58 = arith.constant dense<0.000000e+00> : vector<64x32xf32>
    %118 = tpu.matmul %114, %117, %cst_58 {dimension_numbers = #tpu.dot_dimension_numbers<[1], [0], [0], [1], [0, 0, 1, 1], [], []>} : vector<64x64xbf16>, vector<64x32xbf16>, vector<64x32xf32> -> vector<64x32xf32>
    %cst_59 = arith.constant 0.000000e+00 : f32
    %119 = vector.broadcast %cst_59 : f32 to vector<1x8x64xf32>
    %120 = vector.extract_strided_slice %106 {offsets = [0, 0, 0], sizes = [7, 8, 64], strides = [1, 1, 1]} : vector<8x8x64xf32> to vector<7x8x64xf32>
    %121 = tpu.concatenate %119, %120 in 0 : vector<1x8x64xf32>, vector<7x8x64xf32> -> vector<8x8x64xf32>
    %122 = vector.shape_cast %121 : vector<8x8x64xf32> to vector<64x64xf32>
    %123 = arith.truncf %122 : vector<64x64xf32> to vector<64x64xbf16>
    %c64_60 = arith.constant 64 : index
    %c0_61 = arith.constant 0 : index
    %124 = vector.load %arg9[%c64_60, %c0_61] : memref<256x32xbf16, #tpu.memory_space<vmem>>, vector<64x32xbf16>
    %cst_62 = arith.constant dense<0.000000e+00> : vector<64x32xf32>
    %125 = tpu.matmul %123, %124, %cst_62 {dimension_numbers = #tpu.dot_dimension_numbers<[1], [0], [0], [1], [0, 0, 1, 1], [], []>} : vector<64x64xbf16>, vector<64x32xbf16>, vector<64x32xf32> -> vector<64x32xf32>
    %126 = arith.addf %116, %125 : vector<64x32xf32>
    %c64_63 = arith.constant 64 : index
    %c0_64 = arith.constant 0 : index
    %127 = vector.load %arg10[%c64_63, %c0_64] : memref<256x32xbf16, #tpu.memory_space<vmem>>, vector<64x32xbf16>
    %cst_65 = arith.constant dense<0.000000e+00> : vector<64x32xf32>
    %128 = tpu.matmul %123, %127, %cst_65 {dimension_numbers = #tpu.dot_dimension_numbers<[1], [0], [0], [1], [0, 0, 1, 1], [], []>} : vector<64x64xbf16>, vector<64x32xbf16>, vector<64x32xf32> -> vector<64x32xf32>
    %129 = arith.addf %118, %128 : vector<64x32xf32>
    %cst_66 = arith.constant 0.000000e+00 : f32
    %130 = vector.broadcast %cst_66 : f32 to vector<8x1x64xf32>
    %131 = vector.extract_strided_slice %106 {offsets = [0, 0, 0], sizes = [8, 7, 64], strides = [1, 1, 1]} : vector<8x8x64xf32> to vector<8x7x64xf32>
    %132 = tpu.concatenate %130, %131 in 1 : vector<8x1x64xf32>, vector<8x7x64xf32> -> vector<8x8x64xf32>
    %133 = vector.shape_cast %132 : vector<8x8x64xf32> to vector<64x64xf32>
    %134 = arith.truncf %133 : vector<64x64xf32> to vector<64x64xbf16>
    %c128_67 = arith.constant 128 : index
    %c0_68 = arith.constant 0 : index
    %135 = vector.load %arg9[%c128_67, %c0_68] : memref<256x32xbf16, #tpu.memory_space<vmem>>, vector<64x32xbf16>
    %cst_69 = arith.constant dense<0.000000e+00> : vector<64x32xf32>
    %136 = tpu.matmul %134, %135, %cst_69 {dimension_numbers = #tpu.dot_dimension_numbers<[1], [0], [0], [1], [0, 0, 1, 1], [], []>} : vector<64x64xbf16>, vector<64x32xbf16>, vector<64x32xf32> -> vector<64x32xf32>
    %137 = arith.addf %126, %136 : vector<64x32xf32>
    %c128_70 = arith.constant 128 : index
    %c0_71 = arith.constant 0 : index
    %138 = vector.load %arg10[%c128_70, %c0_71] : memref<256x32xbf16, #tpu.memory_space<vmem>>, vector<64x32xbf16>
    %cst_72 = arith.constant dense<0.000000e+00> : vector<64x32xf32>
    %139 = tpu.matmul %134, %138, %cst_72 {dimension_numbers = #tpu.dot_dimension_numbers<[1], [0], [0], [1], [0, 0, 1, 1], [], []>} : vector<64x64xbf16>, vector<64x32xbf16>, vector<64x32xf32> -> vector<64x32xf32>
    %140 = arith.addf %129, %139 : vector<64x32xf32>
    %141 = vector.shape_cast %106 : vector<8x8x64xf32> to vector<64x64xf32>
    %142 = arith.truncf %141 : vector<64x64xf32> to vector<64x64xbf16>
    %c192_73 = arith.constant 192 : index
    %c0_74 = arith.constant 0 : index
    %143 = vector.load %arg9[%c192_73, %c0_74] : memref<256x32xbf16, #tpu.memory_space<vmem>>, vector<64x32xbf16>
    %cst_75 = arith.constant dense<0.000000e+00> : vector<64x32xf32>
    %144 = tpu.matmul %142, %143, %cst_75 {dimension_numbers = #tpu.dot_dimension_numbers<[1], [0], [0], [1], [0, 0, 1, 1], [], []>} : vector<64x64xbf16>, vector<64x32xbf16>, vector<64x32xf32> -> vector<64x32xf32>
    %145 = arith.addf %137, %144 : vector<64x32xf32>
    %c192_76 = arith.constant 192 : index
    %c0_77 = arith.constant 0 : index
    %146 = vector.load %arg10[%c192_76, %c0_77] : memref<256x32xbf16, #tpu.memory_space<vmem>>, vector<64x32xbf16>
    %cst_78 = arith.constant dense<0.000000e+00> : vector<64x32xf32>
    %147 = tpu.matmul %142, %146, %cst_78 {dimension_numbers = #tpu.dot_dimension_numbers<[1], [0], [0], [1], [0, 0, 1, 1], [], []>} : vector<64x64xbf16>, vector<64x32xbf16>, vector<64x32xf32> -> vector<64x32xf32>
    %148 = arith.addf %140, %147 : vector<64x32xf32>
    %c0_79 = arith.constant 0 : index
    %c0_80 = arith.constant 0 : index
    %149 = vector.load %arg11[%c0_79, %c0_80] : memref<1x32xf32, #tpu.memory_space<vmem>>, vector<1x32xf32>
    %150 = vector.broadcast %149 : vector<1x32xf32> to vector<64x32xf32>
    %151 = arith.addf %145, %150 : vector<64x32xf32>
    %c0_81 = arith.constant 0 : index
    %c0_82 = arith.constant 0 : index
    %152 = vector.load %arg12[%c0_81, %c0_82] : memref<1x32xf32, #tpu.memory_space<vmem>>, vector<1x32xf32>
    %153 = vector.broadcast %152 : vector<1x32xf32> to vector<64x32xf32>
    %154 = arith.addf %148, %153 : vector<64x32xf32>
    %155 = vector.shape_cast %1 : vector<8x8x32xf32> to vector<64x32xf32>
    %156 = arith.negf %154 : vector<64x32xf32>
    %157 = math.exp %156 : vector<64x32xf32>
    %cst_83 = arith.constant 1.000000e+00 : f32
    %158 = vector.broadcast %cst_83 : f32 to vector<64x32xf32>
    %159 = arith.addf %158, %157 : vector<64x32xf32>
    %160 = arith.divf %158, %159 : vector<64x32xf32>
    %161 = arith.mulf %151, %160 : vector<64x32xf32>
    %162 = arith.addf %155, %161 : vector<64x32xf32>
    %163 = vector.shape_cast %162 : vector<64x32xf32> to vector<8x8x32xf32>
    %c0_84 = arith.constant 0 : index
    %c0_85 = arith.constant 0 : index
    %c0_86 = arith.constant 0 : index
    %c0_87 = arith.constant 0 : index
    %164 = vector.load %arg13[%c0_84, %c0_85, %c0_86, %c0_87] : memref<1x8x8x32xf32, #tpu.memory_space<vmem>>, vector<1x8x8x32xf32>
    %165 = vector.shape_cast %164 : vector<1x8x8x32xf32> to vector<8x8x32xf32>
    %166 = vector.shape_cast %163 : vector<8x8x32xf32> to vector<1x8x8x32xf32>
    tpu.vector_store %arg13[%c0_84, %c0_85, %c0_86, %c0_87], %166 {strides = array<i32>} : memref<1x8x8x32xf32, #tpu.memory_space<vmem>>, vector<1x8x8x32xf32>,
    return
  }
  func.func @transform_0(%arg0: i32) -> (i32, i32, i32, i32) {
    %c0_i32 = arith.constant 0 : i32
    %c0_i32_0 = arith.constant 0 : i32
    %c0_i32_1 = arith.constant 0 : i32
    %c0_i32_2 = arith.constant 0 : i32
    return %arg0, %c0_i32, %c0_i32_0, %c0_i32_1 : i32, i32, i32, i32
  }
  func.func @transform_1(%arg0: i32) -> (i32, i32, i32, i32) {
    %c0_i32 = arith.constant 0 : i32
    %c0_i32_0 = arith.constant 0 : i32
    %c0_i32_1 = arith.constant 0 : i32
    %c0_i32_2 = arith.constant 0 : i32
    return %arg0, %c0_i32, %c0_i32_0, %c0_i32_1 : i32, i32, i32, i32
  }
  func.func @transform_2(%arg0: i32) -> (i32, i32, i32, i32) {
    %c0_i32 = arith.constant 0 : i32
    %c0_i32_0 = arith.constant 0 : i32
    %c0_i32_1 = arith.constant 0 : i32
    %c0_i32_2 = arith.constant 0 : i32
    return %arg0, %c0_i32, %c0_i32_0, %c0_i32_1 : i32, i32, i32, i32
  }
  func.func @transform_3(%arg0: i32) -> (i32, i32, i32, i32) {
    %c0_i32 = arith.constant 0 : i32
    %c0_i32_0 = arith.constant 0 : i32
    %c0_i32_1 = arith.constant 0 : i32
    %c0_i32_2 = arith.constant 0 : i32
    return %arg0, %c0_i32, %c0_i32_0, %c0_i32_1 : i32, i32, i32, i32
  }
  func.func @transform_4(%arg0: i32) -> (i32, i32) {
    %c0_i32 = arith.constant 0 : i32
    %c0_i32_0 = arith.constant 0 : i32
    %c0_i32_1 = arith.constant 0 : i32
    return %c0_i32, %c0_i32_0 : i32, i32
  }
  func.func @transform_5(%arg0: i32) -> (i32, i32) {
    %c0_i32 = arith.constant 0 : i32
    %c0_i32_0 = arith.constant 0 : i32
    %c0_i32_1 = arith.constant 0 : i32
    return %c0_i32, %c0_i32_0 : i32, i32
  }
  func.func @transform_6(%arg0: i32) -> (i32, i32) {
    %c0_i32 = arith.constant 0 : i32
    %c0_i32_0 = arith.constant 0 : i32
    %c0_i32_1 = arith.constant 0 : i32
    return %c0_i32, %c0_i32_0 : i32, i32
  }
  func.func @transform_7(%arg0: i32) -> (i32, i32) {
    %c0_i32 = arith.constant 0 : i32
    %c0_i32_0 = arith.constant 0 : i32
    %c0_i32_1 = arith.constant 0 : i32
    return %c0_i32, %c0_i32_0 : i32, i32
  }
  func.func @transform_8(%arg0: i32) -> (i32, i32) {
    %c0_i32 = arith.constant 0 : i32
    %c0_i32_0 = arith.constant 0 : i32
    %c0_i32_1 = arith.constant 0 : i32
    return %c0_i32, %c0_i32_0 : i32, i32
  }
  func.func @transform_9(%arg0: i32) -> (i32, i32) {
    %c0_i32 = arith.constant 0 : i32
    %c0_i32_0 = arith.constant 0 : i32
    %c0_i32_1 = arith.constant 0 : i32
    return %c0_i32, %c0_i32_0 : i32, i32
  }
  func.func @transform_10(%arg0: i32) -> (i32, i32) {
    %c0_i32 = arith.constant 0 : i32
    %c0_i32_0 = arith.constant 0 : i32
    %c0_i32_1 = arith.constant 0 : i32
    return %c0_i32, %c0_i32_0 : i32, i32
  }
  func.func @transform_11(%arg0: i32) -> (i32, i32) {
    %c0_i32 = arith.constant 0 : i32
    %c0_i32_0 = arith.constant 0 : i32
    %c0_i32_1 = arith.constant 0 : i32
    return %c0_i32, %c0_i32_0 : i32, i32
  }
  func.func @transform_12(%arg0: i32) -> (i32, i32, i32, i32) {
    %c0_i32 = arith.constant 0 : i32
    %c0_i32_0 = arith.constant 0 : i32
    %c0_i32_1 = arith.constant 0 : i32
    %c0_i32_2 = arith.constant 0 : i32
    return %arg0, %c0_i32, %c0_i32_0, %c0_i32_1 : i32, i32, i32, i32
  }
}

</mosaic_0001>

<llo_original>
// kernel: pixelcnn_layer_down.6
$region0: #{pixelcnn_layer_down.6}
  #allocation0 [shape = 'u32[]', space=smem, size = 0x4, offset = 0x4, fixed_abs, tag = 'smem constant byte address 0x4 - core index']
  #allocation1 [shape = 'u32[144,128]{1,0:T(1,128)}', space=vmem, size = 0x12000, scoped, tag = 'internal scratch']
  %s0 = inlined_call_operand.vmem [shape: f32[2,8,8,32], index: 0, kind: input, shape index: {}]
  %s1 = inlined_call_operand.vmem [shape: f32[2,8,8,32], index: 1, kind: input, shape index: {}]
  %s2 = inlined_call_operand.vmem [shape: bf16[288,32], index: 2, kind: input, shape index: {}]
  %s3 = inlined_call_operand.vmem [shape: bf16[32,32], index: 3, kind: input, shape index: {}]
  %s4 = inlined_call_operand.vmem [shape: f32[1,32], index: 4, kind: input, shape index: {}]
  %s5 = inlined_call_operand.vmem [shape: f32[1,32], index: 5, kind: input, shape index: {}]
  %s6 = inlined_call_operand.vmem [shape: f32[2,8,8,32], index: 6, kind: output, shape index: {}]
  %s7 = sld [smem:[#allocation0]]
  $region57: #{pixelcnn_layer_down.6} parent=0
    _
  %s9 = ssub.s32 1, %s7
  %s10 = scalar_select 0, %s9, %s7
  loop: start=0, step=1, limit=4
  $region2: #{pixelcnn_layer_down.6} parent=0 // loop_pre_header
    _
  $region3: #{pixelcnn_layer_down.6} parent=0 // loop_header
    %s12 = sphi 0, %s16
    %p13 = scmp.ge.s32.totalorder %s12, 4
    %s22 = sphi 0, %s24
    %s25 = sphi 0, %s22
    %s26 = sphi 0, %s25
    %s42 = sphi 0, %s26
    %s48 = sphi 0, %s50
    %s51 = sphi 0, %s48
    %s52 = sphi 0, %s51
    %s68 = sphi 0, %s52
    %s72 = sphi 0, %s72
    %s74 = sphi 0, %s72
    %s75 = sphi 0, %s74
    %s89 = sphi 0, %s75
    %s93 = sphi 0, %s93
    %s95 = sphi 0, %s93
    %s96 = sphi 0, %s95
    %s110 = sphi 0, %s96
    %s114 = sphi 0, %s114
    %s116 = sphi 0, %s114
    %s117 = sphi 0, %s116
    %s131 = sphi 0, %s117
    %s135 = sphi 0, %s135
    %s137 = sphi 0, %s135
    %s138 = sphi 0, %s137
    %s152 = sphi 0, %s138
    %s158 = sphi 0, %s160
    %s161 = sphi 0, %s158
    %s162 = sphi 0, %s161
    %s178 = sphi 0, %s162
  $region4: #{pixelcnn_layer_down.6} parent=0 // loop_header_branch
    %15 = sbr.rel (%p13) target = $region8
  $region5: #{pixelcnn_layer_down.6} parent=0 // loop_body
    %s17 = ssub.s32 %s12, 1
    %s18 = ssub.s32 %s12, 2
    %s19 = sadd.s32 %s12, 1
    %s20 = ssub.s32 %s12, %s19
    %p21 = scmp.eq.s32.totalorder %s20, 0
    %s23 = sadd.s32 %s22, 1
    %s24 = scalar_select %p21, %s22, %s23
    %p27 = pneg %p21
    %p28 = scmp.eq.s32.totalorder %s12, 1
    %p29 = por %p27, %p28
    %p30 = scmp.ne.s32.totalorder %s22, %s25
    %p31 = scmp.eq.s32.totalorder %s12, 0
    %p32 = por %p30, %p31
    %p33 = scmp.ne.s32.totalorder %s22, %s25
    %p34 = scmp.eq.s32.totalorder %s17, 1
    %p35 = por %p33, %p34
    %p36 = scmp.ne.s32.totalorder %s25, %s26
    %p37 = scmp.eq.s32.totalorder %s17, 0
    %p38 = por %p36, %p37
    %p39 = scmp.ne.s32.totalorder %s25, %s26
    %p40 = scmp.eq.s32.totalorder %s18, 1
    %p41 = por %p39, %p40
    %p43 = scmp.ne.s32.totalorder %s26, %s42
    %p44 = scmp.eq.s32.totalorder %s18, 0
    %p45 = por %p43, %p44
    %s46 = ssub.s32 %s12, %s19
    %p47 = scmp.eq.s32.totalorder %s46, 0
    %s49 = sadd.s32 %s48, 1
    %s50 = scalar_select %p47, %s48, %s49
    %p53 = pneg %p47
    %p54 = scmp.eq.s32.totalorder %s12, 1
    %p55 = por %p53, %p54
    %p56 = scmp.ne.s32.totalorder %s48, %s51
    %p57 = scmp.eq.s32.totalorder %s12, 0
    %p58 = por %p56, %p57
    %p59 = scmp.ne.s32.totalorder %s48, %s51
    %p60 = scmp.eq.s32.totalorder %s17, 1
    %p61 = por %p59, %p60
    %p62 = scmp.ne.s32.totalorder %s51, %s52
    %p63 = scmp.eq.s32.totalorder %s17, 0
    %p64 = por %p62, %p63
    %p65 = scmp.ne.s32.totalorder %s51, %s52
    %p66 = scmp.eq.s32.totalorder %s18, 1
    %p67 = por %p65, %p66
    %p69 = scmp.ne.s32.totalorder %s52, %s68
    %p70 = scmp.eq.s32.totalorder %s18, 0
    %p71 = por %p69, %p70
    %s73 = sadd.s32 %s72, 1
    %p76 = scmp.eq.s32.totalorder %s12, 1
    %p77 = scmp.ne.s32.totalorder %s72, %s74
    %p78 = scmp.eq.s32.totalorder %s12, 0
    %p79 = por %p77, %p78
    %p80 = scmp.ne.s32.totalorder %s72, %s74
    %p81 = scmp.eq.s32.totalorder %s17, 1
    %p82 = por %p80, %p81
    %p83 = scmp.ne.s32.totalorder %s74, %s75
    %p84 = scmp.eq.s32.totalorder %s17, 0
    %p85 = por %p83, %p84
    %p86 = scmp.ne.s32.totalorder %s74, %s75
    %p87 = scmp.eq.s32.totalorder %s18, 1
    %p88 = por %p86, %p87
    %p90 = scmp.ne.s32.totalorder %s75, %s89
    %p91 = scmp.eq.s32.totalorder %s18, 0
    %p92 = por %p90, %p91
    %s94 = sadd.s32 %s93, 1
    %p97 = scmp.eq.s32.totalorder %s12, 1
    %p98 = scmp.ne.s32.totalorder %s93, %s95
    %p99 = scmp.eq.s32.totalorder %s12, 0
    %p100 = por %p98, %p99
    %p101 = scmp.ne.s32.totalorder %s93, %s95
    %p102 = scmp.eq.s32.totalorder %s17, 1
    %p103 = por %p101, %p102
    %p104 = scmp.ne.s32.totalorder %s95, %s96
    %p105 = scmp.eq.s32.totalorder %s17, 0
    %p106 = por %p104, %p105
    %p107 = scmp.ne.s32.totalorder %s95, %s96
    %p108 = scmp.eq.s32.totalorder %s18, 1
    %p109 = por %p107, %p108
    %p111 = scmp.ne.s32.totalorder %s96, %s110
    %p112 = scmp.eq.s32.totalorder %s18, 0
    %p113 = por %p111, %p112
    %s115 = sadd.s32 %s114, 1
    %p118 = scmp.eq.s32.totalorder %s12, 1
    %p119 = scmp.ne.s32.totalorder %s114, %s116
    %p120 = scmp.eq.s32.totalorder %s12, 0
    %p121 = por %p119, %p120
    %p122 = scmp.ne.s32.totalorder %s114, %s116
    %p123 = scmp.eq.s32.totalorder %s17, 1
    %p124 = por %p122, %p123
    %p125 = scmp.ne.s32.totalorder %s116, %s117
    %p126 = scmp.eq.s32.totalorder %s17, 0
    %p127 = por %p125, %p126
    %p128 = scmp.ne.s32.totalorder %s116, %s117
    %p129 = scmp.eq.s32.totalorder %s18, 1
    %p130 = por %p128, %p129
    %p132 = scmp.ne.s32.totalorder %s117, %s131
    %p133 = scmp.eq.s32.totalorder %s18, 0
    %p134 = por %p132, %p133
    %s136 = sadd.s32 %s135, 1
    %p139 = scmp.eq.s32.totalorder %s12, 1
    %p140 = scmp.ne.s32.totalorder %s135, %s137
    %p141 = scmp.eq.s32.totalorder %s12, 0
    %p142 = por %p140, %p141
    %p143 = scmp.ne.s32.totalorder %s135, %s137
    %p144 = scmp.eq.s32.totalorder %s17, 1
    %p145 = por %p143, %p144
    %p146 = scmp.ne.s32.totalorder %s137, %s138
    %p147 = scmp.eq.s32.totalorder %s17, 0
    %p148 = por %p146, %p147
    %p149 = scmp.ne.s32.totalorder %s137, %s138
    %p150 = scmp.eq.s32.totalorder %s18, 1
    %p151 = por %p149, %p150
    %p153 = scmp.ne.s32.totalorder %s138, %s152
    %p154 = scmp.eq.s32.totalorder %s18, 0
    %p155 = por %p153, %p154
    %s156 = ssub.s32 %s12, %s19
    %p157 = scmp.eq.s32.totalorder %s156, 0
    %s159 = sadd.s32 %s158, 1
    %s160 = scalar_select %p157, %s158, %s159
    %p163 = pneg %p157
    %p164 = scmp.eq.s32.totalorder %s12, 1
    %p165 = por %p163, %p164
    %p166 = scmp.ne.s32.totalorder %s158, %s161
    %p167 = scmp.eq.s32.totalorder %s12, 0
    %p168 = por %p166, %p167
    %p169 = scmp.ne.s32.totalorder %s158, %s161
    %p170 = scmp.eq.s32.totalorder %s17, 1
    %p171 = por %p169, %p170
    %p172 = scmp.ne.s32.totalorder %s161, %s162
    %p173 = scmp.eq.s32.totalorder %s17, 0
    %p174 = por %p172, %p173
    %p175 = scmp.ne.s32.totalorder %s161, %s162
    %p176 = scmp.eq.s32.totalorder %s18, 1
    %p177 = por %p175, %p176
    %p179 = scmp.ne.s32.totalorder %s162, %s178
    %p180 = scmp.eq.s32.totalorder %s18, 0
    %p181 = por %p179, %p180
    %p182 = scmp.le.s32.totalorder 1, %s12
    %p183 = scmp.lt.s32.totalorder %s12, 3
    %p184 = pnand %p182, %p183
    %p185 = pneg %p184
    // Predicated region
    $region9: #{pixelcnn_layer_down.6} parent=5 // pred_check
      _
    $region10: #{pixelcnn_layer_down.6} parent=5 // pred_check_branch
      %187 = sbr.rel (%p184) target = $region12
    $region11: #{pixelcnn_layer_down.6} parent=5 // pred_region
      %s188 = ssub.s32 %s12, 1
      // Predicated region
      $region13: #{pixelcnn_layer_down.6} parent=11 // pred_check
        %p189 = pneg %p85
      $region14: #{pixelcnn_layer_down.6} parent=11 // pred_check_branch
        %191 = sbr.rel (%p189) target = $region16
      $region15: #{pixelcnn_layer_down.6} parent=11 // pred_region
        _
      $region16: #{pixelcnn_layer_down.6} parent=11 // pred_fallthru
        _
      // Predicated region
      $region17: #{pixelcnn_layer_down.6} parent=11 // pred_check
        %p192 = pneg %p106
      $region18: #{pixelcnn_layer_down.6} parent=11 // pred_check_branch
        %194 = sbr.rel (%p192) target = $region20
      $region19: #{pixelcnn_layer_down.6} parent=11 // pred_region
        _
      $region20: #{pixelcnn_layer_down.6} parent=11 // pred_fallthru
        _
      // Predicated region
      $region21: #{pixelcnn_layer_down.6} parent=11 // pred_check
        %p195 = pneg %p127
      $region22: #{pixelcnn_layer_down.6} parent=11 // pred_check_branch
        %197 = sbr.rel (%p195) target = $region24
      $region23: #{pixelcnn_layer_down.6} parent=11 // pred_region
        _
      $region24: #{pixelcnn_layer_down.6} parent=11 // pred_fallthru
        _
      // Predicated region
      $region25: #{pixelcnn_layer_down.6} parent=11 // pred_check
        %p198 = pneg %p148
      $region26: #{pixelcnn_layer_down.6} parent=11 // pred_check_branch
        %200 = sbr.rel (%p198) target = $region28
      $region27: #{pixelcnn_layer_down.6} parent=11 // pred_region
        _
      $region28: #{pixelcnn_layer_down.6} parent=11 // pred_fallthru
        _
    $region12: #{pixelcnn_layer_down.6} parent=5 // pred_fallthru
      _
    %p201 = scmp.lt.s32.totalorder %s12, 2
    // Predicated region
    $region29: #{pixelcnn_layer_down.6} parent=5 // pred_check
      %p202 = pneg %p201
    $region30: #{pixelcnn_layer_down.6} parent=5 // pred_check_branch
      %204 = sbr.rel (%p202) target = $region32
    $region31: #{pixelcnn_layer_down.6} parent=5 // pred_region
      // Predicated region
      $region33: #{pixelcnn_layer_down.6} parent=31 // pred_check
        %p205 = pneg %p32
      $region34: #{pixelcnn_layer_down.6} parent=31 // pred_check_branch
        %207 = sbr.rel (%p205) target = $region36
      $region35: #{pixelcnn_layer_down.6} parent=31 // pred_region
        %p208 = scmp.lt.s32.totalorder %s12, 1
        %s209 = scalar_select %p208, %s12, 1
        %s210 = smul.addr %s209, 8
        %s211 = smul.addr %s210, 8
        %s212 = scalar_lea.vmem %s0, %s211
      $region36: #{pixelcnn_layer_down.6} parent=31 // pred_fallthru
        _
      // Predicated region
      $region37: #{pixelcnn_layer_down.6} parent=31 // pred_check
        %p213 = pneg %p58
      $region38: #{pixelcnn_layer_down.6} parent=31 // pred_check_branch
        %215 = sbr.rel (%p213) target = $region40
      $region39: #{pixelcnn_layer_down.6} parent=31 // pred_region
        %p216 = scmp.lt.s32.totalorder %s12, 1
        %s217 = scalar_select %p216, %s12, 1
        %s218 = smul.addr %s217, 8
        %s219 = smul.addr %s218, 8
        %s220 = scalar_lea.vmem %s1, %s219
      $region40: #{pixelcnn_layer_down.6} parent=31 // pred_fallthru
        _
    $region32: #{pixelcnn_layer_down.6} parent=5 // pred_fallthru
      _
    %p221 = scmp.le.s32.totalorder 1, %s12
    %p222 = scmp.lt.s32.totalorder %s12, 3
    %p223 = pnand %p221, %p222
    %p224 = pneg %p223
    // Predicated region
    $region41: #{pixelcnn_layer_down.6} parent=5 // pred_check
      _
    $region42: #{pixelcnn_layer_down.6} parent=5 // pred_check_branch
      %226 = sbr.rel (%p223) target = $region44
    $region43: #{pixelcnn_layer_down.6} parent=5 // pred_region
      %s227 = ssub.s32 %s12, 1
      %p228 = scmp.lt.s32.totalorder %s17, 1
      %s229 = scalar_select %p228, %s17, 1
      %s230 = smul.addr %s229, 8
      %s231 = smul.addr %s230, 8
      %s232 = scalar_lea.vmem %s0, %s231
      %p233 = pneg %p38
      %p234 = pneg %p35
      %p235 = scmp.lt.s32.totalorder %s17, 1
      %s236 = scalar_select %p235, %s17, 1
      %s237 = smul.addr %s236, 8
      %s238 = smul.addr %s237, 8
      %s239 = scalar_lea.vmem %s1, %s238
      %p240 = pneg %p64
      %p241 = pneg %p61
      %p242 = pneg %p85
      %p243 = pneg %p82
      %p244 = pneg %p106
      %p245 = pneg %p103
      %p246 = pneg %p127
      %p247 = pneg %p124
      %p248 = pneg %p148
      %p249 = pneg %p145
      %p250 = pneg %p174
      %p251 = pneg %p171
      %p252 = scmp.lt.s32.totalorder %s17, 1
      %s253 = scalar_select %p252, %s17, 1
      %s254 = smul.addr %s253, 8
      %s255 = smul.addr %s254, 8
      %s256 = scalar_lea.vmem %s6, %s255
      %p257 = scmp.lt.s32.totalorder %s17, 1
      %s258 = scalar_select %p257, %s17, 1
      %s259 = smul.addr %s258, 8
      %s260 = smul.addr %s259, 8
      %s261 = scalar_lea.vmem %s0, %s260
      %p262 = scmp.lt.s32.totalorder %s17, 1
      %s263 = scalar_select %p262, %s17, 1
      %s264 = smul.addr %s263, 8
      %s265 = smul.addr %s264, 8
      %s266 = scalar_lea.vmem %s1, %s265
      %p267 = scmp.lt.s32.totalorder %s17, 1
      %s268 = scalar_select %p267, %s17, 1
      %s269 = smul.addr %s268, 8
      %s270 = smul.addr %s269, 8
      %s271 = scalar_lea.vmem %s6, %s270
      %v273 = vld [vmem:[%s261] sm:$0xff]
      %v274 = vld [vmem:[%s261 + $0x8] sm:$0xff]
      %v275 = vld [vmem:[%s261 + $0x10] sm:$0xff]
      %v276 = vld [vmem:[%s261 + $0x18] sm:$0xff]
      %v277 = vld [vmem:[%s261 + $0x20] sm:$0xff]
      %v278 = vld [vmem:[%s261 + $0x28] sm:$0xff]
      %v279 = vld [vmem:[%s261 + $0x30] sm:$0xff]
      %v280 = vld [vmem:[%s261 + $0x38] sm:$0xff]
      %v289 = vrot.slane 0.0, 7
      %v290 = vrot.slane %v273, 7
      %v291 = vrot.slane %v274, 7
      %v292 = vrot.slane %v275, 7
      %v293 = vrot.slane %v276, 7
      %v294 = vrot.slane %v277, 7
      %v295 = vrot.slane %v278, 7
      %v296 = vrot.slane %v279, 7
      %vm305 = vcmask 1040384
      %v306 = vsel %vm305, 0.0, %v289
      %v307 = vsel %vm305, 0.0, %v290
      %v308 = vsel %vm305, 0.0, %v291
      %v309 = vsel %vm305, 0.0, %v292
      %v310 = vsel %vm305, 0.0, %v293
      %v311 = vsel %vm305, 0.0, %v294
      %v312 = vsel %vm305, 0.0, %v295
      %v313 = vsel %vm305, 0.0, %v296
      %v314 = vpack.c.bf16 %v307, %v306
      %v315 = vpack.c.bf16 %v309, %v308
      %v316 = vpack.c.bf16 %v311, %v310
      %v317 = vpack.c.bf16 %v313, %v312
      %v318 = vld [vmem:[%s2] sm:$0xf]
      %v319 = vld [vmem:[%s2 + $0x4] sm:$0xf]
      %v320 = vld [vmem:[%s2 + $0x8] sm:$0xf]
      %v321 = vld [vmem:[%s2 + $0xc] sm:$0xf]
      %v322 = vpack.c.bf16 %v273, 0.0
      %v323 = vpack.c.bf16 %v275, %v274
      %v324 = vpack.c.bf16 %v277, %v276
      %v325 = vpack.c.bf16 %v279, %v278
      %v326 = vld [vmem:[%s2 + $0x10] sm:$0xf]
      %v327 = vld [vmem:[%s2 + $0x14] sm:$0xf]
      %v328 = vld [vmem:[%s2 + $0x18] sm:$0xf]
      %v329 = vld [vmem:[%s2 + $0x1c] sm:$0xf]
      %v334 = vunpack.c.l.b16 %v326
      %v335 = vunpack.c.l.b16 %v327
      %v336 = vunpack.c.l.b16 %v328
      %v337 = vunpack.c.l.b16 %v329
      %v338 = vpack.c.b16 %v335, %v334
      %v339 = vpack.c.b16 %v337, %v336
      %vm342 = vcmask 261120
      %v344 = vsel %vm342, %v322, 0
      %v347 = vsel %vm342, %v323, 0
      %v350 = vsel %vm342, %v324, 0
      %v353 = vsel %vm342, %v325, 0
      %355 = vmatprep.subr.bf16.mxu0 0
      %356 = vmatpush1.bf16.msra.mxu0 %v338
      %357 = vmatprep.subr.bf16.mxu0 0
      %358 = vmatpush1.bf16.msra.mxu0 %v339
      %359 = vmatprep.subr.bf16.mxu0 0
      %360 = vmatpush1.bf16.msra.mxu0 0
      %361 = vmatprep.subr.bf16.mxu0 0
      %362 = vmatpush1.bf16.msra.mxu0 0
      %363 = vmatprep.subr.bf16.mxu0 0
      %364 = vmatpush1.bf16.msra.mxu0 0
      %365 = vmatprep.subr.bf16.mxu0 0
      %366 = vmatpush1.bf16.msra.mxu0 0
      %367 = vmatprep.subr.bf16.mxu0 0
      %368 = vmatpush1.bf16.msra.mxu0 0
      %369 = vmatprep.subr.bf16.mxu0 0
      %370 = vmatpush1.bf16.msra.mxu0 0
      %371 = vmatprep.subr.bf16.mxu0 0
      %372 = vmatpush1.bf16.msra.mxu0 0
      %373 = vmatprep.subr.bf16.mxu0 0
      %374 = vmatpush1.bf16.msra.mxu0 0
      %375 = vmatprep.subr.bf16.mxu0 0
      %376 = vmatpush1.bf16.msra.mxu0 0
      %377 = vmatprep.subr.bf16.mxu0 0
      %378 = vmatpush1.bf16.msra.mxu0 0
      %379 = vmatprep.subr.bf16.mxu0 0
      %380 = vmatpush1.bf16.msra.mxu0 0
      %381 = vmatprep.subr.bf16.mxu0 0
      %382 = vmatpush1.bf16.msra.mxu0 0
      %383 = vmatprep.subr.bf16.mxu0 0
      %384 = vmatpush1.bf16.msra.mxu0 0
      %385 = vmatprep.subr.bf16.mxu0 0
      %386 = vmatpush1.bf16.msra.mxu0 0
      %387 = vmatprep.mubr.bf16.mxu0 0
      %388 = vmatmul.mubr.bf16.gmra.mrb[0].mxu0 %v344
      %v389 = vpop.f32.mrb[0].mxu0
      %v390 = vadd.f32 0.0, %v389
      %v391 = vpop.f32.mrb[0].mxu0
      %v392 = vpop.f32.mrb[0].mxu0
      %v393 = vadd.f32 0.0, %v392
      %v394 = vpop.f32.mrb[0].mxu0
      %395 = vmatprep.mubr.bf16.mxu0 0
      %396 = vmatmul.mubr.bf16.gmra.mrb[0].mxu0 %v347
      %v397 = vpop.f32.mrb[0].mxu0
      %v398 = vadd.f32 0.0, %v397
      %v399 = vpop.f32.mrb[0].mxu0
      %v400 = vpop.f32.mrb[0].mxu0
      %v401 = vadd.f32 0.0, %v400
      %v402 = vpop.f32.mrb[0].mxu0
      %403 = vmatprep.mubr.bf16.mxu0 0
      %404 = vmatmul.mubr.bf16.gmra.mrb[0].mxu0 %v350
      %v405 = vpop.f32.mrb[0].mxu0
      %v406 = vadd.f32 0.0, %v405
      %v407 = vpop.f32.mrb[0].mxu0
      %v408 = vpop.f32.mrb[0].mxu0
      %v409 = vadd.f32 0.0, %v408
      %v410 = vpop.f32.mrb[0].mxu0
      %411 = vmatprep.mubr.bf16.mxu0 0
      %412 = vmatmul.mubr.bf16.gmra.mrb[0].mxu0 %v353
      %v413 = vpop.f32.mrb[0].mxu0
      %v414 = vadd.f32 0.0, %v413
      %v415 = vpop.f32.mrb[0].mxu0
      %v416 = vpop.f32.mrb[0].mxu0
      %v417 = vadd.f32 0.0, %v416
      %v418 = vpop.f32.mrb[0].mxu0
      %419 = vdwg.mxu0
      %v424 = vunpack.c.l.b16 %v318
      %v425 = vunpack.c.l.b16 %v319
      %v426 = vunpack.c.l.b16 %v320
      %v427 = vunpack.c.l.b16 %v321
      %v428 = vpack.c.b16 %v425, %v424
      %v429 = vpack.c.b16 %v427, %v426
      %v433 = vsel %vm342, %v314, 0
      %v436 = vsel %vm342, %v315, 0
      %v439 = vsel %vm342, %v316, 0
      %v442 = vsel %vm342, %v317, 0
      %444 = vmatprep.subr.bf16.mxu0 0
      %445 = vmatpush1.bf16.msra.mxu0 %v428
      %446 = vmatprep.subr.bf16.mxu0 0
      %447 = vmatpush1.bf16.msra.mxu0 %v429
      %448 = vmatprep.subr.bf16.mxu0 0
      %449 = vmatpush1.bf16.msra.mxu0 0
      %450 = vmatprep.subr.bf16.mxu0 0
      %451 = vmatpush1.bf16.msra.mxu0 0
      %452 = vmatprep.subr.bf16.mxu0 0
      %453 = vmatpush1.bf16.msra.mxu0 0
      %454 = vmatprep.subr.bf16.mxu0 0
      %455 = vmatpush1.bf16.msra.mxu0 0
      %456 = vmatprep.subr.bf16.mxu0 0
      %457 = vmatpush1.bf16.msra.mxu0 0
      %458 = vmatprep.subr.bf16.mxu0 0
      %459 = vmatpush1.bf16.msra.mxu0 0
      %460 = vmatprep.subr.bf16.mxu0 0
      %461 = vmatpush1.bf16.msra.mxu0 0
      %462 = vmatprep.subr.bf16.mxu0 0
      %463 = vmatpush1.bf16.msra.mxu0 0
      %464 = vmatprep.subr.bf16.mxu0 0
      %465 = vmatpush1.bf16.msra.mxu0 0
      %466 = vmatprep.subr.bf16.mxu0 0
      %467 = vmatpush1.bf16.msra.mxu0 0
      %468 = vmatprep.subr.bf16.mxu0 0
      %469 = vmatpush1.bf16.msra.mxu0 0
      %470 = vmatprep.subr.bf16.mxu0 0
      %471 = vmatpush1.bf16.msra.mxu0 0
      %472 = vmatprep.subr.bf16.mxu0 0
      %473 = vmatpush1.bf16.msra.mxu0 0
      %474 = vmatprep.subr.bf16.mxu0 0
      %475 = vmatpush1.bf16.msra.mxu0 0
      %476 = vmatprep.mubr.bf16.mxu0 0
      %477 = vmatmul.mubr.bf16.gmra.mrb[0].mxu0 %v433
      %v478 = vpop.f32.mrb[0].mxu0
      %v479 = vadd.f32 %v390, %v478
      %v480 = vpop.f32.mrb[0].mxu0
      %v481 = vpop.f32.mrb[0].mxu0
      %v482 = vadd.f32 %v393, %v481
      %v483 = vpop.f32.mrb[0].mxu0
      %484 = vmatprep.mubr.bf16.mxu0 0
      %485 = vmatmul.mubr.bf16.gmra.mrb[0].mxu0 %v436
      %v486 = vpop.f32.mrb[0].mxu0
      %v487 = vadd.f32 %v398, %v486
      %v488 = vpop.f32.mrb[0].mxu0
      %v489 = vpop.f32.mrb[0].mxu0
      %v490 = vadd.f32 %v401, %v489
      %v491 = vpop.f32.mrb[0].mxu0
      %492 = vmatprep.mubr.bf16.mxu0 0
      %493 = vmatmul.mubr.bf16.gmra.mrb[0].mxu0 %v439
      %v494 = vpop.f32.mrb[0].mxu0
      %v495 = vadd.f32 %v406, %v494
      %v496 = vpop.f32.mrb[0].mxu0
      %v497 = vpop.f32.mrb[0].mxu0
      %v498 = vadd.f32 %v409, %v497
      %v499 = vpop.f32.mrb[0].mxu0
      %500 = vmatprep.mubr.bf16.mxu0 0
      %501 = vmatmul.mubr.bf16.gmra.mrb[0].mxu0 %v442
      %v502 = vpop.f32.mrb[0].mxu0
      %v503 = vadd.f32 %v414, %v502
      %v504 = vpop.f32.mrb[0].mxu0
      %v505 = vpop.f32.mrb[0].mxu0
      %v506 = vadd.f32 %v417, %v505
      %v507 = vpop.f32.mrb[0].mxu0
      %508 = vdwg.mxu0
      %v509 = vrot.slane 0.0, 1
      %v510 = vrot.slane %v273, 1
      %v511 = vrot.slane %v274, 1
      %v512 = vrot.slane %v275, 1
      %v513 = vrot.slane %v276, 1
      %v514 = vrot.slane %v277, 1
      %v515 = vrot.slane %v278, 1
      %v516 = vrot.slane %v279, 1
      %vm525 = vcmask 1046528
      %v526 = vsel %vm525, %v509, 0.0
      %v527 = vsel %vm525, %v510, 0.0
      %v528 = vsel %vm525, %v511, 0.0
      %v529 = vsel %vm525, %v512, 0.0
      %v530 = vsel %vm525, %v513, 0.0
      %v531 = vsel %vm525, %v514, 0.0
      %v532 = vsel %vm525, %v515, 0.0
      %v533 = vsel %vm525, %v516, 0.0
      %v534 = vpack.c.bf16 %v527, %v526
      %v535 = vpack.c.bf16 %v529, %v528
      %v536 = vpack.c.bf16 %v531, %v530
      %v537 = vpack.c.bf16 %v533, %v532
      %v538 = vld [vmem:[%s2 + $0x20] sm:$0xf]
      %v539 = vld [vmem:[%s2 + $0x24] sm:$0xf]
      %v540 = vld [vmem:[%s2 + $0x28] sm:$0xf]
      %v541 = vld [vmem:[%s2 + $0x2c] sm:$0xf]
      %v546 = vunpack.c.l.b16 %v538
      %v547 = vunpack.c.l.b16 %v539
      %v548 = vunpack.c.l.b16 %v540
      %v549 = vunpack.c.l.b16 %v541
      %v550 = vpack.c.b16 %v547, %v546
      %v551 = vpack.c.b16 %v549, %v548
      %v555 = vsel %vm342, %v534, 0
      %v558 = vsel %vm342, %v535, 0
      %v561 = vsel %vm342, %v536, 0
      %v564 = vsel %vm342, %v537, 0
      %566 = vmatprep.subr.bf16.mxu0 0
      %567 = vmatpush1.bf16.msra.mxu0 %v550
      %568 = vmatprep.subr.bf16.mxu0 0
      %569 = vmatpush1.bf16.msra.mxu0 %v551
      %570 = vmatprep.subr.bf16.mxu0 0
      %571 = vmatpush1.bf16.msra.mxu0 0
      %572 = vmatprep.subr.bf16.mxu0 0
      %573 = vmatpush1.bf16.msra.mxu0 0
      %574 = vmatprep.subr.bf16.mxu0 0
      %575 = vmatpush1.bf16.msra.mxu0 0
      %576 = vmatprep.subr.bf16.mxu0 0
      %577 = vmatpush1.bf16.msra.mxu0 0
      %578 = vmatprep.subr.bf16.mxu0 0
      %579 = vmatpush1.bf16.msra.mxu0 0
      %580 = vmatprep.subr.bf16.mxu0 0
      %581 = vmatpush1.bf16.msra.mxu0 0
      %582 = vmatprep.subr.bf16.mxu0 0
      %583 = vmatpush1.bf16.msra.mxu0 0
      %584 = vmatprep.subr.bf16.mxu0 0
      %585 = vmatpush1.bf16.msra.mxu0 0
      %586 = vmatprep.subr.bf16.mxu0 0
      %587 = vmatpush1.bf16.msra.mxu0 0
      %588 = vmatprep.subr.bf16.mxu0 0
      %589 = vmatpush1.bf16.msra.mxu0 0
      %590 = vmatprep.subr.bf16.mxu0 0
      %591 = vmatpush1.bf16.msra.mxu0 0
      %592 = vmatprep.subr.bf16.mxu0 0
      %593 = vmatpush1.bf16.msra.mxu0 0
      %594 = vmatprep.subr.bf16.mxu0 0
      %595 = vmatpush1.bf16.msra.mxu0 0
      %596 = vmatprep.subr.bf16.mxu0 0
      %597 = vmatpush1.bf16.msra.mxu0 0
      %598 = vmatprep.mubr.bf16.mxu0 0
      %599 = vmatmul.mubr.bf16.gmra.mrb[0].mxu0 %v555
      %v600 = vpop.f32.mrb[0].mxu0
      %v601 = vadd.f32 0.0, %v600
      %v602 = vpop.f32.mrb[0].mxu0
      %v603 = vpop.f32.mrb[0].mxu0
      %v604 = vadd.f32 0.0, %v603
      %v605 = vpop.f32.mrb[0].mxu0
      %606 = vmatprep.mubr.bf16.mxu0 0
      %607 = vmatmul.mubr.bf16.gmra.mrb[0].mxu0 %v558
      %v608 = vpop.f32.mrb[0].mxu0
      %v609 = vadd.f32 0.0, %v608
      %v610 = vpop.f32.mrb[0].mxu0
      %v611 = vpop.f32.mrb[0].mxu0
      %v612 = vadd.f32 0.0, %v611
      %v613 = vpop.f32.mrb[0].mxu0
      %614 = vmatprep.mubr.bf16.mxu0 0
      %615 = vmatmul.mubr.bf16.gmra.mrb[0].mxu0 %v561
      %v616 = vpop.f32.mrb[0].mxu0
      %v617 = vadd.f32 0.0, %v616
      %v618 = vpop.f32.mrb[0].mxu0
      %v619 = vpop.f32.mrb[0].mxu0
      %v620 = vadd.f32 0.0, %v619
      %v621 = vpop.f32.mrb[0].mxu0
      %622 = vmatprep.mubr.bf16.mxu0 0
      %623 = vmatmul.mubr.bf16.gmra.mrb[0].mxu0 %v564
      %v624 = vpop.f32.mrb[0].mxu0
      %v625 = vadd.f32 0.0, %v624
      %v626 = vpop.f32.mrb[0].mxu0
      %v627 = vpop.f32.mrb[0].mxu0
      %v628 = vadd.f32 0.0, %v627
      %v629 = vpop.f32.mrb[0].mxu0
      %630 = vdwg.mxu0
      %v631 = vadd.f32 %v479, %v601
      %v632 = vadd.f32 %v482, %v604
      %v633 = vadd.f32 %v487, %v609
      %v634 = vadd.f32 %v490, %v612
      %v635 = vadd.f32 %v495, %v617
      %v636 = vadd.f32 %v498, %v620
      %v637 = vadd.f32 %v503, %v625
      %v638 = vadd.f32 %v506, %v628
      %v640 = vrot.slane %v280, 7
      %v642 = vsel %vm305, 0.0, %v640
      %v643 = vpack.c.bf16 %v308, %v307
      %v644 = vpack.c.bf16 %v310, %v309
      %v645 = vpack.c.bf16 %v312, %v311
      %v646 = vpack.c.bf16 %v642, %v313
      %v647 = vld [vmem:[%s2 + $0x30] sm:$0xf]
      %v648 = vld [vmem:[%s2 + $0x34] sm:$0xf]
      %v649 = vld [vmem:[%s2 + $0x38] sm:$0xf]
      %v650 = vld [vmem:[%s2 + $0x3c] sm:$0xf]
      %v655 = vunpack.c.l.b16 %v647
      %v656 = vunpack.c.l.b16 %v648
      %v657 = vunpack.c.l.b16 %v649
      %v658 = vunpack.c.l.b16 %v650
      %v659 = vpack.c.b16 %v656, %v655
      %v660 = vpack.c.b16 %v658, %v657
      %v664 = vsel %vm342, %v643, 0
      %v667 = vsel %vm342, %v644, 0
      %v670 = vsel %vm342, %v645, 0
      %v673 = vsel %vm342, %v646, 0
      %675 = vmatprep.subr.bf16.mxu0 0
      %676 = vmatpush1.bf16.msra.mxu0 %v659
      %677 = vmatprep.subr.bf16.mxu0 0
      %678 = vmatpush1.bf16.msra.mxu0 %v660
      %679 = vmatprep.subr.bf16.mxu0 0
      %680 = vmatpush1.bf16.msra.mxu0 0
      %681 = vmatprep.subr.bf16.mxu0 0
      %682 = vmatpush1.bf16.msra.mxu0 0
      %683 = vmatprep.subr.bf16.mxu0 0
      %684 = vmatpush1.bf16.msra.mxu0 0
      %685 = vmatprep.subr.bf16.mxu0 0
      %686 = vmatpush1.bf16.msra.mxu0 0
      %687 = vmatprep.subr.bf16.mxu0 0
      %688 = vmatpush1.bf16.msra.mxu0 0
      %689 = vmatprep.subr.bf16.mxu0 0
      %690 = vmatpush1.bf16.msra.mxu0 0
      %691 = vmatprep.subr.bf16.mxu0 0
      %692 = vmatpush1.bf16.msra.mxu0 0
      %693 = vmatprep.subr.bf16.mxu0 0
      %694 = vmatpush1.bf16.msra.mxu0 0
      %695 = vmatprep.subr.bf16.mxu0 0
      %696 = vmatpush1.bf16.msra.mxu0 0
      %697 = vmatprep.subr.bf16.mxu0 0
      %698 = vmatpush1.bf16.msra.mxu0 0
      %699 = vmatprep.subr.bf16.mxu0 0
      %700 = vmatpush1.bf16.msra.mxu0 0
      %701 = vmatprep.subr.bf16.mxu0 0
      %702 = vmatpush1.bf16.msra.mxu0 0
      %703 = vmatprep.subr.bf16.mxu0 0
      %704 = vmatpush1.bf16.msra.mxu0 0
      %705 = vmatprep.subr.bf16.mxu0 0
      %706 = vmatpush1.bf16.msra.mxu0 0
      %707 = vmatprep.mubr.bf16.mxu0 0
      %708 = vmatmul.mubr.bf16.gmra.mrb[0].mxu0 %v664
      %v709 = vpop.f32.mrb[0].mxu0
      %v710 = vadd.f32 0.0, %v709
      %v711 = vpop.f32.mrb[0].mxu0
      %v712 = vpop.f32.mrb[0].mxu0
      %v713 = vadd.f32 0.0, %v712
      %v714 = vpop.f32.mrb[0].mxu0
      %715 = vmatprep.mubr.bf16.mxu0 0
      %716 = vmatmul.mubr.bf16.gmra.mrb[0].mxu0 %v667
      %v717 = vpop.f32.mrb[0].mxu0
      %v718 = vadd.f32 0.0, %v717
      %v719 = vpop.f32.mrb[0].mxu0
      %v720 = vpop.f32.mrb[0].mxu0
      %v721 = vadd.f32 0.0, %v720
      %v722 = vpop.f32.mrb[0].mxu0
      %723 = vmatprep.mubr.bf16.mxu0 0
      %724 = vmatmul.mubr.bf16.gmra.mrb[0].mxu0 %v670
      %v725 = vpop.f32.mrb[0].mxu0
      %v726 = vadd.f32 0.0, %v725
      %v727 = vpop.f32.mrb[0].mxu0
      %v728 = vpop.f32.mrb[0].mxu0
      %v729 = vadd.f32 0.0, %v728
      %v730 = vpop.f32.mrb[0].mxu0
      %731 = vmatprep.mubr.bf16.mxu0 0
      %732 = vmatmul.mubr.bf16.gmra.mrb[0].mxu0 %v673
      %v733 = vpop.f32.mrb[0].mxu0
      %v734 = vadd.f32 0.0, %v733
      %v735 = vpop.f32.mrb[0].mxu0
      %v736 = vpop.f32.mrb[0].mxu0
      %v737 = vadd.f32 0.0, %v736
      %v738 = vpop.f32.mrb[0].mxu0
      %739 = vdwg.mxu0
      %v740 = vadd.f32 %v631, %v710
      %v741 = vadd.f32 %v632, %v713
      %v742 = vadd.f32 %v633, %v718
      %v743 = vadd.f32 %v634, %v721
      %v744 = vadd.f32 %v635, %v726
      %v745 = vadd.f32 %v636, %v729
      %v746 = vadd.f32 %v637, %v734
      %v747 = vadd.f32 %v638, %v737
      %v748 = vpack.c.bf16 %v274, %v273
      %v749 = vpack.c.bf16 %v276, %v275
      %v750 = vpack.c.bf16 %v278, %v277
      %v751 = vpack.c.bf16 %v280, %v279
      %v752 = vld [vmem:[%s2 + $0x40] sm:$0xf]
      %v753 = vld [vmem:[%s2 + $0x44] sm:$0xf]
      %v754 = vld [vmem:[%s2 + $0x48] sm:$0xf]
      %v755 = vld [vmem:[%s2 + $0x4c] sm:$0xf]
      %v760 = vunpack.c.l.b16 %v752
      %v761 = vunpack.c.l.b16 %v753
      %v762 = vunpack.c.l.b16 %v754
      %v763 = vunpack.c.l.b16 %v755
      %v764 = vpack.c.b16 %v761, %v760
      %v765 = vpack.c.b16 %v763, %v762
      %v769 = vsel %vm342, %v748, 0
      %v772 = vsel %vm342, %v749, 0
      %v775 = vsel %vm342, %v750, 0
      %v778 = vsel %vm342, %v751, 0
      %780 = vmatprep.subr.bf16.mxu0 0
      %781 = vmatpush1.bf16.msra.mxu0 %v764
      %782 = vmatprep.subr.bf16.mxu0 0
      %783 = vmatpush1.bf16.msra.mxu0 %v765
      %784 = vmatprep.subr.bf16.mxu0 0
      %785 = vmatpush1.bf16.msra.mxu0 0
      %786 = vmatprep.subr.bf16.mxu0 0
      %787 = vmatpush1.bf16.msra.mxu0 0
      %788 = vmatprep.subr.bf16.mxu0 0
      %789 = vmatpush1.bf16.msra.mxu0 0
      %790 = vmatprep.subr.bf16.mxu0 0
      %791 = vmatpush1.bf16.msra.mxu0 0
      %792 = vmatprep.subr.bf16.mxu0 0
      %793 = vmatpush1.bf16.msra.mxu0 0
      %794 = vmatprep.subr.bf16.mxu0 0
      %795 = vmatpush1.bf16.msra.mxu0 0
      %796 = vmatprep.subr.bf16.mxu0 0
      %797 = vmatpush1.bf16.msra.mxu0 0
      %798 = vmatprep.subr.bf16.mxu0 0
      %799 = vmatpush1.bf16.msra.mxu0 0
      %800 = vmatprep.subr.bf16.mxu0 0
      %801 = vmatpush1.bf16.msra.mxu0 0
      %802 = vmatprep.subr.bf16.mxu0 0
      %803 = vmatpush1.bf16.msra.mxu0 0
      %804 = vmatprep.subr.bf16.mxu0 0
      %805 = vmatpush1.bf16.msra.mxu0 0
      %806 = vmatprep.subr.bf16.mxu0 0
      %807 = vmatpush1.bf16.msra.mxu0 0
      %808 = vmatprep.subr.bf16.mxu0 0
      %809 = vmatpush1.bf16.msra.mxu0 0
      %810 = vmatprep.subr.bf16.mxu0 0
      %811 = vmatpush1.bf16.msra.mxu0 0
      %812 = vmatprep.mubr.bf16.mxu0 0
      %813 = vmatmul.mubr.bf16.gmra.mrb[0].mxu0 %v769
      %v814 = vpop.f32.mrb[0].mxu0
      %v815 = vadd.f32 0.0, %v814
      %v816 = vpop.f32.mrb[0].mxu0
      %v817 = vpop.f32.mrb[0].mxu0
      %v818 = vadd.f32 0.0, %v817
      %v819 = vpop.f32.mrb[0].mxu0
      %820 = vmatprep.mubr.bf16.mxu0 0
      %821 = vmatmul.mubr.bf16.gmra.mrb[0].mxu0 %v772
      %v822 = vpop.f32.mrb[0].mxu0
      %v823 = vadd.f32 0.0, %v822
      %v824 = vpop.f32.mrb[0].mxu0
      %v825 = vpop.f32.mrb[0].mxu0
      %v826 = vadd.f32 0.0, %v825
      %v827 = vpop.f32.mrb[0].mxu0
      %828 = vmatprep.mubr.bf16.mxu0 0
      %829 = vmatmul.mubr.bf16.gmra.mrb[0].mxu0 %v775
      %v830 = vpop.f32.mrb[0].mxu0
      %v831 = vadd.f32 0.0, %v830
      %v832 = vpop.f32.mrb[0].mxu0
      %v833 = vpop.f32.mrb[0].mxu0
      %v834 = vadd.f32 0.0, %v833
      %v835 = vpop.f32.mrb[0].mxu0
      %836 = vmatprep.mubr.bf16.mxu0 0
      %837 = vmatmul.mubr.bf16.gmra.mrb[0].mxu0 %v778
      %v838 = vpop.f32.mrb[0].mxu0
      %v839 = vadd.f32 0.0, %v838
      %v840 = vpop.f32.mrb[0].mxu0
      %v841 = vpop.f32.mrb[0].mxu0
      %v842 = vadd.f32 0.0, %v841
      %v843 = vpop.f32.mrb[0].mxu0
      %844 = vdwg.mxu0
      %v845 = vadd.f32 %v740, %v815
      %v846 = vadd.f32 %v741, %v818
      %v847 = vadd.f32 %v742, %v823
      %v848 = vadd.f32 %v743, %v826
      %v849 = vadd.f32 %v744, %v831
      %v850 = vadd.f32 %v745, %v834
      %v851 = vadd.f32 %v746, %v839
      %v852 = vadd.f32 %v747, %v842
      %v853 = vrot.slane %v280, 1
      %v855 = vsel %vm525, %v853, 0.0
      %v856 = vpack.c.bf16 %v528, %v527
      %v857 = vpack.c.bf16 %v530, %v529
      %v858 = vpack.c.bf16 %v532, %v531
      %v859 = vpack.c.bf16 %v855, %v533
      %v860 = vld [vmem:[%s2 + $0x50] sm:$0xf]
      %v861 = vld [vmem:[%s2 + $0x54] sm:$0xf]
      %v862 = vld [vmem:[%s2 + $0x58] sm:$0xf]
      %v863 = vld [vmem:[%s2 + $0x5c] sm:$0xf]
      %v868 = vunpack.c.l.b16 %v860
      %v869 = vunpack.c.l.b16 %v861
      %v870 = vunpack.c.l.b16 %v862
      %v871 = vunpack.c.l.b16 %v863
      %v872 = vpack.c.b16 %v869, %v868
      %v873 = vpack.c.b16 %v871, %v870
      %v877 = vsel %vm342, %v856, 0
      %v880 = vsel %vm342, %v857, 0
      %v883 = vsel %vm342, %v858, 0
      %v886 = vsel %vm342, %v859, 0
      %888 = vmatprep.subr.bf16.mxu0 0
      %889 = vmatpush1.bf16.msra.mxu0 %v872
      %890 = vmatprep.subr.bf16.mxu0 0
      %891 = vmatpush1.bf16.msra.mxu0 %v873
      %892 = vmatprep.subr.bf16.mxu0 0
      %893 = vmatpush1.bf16.msra.mxu0 0
      %894 = vmatprep.subr.bf16.mxu0 0
      %895 = vmatpush1.bf16.msra.mxu0 0
      %896 = vmatprep.subr.bf16.mxu0 0
      %897 = vmatpush1.bf16.msra.mxu0 0
      %898 = vmatprep.subr.bf16.mxu0 0
      %899 = vmatpush1.bf16.msra.mxu0 0
      %900 = vmatprep.subr.bf16.mxu0 0
      %901 = vmatpush1.bf16.msra.mxu0 0
      %902 = vmatprep.subr.bf16.mxu0 0
      %903 = vmatpush1.bf16.msra.mxu0 0
      %904 = vmatprep.subr.bf16.mxu0 0
      %905 = vmatpush1.bf16.msra.mxu0 0
      %906 = vmatprep.subr.bf16.mxu0 0
      %907 = vmatpush1.bf16.msra.mxu0 0
      %908 = vmatprep.subr.bf16.mxu0 0
      %909 = vmatpush1.bf16.msra.mxu0 0
      %910 = vmatprep.subr.bf16.mxu0 0
      %911 = vmatpush1.bf16.msra.mxu0 0
      %912 = vmatprep.subr.bf16.mxu0 0
      %913 = vmatpush1.bf16.msra.mxu0 0
      %914 = vmatprep.subr.bf16.mxu0 0
      %915 = vmatpush1.bf16.msra.mxu0 0
      %916 = vmatprep.subr.bf16.mxu0 0
      %917 = vmatpush1.bf16.msra.mxu0 0
      %918 = vmatprep.subr.bf16.mxu0 0
      %919 = vmatpush1.bf16.msra.mxu0 0
      %920 = vmatprep.mubr.bf16.mxu0 0
      %921 = vmatmul.mubr.bf16.gmra.mrb[0].mxu0 %v877
      %v922 = vpop.f32.mrb[0].mxu0
      %v923 = vadd.f32 0.0, %v922
      %v924 = vpop.f32.mrb[0].mxu0
      %v925 = vpop.f32.mrb[0].mxu0
      %v926 = vadd.f32 0.0, %v925
      %v927 = vpop.f32.mrb[0].mxu0
      %928 = vmatprep.mubr.bf16.mxu0 0
      %929 = vmatmul.mubr.bf16.gmra.mrb[0].mxu0 %v880
      %v930 = vpop.f32.mrb[0].mxu0
      %v931 = vadd.f32 0.0, %v930
      %v932 = vpop.f32.mrb[0].mxu0
      %v933 = vpop.f32.mrb[0].mxu0
      %v934 = vadd.f32 0.0, %v933
      %v935 = vpop.f32.mrb[0].mxu0
      %936 = vmatprep.mubr.bf16.mxu0 0
      %937 = vmatmul.mubr.bf16.gmra.mrb[0].mxu0 %v883
      %v938 = vpop.f32.mrb[0].mxu0
      %v939 = vadd.f32 0.0, %v938
      %v940 = vpop.f32.mrb[0].mxu0
      %v941 = vpop.f32.mrb[0].mxu0
      %v942 = vadd.f32 0.0, %v941
      %v943 = vpop.f32.mrb[0].mxu0
      %944 = vmatprep.mubr.bf16.mxu0 0
      %945 = vmatmul.mubr.bf16.gmra.mrb[0].mxu0 %v886
      %v946 = vpop.f32.mrb[0].mxu0
      %v947 = vadd.f32 0.0, %v946
      %v948 = vpop.f32.mrb[0].mxu0
      %v949 = vpop.f32.mrb[0].mxu0
      %v950 = vadd.f32 0.0, %v949
      %v951 = vpop.f32.mrb[0].mxu0
      %952 = vdwg.mxu0
      %v953 = vadd.f32 %v845, %v923
      %v954 = vadd.f32 %v846, %v926
      %v955 = vadd.f32 %v847, %v931
      %v956 = vadd.f32 %v848, %v934
      %v957 = vadd.f32 %v849, %v939
      %v958 = vadd.f32 %v850, %v942
      %v959 = vadd.f32 %v851, %v947
      %v960 = vadd.f32 %v852, %v950
      %v961 = vpack.c.bf16 %v306, %v642
      %v962 = vld [vmem:[%s2 + $0x60] sm:$0xf]
      %v963 = vld [vmem:[%s2 + $0x64] sm:$0xf]
      %v964 = vld [vmem:[%s2 + $0x68] sm:$0xf]
      %v965 = vld [vmem:[%s2 + $0x6c] sm:$0xf]
      %v970 = vunpack.c.l.b16 %v962
      %v971 = vunpack.c.l.b16 %v963
      %v972 = vunpack.c.l.b16 %v964
      %v973 = vunpack.c.l.b16 %v965
      %v974 = vpack.c.b16 %v971, %v970
      %v975 = vpack.c.b16 %v973, %v972
      %v979 = vsel %vm342, %v961, 0
      %981 = vmatprep.subr.bf16.mxu0 0
      %982 = vmatpush1.bf16.msra.mxu0 %v974
      %983 = vmatprep.subr.bf16.mxu0 0
      %984 = vmatpush1.bf16.msra.mxu0 %v975
      %985 = vmatprep.subr.bf16.mxu0 0
      %986 = vmatpush1.bf16.msra.mxu0 0
      %987 = vmatprep.subr.bf16.mxu0 0
      %988 = vmatpush1.bf16.msra.mxu0 0
      %989 = vmatprep.subr.bf16.mxu0 0
      %990 = vmatpush1.bf16.msra.mxu0 0
      %991 = vmatprep.subr.bf16.mxu0 0
      %992 = vmatpush1.bf16.msra.mxu0 0
      %993 = vmatprep.subr.bf16.mxu0 0
      %994 = vmatpush1.bf16.msra.mxu0 0
      %995 = vmatprep.subr.bf16.mxu0 0
      %996 = vmatpush1.bf16.msra.mxu0 0
      %997 = vmatprep.subr.bf16.mxu0 0
      %998 = vmatpush1.bf16.msra.mxu0 0
      %999 = vmatprep.subr.bf16.mxu0 0
      %1000 = vmatpush1.bf16.msra.mxu0 0
      %1001 = vmatprep.subr.bf16.mxu0 0
      %1002 = vmatpush1.bf16.msra.mxu0 0
      %1003 = vmatprep.subr.bf16.mxu0 0
      %1004 = vmatpush1.bf16.msra.mxu0 0
      %1005 = vmatprep.subr.bf16.mxu0 0
      %1006 = vmatpush1.bf16.msra.mxu0 0
      %1007 = vmatprep.subr.bf16.mxu0 0
      %1008 = vmatpush1.bf16.msra.mxu0 0
      %1009 = vmatprep.subr.bf16.mxu0 0
      %1010 = vmatpush1.bf16.msra.mxu0 0
      %1011 = vmatprep.subr.bf16.mxu0 0
      %1012 = vmatpush1.bf16.msra.mxu0 0
      %1013 = vmatprep.mubr.bf16.mxu0 0
      %1014 = vmatmul.mubr.bf16.gmra.mrb[0].mxu0 %v436
      %v1015 = vpop.f32.mrb[0].mxu0
      %v1016 = vadd.f32 0.0, %v1015
      %v1017 = vpop.f32.mrb[0].mxu0
      %v1018 = vpop.f32.mrb[0].mxu0
      %v1019 = vadd.f32 0.0, %v1018
      %v1020 = vpop.f32.mrb[0].mxu0
      %1021 = vmatprep.mubr.bf16.mxu0 0
      %1022 = vmatmul.mubr.bf16.gmra.mrb[0].mxu0 %v439
      %v1023 = vpop.f32.mrb[0].mxu0
      %v1024 = vadd.f32 0.0, %v1023
      %v1025 = vpop.f32.mrb[0].mxu0
      %v1026 = vpop.f32.mrb[0].mxu0
      %v1027 = vadd.f32 0.0, %v1026
      %v1028 = vpop.f32.mrb[0].mxu0
      %1029 = vmatprep.mubr.bf16.mxu0 0
      %1030 = vmatmul.mubr.bf16.gmra.mrb[0].mxu0 %v442
      %v1031 = vpop.f32.mrb[0].mxu0
      %v1032 = vadd.f32 0.0, %v1031
      %v1033 = vpop.f32.mrb[0].mxu0
      %v1034 = vpop.f32.mrb[0].mxu0
      %v1035 = vadd.f32 0.0, %v1034
      %v1036 = vpop.f32.mrb[0].mxu0
      %1037 = vmatprep.mubr.bf16.mxu0 0
      %1038 = vmatmul.mubr.bf16.gmra.mrb[0].mxu0 %v979
      %v1039 = vpop.f32.mrb[0].mxu0
      %v1040 = vadd.f32 0.0, %v1039
      %v1041 = vpop.f32.mrb[0].mxu0
      %v1042 = vpop.f32.mrb[0].mxu0
      %v1043 = vadd.f32 0.0, %v1042
      %v1044 = vpop.f32.mrb[0].mxu0
      %1045 = vdwg.mxu0
      %v1046 = vadd.f32 %v953, %v1016
      %v1047 = vadd.f32 %v954, %v1019
      %v1048 = vadd.f32 %v955, %v1024
      %v1049 = vadd.f32 %v956, %v1027
      %v1050 = vadd.f32 %v957, %v1032
      %v1051 = vadd.f32 %v958, %v1035
      %v1052 = vadd.f32 %v959, %v1040
      %v1053 = vadd.f32 %v960, %v1043
      %v1054 = vpack.c.bf16 0.0, %v280
      %v1055 = vld [vmem:[%s2 + $0x70] sm:$0xf]
      %v1056 = vld [vmem:[%s2 + $0x74] sm:$0xf]
      %v1057 = vld [vmem:[%s2 + $0x78] sm:$0xf]
      %v1058 = vld [vmem:[%s2 + $0x7c] sm:$0xf]
      %v1063 = vunpack.c.l.b16 %v1055
      %v1064 = vunpack.c.l.b16 %v1056
      %v1065 = vunpack.c.l.b16 %v1057
      %v1066 = vunpack.c.l.b16 %v1058
      %v1067 = vpack.c.b16 %v1064, %v1063
      %v1068 = vpack.c.b16 %v1066, %v1065
      %v1072 = vsel %vm342, %v1054, 0
      %1074 = vmatprep.subr.bf16.mxu0 0
      %1075 = vmatpush1.bf16.msra.mxu0 %v1067
      %1076 = vmatprep.subr.bf16.mxu0 0
      %1077 = vmatpush1.bf16.msra.mxu0 %v1068
      %1078 = vmatprep.subr.bf16.mxu0 0
      %1079 = vmatpush1.bf16.msra.mxu0 0
      %1080 = vmatprep.subr.bf16.mxu0 0
      %1081 = vmatpush1.bf16.msra.mxu0 0
      %1082 = vmatprep.subr.bf16.mxu0 0
      %1083 = vmatpush1.bf16.msra.mxu0 0
      %1084 = vmatprep.subr.bf16.mxu0 0
      %1085 = vmatpush1.bf16.msra.mxu0 0
      %1086 = vmatprep.subr.bf16.mxu0 0
      %1087 = vmatpush1.bf16.msra.mxu0 0
      %1088 = vmatprep.subr.bf16.mxu0 0
      %1089 = vmatpush1.bf16.msra.mxu0 0
      %1090 = vmatprep.subr.bf16.mxu0 0
      %1091 = vmatpush1.bf16.msra.mxu0 0
      %1092 = vmatprep.subr.bf16.mxu0 0
      %1093 = vmatpush1.bf16.msra.mxu0 0
      %1094 = vmatprep.subr.bf16.mxu0 0
      %1095 = vmatpush1.bf16.msra.mxu0 0
      %1096 = vmatprep.subr.bf16.mxu0 0
      %1097 = vmatpush1.bf16.msra.mxu0 0
      %1098 = vmatprep.subr.bf16.mxu0 0
      %1099 = vmatpush1.bf16.msra.mxu0 0
      %1100 = vmatprep.subr.bf16.mxu0 0
      %1101 = vmatpush1.bf16.msra.mxu0 0
      %1102 = vmatprep.subr.bf16.mxu0 0
      %1103 = vmatpush1.bf16.msra.mxu0 0
      %1104 = vmatprep.subr.bf16.mxu0 0
      %1105 = vmatpush1.bf16.msra.mxu0 0
      %1106 = vmatprep.mubr.bf16.mxu0 0
      %1107 = vmatmul.mubr.bf16.gmra.mrb[0].mxu0 %v347
      %v1108 = vpop.f32.mrb[0].mxu0
      %v1109 = vadd.f32 0.0, %v1108
      %v1110 = vpop.f32.mrb[0].mxu0
      %v1111 = vpop.f32.mrb[0].mxu0
      %v1112 = vadd.f32 0.0, %v1111
      %v1113 = vpop.f32.mrb[0].mxu0
      %1114 = vmatprep.mubr.bf16.mxu0 0
      %1115 = vmatmul.mubr.bf16.gmra.mrb[0].mxu0 %v350
      %v1116 = vpop.f32.mrb[0].mxu0
      %v1117 = vadd.f32 0.0, %v1116
      %v1118 = vpop.f32.mrb[0].mxu0
      %v1119 = vpop.f32.mrb[0].mxu0
      %v1120 = vadd.f32 0.0, %v1119
      %v1121 = vpop.f32.mrb[0].mxu0
      %1122 = vmatprep.mubr.bf16.mxu0 0
      %1123 = vmatmul.mubr.bf16.gmra.mrb[0].mxu0 %v353
      %v1124 = vpop.f32.mrb[0].mxu0
      %v1125 = vadd.f32 0.0, %v1124
      %v1126 = vpop.f32.mrb[0].mxu0
      %v1127 = vpop.f32.mrb[0].mxu0
      %v1128 = vadd.f32 0.0, %v1127
      %v1129 = vpop.f32.mrb[0].mxu0
      %1130 = vmatprep.mubr.bf16.mxu0 0
      %1131 = vmatmul.mubr.bf16.gmra.mrb[0].mxu0 %v1072
      %v1132 = vpop.f32.mrb[0].mxu0
      %v1133 = vadd.f32 0.0, %v1132
      %v1134 = vpop.f32.mrb[0].mxu0
      %v1135 = vpop.f32.mrb[0].mxu0
      %v1136 = vadd.f32 0.0, %v1135
      %v1137 = vpop.f32.mrb[0].mxu0
      %1138 = vdwg.mxu0
      %v1139 = vadd.f32 %v1046, %v1109
      %v1140 = vadd.f32 %v1047, %v1112
      %v1141 = vadd.f32 %v1048, %v1117
      %v1142 = vadd.f32 %v1049, %v1120
      %v1143 = vadd.f32 %v1050, %v1125
      %v1144 = vadd.f32 %v1051, %v1128
      %v1145 = vadd.f32 %v1052, %v1133
      %v1146 = vadd.f32 %v1053, %v1136
      %v1147 = vpack.c.bf16 %v526, %v855
      %v1148 = vld [vmem:[%s2 + $0x80] sm:$0xf]
      %v1149 = vld [vmem:[%s2 + $0x84] sm:$0xf]
      %v1150 = vld [vmem:[%s2 + $0x88] sm:$0xf]
      %v1151 = vld [vmem:[%s2 + $0x8c] sm:$0xf]
      %v1156 = vunpack.c.l.b16 %v1148
      %v1157 = vunpack.c.l.b16 %v1149
      %v1158 = vunpack.c.l.b16 %v1150
      %v1159 = vunpack.c.l.b16 %v1151
      %v1160 = vpack.c.b16 %v1157, %v1156
      %v1161 = vpack.c.b16 %v1159, %v1158
      %v1165 = vsel %vm342, %v1147, 0
      %1167 = vmatprep.subr.bf16.mxu0 0
      %1168 = vmatpush1.bf16.msra.mxu0 %v1160
      %1169 = vmatprep.subr.bf16.mxu0 0
      %1170 = vmatpush1.bf16.msra.mxu0 %v1161
      %1171 = vmatprep.subr.bf16.mxu0 0
      %1172 = vmatpush1.bf16.msra.mxu0 0
      %1173 = vmatprep.subr.bf16.mxu0 0
      %1174 = vmatpush1.bf16.msra.mxu0 0
      %1175 = vmatprep.subr.bf16.mxu0 0
      %1176 = vmatpush1.bf16.msra.mxu0 0
      %1177 = vmatprep.subr.bf16.mxu0 0
      %1178 = vmatpush1.bf16.msra.mxu0 0
      %1179 = vmatprep.subr.bf16.mxu0 0
      %1180 = vmatpush1.bf16.msra.mxu0 0
      %1181 = vmatprep.subr.bf16.mxu0 0
      %1182 = vmatpush1.bf16.msra.mxu0 0
      %1183 = vmatprep.subr.bf16.mxu0 0
      %1184 = vmatpush1.bf16.msra.mxu0 0
      %1185 = vmatprep.subr.bf16.mxu0 0
      %1186 = vmatpush1.bf16.msra.mxu0 0
      %1187 = vmatprep.subr.bf16.mxu0 0
      %1188 = vmatpush1.bf16.msra.mxu0 0
      %1189 = vmatprep.subr.bf16.mxu0 0
      %1190 = vmatpush1.bf16.msra.mxu0 0
      %1191 = vmatprep.subr.bf16.mxu0 0
      %1192 = vmatpush1.bf16.msra.mxu0 0
      %1193 = vmatprep.subr.bf16.mxu0 0
      %1194 = vmatpush1.bf16.msra.mxu0 0
      %1195 = vmatprep.subr.bf16.mxu0 0
      %1196 = vmatpush1.bf16.msra.mxu0 0
      %1197 = vmatprep.subr.bf16.mxu0 0
      %1198 = vmatpush1.bf16.msra.mxu0 0
      %1199 = vmatprep.mubr.bf16.mxu0 0
      %1200 = vmatmul.mubr.bf16.gmra.mrb[0].mxu0 %v558
      %v1201 = vpop.f32.mrb[0].mxu0
      %v1202 = vadd.f32 0.0, %v1201
      %v1203 = vpop.f32.mrb[0].mxu0
      %v1204 = vpop.f32.mrb[0].mxu0
      %v1205 = vadd.f32 0.0, %v1204
      %v1206 = vpop.f32.mrb[0].mxu0
      %1207 = vmatprep.mubr.bf16.mxu0 0
      %1208 = vmatmul.mubr.bf16.gmra.mrb[0].mxu0 %v561
      %v1209 = vpop.f32.mrb[0].mxu0
      %v1210 = vadd.f32 0.0, %v1209
      %v1211 = vpop.f32.mrb[0].mxu0
      %v1212 = vpop.f32.mrb[0].mxu0
      %v1213 = vadd.f32 0.0, %v1212
      %v1214 = vpop.f32.mrb[0].mxu0
      %1215 = vmatprep.mubr.bf16.mxu0 0
      %1216 = vmatmul.mubr.bf16.gmra.mrb[0].mxu0 %v564
      %v1217 = vpop.f32.mrb[0].mxu0
      %v1218 = vadd.f32 0.0, %v1217
      %v1219 = vpop.f32.mrb[0].mxu0
      %v1220 = vpop.f32.mrb[0].mxu0
      %v1221 = vadd.f32 0.0, %v1220
      %v1222 = vpop.f32.mrb[0].mxu0
      %1223 = vmatprep.mubr.bf16.mxu0 0
      %1224 = vmatmul.mubr.bf16.gmra.mrb[0].mxu0 %v1165
      %v1225 = vpop.f32.mrb[0].mxu0
      %v1226 = vadd.f32 0.0, %v1225
      %v1227 = vpop.f32.mrb[0].mxu0
      %v1228 = vpop.f32.mrb[0].mxu0
      %v1229 = vadd.f32 0.0, %v1228
      %v1230 = vpop.f32.mrb[0].mxu0
      %1231 = vdwg.mxu0
      %v1232 = vadd.f32 %v1139, %v1202
      %v1233 = vadd.f32 %v1140, %v1205
      %v1234 = vadd.f32 %v1141, %v1210
      %v1235 = vadd.f32 %v1142, %v1213
      %v1236 = vadd.f32 %v1143, %v1218
      %v1237 = vadd.f32 %v1144, %v1221
      %v1238 = vadd.f32 %v1145, %v1226
      %v1239 = vadd.f32 %v1146, %v1229
      %v1240 = vld [vmem:[%s266] sm:$0xff]
      %v1241 = vld [vmem:[%s266 + $0x8] sm:$0xff]
      %v1242 = vld [vmem:[%s266 + $0x10] sm:$0xff]
      %v1243 = vld [vmem:[%s266 + $0x18] sm:$0xff]
      %v1244 = vld [vmem:[%s266 + $0x20] sm:$0xff]
      %v1245 = vld [vmem:[%s266 + $0x28] sm:$0xff]
      %v1246 = vld [vmem:[%s266 + $0x30] sm:$0xff]
      %v1247 = vld [vmem:[%s266 + $0x38] sm:$0xff]
      %v1248 = vpack.c.bf16 %v1241, %v1240
      %v1249 = vpack.c.bf16 %v1243, %v1242
      %v1250 = vpack.c.bf16 %v1245, %v1244
      %v1251 = vpack.c.bf16 %v1247, %v1246
      %v1252 = vld [vmem:[%s3] sm:$0xf]
      %v1253 = vld [vmem:[%s3 + $0x4] sm:$0xf]
      %v1254 = vld [vmem:[%s3 + $0x8] sm:$0xf]
      %v1255 = vld [vmem:[%s3 + $0xc] sm:$0xf]
      %v1260 = vunpack.c.l.b16 %v1252
      %v1261 = vunpack.c.l.b16 %v1253
      %v1262 = vunpack.c.l.b16 %v1254
      %v1263 = vunpack.c.l.b16 %v1255
      %v1264 = vpack.c.b16 %v1261, %v1260
      %v1265 = vpack.c.b16 %v1263, %v1262
      %v1269 = vsel %vm342, %v1248, 0
      %v1272 = vsel %vm342, %v1249, 0
      %v1275 = vsel %vm342, %v1250, 0
      %v1278 = vsel %vm342, %v1251, 0
      %1280 = vmatprep.subr.bf16.mxu0 0
      %1281 = vmatpush1.bf16.msra.mxu0 %v1264
      %1282 = vmatprep.subr.bf16.mxu0 0
      %1283 = vmatpush1.bf16.msra.mxu0 %v1265
      %1284 = vmatprep.subr.bf16.mxu0 0
      %1285 = vmatpush1.bf16.msra.mxu0 0
      %1286 = vmatprep.subr.bf16.mxu0 0
      %1287 = vmatpush1.bf16.msra.mxu0 0
      %1288 = vmatprep.subr.bf16.mxu0 0
      %1289 = vmatpush1.bf16.msra.mxu0 0
      %1290 = vmatprep.subr.bf16.mxu0 0
      %1291 = vmatpush1.bf16.msra.mxu0 0
      %1292 = vmatprep.subr.bf16.mxu0 0
      %1293 = vmatpush1.bf16.msra.mxu0 0
      %1294 = vmatprep.subr.bf16.mxu0 0
      %1295 = vmatpush1.bf16.msra.mxu0 0
      %1296 = vmatprep.subr.bf16.mxu0 0
      %1297 = vmatpush1.bf16.msra.mxu0 0
      %1298 = vmatprep.subr.bf16.mxu0 0
      %1299 = vmatpush1.bf16.msra.mxu0 0
      %1300 = vmatprep.subr.bf16.mxu0 0
      %1301 = vmatpush1.bf16.msra.mxu0 0
      %1302 = vmatprep.subr.bf16.mxu0 0
      %1303 = vmatpush1.bf16.msra.mxu0 0
      %1304 = vmatprep.subr.bf16.mxu0 0
      %1305 = vmatpush1.bf16.msra.mxu0 0
      %1306 = vmatprep.subr.bf16.mxu0 0
      %1307 = vmatpush1.bf16.msra.mxu0 0
      %1308 = vmatprep.subr.bf16.mxu0 0
      %1309 = vmatpush1.bf16.msra.mxu0 0
      %1310 = vmatprep.subr.bf16.mxu0 0
      %1311 = vmatpush1.bf16.msra.mxu0 0
      %1312 = vmatprep.mubr.bf16.mxu0 0
      %1313 = vmatmul.mubr.bf16.gmra.mrb[0].mxu0 %v1269
      %v1314 = vpop.f32.mrb[0].mxu0
      %v1315 = vadd.f32 0.0, %v1314
      %v1316 = vpop.f32.mrb[0].mxu0
      %v1317 = vpop.f32.mrb[0].mxu0
      %v1318 = vadd.f32 0.0, %v1317
      %v1319 = vpop.f32.mrb[0].mxu0
      %1320 = vmatprep.mubr.bf16.mxu0 0
      %1321 = vmatmul.mubr.bf16.gmra.mrb[0].mxu0 %v1272
      %v1322 = vpop.f32.mrb[0].mxu0
      %v1323 = vadd.f32 0.0, %v1322
      %v1324 = vpop.f32.mrb[0].mxu0
      %v1325 = vpop.f32.mrb[0].mxu0
      %v1326 = vadd.f32 0.0, %v1325
      %v1327 = vpop.f32.mrb[0].mxu0
      %1328 = vmatprep.mubr.bf16.mxu0 0
      %1329 = vmatmul.mubr.bf16.gmra.mrb[0].mxu0 %v1275
      %v1330 = vpop.f32.mrb[0].mxu0
      %v1331 = vadd.f32 0.0, %v1330
      %v1332 = vpop.f32.mrb[0].mxu0
      %v1333 = vpop.f32.mrb[0].mxu0
      %v1334 = vadd.f32 0.0, %v1333
      %v1335 = vpop.f32.mrb[0].mxu0
      %1336 = vmatprep.mubr.bf16.mxu0 0
      %1337 = vmatmul.mubr.bf16.gmra.mrb[0].mxu0 %v1278
      %v1338 = vpop.f32.mrb[0].mxu0
      %v1339 = vadd.f32 0.0, %v1338
      %v1340 = vpop.f32.mrb[0].mxu0
      %v1341 = vpop.f32.mrb[0].mxu0
      %v1342 = vadd.f32 0.0, %v1341
      %v1343 = vpop.f32.mrb[0].mxu0
      %1344 = vdwg.mxu0
      %v1345 = vadd.f32 %v1232, %v1315
      %v1346 = vadd.f32 %v1233, %v1318
      %v1347 = vadd.f32 %v1234, %v1323
      %v1348 = vadd.f32 %v1235, %v1326
      %v1349 = vadd.f32 %v1236, %v1331
      %v1350 = vadd.f32 %v1237, %v1334
      %v1351 = vadd.f32 %v1238, %v1339
      %v1352 = vadd.f32 %v1239, %v1342
      %v1353 = vld [vmem:[%s4] sm:$0x1]
      %v1355 = vlaneseq
      %v1356 = vshrl.u32 %v1355, 7
      %v1357 = vsub.s32 0, %v1356
      %v1358 = vrot.slane %v1353, %v1357
      %v1360 = vmul.f32 %v1345, %v1358
      %v1361 = vmul.f32 %v1346, %v1358
      %v1362 = vmul.f32 %v1347, %v1358
      %v1363 = vmul.f32 %v1348, %v1358
      %v1364 = vmul.f32 %v1349, %v1358
      %v1365 = vmul.f32 %v1350, %v1358
      %v1366 = vmul.f32 %v1351, %v1358
      %v1367 = vmul.f32 %v1352, %v1358
      %v1368 = vld [vmem:[%s5] sm:$0x1]
      %v1370 = vlaneseq
      %v1371 = vshrl.u32 %v1370, 7
      %v1372 = vsub.s32 0, %v1371
      %v1373 = vrot.slane %v1368, %v1372
      %v1375 = vadd.f32 %v1360, %v1373
      %v1376 = vadd.f32 %v1361, %v1373
      %v1377 = vadd.f32 %v1362, %v1373
      %v1378 = vadd.f32 %v1363, %v1373
      %v1379 = vadd.f32 %v1364, %v1373
      %v1380 = vadd.f32 %v1365, %v1373
      %v1381 = vadd.f32 %v1366, %v1373
      %v1382 = vadd.f32 %v1367, %v1373
      %v1383 = vmax.f32 %v1375, 0.0
      %v1384 = vmax.f32 %v1376, 0.0
      %v1385 = vmax.f32 %v1377, 0.0
      %v1386 = vmax.f32 %v1378, 0.0
      %v1387 = vmax.f32 %v1379, 0.0
      %v1388 = vmax.f32 %v1380, 0.0
      %v1389 = vmax.f32 %v1381, 0.0
      %v1390 = vmax.f32 %v1382, 0.0
      %1391 = vst.msk [vmem:[%s271] sm:$0xff] %vm342, %v1383
      %1392 = vst.msk [vmem:[%s271 + $0x8] sm:$0xff] %vm342, %v1384
      %1393 = vst.msk [vmem:[%s271 + $0x10] sm:$0xff] %vm342, %v1385
      %1394 = vst.msk [vmem:[%s271 + $0x18] sm:$0xff] %vm342, %v1386
      %1395 = vst.msk [vmem:[%s271 + $0x20] sm:$0xff] %vm342, %v1387
      %1396 = vst.msk [vmem:[%s271 + $0x28] sm:$0xff] %vm342, %v1388
      %1397 = vst.msk [vmem:[%s271 + $0x30] sm:$0xff] %vm342, %v1389
      %1398 = vst.msk [vmem:[%s271 + $0x38] sm:$0xff] %vm342, %v1390
      %p1399 = scmp.lt.s32.totalorder %s17, 1
      %s1400 = scalar_select %p1399, %s17, 1
      %s1401 = smul.addr %s1400, 8
      %s1402 = smul.addr %s1401, 8
      %s1403 = scalar_lea.vmem %s6, %s1402
      // Predicated region
      $region45: #{pixelcnn_layer_down.6} parent=43 // pred_check
        %p1404 = pneg %p171
      $region46: #{pixelcnn_layer_down.6} parent=43 // pred_check_branch
        %1406 = sbr.rel (%p1404) target = $region48
      $region47: #{pixelcnn_layer_down.6} parent=43 // pred_region
        _
      $region48: #{pixelcnn_layer_down.6} parent=43 // pred_fallthru
        _
    $region44: #{pixelcnn_layer_down.6} parent=5 // pred_fallthru
      _
    %p1407 = scmp.le.s32.totalorder 2, %s12
    // Predicated region
    $region49: #{pixelcnn_layer_down.6} parent=5 // pred_check
      %p1408 = pneg %p1407
    $region50: #{pixelcnn_layer_down.6} parent=5 // pred_check_branch
      %1410 = sbr.rel (%p1408) target = $region52
    $region51: #{pixelcnn_layer_down.6} parent=5 // pred_region
      %s1411 = ssub.s32 %s12, 2
      // Predicated region
      $region53: #{pixelcnn_layer_down.6} parent=51 // pred_check
        %p1412 = pneg %p177
      $region54: #{pixelcnn_layer_down.6} parent=51 // pred_check_branch
        %1414 = sbr.rel (%p1412) target = $region56
      $region55: #{pixelcnn_layer_down.6} parent=51 // pred_region
        %p1415 = scmp.lt.s32.totalorder %s18, 1
        %s1416 = scalar_select %p1415, %s18, 1
        %s1417 = smul.addr %s1416, 8
        %s1418 = smul.addr %s1417, 8
        %s1419 = scalar_lea.vmem %s6, %s1418
      $region56: #{pixelcnn_layer_down.6} parent=51 // pred_fallthru
        _
    $region52: #{pixelcnn_layer_down.6} parent=5 // pred_fallthru
      _
  $region6: #{pixelcnn_layer_down.6} parent=0 // loop_footer
    %s16 = sadd.s32 1, %s12
  $region7: #{pixelcnn_layer_down.6} parent=0 // loop_footer_branch
    %11 = sbr.rel target = $region3
  $region8: #{pixelcnn_layer_down.6} parent=0 // loop_exit
    _

// kernel: pixelcnn_layer_down.7
$region0: #{pixelcnn_layer_down.7}
  #allocation0 [shape = 'u32[]', space=smem, size = 0x4, offset = 0x4, fixed_abs, tag = 'smem constant byte address 0x4 - core index']
  #allocation1 [shape = 'u32[144,128]{1,0:T(1,128)}', space=vmem, size = 0x12000, scoped, tag = 'internal scratch']
  %s0 = inlined_call_operand.vmem [shape: f32[2,8,8,32], index: 0, kind: input, shape index: {}]
  %s1 = inlined_call_operand.vmem [shape: f32[2,8,8,32], index: 1, kind: input, shape index: {}]
  %s2 = inlined_call_operand.vmem [shape: f32[2,8,8,32], index: 2, kind: input, shape index: {}]
  %s3 = inlined_call_operand.vmem [shape: bf16[384,32], index: 3, kind: input, shape index: {}]
  %s4 = inlined_call_operand.vmem [shape: bf16[64,32], index: 4, kind: input, shape index: {}]
  %s5 = inlined_call_operand.vmem [shape: f32[1,32], index: 5, kind: input, shape index: {}]
  %s6 = inlined_call_operand.vmem [shape: bf16[384,32], index: 6, kind: input, shape index: {}]
  %s7 = inlined_call_operand.vmem [shape: bf16[384,32], index: 7, kind: input, shape index: {}]
  %s8 = inlined_call_operand.vmem [shape: f32[1,32], index: 8, kind: input, shape index: {}]
  %s9 = inlined_call_operand.vmem [shape: f32[1,32], index: 9, kind: input, shape index: {}]
  %s10 = inlined_call_operand.vmem [shape: f32[2,8,8,32], index: 10, kind: output, shape index: {}]
  %s11 = sld [smem:[#allocation0]]
  $region73: #{pixelcnn_layer_down.7} parent=0
    _
  %s13 = ssub.s32 1, %s11
  %s14 = scalar_select 0, %s13, %s11
  loop: start=0, step=1, limit=4
  $region2: #{pixelcnn_layer_down.7} parent=0 // loop_pre_header
    _
  $region3: #{pixelcnn_layer_down.7} parent=0 // loop_header
    %s16 = sphi 0, %s20
    %p17 = scmp.ge.s32.totalorder %s16, 4
    %s26 = sphi 0, %s28
    %s29 = sphi 0, %s26
    %s30 = sphi 0, %s29
    %s46 = sphi 0, %s30
    %s52 = sphi 0, %s54
    %s55 = sphi 0, %s52
    %s56 = sphi 0, %s55
    %s72 = sphi 0, %s56
    %s78 = sphi 0, %s80
    %s81 = sphi 0, %s78
    %s82 = sphi 0, %s81
    %s98 = sphi 0, %s82
    %s102 = sphi 0, %s102
    %s104 = sphi 0, %s102
    %s105 = sphi 0, %s104
    %s119 = sphi 0, %s105
    %s123 = sphi 0, %s123
    %s125 = sphi 0, %s123
    %s126 = sphi 0, %s125
    %s140 = sphi 0, %s126
    %s144 = sphi 0, %s144
    %s146 = sphi 0, %s144
    %s147 = sphi 0, %s146
    %s161 = sphi 0, %s147
    %s165 = sphi 0, %s165
    %s167 = sphi 0, %s165
    %s168 = sphi 0, %s167
    %s182 = sphi 0, %s168
    %s186 = sphi 0, %s186
    %s188 = sphi 0, %s186
    %s189 = sphi 0, %s188
    %s203 = sphi 0, %s189
    %s207 = sphi 0, %s207
    %s209 = sphi 0, %s207
    %s210 = sphi 0, %s209
    %s224 = sphi 0, %s210
    %s228 = sphi 0, %s228
    %s230 = sphi 0, %s228
    %s231 = sphi 0, %s230
    %s245 = sphi 0, %s231
    %s251 = sphi 0, %s253
    %s254 = sphi 0, %s251
    %s255 = sphi 0, %s254
    %s271 = sphi 0, %s255
  $region4: #{pixelcnn_layer_down.7} parent=0 // loop_header_branch
    %19 = sbr.rel (%p17) target = $region8
  $region5: #{pixelcnn_layer_down.7} parent=0 // loop_body
    %s21 = ssub.s32 %s16, 1
    %s22 = ssub.s32 %s16, 2
    %s23 = sadd.s32 %s16, 1
    %s24 = ssub.s32 %s16, %s23
    %p25 = scmp.eq.s32.totalorder %s24, 0
    %s27 = sadd.s32 %s26, 1
    %s28 = scalar_select %p25, %s26, %s27
    %p31 = pneg %p25
    %p32 = scmp.eq.s32.totalorder %s16, 1
    %p33 = por %p31, %p32
    %p34 = scmp.ne.s32.totalorder %s26, %s29
    %p35 = scmp.eq.s32.totalorder %s16, 0
    %p36 = por %p34, %p35
    %p37 = scmp.ne.s32.totalorder %s26, %s29
    %p38 = scmp.eq.s32.totalorder %s21, 1
    %p39 = por %p37, %p38
    %p40 = scmp.ne.s32.totalorder %s29, %s30
    %p41 = scmp.eq.s32.totalorder %s21, 0
    %p42 = por %p40, %p41
    %p43 = scmp.ne.s32.totalorder %s29, %s30
    %p44 = scmp.eq.s32.totalorder %s22, 1
    %p45 = por %p43, %p44
    %p47 = scmp.ne.s32.totalorder %s30, %s46
    %p48 = scmp.eq.s32.totalorder %s22, 0
    %p49 = por %p47, %p48
    %s50 = ssub.s32 %s16, %s23
    %p51 = scmp.eq.s32.totalorder %s50, 0
    %s53 = sadd.s32 %s52, 1
    %s54 = scalar_select %p51, %s52, %s53
    %p57 = pneg %p51
    %p58 = scmp.eq.s32.totalorder %s16, 1
    %p59 = por %p57, %p58
    %p60 = scmp.ne.s32.totalorder %s52, %s55
    %p61 = scmp.eq.s32.totalorder %s16, 0
    %p62 = por %p60, %p61
    %p63 = scmp.ne.s32.totalorder %s52, %s55
    %p64 = scmp.eq.s32.totalorder %s21, 1
    %p65 = por %p63, %p64
    %p66 = scmp.ne.s32.totalorder %s55, %s56
    %p67 = scmp.eq.s32.totalorder %s21, 0
    %p68 = por %p66, %p67
    %p69 = scmp.ne.s32.totalorder %s55, %s56
    %p70 = scmp.eq.s32.totalorder %s22, 1
    %p71 = por %p69, %p70
    %p73 = scmp.ne.s32.totalorder %s56, %s72
    %p74 = scmp.eq.s32.totalorder %s22, 0
    %p75 = por %p73, %p74
    %s76 = ssub.s32 %s16, %s23
    %p77 = scmp.eq.s32.totalorder %s76, 0
    %s79 = sadd.s32 %s78, 1
    %s80 = scalar_select %p77, %s78, %s79
    %p83 = pneg %p77
    %p84 = scmp.eq.s32.totalorder %s16, 1
    %p85 = por %p83, %p84
    %p86 = scmp.ne.s32.totalorder %s78, %s81
    %p87 = scmp.eq.s32.totalorder %s16, 0
    %p88 = por %p86, %p87
    %p89 = scmp.ne.s32.totalorder %s78, %s81
    %p90 = scmp.eq.s32.totalorder %s21, 1
    %p91 = por %p89, %p90
    %p92 = scmp.ne.s32.totalorder %s81, %s82
    %p93 = scmp.eq.s32.totalorder %s21, 0
    %p94 = por %p92, %p93
    %p95 = scmp.ne.s32.totalorder %s81, %s82
    %p96 = scmp.eq.s32.totalorder %s22, 1
    %p97 = por %p95, %p96
    %p99 = scmp.ne.s32.totalorder %s82, %s98
    %p100 = scmp.eq.s32.totalorder %s22, 0
    %p101 = por %p99, %p100
    %s103 = sadd.s32 %s102, 1
    %p106 = scmp.eq.s32.totalorder %s16, 1
    %p107 = scmp.ne.s32.totalorder %s102, %s104
    %p108 = scmp.eq.s32.totalorder %s16, 0
    %p109 = por %p107, %p108
    %p110 = scmp.ne.s32.totalorder %s102, %s104
    %p111 = scmp.eq.s32.totalorder %s21, 1
    %p112 = por %p110, %p111
    %p113 = scmp.ne.s32.totalorder %s104, %s105
    %p114 = scmp.eq.s32.totalorder %s21, 0
    %p115 = por %p113, %p114
    %p116 = scmp.ne.s32.totalorder %s104, %s105
    %p117 = scmp.eq.s32.totalorder %s22, 1
    %p118 = por %p116, %p117
    %p120 = scmp.ne.s32.totalorder %s105, %s119
    %p121 = scmp.eq.s32.totalorder %s22, 0
    %p122 = por %p120, %p121
    %s124 = sadd.s32 %s123, 1
    %p127 = scmp.eq.s32.totalorder %s16, 1
    %p128 = scmp.ne.s32.totalorder %s123, %s125
    %p129 = scmp.eq.s32.totalorder %s16, 0
    %p130 = por %p128, %p129
    %p131 = scmp.ne.s32.totalorder %s123, %s125
    %p132 = scmp.eq.s32.totalorder %s21, 1
    %p133 = por %p131, %p132
    %p134 = scmp.ne.s32.totalorder %s125, %s126
    %p135 = scmp.eq.s32.totalorder %s21, 0
    %p136 = por %p134, %p135
    %p137 = scmp.ne.s32.totalorder %s125, %s126
    %p138 = scmp.eq.s32.totalorder %s22, 1
    %p139 = por %p137, %p138
    %p141 = scmp.ne.s32.totalorder %s126, %s140
    %p142 = scmp.eq.s32.totalorder %s22, 0
    %p143 = por %p141, %p142
    %s145 = sadd.s32 %s144, 1
    %p148 = scmp.eq.s32.totalorder %s16, 1
    %p149 = scmp.ne.s32.totalorder %s144, %s146
    %p150 = scmp.eq.s32.totalorder %s16, 0
    %p151 = por %p149, %p150
    %p152 = scmp.ne.s32.totalorder %s144, %s146
    %p153 = scmp.eq.s32.totalorder %s21, 1
    %p154 = por %p152, %p153
    %p155 = scmp.ne.s32.totalorder %s146, %s147
    %p156 = scmp.eq.s32.totalorder %s21, 0
    %p157 = por %p155, %p156
    %p158 = scmp.ne.s32.totalorder %s146, %s147
    %p159 = scmp.eq.s32.totalorder %s22, 1
    %p160 = por %p158, %p159
    %p162 = scmp.ne.s32.totalorder %s147, %s161
    %p163 = scmp.eq.s32.totalorder %s22, 0
    %p164 = por %p162, %p163
    %s166 = sadd.s32 %s165, 1
    %p169 = scmp.eq.s32.totalorder %s16, 1
    %p170 = scmp.ne.s32.totalorder %s165, %s167
    %p171 = scmp.eq.s32.totalorder %s16, 0
    %p172 = por %p170, %p171
    %p173 = scmp.ne.s32.totalorder %s165, %s167
    %p174 = scmp.eq.s32.totalorder %s21, 1
    %p175 = por %p173, %p174
    %p176 = scmp.ne.s32.totalorder %s167, %s168
    %p177 = scmp.eq.s32.totalorder %s21, 0
    %p178 = por %p176, %p177
    %p179 = scmp.ne.s32.totalorder %s167, %s168
    %p180 = scmp.eq.s32.totalorder %s22, 1
    %p181 = por %p179, %p180
    %p183 = scmp.ne.s32.totalorder %s168, %s182
    %p184 = scmp.eq.s32.totalorder %s22, 0
    %p185 = por %p183, %p184
    %s187 = sadd.s32 %s186, 1
    %p190 = scmp.eq.s32.totalorder %s16, 1
    %p191 = scmp.ne.s32.totalorder %s186, %s188
    %p192 = scmp.eq.s32.totalorder %s16, 0
    %p193 = por %p191, %p192
    %p194 = scmp.ne.s32.totalorder %s186, %s188
    %p195 = scmp.eq.s32.totalorder %s21, 1
    %p196 = por %p194, %p195
    %p197 = scmp.ne.s32.totalorder %s188, %s189
    %p198 = scmp.eq.s32.totalorder %s21, 0
    %p199 = por %p197, %p198
    %p200 = scmp.ne.s32.totalorder %s188, %s189
    %p201 = scmp.eq.s32.totalorder %s22, 1
    %p202 = por %p200, %p201
    %p204 = scmp.ne.s32.totalorder %s189, %s203
    %p205 = scmp.eq.s32.totalorder %s22, 0
    %p206 = por %p204, %p205
    %s208 = sadd.s32 %s207, 1
    %p211 = scmp.eq.s32.totalorder %s16, 1
    %p212 = scmp.ne.s32.totalorder %s207, %s209
    %p213 = scmp.eq.s32.totalorder %s16, 0
    %p214 = por %p212, %p213
    %p215 = scmp.ne.s32.totalorder %s207, %s209
    %p216 = scmp.eq.s32.totalorder %s21, 1
    %p217 = por %p215, %p216
    %p218 = scmp.ne.s32.totalorder %s209, %s210
    %p219 = scmp.eq.s32.totalorder %s21, 0
    %p220 = por %p218, %p219
    %p221 = scmp.ne.s32.totalorder %s209, %s210
    %p222 = scmp.eq.s32.totalorder %s22, 1
    %p223 = por %p221, %p222
    %p225 = scmp.ne.s32.totalorder %s210, %s224
    %p226 = scmp.eq.s32.totalorder %s22, 0
    %p227 = por %p225, %p226
    %s229 = sadd.s32 %s228, 1
    %p232 = scmp.eq.s32.totalorder %s16, 1
    %p233 = scmp.ne.s32.totalorder %s228, %s230
    %p234 = scmp.eq.s32.totalorder %s16, 0
    %p235 = por %p233, %p234
    %p236 = scmp.ne.s32.totalorder %s228, %s230
    %p237 = scmp.eq.s32.totalorder %s21, 1
    %p238 = por %p236, %p237
    %p239 = scmp.ne.s32.totalorder %s230, %s231
    %p240 = scmp.eq.s32.totalorder %s21, 0
    %p241 = por %p239, %p240
    %p242 = scmp.ne.s32.totalorder %s230, %s231
    %p243 = scmp.eq.s32.totalorder %s22, 1
    %p244 = por %p242, %p243
    %p246 = scmp.ne.s32.totalorder %s231, %s245
    %p247 = scmp.eq.s32.totalorder %s22, 0
    %p248 = por %p246, %p247
    %s249 = ssub.s32 %s16, %s23
    %p250 = scmp.eq.s32.totalorder %s249, 0
    %s252 = sadd.s32 %s251, 1
    %s253 = scalar_select %p250, %s251, %s252
    %p256 = pneg %p250
    %p257 = scmp.eq.s32.totalorder %s16, 1
    %p258 = por %p256, %p257
    %p259 = scmp.ne.s32.totalorder %s251, %s254
    %p260 = scmp.eq.s32.totalorder %s16, 0
    %p261 = por %p259, %p260
    %p262 = scmp.ne.s32.totalorder %s251, %s254
    %p263 = scmp.eq.s32.totalorder %s21, 1
    %p264 = por %p262, %p263
    %p265 = scmp.ne.s32.totalorder %s254, %s255
    %p266 = scmp.eq.s32.totalorder %s21, 0
    %p267 = por %p265, %p266
    %p268 = scmp.ne.s32.totalorder %s254, %s255
    %p269 = scmp.eq.s32.totalorder %s22, 1
    %p270 = por %p268, %p269
    %p272 = scmp.ne.s32.totalorder %s255, %s271
    %p273 = scmp.eq.s32.totalorder %s22, 0
    %p274 = por %p272, %p273
    %p275 = scmp.le.s32.totalorder 1, %s16
    %p276 = scmp.lt.s32.totalorder %s16, 3
    %p277 = pnand %p275, %p276
    %p278 = pneg %p277
    // Predicated region
    $region9: #{pixelcnn_layer_down.7} parent=5 // pred_check
      _
    $region10: #{pixelcnn_layer_down.7} parent=5 // pred_check_branch
      %280 = sbr.rel (%p277) target = $region12
    $region11: #{pixelcnn_layer_down.7} parent=5 // pred_region
      %s281 = ssub.s32 %s16, 1
      // Predicated region
      $region13: #{pixelcnn_layer_down.7} parent=11 // pred_check
        %p282 = pneg %p115
      $region14: #{pixelcnn_layer_down.7} parent=11 // pred_check_branch
        %284 = sbr.rel (%p282) target = $region16
      $region15: #{pixelcnn_layer_down.7} parent=11 // pred_region
        _
      $region16: #{pixelcnn_layer_down.7} parent=11 // pred_fallthru
        _
      // Predicated region
      $region17: #{pixelcnn_layer_down.7} parent=11 // pred_check
        %p285 = pneg %p136
      $region18: #{pixelcnn_layer_down.7} parent=11 // pred_check_branch
        %287 = sbr.rel (%p285) target = $region20
      $region19: #{pixelcnn_layer_down.7} parent=11 // pred_region
        _
      $region20: #{pixelcnn_layer_down.7} parent=11 // pred_fallthru
        _
      // Predicated region
      $region21: #{pixelcnn_layer_down.7} parent=11 // pred_check
        %p288 = pneg %p157
      $region22: #{pixelcnn_layer_down.7} parent=11 // pred_check_branch
        %290 = sbr.rel (%p288) target = $region24
      $region23: #{pixelcnn_layer_down.7} parent=11 // pred_region
        _
      $region24: #{pixelcnn_layer_down.7} parent=11 // pred_fallthru
        _
      // Predicated region
      $region25: #{pixelcnn_layer_down.7} parent=11 // pred_check
        %p291 = pneg %p178
      $region26: #{pixelcnn_layer_down.7} parent=11 // pred_check_branch
        %293 = sbr.rel (%p291) target = $region28
      $region27: #{pixelcnn_layer_down.7} parent=11 // pred_region
        _
      $region28: #{pixelcnn_layer_down.7} parent=11 // pred_fallthru
        _
      // Predicated region
      $region29: #{pixelcnn_layer_down.7} parent=11 // pred_check
        %p294 = pneg %p199
      $region30: #{pixelcnn_layer_down.7} parent=11 // pred_check_branch
        %296 = sbr.rel (%p294) target = $region32
      $region31: #{pixelcnn_layer_down.7} parent=11 // pred_region
        _
      $region32: #{pixelcnn_layer_down.7} parent=11 // pred_fallthru
        _
      // Predicated region
      $region33: #{pixelcnn_layer_down.7} parent=11 // pred_check
        %p297 = pneg %p220
      $region34: #{pixelcnn_layer_down.7} parent=11 // pred_check_branch
        %299 = sbr.rel (%p297) target = $region36
      $region35: #{pixelcnn_layer_down.7} parent=11 // pred_region
        _
      $region36: #{pixelcnn_layer_down.7} parent=11 // pred_fallthru
        _
      // Predicated region
      $region37: #{pixelcnn_layer_down.7} parent=11 // pred_check
        %p300 = pneg %p241
      $region38: #{pixelcnn_layer_down.7} parent=11 // pred_check_branch
        %302 = sbr.rel (%p300) target = $region40
      $region39: #{pixelcnn_layer_down.7} parent=11 // pred_region
        _
      $region40: #{pixelcnn_layer_down.7} parent=11 // pred_fallthru
        _
    $region12: #{pixelcnn_layer_down.7} parent=5 // pred_fallthru
      _
    %p303 = scmp.lt.s32.totalorder %s16, 2
    // Predicated region
    $region41: #{pixelcnn_layer_down.7} parent=5 // pred_check
      %p304 = pneg %p303
    $region42: #{pixelcnn_layer_down.7} parent=5 // pred_check_branch
      %306 = sbr.rel (%p304) target = $region44
    $region43: #{pixelcnn_layer_down.7} parent=5 // pred_region
      // Predicated region
      $region45: #{pixelcnn_layer_down.7} parent=43 // pred_check
        %p307 = pneg %p36
      $region46: #{pixelcnn_layer_down.7} parent=43 // pred_check_branch
        %309 = sbr.rel (%p307) target = $region48
      $region47: #{pixelcnn_layer_down.7} parent=43 // pred_region
        %p310 = scmp.lt.s32.totalorder %s16, 1
        %s311 = scalar_select %p310, %s16, 1
        %s312 = smul.addr %s311, 8
        %s313 = smul.addr %s312, 8
        %s314 = scalar_lea.vmem %s0, %s313
      $region48: #{pixelcnn_layer_down.7} parent=43 // pred_fallthru
        _
      // Predicated region
      $region49: #{pixelcnn_layer_down.7} parent=43 // pred_check
        %p315 = pneg %p62
      $region50: #{pixelcnn_layer_down.7} parent=43 // pred_check_branch
        %317 = sbr.rel (%p315) target = $region52
      $region51: #{pixelcnn_layer_down.7} parent=43 // pred_region
        %p318 = scmp.lt.s32.totalorder %s16, 1
        %s319 = scalar_select %p318, %s16, 1
        %s320 = smul.addr %s319, 8
        %s321 = smul.addr %s320, 8
        %s322 = scalar_lea.vmem %s1, %s321
      $region52: #{pixelcnn_layer_down.7} parent=43 // pred_fallthru
        _
      // Predicated region
      $region53: #{pixelcnn_layer_down.7} parent=43 // pred_check
        %p323 = pneg %p88
      $region54: #{pixelcnn_layer_down.7} parent=43 // pred_check_branch
        %325 = sbr.rel (%p323) target = $region56
      $region55: #{pixelcnn_layer_down.7} parent=43 // pred_region
        %p326 = scmp.lt.s32.totalorder %s16, 1
        %s327 = scalar_select %p326, %s16, 1
        %s328 = smul.addr %s327, 8
        %s329 = smul.addr %s328, 8
        %s330 = scalar_lea.vmem %s2, %s329
      $region56: #{pixelcnn_layer_down.7} parent=43 // pred_fallthru
        _
    $region44: #{pixelcnn_layer_down.7} parent=5 // pred_fallthru
      _
    %p331 = scmp.le.s32.totalorder 1, %s16
    %p332 = scmp.lt.s32.totalorder %s16, 3
    %p333 = pnand %p331, %p332
    %p334 = pneg %p333
    // Predicated region
    $region57: #{pixelcnn_layer_down.7} parent=5 // pred_check
      _
    $region58: #{pixelcnn_layer_down.7} parent=5 // pred_check_branch
      %336 = sbr.rel (%p333) target = $region60
    $region59: #{pixelcnn_layer_down.7} parent=5 // pred_region
      %s337 = ssub.s32 %s16, 1
      %p338 = scmp.lt.s32.totalorder %s21, 1
      %s339 = scalar_select %p338, %s21, 1
      %s340 = smul.addr %s339, 8
      %s341 = smul.addr %s340, 8
      %s342 = scalar_lea.vmem %s0, %s341
      %p343 = pneg %p42
      %p344 = pneg %p39
      %p345 = scmp.lt.s32.totalorder %s21, 1
      %s346 = scalar_select %p345, %s21, 1
      %s347 = smul.addr %s346, 8
      %s348 = smul.addr %s347, 8
      %s349 = scalar_lea.vmem %s1, %s348
      %p350 = pneg %p68
      %p351 = pneg %p65
      %p352 = scmp.lt.s32.totalorder %s21, 1
      %s353 = scalar_select %p352, %s21, 1
      %s354 = smul.addr %s353, 8
      %s355 = smul.addr %s354, 8
      %s356 = scalar_lea.vmem %s2, %s355
      %p357 = pneg %p94
      %p358 = pneg %p91
      %p359 = pneg %p115
      %p360 = pneg %p112
      %p361 = pneg %p136
      %p362 = pneg %p133
      %p363 = pneg %p157
      %p364 = pneg %p154
      %p365 = pneg %p178
      %p366 = pneg %p175
      %p367 = pneg %p199
      %p368 = pneg %p196
      %p369 = pneg %p220
      %p370 = pneg %p217
      %p371 = pneg %p241
      %p372 = pneg %p238
      %p373 = pneg %p267
      %p374 = pneg %p264
      %p375 = scmp.lt.s32.totalorder %s21, 1
      %s376 = scalar_select %p375, %s21, 1
      %s377 = smul.addr %s376, 8
      %s378 = smul.addr %s377, 8
      %s379 = scalar_lea.vmem %s10, %s378
      %p380 = scmp.lt.s32.totalorder %s21, 1
      %s381 = scalar_select %p380, %s21, 1
      %s382 = smul.addr %s381, 8
      %s383 = smul.addr %s382, 8
      %s384 = scalar_lea.vmem %s0, %s383
      %p385 = scmp.lt.s32.totalorder %s21, 1
      %s386 = scalar_select %p385, %s21, 1
      %s387 = smul.addr %s386, 8
      %s388 = smul.addr %s387, 8
      %s389 = scalar_lea.vmem %s1, %s388
      %p390 = scmp.lt.s32.totalorder %s21, 1
      %s391 = scalar_select %p390, %s21, 1
      %s392 = smul.addr %s391, 8
      %s393 = smul.addr %s392, 8
      %s394 = scalar_lea.vmem %s2, %s393
      %p395 = scmp.lt.s32.totalorder %s21, 1
      %s396 = scalar_select %p395, %s21, 1
      %s397 = smul.addr %s396, 8
      %s398 = smul.addr %s397, 8
      %s399 = scalar_lea.vmem %s10, %s398
      %v401 = vld [vmem:[%s384] sm:$0xff]
      %v402 = vld [vmem:[%s384 + $0x8] sm:$0xff]
      %v403 = vld [vmem:[%s384 + $0x10] sm:$0xff]
      %v404 = vld [vmem:[%s384 + $0x18] sm:$0xff]
      %v405 = vld [vmem:[%s384 + $0x20] sm:$0xff]
      %v406 = vld [vmem:[%s384 + $0x28] sm:$0xff]
      %v407 = vld [vmem:[%s384 + $0x30] sm:$0xff]
      %v408 = vld [vmem:[%s384 + $0x38] sm:$0xff]
      %v409 = vand.u32 2147483647, %v401
      %v410 = vand.u32 2147483647, %v402
      %v411 = vand.u32 2147483647, %v403
      %v412 = vand.u32 2147483647, %v404
      %v413 = vand.u32 2147483647, %v405
      %v414 = vand.u32 2147483647, %v406
      %v415 = vand.u32 2147483647, %v407
      %v416 = vand.u32 2147483647, %v408
      %v417 = vsub.f32 0.0, %v409
      %v418 = vsub.f32 0.0, %v410
      %v419 = vsub.f32 0.0, %v411
      %v420 = vsub.f32 0.0, %v412
      %v421 = vsub.f32 0.0, %v413
      %v422 = vsub.f32 0.0, %v414
      %v423 = vsub.f32 0.0, %v415
      %v424 = vsub.f32 0.0, %v416
      %v425 = vmul.f32 %v417, 1.442695
      %v426 = vpow.pop %v425
      %v427 = vmul.f32 %v418, 1.442695
      %v428 = vpow.pop %v427
      %v429 = vmul.f32 %v419, 1.442695
      %v430 = vpow.pop %v429
      %v431 = vmul.f32 %v420, 1.442695
      %v432 = vpow.pop %v431
      %v433 = vmul.f32 %v421, 1.442695
      %v434 = vpow.pop %v433
      %v435 = vmul.f32 %v422, 1.442695
      %v436 = vpow.pop %v435
      %v437 = vmul.f32 %v423, 1.442695
      %v438 = vpow.pop %v437
      %v439 = vmul.f32 %v424, 1.442695
      %v440 = vpow.pop %v439
      %v441 = vsub.f32 %v426, 1.0
      %v442 = vsub.f32 %v428, 1.0
      %v443 = vsub.f32 %v430, 1.0
      %v444 = vsub.f32 %v432, 1.0
      %v445 = vsub.f32 %v434, 1.0
      %v446 = vsub.f32 %v436, 1.0
      %v447 = vsub.f32 %v438, 1.0
      %v448 = vsub.f32 %v440, 1.0
      %vm449 = vcmp.gt.f32.partialorder %v401, 0.0
      %vm450 = vcmp.gt.f32.partialorder %v402, 0.0
      %vm451 = vcmp.gt.f32.partialorder %v403, 0.0
      %vm452 = vcmp.gt.f32.partialorder %v404, 0.0
      %vm453 = vcmp.gt.f32.partialorder %v405, 0.0
      %vm454 = vcmp.gt.f32.partialorder %v406, 0.0
      %vm455 = vcmp.gt.f32.partialorder %v407, 0.0
      %vm456 = vcmp.gt.f32.partialorder %v408, 0.0
      %v457 = vsel %vm449, %v401, %v441
      %v458 = vsel %vm450, %v402, %v442
      %v459 = vsel %vm451, %v403, %v443
      %v460 = vsel %vm452, %v404, %v444
      %v461 = vsel %vm453, %v405, %v445
      %v462 = vsel %vm454, %v406, %v446
      %v463 = vsel %vm455, %v407, %v447
      %v464 = vsel %vm456, %v408, %v448
      %v465 = vsub.f32 0.0, %v401
      %v466 = vsub.f32 0.0, %v402
      %v467 = vsub.f32 0.0, %v403
      %v468 = vsub.f32 0.0, %v404
      %v469 = vsub.f32 0.0, %v405
      %v470 = vsub.f32 0.0, %v406
      %v471 = vsub.f32 0.0, %v407
      %v472 = vsub.f32 0.0, %v408
      %v473 = vsel %vm449, %v441, %v465
      %v474 = vsel %vm450, %v442, %v466
      %v475 = vsel %vm451, %v443, %v467
      %v476 = vsel %vm452, %v444, %v468
      %v477 = vsel %vm453, %v445, %v469
      %v478 = vsel %vm454, %v446, %v470
      %v479 = vsel %vm455, %v447, %v471
      %v480 = vsel %vm456, %v448, %v472
      %489 = vrot.lane.b32.xlu0 %v473, 32
      %v490 = vpop.permute.xlu0 %489
      %491 = vrot.lane.b32.xlu0 %v474, 32
      %v492 = vpop.permute.xlu0 %491
      %493 = vrot.lane.b32.xlu0 %v475, 32
      %v494 = vpop.permute.xlu0 %493
      %495 = vrot.lane.b32.xlu0 %v476, 32
      %v496 = vpop.permute.xlu0 %495
      %497 = vrot.lane.b32.xlu0 %v477, 32
      %v498 = vpop.permute.xlu0 %497
      %499 = vrot.lane.b32.xlu0 %v478, 32
      %v500 = vpop.permute.xlu0 %499
      %501 = vrot.lane.b32.xlu0 %v479, 32
      %v502 = vpop.permute.xlu0 %501
      %503 = vrot.lane.b32.xlu0 %v480, 32
      %v504 = vpop.permute.xlu0 %503
      %vm513 = vcmask 261120
      %v514 = vsel %vm513, %v457, %v490
      %v515 = vsel %vm513, %v458, %v492
      %v516 = vsel %vm513, %v459, %v494
      %v517 = vsel %vm513, %v460, %v496
      %v518 = vsel %vm513, %v461, %v498
      %v519 = vsel %vm513, %v462, %v500
      %v520 = vsel %vm513, %v463, %v502
      %v521 = vsel %vm513, %v464, %v504
      %v530 = vrot.slane 0.0, 7
      %v531 = vrot.slane %v514, 7
      %v532 = vrot.slane %v515, 7
      %v533 = vrot.slane %v516, 7
      %v534 = vrot.slane %v517, 7
      %v535 = vrot.slane %v518, 7
      %v536 = vrot.slane %v519, 7
      %v537 = vrot.slane %v520, 7
      %vm546 = vcmask 1040384
      %v547 = vsel %vm546, 0.0, %v530
      %v548 = vsel %vm546, 0.0, %v531
      %v549 = vsel %vm546, 0.0, %v532
      %v550 = vsel %vm546, 0.0, %v533
      %v551 = vsel %vm546, 0.0, %v534
      %v552 = vsel %vm546, 0.0, %v535
      %v553 = vsel %vm546, 0.0, %v536
      %v554 = vsel %vm546, 0.0, %v537
      %v555 = vpack.c.bf16 %v548, %v547
      %v556 = vpack.c.bf16 %v550, %v549
      %v557 = vpack.c.bf16 %v552, %v551
      %v558 = vpack.c.bf16 %v554, %v553
      %v559 = vld [vmem:[%s3] sm:$0xf]
      %v560 = vld [vmem:[%s3 + $0x4] sm:$0xf]
      %v561 = vld [vmem:[%s3 + $0x8] sm:$0xf]
      %v562 = vld [vmem:[%s3 + $0xc] sm:$0xf]
      %v563 = vld [vmem:[%s3 + $0x10] sm:$0xf]
      %v564 = vld [vmem:[%s3 + $0x14] sm:$0xf]
      %v565 = vld [vmem:[%s3 + $0x18] sm:$0xf]
      %v566 = vld [vmem:[%s3 + $0x1c] sm:$0xf]
      %v567 = vpack.c.bf16 %v514, 0.0
      %v568 = vpack.c.bf16 %v516, %v515
      %v569 = vpack.c.bf16 %v518, %v517
      %v570 = vpack.c.bf16 %v520, %v519
      %v571 = vld [vmem:[%s3 + $0x20] sm:$0xf]
      %v572 = vld [vmem:[%s3 + $0x24] sm:$0xf]
      %v573 = vld [vmem:[%s3 + $0x28] sm:$0xf]
      %v574 = vld [vmem:[%s3 + $0x2c] sm:$0xf]
      %v575 = vld [vmem:[%s3 + $0x30] sm:$0xf]
      %v576 = vld [vmem:[%s3 + $0x34] sm:$0xf]
      %v577 = vld [vmem:[%s3 + $0x38] sm:$0xf]
      %v578 = vld [vmem:[%s3 + $0x3c] sm:$0xf]
      %v587 = vunpack.c.l.b16 %v571
      %v588 = vunpack.c.l.b16 %v572
      %v589 = vunpack.c.l.b16 %v573
      %v590 = vunpack.c.l.b16 %v574
      %v591 = vunpack.c.l.b16 %v575
      %v592 = vunpack.c.l.b16 %v576
      %v593 = vunpack.c.l.b16 %v577
      %v594 = vunpack.c.l.b16 %v578
      %v595 = vpack.c.b16 %v588, %v587
      %v596 = vpack.c.b16 %v590, %v589
      %v597 = vpack.c.b16 %v592, %v591
      %v598 = vpack.c.b16 %v594, %v593
      %vm603 = vcmask 523264
      %v605 = vsel %vm603, %v567, 0
      %v608 = vsel %vm603, %v568, 0
      %v611 = vsel %vm603, %v569, 0
      %v614 = vsel %vm603, %v570, 0
      %616 = vmatprep.subr.bf16.mxu0 0
      %617 = vmatpush1.bf16.msra.mxu0 %v595
      %618 = vmatprep.subr.bf16.mxu0 0
      %619 = vmatpush1.bf16.msra.mxu0 %v596
      %620 = vmatprep.subr.bf16.mxu0 0
      %621 = vmatpush1.bf16.msra.mxu0 %v597
      %622 = vmatprep.subr.bf16.mxu0 0
      %623 = vmatpush1.bf16.msra.mxu0 %v598
      %624 = vmatprep.subr.bf16.mxu0 0
      %625 = vmatpush1.bf16.msra.mxu0 0
      %626 = vmatprep.subr.bf16.mxu0 0
      %627 = vmatpush1.bf16.msra.mxu0 0
      %628 = vmatprep.subr.bf16.mxu0 0
      %629 = vmatpush1.bf16.msra.mxu0 0
      %630 = vmatprep.subr.bf16.mxu0 0
      %631 = vmatpush1.bf16.msra.mxu0 0
      %632 = vmatprep.subr.bf16.mxu0 0
      %633 = vmatpush1.bf16.msra.mxu0 0
      %634 = vmatprep.subr.bf16.mxu0 0
      %635 = vmatpush1.bf16.msra.mxu0 0
      %636 = vmatprep.subr.bf16.mxu0 0
      %637 = vmatpush1.bf16.msra.mxu0 0
      %638 = vmatprep.subr.bf16.mxu0 0
      %639 = vmatpush1.bf16.msra.mxu0 0
      %640 = vmatprep.subr.bf16.mxu0 0
      %641 = vmatpush1.bf16.msra.mxu0 0
      %642 = vmatprep.subr.bf16.mxu0 0
      %643 = vmatpush1.bf16.msra.mxu0 0
      %644 = vmatprep.subr.bf16.mxu0 0
      %645 = vmatpush1.bf16.msra.mxu0 0
      %646 = vmatprep.subr.bf16.mxu0 0
      %647 = vmatpush1.bf16.msra.mxu0 0
      %648 = vmatprep.mubr.bf16.mxu0 0
      %649 = vmatmul.mubr.bf16.gmra.mrb[0].mxu0 %v605
      %v650 = vpop.f32.mrb[0].mxu0
      %v651 = vadd.f32 0.0, %v650
      %v652 = vpop.f32.mrb[0].mxu0
      %v653 = vpop.f32.mrb[0].mxu0
      %v654 = vadd.f32 0.0, %v653
      %v655 = vpop.f32.mrb[0].mxu0
      %656 = vmatprep.mubr.bf16.mxu0 0
      %657 = vmatmul.mubr.bf16.gmra.mrb[0].mxu0 %v608
      %v658 = vpop.f32.mrb[0].mxu0
      %v659 = vadd.f32 0.0, %v658
      %v660 = vpop.f32.mrb[0].mxu0
      %v661 = vpop.f32.mrb[0].mxu0
      %v662 = vadd.f32 0.0, %v661
      %v663 = vpop.f32.mrb[0].mxu0
      %664 = vmatprep.mubr.bf16.mxu0 0
      %665 = vmatmul.mubr.bf16.gmra.mrb[0].mxu0 %v611
      %v666 = vpop.f32.mrb[0].mxu0
      %v667 = vadd.f32 0.0, %v666
      %v668 = vpop.f32.mrb[0].mxu0
      %v669 = vpop.f32.mrb[0].mxu0
      %v670 = vadd.f32 0.0, %v669
      %v671 = vpop.f32.mrb[0].mxu0
      %672 = vmatprep.mubr.bf16.mxu0 0
      %673 = vmatmul.mubr.bf16.gmra.mrb[0].mxu0 %v614
      %v674 = vpop.f32.mrb[0].mxu0
      %v675 = vadd.f32 0.0, %v674
      %v676 = vpop.f32.mrb[0].mxu0
      %v677 = vpop.f32.mrb[0].mxu0
      %v678 = vadd.f32 0.0, %v677
      %v679 = vpop.f32.mrb[0].mxu0
      %680 = vdwg.mxu0
      %v689 = vunpack.c.l.b16 %v559
      %v690 = vunpack.c.l.b16 %v560
      %v691 = vunpack.c.l.b16 %v561
      %v692 = vunpack.c.l.b16 %v562
      %v693 = vunpack.c.l.b16 %v563
      %v694 = vunpack.c.l.b16 %v564
      %v695 = vunpack.c.l.b16 %v565
      %v696 = vunpack.c.l.b16 %v566
      %v697 = vpack.c.b16 %v690, %v689
      %v698 = vpack.c.b16 %v692, %v691
      %v699 = vpack.c.b16 %v694, %v693
      %v700 = vpack.c.b16 %v696, %v695
      %v706 = vsel %vm603, %v555, 0
      %v709 = vsel %vm603, %v556, 0
      %v712 = vsel %vm603, %v557, 0
      %v715 = vsel %vm603, %v558, 0
      %717 = vmatprep.subr.bf16.mxu0 0
      %718 = vmatpush1.bf16.msra.mxu0 %v697
      %719 = vmatprep.subr.bf16.mxu0 0
      %720 = vmatpush1.bf16.msra.mxu0 %v698
      %721 = vmatprep.subr.bf16.mxu0 0
      %722 = vmatpush1.bf16.msra.mxu0 %v699
      %723 = vmatprep.subr.bf16.mxu0 0
      %724 = vmatpush1.bf16.msra.mxu0 %v700
      %725 = vmatprep.subr.bf16.mxu0 0
      %726 = vmatpush1.bf16.msra.mxu0 0
      %727 = vmatprep.subr.bf16.mxu0 0
      %728 = vmatpush1.bf16.msra.mxu0 0
      %729 = vmatprep.subr.bf16.mxu0 0
      %730 = vmatpush1.bf16.msra.mxu0 0
      %731 = vmatprep.subr.bf16.mxu0 0
      %732 = vmatpush1.bf16.msra.mxu0 0
      %733 = vmatprep.subr.bf16.mxu0 0
      %734 = vmatpush1.bf16.msra.mxu0 0
      %735 = vmatprep.subr.bf16.mxu0 0
      %736 = vmatpush1.bf16.msra.mxu0 0
      %737 = vmatprep.subr.bf16.mxu0 0
      %738 = vmatpush1.bf16.msra.mxu0 0
      %739 = vmatprep.subr.bf16.mxu0 0
      %740 = vmatpush1.bf16.msra.mxu0 0
      %741 = vmatprep.subr.bf16.mxu0 0
      %742 = vmatpush1.bf16.msra.mxu0 0
      %743 = vmatprep.subr.bf16.mxu0 0
      %744 = vmatpush1.bf16.msra.mxu0 0
      %745 = vmatprep.subr.bf16.mxu0 0
      %746 = vmatpush1.bf16.msra.mxu0 0
      %747 = vmatprep.subr.bf16.mxu0 0
      %748 = vmatpush1.bf16.msra.mxu0 0
      %749 = vmatprep.mubr.bf16.mxu0 0
      %750 = vmatmul.mubr.bf16.gmra.mrb[0].mxu0 %v706
      %v751 = vpop.f32.mrb[0].mxu0
      %v752 = vadd.f32 %v651, %v751
      %v753 = vpop.f32.mrb[0].mxu0
      %v754 = vpop.f32.mrb[0].mxu0
      %v755 = vadd.f32 %v654, %v754
      %v756 = vpop.f32.mrb[0].mxu0
      %757 = vmatprep.mubr.bf16.mxu0 0
      %758 = vmatmul.mubr.bf16.gmra.mrb[0].mxu0 %v709
      %v759 = vpop.f32.mrb[0].mxu0
      %v760 = vadd.f32 %v659, %v759
      %v761 = vpop.f32.mrb[0].mxu0
      %v762 = vpop.f32.mrb[0].mxu0
      %v763 = vadd.f32 %v662, %v762
      %v764 = vpop.f32.mrb[0].mxu0
      %765 = vmatprep.mubr.bf16.mxu0 0
      %766 = vmatmul.mubr.bf16.gmra.mrb[0].mxu0 %v712
      %v767 = vpop.f32.mrb[0].mxu0
      %v768 = vadd.f32 %v667, %v767
      %v769 = vpop.f32.mrb[0].mxu0
      %v770 = vpop.f32.mrb[0].mxu0
      %v771 = vadd.f32 %v670, %v770
      %v772 = vpop.f32.mrb[0].mxu0
      %773 = vmatprep.mubr.bf16.mxu0 0
      %774 = vmatmul.mubr.bf16.gmra.mrb[0].mxu0 %v715
      %v775 = vpop.f32.mrb[0].mxu0
      %v776 = vadd.f32 %v675, %v775
      %v777 = vpop.f32.mrb[0].mxu0
      %v778 = vpop.f32.mrb[0].mxu0
      %v779 = vadd.f32 %v678, %v778
      %v780 = vpop.f32.mrb[0].mxu0
      %781 = vdwg.mxu0
      %v782 = vrot.slane 0.0, 1
      %v783 = vrot.slane %v514, 1
      %v784 = vrot.slane %v515, 1
      %v785 = vrot.slane %v516, 1
      %v786 = vrot.slane %v517, 1
      %v787 = vrot.slane %v518, 1
      %v788 = vrot.slane %v519, 1
      %v789 = vrot.slane %v520, 1
      %vm798 = vcmask 1046528
      %v799 = vsel %vm798, %v782, 0.0
      %v800 = vsel %vm798, %v783, 0.0
      %v801 = vsel %vm798, %v784, 0.0
      %v802 = vsel %vm798, %v785, 0.0
      %v803 = vsel %vm798, %v786, 0.0
      %v804 = vsel %vm798, %v787, 0.0
      %v805 = vsel %vm798, %v788, 0.0
      %v806 = vsel %vm798, %v789, 0.0
      %v807 = vpack.c.bf16 %v800, %v799
      %v808 = vpack.c.bf16 %v802, %v801
      %v809 = vpack.c.bf16 %v804, %v803
      %v810 = vpack.c.bf16 %v806, %v805
      %v811 = vld [vmem:[%s3 + $0x40] sm:$0xf]
      %v812 = vld [vmem:[%s3 + $0x44] sm:$0xf]
      %v813 = vld [vmem:[%s3 + $0x48] sm:$0xf]
      %v814 = vld [vmem:[%s3 + $0x4c] sm:$0xf]
      %v815 = vld [vmem:[%s3 + $0x50] sm:$0xf]
      %v816 = vld [vmem:[%s3 + $0x54] sm:$0xf]
      %v817 = vld [vmem:[%s3 + $0x58] sm:$0xf]
      %v818 = vld [vmem:[%s3 + $0x5c] sm:$0xf]
      %v827 = vunpack.c.l.b16 %v811
      %v828 = vunpack.c.l.b16 %v812
      %v829 = vunpack.c.l.b16 %v813
      %v830 = vunpack.c.l.b16 %v814
      %v831 = vunpack.c.l.b16 %v815
      %v832 = vunpack.c.l.b16 %v816
      %v833 = vunpack.c.l.b16 %v817
      %v834 = vunpack.c.l.b16 %v818
      %v835 = vpack.c.b16 %v828, %v827
      %v836 = vpack.c.b16 %v830, %v829
      %v837 = vpack.c.b16 %v832, %v831
      %v838 = vpack.c.b16 %v834, %v833
      %v844 = vsel %vm603, %v807, 0
      %v847 = vsel %vm603, %v808, 0
      %v850 = vsel %vm603, %v809, 0
      %v853 = vsel %vm603, %v810, 0
      %855 = vmatprep.subr.bf16.mxu0 0
      %856 = vmatpush1.bf16.msra.mxu0 %v835
      %857 = vmatprep.subr.bf16.mxu0 0
      %858 = vmatpush1.bf16.msra.mxu0 %v836
      %859 = vmatprep.subr.bf16.mxu0 0
      %860 = vmatpush1.bf16.msra.mxu0 %v837
      %861 = vmatprep.subr.bf16.mxu0 0
      %862 = vmatpush1.bf16.msra.mxu0 %v838
      %863 = vmatprep.subr.bf16.mxu0 0
      %864 = vmatpush1.bf16.msra.mxu0 0
      %865 = vmatprep.subr.bf16.mxu0 0
      %866 = vmatpush1.bf16.msra.mxu0 0
      %867 = vmatprep.subr.bf16.mxu0 0
      %868 = vmatpush1.bf16.msra.mxu0 0
      %869 = vmatprep.subr.bf16.mxu0 0
      %870 = vmatpush1.bf16.msra.mxu0 0
      %871 = vmatprep.subr.bf16.mxu0 0
      %872 = vmatpush1.bf16.msra.mxu0 0
      %873 = vmatprep.subr.bf16.mxu0 0
      %874 = vmatpush1.bf16.msra.mxu0 0
      %875 = vmatprep.subr.bf16.mxu0 0
      %876 = vmatpush1.bf16.msra.mxu0 0
      %877 = vmatprep.subr.bf16.mxu0 0
      %878 = vmatpush1.bf16.msra.mxu0 0
      %879 = vmatprep.subr.bf16.mxu0 0
      %880 = vmatpush1.bf16.msra.mxu0 0
      %881 = vmatprep.subr.bf16.mxu0 0
      %882 = vmatpush1.bf16.msra.mxu0 0
      %883 = vmatprep.subr.bf16.mxu0 0
      %884 = vmatpush1.bf16.msra.mxu0 0
      %885 = vmatprep.subr.bf16.mxu0 0
      %886 = vmatpush1.bf16.msra.mxu0 0
      %887 = vmatprep.mubr.bf16.mxu0 0
      %888 = vmatmul.mubr.bf16.gmra.mrb[0].mxu0 %v844
      %v889 = vpop.f32.mrb[0].mxu0
      %v890 = vadd.f32 0.0, %v889
      %v891 = vpop.f32.mrb[0].mxu0
      %v892 = vpop.f32.mrb[0].mxu0
      %v893 = vadd.f32 0.0, %v892
      %v894 = vpop.f32.mrb[0].mxu0
      %895 = vmatprep.mubr.bf16.mxu0 0
      %896 = vmatmul.mubr.bf16.gmra.mrb[0].mxu0 %v847
      %v897 = vpop.f32.mrb[0].mxu0
      %v898 = vadd.f32 0.0, %v897
      %v899 = vpop.f32.mrb[0].mxu0
      %v900 = vpop.f32.mrb[0].mxu0
      %v901 = vadd.f32 0.0, %v900
      %v902 = vpop.f32.mrb[0].mxu0
      %903 = vmatprep.mubr.bf16.mxu0 0
      %904 = vmatmul.mubr.bf16.gmra.mrb[0].mxu0 %v850
      %v905 = vpop.f32.mrb[0].mxu0
      %v906 = vadd.f32 0.0, %v905
      %v907 = vpop.f32.mrb[0].mxu0
      %v908 = vpop.f32.mrb[0].mxu0
      %v909 = vadd.f32 0.0, %v908
      %v910 = vpop.f32.mrb[0].mxu0
      %911 = vmatprep.mubr.bf16.mxu0 0
      %912 = vmatmul.mubr.bf16.gmra.mrb[0].mxu0 %v853
      %v913 = vpop.f32.mrb[0].mxu0
      %v914 = vadd.f32 0.0, %v913
      %v915 = vpop.f32.mrb[0].mxu0
      %v916 = vpop.f32.mrb[0].mxu0
      %v917 = vadd.f32 0.0, %v916
      %v918 = vpop.f32.mrb[0].mxu0
      %919 = vdwg.mxu0
      %v920 = vadd.f32 %v752, %v890
      %v921 = vadd.f32 %v755, %v893
      %v922 = vadd.f32 %v760, %v898
      %v923 = vadd.f32 %v763, %v901
      %v924 = vadd.f32 %v768, %v906
      %v925 = vadd.f32 %v771, %v909
      %v926 = vadd.f32 %v776, %v914
      %v927 = vadd.f32 %v779, %v917
      %v929 = vrot.slane %v521, 7
      %v931 = vsel %vm546, 0.0, %v929
      %v932 = vpack.c.bf16 %v549, %v548
      %v933 = vpack.c.bf16 %v551, %v550
      %v934 = vpack.c.bf16 %v553, %v552
      %v935 = vpack.c.bf16 %v931, %v554
      %v936 = vld [vmem:[%s3 + $0x60] sm:$0xf]
      %v937 = vld [vmem:[%s3 + $0x64] sm:$0xf]
      %v938 = vld [vmem:[%s3 + $0x68] sm:$0xf]
      %v939 = vld [vmem:[%s3 + $0x6c] sm:$0xf]
      %v940 = vld [vmem:[%s3 + $0x70] sm:$0xf]
      %v941 = vld [vmem:[%s3 + $0x74] sm:$0xf]
      %v942 = vld [vmem:[%s3 + $0x78] sm:$0xf]
      %v943 = vld [vmem:[%s3 + $0x7c] sm:$0xf]
      %v952 = vunpack.c.l.b16 %v936
      %v953 = vunpack.c.l.b16 %v937
      %v954 = vunpack.c.l.b16 %v938
      %v955 = vunpack.c.l.b16 %v939
      %v956 = vunpack.c.l.b16 %v940
      %v957 = vunpack.c.l.b16 %v941
      %v958 = vunpack.c.l.b16 %v942
      %v959 = vunpack.c.l.b16 %v943
      %v960 = vpack.c.b16 %v953, %v952
      %v961 = vpack.c.b16 %v955, %v954
      %v962 = vpack.c.b16 %v957, %v956
      %v963 = vpack.c.b16 %v959, %v958
      %v969 = vsel %vm603, %v932, 0
      %v972 = vsel %vm603, %v933, 0
      %v975 = vsel %vm603, %v934, 0
      %v978 = vsel %vm603, %v935, 0
      %980 = vmatprep.subr.bf16.mxu0 0
      %981 = vmatpush1.bf16.msra.mxu0 %v960
      %982 = vmatprep.subr.bf16.mxu0 0
      %983 = vmatpush1.bf16.msra.mxu0 %v961
      %984 = vmatprep.subr.bf16.mxu0 0
      %985 = vmatpush1.bf16.msra.mxu0 %v962
      %986 = vmatprep.subr.bf16.mxu0 0
      %987 = vmatpush1.bf16.msra.mxu0 %v963
      %988 = vmatprep.subr.bf16.mxu0 0
      %989 = vmatpush1.bf16.msra.mxu0 0
      %990 = vmatprep.subr.bf16.mxu0 0
      %991 = vmatpush1.bf16.msra.mxu0 0
      %992 = vmatprep.subr.bf16.mxu0 0
      %993 = vmatpush1.bf16.msra.mxu0 0
      %994 = vmatprep.subr.bf16.mxu0 0
      %995 = vmatpush1.bf16.msra.mxu0 0
      %996 = vmatprep.subr.bf16.mxu0 0
      %997 = vmatpush1.bf16.msra.mxu0 0
      %998 = vmatprep.subr.bf16.mxu0 0
      %999 = vmatpush1.bf16.msra.mxu0 0
      %1000 = vmatprep.subr.bf16.mxu0 0
      %1001 = vmatpush1.bf16.msra.mxu0 0
      %1002 = vmatprep.subr.bf16.mxu0 0
      %1003 = vmatpush1.bf16.msra.mxu0 0
      %1004 = vmatprep.subr.bf16.mxu0 0
      %1005 = vmatpush1.bf16.msra.mxu0 0
      %1006 = vmatprep.subr.bf16.mxu0 0
      %1007 = vmatpush1.bf16.msra.mxu0 0
      %1008 = vmatprep.subr.bf16.mxu0 0
      %1009 = vmatpush1.bf16.msra.mxu0 0
      %1010 = vmatprep.subr.bf16.mxu0 0
      %1011 = vmatpush1.bf16.msra.mxu0 0
      %1012 = vmatprep.mubr.bf16.mxu0 0
      %1013 = vmatmul.mubr.bf16.gmra.mrb[0].mxu0 %v969
      %v1014 = vpop.f32.mrb[0].mxu0
      %v1015 = vadd.f32 0.0, %v1014
      %v1016 = vpop.f32.mrb[0].mxu0
      %v1017 = vpop.f32.mrb[0].mxu0
      %v1018 = vadd.f32 0.0, %v1017
      %v1019 = vpop.f32.mrb[0].mxu0
      %1020 = vmatprep.mubr.bf16.mxu0 0
      %1021 = vmatmul.mubr.bf16.gmra.mrb[0].mxu0 %v972
      %v1022 = vpop.f32.mrb[0].mxu0
      %v1023 = vadd.f32 0.0, %v1022
      %v1024 = vpop.f32.mrb[0].mxu0
      %v1025 = vpop.f32.mrb[0].mxu0
      %v1026 = vadd.f32 0.0, %v1025
      %v1027 = vpop.f32.mrb[0].mxu0
      %1028 = vmatprep.mubr.bf16.mxu0 0
      %1029 = vmatmul.mubr.bf16.gmra.mrb[0].mxu0 %v975
      %v1030 = vpop.f32.mrb[0].mxu0
      %v1031 = vadd.f32 0.0, %v1030
      %v1032 = vpop.f32.mrb[0].mxu0
      %v1033 = vpop.f32.mrb[0].mxu0
      %v1034 = vadd.f32 0.0, %v1033
      %v1035 = vpop.f32.mrb[0].mxu0
      %1036 = vmatprep.mubr.bf16.mxu0 0
      %1037 = vmatmul.mubr.bf16.gmra.mrb[0].mxu0 %v978
      %v1038 = vpop.f32.mrb[0].mxu0
      %v1039 = vadd.f32 0.0, %v1038
      %v1040 = vpop.f32.mrb[0].mxu0
      %v1041 = vpop.f32.mrb[0].mxu0
      %v1042 = vadd.f32 0.0, %v1041
      %v1043 = vpop.f32.mrb[0].mxu0
      %1044 = vdwg.mxu0
      %v1045 = vadd.f32 %v920, %v1015
      %v1046 = vadd.f32 %v921, %v1018
      %v1047 = vadd.f32 %v922, %v1023
      %v1048 = vadd.f32 %v923, %v1026
      %v1049 = vadd.f32 %v924, %v1031
      %v1050 = vadd.f32 %v925, %v1034
      %v1051 = vadd.f32 %v926, %v1039
      %v1052 = vadd.f32 %v927, %v1042
      %v1053 = vpack.c.bf16 %v515, %v514
      %v1054 = vpack.c.bf16 %v517, %v516
      %v1055 = vpack.c.bf16 %v519, %v518
      %v1056 = vpack.c.bf16 %v521, %v520
      %v1057 = vld [vmem:[%s3 + $0x80] sm:$0xf]
      %v1058 = vld [vmem:[%s3 + $0x84] sm:$0xf]
      %v1059 = vld [vmem:[%s3 + $0x88] sm:$0xf]
      %v1060 = vld [vmem:[%s3 + $0x8c] sm:$0xf]
      %v1061 = vld [vmem:[%s3 + $0x90] sm:$0xf]
      %v1062 = vld [vmem:[%s3 + $0x94] sm:$0xf]
      %v1063 = vld [vmem:[%s3 + $0x98] sm:$0xf]
      %v1064 = vld [vmem:[%s3 + $0x9c] sm:$0xf]
      %v1073 = vunpack.c.l.b16 %v1057
      %v1074 = vunpack.c.l.b16 %v1058
      %v1075 = vunpack.c.l.b16 %v1059
      %v1076 = vunpack.c.l.b16 %v1060
      %v1077 = vunpack.c.l.b16 %v1061
      %v1078 = vunpack.c.l.b16 %v1062
      %v1079 = vunpack.c.l.b16 %v1063
      %v1080 = vunpack.c.l.b16 %v1064
      %v1081 = vpack.c.b16 %v1074, %v1073
      %v1082 = vpack.c.b16 %v1076, %v1075
      %v1083 = vpack.c.b16 %v1078, %v1077
      %v1084 = vpack.c.b16 %v1080, %v1079
      %v1090 = vsel %vm603, %v1053, 0
      %v1093 = vsel %vm603, %v1054, 0
      %v1096 = vsel %vm603, %v1055, 0
      %v1099 = vsel %vm603, %v1056, 0
      %1101 = vmatprep.subr.bf16.mxu0 0
      %1102 = vmatpush1.bf16.msra.mxu0 %v1081
      %1103 = vmatprep.subr.bf16.mxu0 0
      %1104 = vmatpush1.bf16.msra.mxu0 %v1082
      %1105 = vmatprep.subr.bf16.mxu0 0
      %1106 = vmatpush1.bf16.msra.mxu0 %v1083
      %1107 = vmatprep.subr.bf16.mxu0 0
      %1108 = vmatpush1.bf16.msra.mxu0 %v1084
      %1109 = vmatprep.subr.bf16.mxu0 0
      %1110 = vmatpush1.bf16.msra.mxu0 0
      %1111 = vmatprep.subr.bf16.mxu0 0
      %1112 = vmatpush1.bf16.msra.mxu0 0
      %1113 = vmatprep.subr.bf16.mxu0 0
      %1114 = vmatpush1.bf16.msra.mxu0 0
      %1115 = vmatprep.subr.bf16.mxu0 0
      %1116 = vmatpush1.bf16.msra.mxu0 0
      %1117 = vmatprep.subr.bf16.mxu0 0
      %1118 = vmatpush1.bf16.msra.mxu0 0
      %1119 = vmatprep.subr.bf16.mxu0 0
      %1120 = vmatpush1.bf16.msra.mxu0 0
      %1121 = vmatprep.subr.bf16.mxu0 0
      %1122 = vmatpush1.bf16.msra.mxu0 0
      %1123 = vmatprep.subr.bf16.mxu0 0
      %1124 = vmatpush1.bf16.msra.mxu0 0
      %1125 = vmatprep.subr.bf16.mxu0 0
      %1126 = vmatpush1.bf16.msra.mxu0 0
      %1127 = vmatprep.subr.bf16.mxu0 0
      %1128 = vmatpush1.bf16.msra.mxu0 0
      %1129 = vmatprep.subr.bf16.mxu0 0
      %1130 = vmatpush1.bf16.msra.mxu0 0
      %1131 = vmatprep.subr.bf16.mxu0 0
      %1132 = vmatpush1.bf16.msra.mxu0 0
      %1133 = vmatprep.mubr.bf16.mxu0 0
      %1134 = vmatmul.mubr.bf16.gmra.mrb[0].mxu0 %v1090
      %v1135 = vpop.f32.mrb[0].mxu0
      %v1136 = vadd.f32 0.0, %v1135
      %v1137 = vpop.f32.mrb[0].mxu0
      %v1138 = vpop.f32.mrb[0].mxu0
      %v1139 = vadd.f32 0.0, %v1138
      %v1140 = vpop.f32.mrb[0].mxu0
      %1141 = vmatprep.mubr.bf16.mxu0 0
      %1142 = vmatmul.mubr.bf16.gmra.mrb[0].mxu0 %v1093
      %v1143 = vpop.f32.mrb[0].mxu0
      %v1144 = vadd.f32 0.0, %v1143
      %v1145 = vpop.f32.mrb[0].mxu0
      %v1146 = vpop.f32.mrb[0].mxu0
      %v1147 = vadd.f32 0.0, %v1146
      %v1148 = vpop.f32.mrb[0].mxu0
      %1149 = vmatprep.mubr.bf16.mxu0 0
      %1150 = vmatmul.mubr.bf16.gmra.mrb[0].mxu0 %v1096
      %v1151 = vpop.f32.mrb[0].mxu0
      %v1152 = vadd.f32 0.0, %v1151
      %v1153 = vpop.f32.mrb[0].mxu0
      %v1154 = vpop.f32.mrb[0].mxu0
      %v1155 = vadd.f32 0.0, %v1154
      %v1156 = vpop.f32.mrb[0].mxu0
      %1157 = vmatprep.mubr.bf16.mxu0 0
      %1158 = vmatmul.mubr.bf16.gmra.mrb[0].mxu0 %v1099
      %v1159 = vpop.f32.mrb[0].mxu0
      %v1160 = vadd.f32 0.0, %v1159
      %v1161 = vpop.f32.mrb[0].mxu0
      %v1162 = vpop.f32.mrb[0].mxu0
      %v1163 = vadd.f32 0.0, %v1162
      %v1164 = vpop.f32.mrb[0].mxu0
      %1165 = vdwg.mxu0
      %v1166 = vadd.f32 %v1045, %v1136
      %v1167 = vadd.f32 %v1046, %v1139
      %v1168 = vadd.f32 %v1047, %v1144
      %v1169 = vadd.f32 %v1048, %v1147
      %v1170 = vadd.f32 %v1049, %v1152
      %v1171 = vadd.f32 %v1050, %v1155
      %v1172 = vadd.f32 %v1051, %v1160
      %v1173 = vadd.f32 %v1052, %v1163
      %v1174 = vrot.slane %v521, 1
      %v1176 = vsel %vm798, %v1174, 0.0
      %v1177 = vpack.c.bf16 %v801, %v800
      %v1178 = vpack.c.bf16 %v803, %v802
      %v1179 = vpack.c.bf16 %v805, %v804
      %v1180 = vpack.c.bf16 %v1176, %v806
      %v1181 = vld [vmem:[%s3 + $0xa0] sm:$0xf]
      %v1182 = vld [vmem:[%s3 + $0xa4] sm:$0xf]
      %v1183 = vld [vmem:[%s3 + $0xa8] sm:$0xf]
      %v1184 = vld [vmem:[%s3 + $0xac] sm:$0xf]
      %v1185 = vld [vmem:[%s3 + $0xb0] sm:$0xf]
      %v1186 = vld [vmem:[%s3 + $0xb4] sm:$0xf]
      %v1187 = vld [vmem:[%s3 + $0xb8] sm:$0xf]
      %v1188 = vld [vmem:[%s3 + $0xbc] sm:$0xf]
      %v1197 = vunpack.c.l.b16 %v1181
      %v1198 = vunpack.c.l.b16 %v1182
      %v1199 = vunpack.c.l.b16 %v1183
      %v1200 = vunpack.c.l.b16 %v1184
      %v1201 = vunpack.c.l.b16 %v1185
      %v1202 = vunpack.c.l.b16 %v1186
      %v1203 = vunpack.c.l.b16 %v1187
      %v1204 = vunpack.c.l.b16 %v1188
      %v1205 = vpack.c.b16 %v1198, %v1197
      %v1206 = vpack.c.b16 %v1200, %v1199
      %v1207 = vpack.c.b16 %v1202, %v1201
      %v1208 = vpack.c.b16 %v1204, %v1203
      %v1214 = vsel %vm603, %v1177, 0
      %v1217 = vsel %vm603, %v1178, 0
      %v1220 = vsel %vm603, %v1179, 0
      %v1223 = vsel %vm603, %v1180, 0
      %1225 = vmatprep.subr.bf16.mxu0 0
      %1226 = vmatpush1.bf16.msra.mxu0 %v1205
      %1227 = vmatprep.subr.bf16.mxu0 0
      %1228 = vmatpush1.bf16.msra.mxu0 %v1206
      %1229 = vmatprep.subr.bf16.mxu0 0
      %1230 = vmatpush1.bf16.msra.mxu0 %v1207
      %1231 = vmatprep.subr.bf16.mxu0 0
      %1232 = vmatpush1.bf16.msra.mxu0 %v1208
      %1233 = vmatprep.subr.bf16.mxu0 0
      %1234 = vmatpush1.bf16.msra.mxu0 0
      %1235 = vmatprep.subr.bf16.mxu0 0
      %1236 = vmatpush1.bf16.msra.mxu0 0
      %1237 = vmatprep.subr.bf16.mxu0 0
      %1238 = vmatpush1.bf16.msra.mxu0 0
      %1239 = vmatprep.subr.bf16.mxu0 0
      %1240 = vmatpush1.bf16.msra.mxu0 0
      %1241 = vmatprep.subr.bf16.mxu0 0
      %1242 = vmatpush1.bf16.msra.mxu0 0
      %1243 = vmatprep.subr.bf16.mxu0 0
      %1244 = vmatpush1.bf16.msra.mxu0 0
      %1245 = vmatprep.subr.bf16.mxu0 0
      %1246 = vmatpush1.bf16.msra.mxu0 0
      %1247 = vmatprep.subr.bf16.mxu0 0
      %1248 = vmatpush1.bf16.msra.mxu0 0
      %1249 = vmatprep.subr.bf16.mxu0 0
      %1250 = vmatpush1.bf16.msra.mxu0 0
      %1251 = vmatprep.subr.bf16.mxu0 0
      %1252 = vmatpush1.bf16.msra.mxu0 0
      %1253 = vmatprep.subr.bf16.mxu0 0
      %1254 = vmatpush1.bf16.msra.mxu0 0
      %1255 = vmatprep.subr.bf16.mxu0 0
      %1256 = vmatpush1.bf16.msra.mxu0 0
      %1257 = vmatprep.mubr.bf16.mxu0 0
      %1258 = vmatmul.mubr.bf16.gmra.mrb[0].mxu0 %v1214
      %v1259 = vpop.f32.mrb[0].mxu0
      %v1260 = vadd.f32 0.0, %v1259
      %v1261 = vpop.f32.mrb[0].mxu0
      %v1262 = vpop.f32.mrb[0].mxu0
      %v1263 = vadd.f32 0.0, %v1262
      %v1264 = vpop.f32.mrb[0].mxu0
      %1265 = vmatprep.mubr.bf16.mxu0 0
      %1266 = vmatmul.mubr.bf16.gmra.mrb[0].mxu0 %v1217
      %v1267 = vpop.f32.mrb[0].mxu0
      %v1268 = vadd.f32 0.0, %v1267
      %v1269 = vpop.f32.mrb[0].mxu0
      %v1270 = vpop.f32.mrb[0].mxu0
      %v1271 = vadd.f32 0.0, %v1270
      %v1272 = vpop.f32.mrb[0].mxu0
      %1273 = vmatprep.mubr.bf16.mxu0 0
      %1274 = vmatmul.mubr.bf16.gmra.mrb[0].mxu0 %v1220
      %v1275 = vpop.f32.mrb[0].mxu0
      %v1276 = vadd.f32 0.0, %v1275
      %v1277 = vpop.f32.mrb[0].mxu0
      %v1278 = vpop.f32.mrb[0].mxu0
      %v1279 = vadd.f32 0.0, %v1278
      %v1280 = vpop.f32.mrb[0].mxu0
      %1281 = vmatprep.mubr.bf16.mxu0 0
      %1282 = vmatmul.mubr.bf16.gmra.mrb[0].mxu0 %v1223
      %v1283 = vpop.f32.mrb[0].mxu0
      %v1284 = vadd.f32 0.0, %v1283
      %v1285 = vpop.f32.mrb[0].mxu0
      %v1286 = vpop.f32.mrb[0].mxu0
      %v1287 = vadd.f32 0.0, %v1286
      %v1288 = vpop.f32.mrb[0].mxu0
      %1289 = vdwg.mxu0
      %v1290 = vadd.f32 %v1166, %v1260
      %v1291 = vadd.f32 %v1167, %v1263
      %v1292 = vadd.f32 %v1168, %v1268
      %v1293 = vadd.f32 %v1169, %v1271
      %v1294 = vadd.f32 %v1170, %v1276
      %v1295 = vadd.f32 %v1171, %v1279
      %v1296 = vadd.f32 %v1172, %v1284
      %v1297 = vadd.f32 %v1173, %v1287
      %v1298 = vld [vmem:[%s389] sm:$0xff]
      %v1299 = vld [vmem:[%s389 + $0x8] sm:$0xff]
      %v1300 = vld [vmem:[%s389 + $0x10] sm:$0xff]
      %v1301 = vld [vmem:[%s389 + $0x18] sm:$0xff]
      %v1302 = vld [vmem:[%s389 + $0x20] sm:$0xff]
      %v1303 = vld [vmem:[%s389 + $0x28] sm:$0xff]
      %v1304 = vld [vmem:[%s389 + $0x30] sm:$0xff]
      %v1305 = vld [vmem:[%s389 + $0x38] sm:$0xff]
      %v1306 = vand.u32 2147483647, %v1298
      %v1307 = vand.u32 2147483647, %v1299
      %v1308 = vand.u32 2147483647, %v1300
      %v1309 = vand.u32 2147483647, %v1301
      %v1310 = vand.u32 2147483647, %v1302
      %v1311 = vand.u32 2147483647, %v1303
      %v1312 = vand.u32 2147483647, %v1304
      %v1313 = vand.u32 2147483647, %v1305
      %v1314 = vsub.f32 0.0, %v1306
      %v1315 = vsub.f32 0.0, %v1307
      %v1316 = vsub.f32 0.0, %v1308
      %v1317 = vsub.f32 0.0, %v1309
      %v1318 = vsub.f32 0.0, %v1310
      %v1319 = vsub.f32 0.0, %v1311
      %v1320 = vsub.f32 0.0, %v1312
      %v1321 = vsub.f32 0.0, %v1313
      %v1322 = vmul.f32 %v1314, 1.442695
      %v1323 = vpow.pop %v1322
      %v1324 = vmul.f32 %v1315, 1.442695
      %v1325 = vpow.pop %v1324
      %v1326 = vmul.f32 %v1316, 1.442695
      %v1327 = vpow.pop %v1326
      %v1328 = vmul.f32 %v1317, 1.442695
      %v1329 = vpow.pop %v1328
      %v1330 = vmul.f32 %v1318, 1.442695
      %v1331 = vpow.pop %v1330
      %v1332 = vmul.f32 %v1319, 1.442695
      %v1333 = vpow.pop %v1332
      %v1334 = vmul.f32 %v1320, 1.442695
      %v1335 = vpow.pop %v1334
      %v1336 = vmul.f32 %v1321, 1.442695
      %v1337 = vpow.pop %v1336
      %v1338 = vsub.f32 %v1323, 1.0
      %v1339 = vsub.f32 %v1325, 1.0
      %v1340 = vsub.f32 %v1327, 1.0
      %v1341 = vsub.f32 %v1329, 1.0
      %v1342 = vsub.f32 %v1331, 1.0
      %v1343 = vsub.f32 %v1333, 1.0
      %v1344 = vsub.f32 %v1335, 1.0
      %v1345 = vsub.f32 %v1337, 1.0
      %vm1346 = vcmp.gt.f32.partialorder %v1298, 0.0
      %vm1347 = vcmp.gt.f32.partialorder %v1299, 0.0
      %vm1348 = vcmp.gt.f32.partialorder %v1300, 0.0
      %vm1349 = vcmp.gt.f32.partialorder %v1301, 0.0
      %vm1350 = vcmp.gt.f32.partialorder %v1302, 0.0
      %vm1351 = vcmp.gt.f32.partialorder %v1303, 0.0
      %vm1352 = vcmp.gt.f32.partialorder %v1304, 0.0
      %vm1353 = vcmp.gt.f32.partialorder %v1305, 0.0
      %v1354 = vsel %vm1346, %v1298, %v1338
      %v1355 = vsel %vm1347, %v1299, %v1339
      %v1356 = vsel %vm1348, %v1300, %v1340
      %v1357 = vsel %vm1349, %v1301, %v1341
      %v1358 = vsel %vm1350, %v1302, %v1342
      %v1359 = vsel %vm1351, %v1303, %v1343
      %v1360 = vsel %vm1352, %v1304, %v1344
      %v1361 = vsel %vm1353, %v1305, %v1345
      %v1362 = vsub.f32 0.0, %v1298
      %v1363 = vsub.f32 0.0, %v1299
      %v1364 = vsub.f32 0.0, %v1300
      %v1365 = vsub.f32 0.0, %v1301
      %v1366 = vsub.f32 0.0, %v1302
      %v1367 = vsub.f32 0.0, %v1303
      %v1368 = vsub.f32 0.0, %v1304
      %v1369 = vsub.f32 0.0, %v1305
      %v1370 = vsel %vm1346, %v1338, %v1362
      %v1371 = vsel %vm1347, %v1339, %v1363
      %v1372 = vsel %vm1348, %v1340, %v1364
      %v1373 = vsel %vm1349, %v1341, %v1365
      %v1374 = vsel %vm1350, %v1342, %v1366
      %v1375 = vsel %vm1351, %v1343, %v1367
      %v1376 = vsel %vm1352, %v1344, %v1368
      %v1377 = vsel %vm1353, %v1345, %v1369
      %1386 = vrot.lane.b32.xlu0 %v1370, 32
      %v1387 = vpop.permute.xlu0 %1386
      %1388 = vrot.lane.b32.xlu0 %v1371, 32
      %v1389 = vpop.permute.xlu0 %1388
      %1390 = vrot.lane.b32.xlu0 %v1372, 32
      %v1391 = vpop.permute.xlu0 %1390
      %1392 = vrot.lane.b32.xlu0 %v1373, 32
      %v1393 = vpop.permute.xlu0 %1392
      %1394 = vrot.lane.b32.xlu0 %v1374, 32
      %v1395 = vpop.permute.xlu0 %1394
      %1396 = vrot.lane.b32.xlu0 %v1375, 32
      %v1397 = vpop.permute.xlu0 %1396
      %1398 = vrot.lane.b32.xlu0 %v1376, 32
      %v1399 = vpop.permute.xlu0 %1398
      %1400 = vrot.lane.b32.xlu0 %v1377, 32
      %v1401 = vpop.permute.xlu0 %1400
      %v1410 = vsel %vm513, %v1354, %v1387
      %v1411 = vsel %vm513, %v1355, %v1389
      %v1412 = vsel %vm513, %v1356, %v1391
      %v1413 = vsel %vm513, %v1357, %v1393
      %v1414 = vsel %vm513, %v1358, %v1395
      %v1415 = vsel %vm513, %v1359, %v1397
      %v1416 = vsel %vm513, %v1360, %v1399
      %v1417 = vsel %vm513, %v1361, %v1401
      %v1418 = vpack.c.bf16 %v1411, %v1410
      %v1419 = vpack.c.bf16 %v1413, %v1412
      %v1420 = vpack.c.bf16 %v1415, %v1414
      %v1421 = vpack.c.bf16 %v1417, %v1416
      %v1422 = vld [vmem:[%s4] sm:$0xf]
      %v1423 = vld [vmem:[%s4 + $0x4] sm:$0xf]
      %v1424 = vld [vmem:[%s4 + $0x8] sm:$0xf]
      %v1425 = vld [vmem:[%s4 + $0xc] sm:$0xf]
      %v1426 = vld [vmem:[%s4 + $0x10] sm:$0xf]
      %v1427 = vld [vmem:[%s4 + $0x14] sm:$0xf]
      %v1428 = vld [vmem:[%s4 + $0x18] sm:$0xf]
      %v1429 = vld [vmem:[%s4 + $0x1c] sm:$0xf]
      %v1438 = vunpack.c.l.b16 %v1422
      %v1439 = vunpack.c.l.b16 %v1423
      %v1440 = vunpack.c.l.b16 %v1424
      %v1441 = vunpack.c.l.b16 %v1425
      %v1442 = vunpack.c.l.b16 %v1426
      %v1443 = vunpack.c.l.b16 %v1427
      %v1444 = vunpack.c.l.b16 %v1428
      %v1445 = vunpack.c.l.b16 %v1429
      %v1446 = vpack.c.b16 %v1439, %v1438
      %v1447 = vpack.c.b16 %v1441, %v1440
      %v1448 = vpack.c.b16 %v1443, %v1442
      %v1449 = vpack.c.b16 %v1445, %v1444
      %v1455 = vsel %vm603, %v1418, 0
      %v1458 = vsel %vm603, %v1419, 0
      %v1461 = vsel %vm603, %v1420, 0
      %v1464 = vsel %vm603, %v1421, 0
      %1466 = vmatprep.subr.bf16.mxu0 0
      %1467 = vmatpush1.bf16.msra.mxu0 %v1446
      %1468 = vmatprep.subr.bf16.mxu0 0
      %1469 = vmatpush1.bf16.msra.mxu0 %v1447
      %1470 = vmatprep.subr.bf16.mxu0 0
      %1471 = vmatpush1.bf16.msra.mxu0 %v1448
      %1472 = vmatprep.subr.bf16.mxu0 0
      %1473 = vmatpush1.bf16.msra.mxu0 %v1449
      %1474 = vmatprep.subr.bf16.mxu0 0
      %1475 = vmatpush1.bf16.msra.mxu0 0
      %1476 = vmatprep.subr.bf16.mxu0 0
      %1477 = vmatpush1.bf16.msra.mxu0 0
      %1478 = vmatprep.subr.bf16.mxu0 0
      %1479 = vmatpush1.bf16.msra.mxu0 0
      %1480 = vmatprep.subr.bf16.mxu0 0
      %1481 = vmatpush1.bf16.msra.mxu0 0
      %1482 = vmatprep.subr.bf16.mxu0 0
      %1483 = vmatpush1.bf16.msra.mxu0 0
      %1484 = vmatprep.subr.bf16.mxu0 0
      %1485 = vmatpush1.bf16.msra.mxu0 0
      %1486 = vmatprep.subr.bf16.mxu0 0
      %1487 = vmatpush1.bf16.msra.mxu0 0
      %1488 = vmatprep.subr.bf16.mxu0 0
      %1489 = vmatpush1.bf16.msra.mxu0 0
      %1490 = vmatprep.subr.bf16.mxu0 0
      %1491 = vmatpush1.bf16.msra.mxu0 0
      %1492 = vmatprep.subr.bf16.mxu0 0
      %1493 = vmatpush1.bf16.msra.mxu0 0
      %1494 = vmatprep.subr.bf16.mxu0 0
      %1495 = vmatpush1.bf16.msra.mxu0 0
      %1496 = vmatprep.subr.bf16.mxu0 0
      %1497 = vmatpush1.bf16.msra.mxu0 0
      %1498 = vmatprep.mubr.bf16.mxu0 0
      %1499 = vmatmul.mubr.bf16.gmra.mrb[0].mxu0 %v1455
      %v1500 = vpop.f32.mrb[0].mxu0
      %v1501 = vadd.f32 0.0, %v1500
      %v1502 = vpop.f32.mrb[0].mxu0
      %v1503 = vpop.f32.mrb[0].mxu0
      %v1504 = vadd.f32 0.0, %v1503
      %v1505 = vpop.f32.mrb[0].mxu0
      %1506 = vmatprep.mubr.bf16.mxu0 0
      %1507 = vmatmul.mubr.bf16.gmra.mrb[0].mxu0 %v1458
      %v1508 = vpop.f32.mrb[0].mxu0
      %v1509 = vadd.f32 0.0, %v1508
      %v1510 = vpop.f32.mrb[0].mxu0
      %v1511 = vpop.f32.mrb[0].mxu0
      %v1512 = vadd.f32 0.0, %v1511
      %v1513 = vpop.f32.mrb[0].mxu0
      %1514 = vmatprep.mubr.bf16.mxu0 0
      %1515 = vmatmul.mubr.bf16.gmra.mrb[0].mxu0 %v1461
      %v1516 = vpop.f32.mrb[0].mxu0
      %v1517 = vadd.f32 0.0, %v1516
      %v1518 = vpop.f32.mrb[0].mxu0
      %v1519 = vpop.f32.mrb[0].mxu0
      %v1520 = vadd.f32 0.0, %v1519
      %v1521 = vpop.f32.mrb[0].mxu0
      %1522 = vmatprep.mubr.bf16.mxu0 0
      %1523 = vmatmul.mubr.bf16.gmra.mrb[0].mxu0 %v1464
      %v1524 = vpop.f32.mrb[0].mxu0
      %v1525 = vadd.f32 0.0, %v1524
      %v1526 = vpop.f32.mrb[0].mxu0
      %v1527 = vpop.f32.mrb[0].mxu0
      %v1528 = vadd.f32 0.0, %v1527
      %v1529 = vpop.f32.mrb[0].mxu0
      %1530 = vdwg.mxu0
      %v1531 = vadd.f32 %v1290, %v1501
      %v1532 = vadd.f32 %v1291, %v1504
      %v1533 = vadd.f32 %v1292, %v1509
      %v1534 = vadd.f32 %v1293, %v1512
      %v1535 = vadd.f32 %v1294, %v1517
      %v1536 = vadd.f32 %v1295, %v1520
      %v1537 = vadd.f32 %v1296, %v1525
      %v1538 = vadd.f32 %v1297, %v1528
      %v1539 = vld [vmem:[%s5] sm:$0x1]
      %v1541 = vlaneseq
      %v1542 = vshrl.u32 %v1541, 7
      %v1543 = vsub.s32 0, %v1542
      %v1544 = vrot.slane %v1539, %v1543
      %v1546 = vadd.f32 %v1531, %v1544
      %v1547 = vadd.f32 %v1532, %v1544
      %v1548 = vadd.f32 %v1533, %v1544
      %v1549 = vadd.f32 %v1534, %v1544
      %v1550 = vadd.f32 %v1535, %v1544
      %v1551 = vadd.f32 %v1536, %v1544
      %v1552 = vadd.f32 %v1537, %v1544
      %v1553 = vadd.f32 %v1538, %v1544
      %v1554 = vld [vmem:[%s394] sm:$0xff]
      %v1555 = vld [vmem:[%s394 + $0x8] sm:$0xff]
      %v1556 = vld [vmem:[%s394 + $0x10] sm:$0xff]
      %v1557 = vld [vmem:[%s394 + $0x18] sm:$0xff]
      %v1558 = vld [vmem:[%s394 + $0x20] sm:$0xff]
      %v1559 = vld [vmem:[%s394 + $0x28] sm:$0xff]
      %v1560 = vld [vmem:[%s394 + $0x30] sm:$0xff]
      %v1561 = vld [vmem:[%s394 + $0x38] sm:$0xff]
      %v1562 = vadd.f32 %v1546, %v1554
      %v1563 = vadd.f32 %v1547, %v1555
      %v1564 = vadd.f32 %v1548, %v1556
      %v1565 = vadd.f32 %v1549, %v1557
      %v1566 = vadd.f32 %v1550, %v1558
      %v1567 = vadd.f32 %v1551, %v1559
      %v1568 = vadd.f32 %v1552, %v1560
      %v1569 = vadd.f32 %v1553, %v1561
      %v1570 = vand.u32 2147483647, %v1562
      %v1571 = vand.u32 2147483647, %v1563
      %v1572 = vand.u32 2147483647, %v1564
      %v1573 = vand.u32 2147483647, %v1565
      %v1574 = vand.u32 2147483647, %v1566
      %v1575 = vand.u32 2147483647, %v1567
      %v1576 = vand.u32 2147483647, %v1568
      %v1577 = vand.u32 2147483647, %v1569
      %v1578 = vsub.f32 0.0, %v1570
      %v1579 = vsub.f32 0.0, %v1571
      %v1580 = vsub.f32 0.0, %v1572
      %v1581 = vsub.f32 0.0, %v1573
      %v1582 = vsub.f32 0.0, %v1574
      %v1583 = vsub.f32 0.0, %v1575
      %v1584 = vsub.f32 0.0, %v1576
      %v1585 = vsub.f32 0.0, %v1577
      %v1586 = vmul.f32 %v1578, 1.442695
      %v1587 = vpow.pop %v1586
      %v1588 = vmul.f32 %v1579, 1.442695
      %v1589 = vpow.pop %v1588
      %v1590 = vmul.f32 %v1580, 1.442695
      %v1591 = vpow.pop %v1590
      %v1592 = vmul.f32 %v1581, 1.442695
      %v1593 = vpow.pop %v1592
      %v1594 = vmul.f32 %v1582, 1.442695
      %v1595 = vpow.pop %v1594
      %v1596 = vmul.f32 %v1583, 1.442695
      %v1597 = vpow.pop %v1596
      %v1598 = vmul.f32 %v1584, 1.442695
      %v1599 = vpow.pop %v1598
      %v1600 = vmul.f32 %v1585, 1.442695
      %v1601 = vpow.pop %v1600
      %v1602 = vsub.f32 %v1587, 1.0
      %v1603 = vsub.f32 %v1589, 1.0
      %v1604 = vsub.f32 %v1591, 1.0
      %v1605 = vsub.f32 %v1593, 1.0
      %v1606 = vsub.f32 %v1595, 1.0
      %v1607 = vsub.f32 %v1597, 1.0
      %v1608 = vsub.f32 %v1599, 1.0
      %v1609 = vsub.f32 %v1601, 1.0
      %vm1610 = vcmp.gt.f32.partialorder %v1562, 0.0
      %vm1611 = vcmp.gt.f32.partialorder %v1563, 0.0
      %vm1612 = vcmp.gt.f32.partialorder %v1564, 0.0
      %vm1613 = vcmp.gt.f32.partialorder %v1565, 0.0
      %vm1614 = vcmp.gt.f32.partialorder %v1566, 0.0
      %vm1615 = vcmp.gt.f32.partialorder %v1567, 0.0
      %vm1616 = vcmp.gt.f32.partialorder %v1568, 0.0
      %vm1617 = vcmp.gt.f32.partialorder %v1569, 0.0
      %v1618 = vsel %vm1610, %v1562, %v1602
      %v1619 = vsel %vm1611, %v1563, %v1603
      %v1620 = vsel %vm1612, %v1564, %v1604
      %v1621 = vsel %vm1613, %v1565, %v1605
      %v1622 = vsel %vm1614, %v1566, %v1606
      %v1623 = vsel %vm1615, %v1567, %v1607
      %v1624 = vsel %vm1616, %v1568, %v1608
      %v1625 = vsel %vm1617, %v1569, %v1609
      %v1626 = vsub.f32 0.0, %v1562
      %v1627 = vsub.f32 0.0, %v1563
      %v1628 = vsub.f32 0.0, %v1564
      %v1629 = vsub.f32 0.0, %v1565
      %v1630 = vsub.f32 0.0, %v1566
      %v1631 = vsub.f32 0.0, %v1567
      %v1632 = vsub.f32 0.0, %v1568
      %v1633 = vsub.f32 0.0, %v1569
      %v1634 = vsel %vm1610, %v1602, %v1626
      %v1635 = vsel %vm1611, %v1603, %v1627
      %v1636 = vsel %vm1612, %v1604, %v1628
      %v1637 = vsel %vm1613, %v1605, %v1629
      %v1638 = vsel %vm1614, %v1606, %v1630
      %v1639 = vsel %vm1615, %v1607, %v1631
      %v1640 = vsel %vm1616, %v1608, %v1632
      %v1641 = vsel %vm1617, %v1609, %v1633
      %1650 = vrot.lane.b32.xlu0 %v1634, 32
      %v1651 = vpop.permute.xlu0 %1650
      %1652 = vrot.lane.b32.xlu0 %v1635, 32
      %v1653 = vpop.permute.xlu0 %1652
      %1654 = vrot.lane.b32.xlu0 %v1636, 32
      %v1655 = vpop.permute.xlu0 %1654
      %1656 = vrot.lane.b32.xlu0 %v1637, 32
      %v1657 = vpop.permute.xlu0 %1656
      %1658 = vrot.lane.b32.xlu0 %v1638, 32
      %v1659 = vpop.permute.xlu0 %1658
      %1660 = vrot.lane.b32.xlu0 %v1639, 32
      %v1661 = vpop.permute.xlu0 %1660
      %1662 = vrot.lane.b32.xlu0 %v1640, 32
      %v1663 = vpop.permute.xlu0 %1662
      %1664 = vrot.lane.b32.xlu0 %v1641, 32
      %v1665 = vpop.permute.xlu0 %1664
      %v1674 = vsel %vm513, %v1618, %v1651
      %v1675 = vsel %vm513, %v1619, %v1653
      %v1676 = vsel %vm513, %v1620, %v1655
      %v1677 = vsel %vm513, %v1621, %v1657
      %v1678 = vsel %vm513, %v1622, %v1659
      %v1679 = vsel %vm513, %v1623, %v1661
      %v1680 = vsel %vm513, %v1624, %v1663
      %v1681 = vsel %vm513, %v1625, %v1665
      %v1689 = vrot.slane %v1674, 7
      %v1690 = vrot.slane %v1675, 7
      %v1691 = vrot.slane %v1676, 7
      %v1692 = vrot.slane %v1677, 7
      %v1693 = vrot.slane %v1678, 7
      %v1694 = vrot.slane %v1679, 7
      %v1695 = vrot.slane %v1680, 7
      %v1703 = vsel %vm546, 0.0, %v1689
      %v1704 = vsel %vm546, 0.0, %v1690
      %v1705 = vsel %vm546, 0.0, %v1691
      %v1706 = vsel %vm546, 0.0, %v1692
      %v1707 = vsel %vm546, 0.0, %v1693
      %v1708 = vsel %vm546, 0.0, %v1694
      %v1709 = vsel %vm546, 0.0, %v1695
      %v1710 = vpack.c.bf16 %v1703, %v547
      %v1711 = vpack.c.bf16 %v1705, %v1704
      %v1712 = vpack.c.bf16 %v1707, %v1706
      %v1713 = vpack.c.bf16 %v1709, %v1708
      %v1714 = vld [vmem:[%s6] sm:$0xf]
      %v1715 = vld [vmem:[%s6 + $0x4] sm:$0xf]
      %v1716 = vld [vmem:[%s6 + $0x8] sm:$0xf]
      %v1717 = vld [vmem:[%s6 + $0xc] sm:$0xf]
      %v1718 = vld [vmem:[%s6 + $0x10] sm:$0xf]
      %v1719 = vld [vmem:[%s6 + $0x14] sm:$0xf]
      %v1720 = vld [vmem:[%s6 + $0x18] sm:$0xf]
      %v1721 = vld [vmem:[%s6 + $0x1c] sm:$0xf]
      %v1722 = vld [vmem:[%s7] sm:$0xf]
      %v1723 = vld [vmem:[%s7 + $0x4] sm:$0xf]
      %v1724 = vld [vmem:[%s7 + $0x8] sm:$0xf]
      %v1725 = vld [vmem:[%s7 + $0xc] sm:$0xf]
      %v1726 = vld [vmem:[%s7 + $0x10] sm:$0xf]
      %v1727 = vld [vmem:[%s7 + $0x14] sm:$0xf]
      %v1728 = vld [vmem:[%s7 + $0x18] sm:$0xf]
      %v1729 = vld [vmem:[%s7 + $0x1c] sm:$0xf]
      %v1730 = vpack.c.bf16 %v1674, 0.0
      %v1731 = vpack.c.bf16 %v1676, %v1675
      %v1732 = vpack.c.bf16 %v1678, %v1677
      %v1733 = vpack.c.bf16 %v1680, %v1679
      %v1734 = vld [vmem:[%s6 + $0x20] sm:$0xf]
      %v1735 = vld [vmem:[%s6 + $0x24] sm:$0xf]
      %v1736 = vld [vmem:[%s6 + $0x28] sm:$0xf]
      %v1737 = vld [vmem:[%s6 + $0x2c] sm:$0xf]
      %v1738 = vld [vmem:[%s6 + $0x30] sm:$0xf]
      %v1739 = vld [vmem:[%s6 + $0x34] sm:$0xf]
      %v1740 = vld [vmem:[%s6 + $0x38] sm:$0xf]
      %v1741 = vld [vmem:[%s6 + $0x3c] sm:$0xf]
      %v1750 = vunpack.c.l.b16 %v1734
      %v1751 = vunpack.c.l.b16 %v1735
      %v1752 = vunpack.c.l.b16 %v1736
      %v1753 = vunpack.c.l.b16 %v1737
      %v1754 = vunpack.c.l.b16 %v1738
      %v1755 = vunpack.c.l.b16 %v1739
      %v1756 = vunpack.c.l.b16 %v1740
      %v1757 = vunpack.c.l.b16 %v1741
      %v1758 = vpack.c.b16 %v1751, %v1750
      %v1759 = vpack.c.b16 %v1753, %v1752
      %v1760 = vpack.c.b16 %v1755, %v1754
      %v1761 = vpack.c.b16 %v1757, %v1756
      %v1767 = vsel %vm603, %v1730, 0
      %v1770 = vsel %vm603, %v1731, 0
      %v1773 = vsel %vm603, %v1732, 0
      %v1776 = vsel %vm603, %v1733, 0
      %1778 = vmatprep.subr.bf16.mxu0 0
      %1779 = vmatpush1.bf16.msra.mxu0 %v1758
      %1780 = vmatprep.subr.bf16.mxu0 0
      %1781 = vmatpush1.bf16.msra.mxu0 %v1759
      %1782 = vmatprep.subr.bf16.mxu0 0
      %1783 = vmatpush1.bf16.msra.mxu0 %v1760
      %1784 = vmatprep.subr.bf16.mxu0 0
      %1785 = vmatpush1.bf16.msra.mxu0 %v1761
      %1786 = vmatprep.subr.bf16.mxu0 0
      %1787 = vmatpush1.bf16.msra.mxu0 0
      %1788 = vmatprep.subr.bf16.mxu0 0
      %1789 = vmatpush1.bf16.msra.mxu0 0
      %1790 = vmatprep.subr.bf16.mxu0 0
      %1791 = vmatpush1.bf16.msra.mxu0 0
      %1792 = vmatprep.subr.bf16.mxu0 0
      %1793 = vmatpush1.bf16.msra.mxu0 0
      %1794 = vmatprep.subr.bf16.mxu0 0
      %1795 = vmatpush1.bf16.msra.mxu0 0
      %1796 = vmatprep.subr.bf16.mxu0 0
      %1797 = vmatpush1.bf16.msra.mxu0 0
      %1798 = vmatprep.subr.bf16.mxu0 0
      %1799 = vmatpush1.bf16.msra.mxu0 0
      %1800 = vmatprep.subr.bf16.mxu0 0
      %1801 = vmatpush1.bf16.msra.mxu0 0
      %1802 = vmatprep.subr.bf16.mxu0 0
      %1803 = vmatpush1.bf16.msra.mxu0 0
      %1804 = vmatprep.subr.bf16.mxu0 0
      %1805 = vmatpush1.bf16.msra.mxu0 0
      %1806 = vmatprep.subr.bf16.mxu0 0
      %1807 = vmatpush1.bf16.msra.mxu0 0
      %1808 = vmatprep.subr.bf16.mxu0 0
      %1809 = vmatpush1.bf16.msra.mxu0 0
      %1810 = vmatprep.mubr.bf16.mxu0 0
      %1811 = vmatmul.mubr.bf16.gmra.mrb[0].mxu0 %v1767
      %v1812 = vpop.f32.mrb[0].mxu0
      %v1813 = vadd.f32 0.0, %v1812
      %v1814 = vpop.f32.mrb[0].mxu0
      %v1815 = vpop.f32.mrb[0].mxu0
      %v1816 = vadd.f32 0.0, %v1815
      %v1817 = vpop.f32.mrb[0].mxu0
      %1818 = vmatprep.mubr.bf16.mxu0 0
      %1819 = vmatmul.mubr.bf16.gmra.mrb[0].mxu0 %v1770
      %v1820 = vpop.f32.mrb[0].mxu0
      %v1821 = vadd.f32 0.0, %v1820
      %v1822 = vpop.f32.mrb[0].mxu0
      %v1823 = vpop.f32.mrb[0].mxu0
      %v1824 = vadd.f32 0.0, %v1823
      %v1825 = vpop.f32.mrb[0].mxu0
      %1826 = vmatprep.mubr.bf16.mxu0 0
      %1827 = vmatmul.mubr.bf16.gmra.mrb[0].mxu0 %v1773
      %v1828 = vpop.f32.mrb[0].mxu0
      %v1829 = vadd.f32 0.0, %v1828
      %v1830 = vpop.f32.mrb[0].mxu0
      %v1831 = vpop.f32.mrb[0].mxu0
      %v1832 = vadd.f32 0.0, %v1831
      %v1833 = vpop.f32.mrb[0].mxu0
      %1834 = vmatprep.mubr.bf16.mxu0 0
      %1835 = vmatmul.mubr.bf16.gmra.mrb[0].mxu0 %v1776
      %v1836 = vpop.f32.mrb[0].mxu0
      %v1837 = vadd.f32 0.0, %v1836
      %v1838 = vpop.f32.mrb[0].mxu0
      %v1839 = vpop.f32.mrb[0].mxu0
      %v1840 = vadd.f32 0.0, %v1839
      %v1841 = vpop.f32.mrb[0].mxu0
      %1842 = vdwg.mxu0
      %v1851 = vunpack.c.l.b16 %v1714
      %v1852 = vunpack.c.l.b16 %v1715
      %v1853 = vunpack.c.l.b16 %v1716
      %v1854 = vunpack.c.l.b16 %v1717
      %v1855 = vunpack.c.l.b16 %v1718
      %v1856 = vunpack.c.l.b16 %v1719
      %v1857 = vunpack.c.l.b16 %v1720
      %v1858 = vunpack.c.l.b16 %v1721
      %v1859 = vpack.c.b16 %v1852, %v1851
      %v1860 = vpack.c.b16 %v1854, %v1853
      %v1861 = vpack.c.b16 %v1856, %v1855
      %v1862 = vpack.c.b16 %v1858, %v1857
      %v1868 = vsel %vm603, %v1710, 0
      %v1871 = vsel %vm603, %v1711, 0
      %v1874 = vsel %vm603, %v1712, 0
      %v1877 = vsel %vm603, %v1713, 0
      %1879 = vmatprep.subr.bf16.mxu0 0
      %1880 = vmatpush1.bf16.msra.mxu0 %v1859
      %1881 = vmatprep.subr.bf16.mxu0 0
      %1882 = vmatpush1.bf16.msra.mxu0 %v1860
      %1883 = vmatprep.subr.bf16.mxu0 0
      %1884 = vmatpush1.bf16.msra.mxu0 %v1861
      %1885 = vmatprep.subr.bf16.mxu0 0
      %1886 = vmatpush1.bf16.msra.mxu0 %v1862
      %1887 = vmatprep.subr.bf16.mxu0 0
      %1888 = vmatpush1.bf16.msra.mxu0 0
      %1889 = vmatprep.subr.bf16.mxu0 0
      %1890 = vmatpush1.bf16.msra.mxu0 0
      %1891 = vmatprep.subr.bf16.mxu0 0
      %1892 = vmatpush1.bf16.msra.mxu0 0
      %1893 = vmatprep.subr.bf16.mxu0 0
      %1894 = vmatpush1.bf16.msra.mxu0 0
      %1895 = vmatprep.subr.bf16.mxu0 0
      %1896 = vmatpush1.bf16.msra.mxu0 0
      %1897 = vmatprep.subr.bf16.mxu0 0
      %1898 = vmatpush1.bf16.msra.mxu0 0
      %1899 = vmatprep.subr.bf16.mxu0 0
      %1900 = vmatpush1.bf16.msra.mxu0 0
      %1901 = vmatprep.subr.bf16.mxu0 0
      %1902 = vmatpush1.bf16.msra.mxu0 0
      %1903 = vmatprep.subr.bf16.mxu0 0
      %1904 = vmatpush1.bf16.msra.mxu0 0
      %1905 = vmatprep.subr.bf16.mxu0 0
      %1906 = vmatpush1.bf16.msra.mxu0 0
      %1907 = vmatprep.subr.bf16.mxu0 0
      %1908 = vmatpush1.bf16.msra.mxu0 0
      %1909 = vmatprep.subr.bf16.mxu0 0
      %1910 = vmatpush1.bf16.msra.mxu0 0
      %1911 = vmatprep.mubr.bf16.mxu0 0
      %1912 = vmatmul.mubr.bf16.gmra.mrb[0].mxu0 %v1868
      %v1913 = vpop.f32.mrb[0].mxu0
      %v1914 = vadd.f32 %v1813, %v1913
      %v1915 = vpop.f32.mrb[0].mxu0
      %v1916 = vpop.f32.mrb[0].mxu0
      %v1917 = vadd.f32 %v1816, %v1916
      %v1918 = vpop.f32.mrb[0].mxu0
      %1919 = vmatprep.mubr.bf16.mxu0 0
      %1920 = vmatmul.mubr.bf16.gmra.mrb[0].mxu0 %v1871
      %v1921 = vpop.f32.mrb[0].mxu0
      %v1922 = vadd.f32 %v1821, %v1921
      %v1923 = vpop.f32.mrb[0].mxu0
      %v1924 = vpop.f32.mrb[0].mxu0
      %v1925 = vadd.f32 %v1824, %v1924
      %v1926 = vpop.f32.mrb[0].mxu0
      %1927 = vmatprep.mubr.bf16.mxu0 0
      %1928 = vmatmul.mubr.bf16.gmra.mrb[0].mxu0 %v1874
      %v1929 = vpop.f32.mrb[0].mxu0
      %v1930 = vadd.f32 %v1829, %v1929
      %v1931 = vpop.f32.mrb[0].mxu0
      %v1932 = vpop.f32.mrb[0].mxu0
      %v1933 = vadd.f32 %v1832, %v1932
      %v1934 = vpop.f32.mrb[0].mxu0
      %1935 = vmatprep.mubr.bf16.mxu0 0
      %1936 = vmatmul.mubr.bf16.gmra.mrb[0].mxu0 %v1877
      %v1937 = vpop.f32.mrb[0].mxu0
      %v1938 = vadd.f32 %v1837, %v1937
      %v1939 = vpop.f32.mrb[0].mxu0
      %v1940 = vpop.f32.mrb[0].mxu0
      %v1941 = vadd.f32 %v1840, %v1940
      %v1942 = vpop.f32.mrb[0].mxu0
      %1943 = vdwg.mxu0
      %v1944 = vld [vmem:[%s7 + $0x20] sm:$0xf]
      %v1945 = vld [vmem:[%s7 + $0x24] sm:$0xf]
      %v1946 = vld [vmem:[%s7 + $0x28] sm:$0xf]
      %v1947 = vld [vmem:[%s7 + $0x2c] sm:$0xf]
      %v1948 = vld [vmem:[%s7 + $0x30] sm:$0xf]
      %v1949 = vld [vmem:[%s7 + $0x34] sm:$0xf]
      %v1950 = vld [vmem:[%s7 + $0x38] sm:$0xf]
      %v1951 = vld [vmem:[%s7 + $0x3c] sm:$0xf]
      %v1960 = vunpack.c.l.b16 %v1944
      %v1961 = vunpack.c.l.b16 %v1945
      %v1962 = vunpack.c.l.b16 %v1946
      %v1963 = vunpack.c.l.b16 %v1947
      %v1964 = vunpack.c.l.b16 %v1948
      %v1965 = vunpack.c.l.b16 %v1949
      %v1966 = vunpack.c.l.b16 %v1950
      %v1967 = vunpack.c.l.b16 %v1951
      %v1968 = vpack.c.b16 %v1961, %v1960
      %v1969 = vpack.c.b16 %v1963, %v1962
      %v1970 = vpack.c.b16 %v1965, %v1964
      %v1971 = vpack.c.b16 %v1967, %v1966
      %1976 = vmatprep.subr.bf16.mxu0 0
      %1977 = vmatpush1.bf16.msra.mxu0 %v1968
      %1978 = vmatprep.subr.bf16.mxu0 0
      %1979 = vmatpush1.bf16.msra.mxu0 %v1969
      %1980 = vmatprep.subr.bf16.mxu0 0
      %1981 = vmatpush1.bf16.msra.mxu0 %v1970
      %1982 = vmatprep.subr.bf16.mxu0 0
      %1983 = vmatpush1.bf16.msra.mxu0 %v1971
      %1984 = vmatprep.subr.bf16.mxu0 0
      %1985 = vmatpush1.bf16.msra.mxu0 0
      %1986 = vmatprep.subr.bf16.mxu0 0
      %1987 = vmatpush1.bf16.msra.mxu0 0
      %1988 = vmatprep.subr.bf16.mxu0 0
      %1989 = vmatpush1.bf16.msra.mxu0 0
      %1990 = vmatprep.subr.bf16.mxu0 0
      %1991 = vmatpush1.bf16.msra.mxu0 0
      %1992 = vmatprep.subr.bf16.mxu0 0
      %1993 = vmatpush1.bf16.msra.mxu0 0
      %1994 = vmatprep.subr.bf16.mxu0 0
      %1995 = vmatpush1.bf16.msra.mxu0 0
      %1996 = vmatprep.subr.bf16.mxu0 0
      %1997 = vmatpush1.bf16.msra.mxu0 0
      %1998 = vmatprep.subr.bf16.mxu0 0
      %1999 = vmatpush1.bf16.msra.mxu0 0
      %2000 = vmatprep.subr.bf16.mxu0 0
      %2001 = vmatpush1.bf16.msra.mxu0 0
      %2002 = vmatprep.subr.bf16.mxu0 0
      %2003 = vmatpush1.bf16.msra.mxu0 0
      %2004 = vmatprep.subr.bf16.mxu0 0
      %2005 = vmatpush1.bf16.msra.mxu0 0
      %2006 = vmatprep.subr.bf16.mxu0 0
      %2007 = vmatpush1.bf16.msra.mxu0 0
      %2008 = vmatprep.mubr.bf16.mxu0 0
      %2009 = vmatmul.mubr.bf16.gmra.mrb[0].mxu0 %v1767
      %v2010 = vpop.f32.mrb[0].mxu0
      %v2011 = vadd.f32 0.0, %v2010
      %v2012 = vpop.f32.mrb[0].mxu0
      %v2013 = vpop.f32.mrb[0].mxu0
      %v2014 = vadd.f32 0.0, %v2013
      %v2015 = vpop.f32.mrb[0].mxu0
      %2016 = vmatprep.mubr.bf16.mxu0 0
      %2017 = vmatmul.mubr.bf16.gmra.mrb[0].mxu0 %v1770
      %v2018 = vpop.f32.mrb[0].mxu0
      %v2019 = vadd.f32 0.0, %v2018
      %v2020 = vpop.f32.mrb[0].mxu0
      %v2021 = vpop.f32.mrb[0].mxu0
      %v2022 = vadd.f32 0.0, %v2021
      %v2023 = vpop.f32.mrb[0].mxu0
      %2024 = vmatprep.mubr.bf16.mxu0 0
      %2025 = vmatmul.mubr.bf16.gmra.mrb[0].mxu0 %v1773
      %v2026 = vpop.f32.mrb[0].mxu0
      %v2027 = vadd.f32 0.0, %v2026
      %v2028 = vpop.f32.mrb[0].mxu0
      %v2029 = vpop.f32.mrb[0].mxu0
      %v2030 = vadd.f32 0.0, %v2029
      %v2031 = vpop.f32.mrb[0].mxu0
      %2032 = vmatprep.mubr.bf16.mxu0 0
      %2033 = vmatmul.mubr.bf16.gmra.mrb[0].mxu0 %v1776
      %v2034 = vpop.f32.mrb[0].mxu0
      %v2035 = vadd.f32 0.0, %v2034
      %v2036 = vpop.f32.mrb[0].mxu0
      %v2037 = vpop.f32.mrb[0].mxu0
      %v2038 = vadd.f32 0.0, %v2037
      %v2039 = vpop.f32.mrb[0].mxu0
      %2040 = vdwg.mxu0
      %v2049 = vunpack.c.l.b16 %v1722
      %v2050 = vunpack.c.l.b16 %v1723
      %v2051 = vunpack.c.l.b16 %v1724
      %v2052 = vunpack.c.l.b16 %v1725
      %v2053 = vunpack.c.l.b16 %v1726
      %v2054 = vunpack.c.l.b16 %v1727
      %v2055 = vunpack.c.l.b16 %v1728
      %v2056 = vunpack.c.l.b16 %v1729
      %v2057 = vpack.c.b16 %v2050, %v2049
      %v2058 = vpack.c.b16 %v2052, %v2051
      %v2059 = vpack.c.b16 %v2054, %v2053
      %v2060 = vpack.c.b16 %v2056, %v2055
      %2065 = vmatprep.subr.bf16.mxu0 0
      %2066 = vmatpush1.bf16.msra.mxu0 %v2057
      %2067 = vmatprep.subr.bf16.mxu0 0
      %2068 = vmatpush1.bf16.msra.mxu0 %v2058
      %2069 = vmatprep.subr.bf16.mxu0 0
      %2070 = vmatpush1.bf16.msra.mxu0 %v2059
      %2071 = vmatprep.subr.bf16.mxu0 0
      %2072 = vmatpush1.bf16.msra.mxu0 %v2060
      %2073 = vmatprep.subr.bf16.mxu0 0
      %2074 = vmatpush1.bf16.msra.mxu0 0
      %2075 = vmatprep.subr.bf16.mxu0 0
      %2076 = vmatpush1.bf16.msra.mxu0 0
      %2077 = vmatprep.subr.bf16.mxu0 0
      %2078 = vmatpush1.bf16.msra.mxu0 0
      %2079 = vmatprep.subr.bf16.mxu0 0
      %2080 = vmatpush1.bf16.msra.mxu0 0
      %2081 = vmatprep.subr.bf16.mxu0 0
      %2082 = vmatpush1.bf16.msra.mxu0 0
      %2083 = vmatprep.subr.bf16.mxu0 0
      %2084 = vmatpush1.bf16.msra.mxu0 0
      %2085 = vmatprep.subr.bf16.mxu0 0
      %2086 = vmatpush1.bf16.msra.mxu0 0
      %2087 = vmatprep.subr.bf16.mxu0 0
      %2088 = vmatpush1.bf16.msra.mxu0 0
      %2089 = vmatprep.subr.bf16.mxu0 0
      %2090 = vmatpush1.bf16.msra.mxu0 0
      %2091 = vmatprep.subr.bf16.mxu0 0
      %2092 = vmatpush1.bf16.msra.mxu0 0
      %2093 = vmatprep.subr.bf16.mxu0 0
      %2094 = vmatpush1.bf16.msra.mxu0 0
      %2095 = vmatprep.subr.bf16.mxu0 0
      %2096 = vmatpush1.bf16.msra.mxu0 0
      %2097 = vmatprep.mubr.bf16.mxu0 0
      %2098 = vmatmul.mubr.bf16.gmra.mrb[0].mxu0 %v1868
      %v2099 = vpop.f32.mrb[0].mxu0
      %v2100 = vadd.f32 %v2011, %v2099
      %v2101 = vpop.f32.mrb[0].mxu0
      %v2102 = vpop.f32.mrb[0].mxu0
      %v2103 = vadd.f32 %v2014, %v2102
      %v2104 = vpop.f32.mrb[0].mxu0
      %2105 = vmatprep.mubr.bf16.mxu0 0
      %2106 = vmatmul.mubr.bf16.gmra.mrb[0].mxu0 %v1871
      %v2107 = vpop.f32.mrb[0].mxu0
      %v2108 = vadd.f32 %v2019, %v2107
      %v2109 = vpop.f32.mrb[0].mxu0
      %v2110 = vpop.f32.mrb[0].mxu0
      %v2111 = vadd.f32 %v2022, %v2110
      %v2112 = vpop.f32.mrb[0].mxu0
      %2113 = vmatprep.mubr.bf16.mxu0 0
      %2114 = vmatmul.mubr.bf16.gmra.mrb[0].mxu0 %v1874
      %v2115 = vpop.f32.mrb[0].mxu0
      %v2116 = vadd.f32 %v2027, %v2115
      %v2117 = vpop.f32.mrb[0].mxu0
      %v2118 = vpop.f32.mrb[0].mxu0
      %v2119 = vadd.f32 %v2030, %v2118
      %v2120 = vpop.f32.mrb[0].mxu0
      %2121 = vmatprep.mubr.bf16.mxu0 0
      %2122 = vmatmul.mubr.bf16.gmra.mrb[0].mxu0 %v1877
      %v2123 = vpop.f32.mrb[0].mxu0
      %v2124 = vadd.f32 %v2035, %v2123
      %v2125 = vpop.f32.mrb[0].mxu0
      %v2126 = vpop.f32.mrb[0].mxu0
      %v2127 = vadd.f32 %v2038, %v2126
      %v2128 = vpop.f32.mrb[0].mxu0
      %2129 = vdwg.mxu0
      %v2130 = vrot.slane %v1674, 1
      %v2131 = vrot.slane %v1675, 1
      %v2132 = vrot.slane %v1676, 1
      %v2133 = vrot.slane %v1677, 1
      %v2134 = vrot.slane %v1678, 1
      %v2135 = vrot.slane %v1679, 1
      %v2136 = vrot.slane %v1680, 1
      %v2144 = vsel %vm798, %v2130, 0.0
      %v2145 = vsel %vm798, %v2131, 0.0
      %v2146 = vsel %vm798, %v2132, 0.0
      %v2147 = vsel %vm798, %v2133, 0.0
      %v2148 = vsel %vm798, %v2134, 0.0
      %v2149 = vsel %vm798, %v2135, 0.0
      %v2150 = vsel %vm798, %v2136, 0.0
      %v2151 = vpack.c.bf16 %v2144, %v799
      %v2152 = vpack.c.bf16 %v2146, %v2145
      %v2153 = vpack.c.bf16 %v2148, %v2147
      %v2154 = vpack.c.bf16 %v2150, %v2149
      %v2155 = vld [vmem:[%s6 + $0x40] sm:$0xf]
      %v2156 = vld [vmem:[%s6 + $0x44] sm:$0xf]
      %v2157 = vld [vmem:[%s6 + $0x48] sm:$0xf]
      %v2158 = vld [vmem:[%s6 + $0x4c] sm:$0xf]
      %v2159 = vld [vmem:[%s6 + $0x50] sm:$0xf]
      %v2160 = vld [vmem:[%s6 + $0x54] sm:$0xf]
      %v2161 = vld [vmem:[%s6 + $0x58] sm:$0xf]
      %v2162 = vld [vmem:[%s6 + $0x5c] sm:$0xf]
      %v2171 = vunpack.c.l.b16 %v2155
      %v2172 = vunpack.c.l.b16 %v2156
      %v2173 = vunpack.c.l.b16 %v2157
      %v2174 = vunpack.c.l.b16 %v2158
      %v2175 = vunpack.c.l.b16 %v2159
      %v2176 = vunpack.c.l.b16 %v2160
      %v2177 = vunpack.c.l.b16 %v2161
      %v2178 = vunpack.c.l.b16 %v2162
      %v2179 = vpack.c.b16 %v2172, %v2171
      %v2180 = vpack.c.b16 %v2174, %v2173
      %v2181 = vpack.c.b16 %v2176, %v2175
      %v2182 = vpack.c.b16 %v2178, %v2177
      %v2188 = vsel %vm603, %v2151, 0
      %v2191 = vsel %vm603, %v2152, 0
      %v2194 = vsel %vm603, %v2153, 0
      %v2197 = vsel %vm603, %v2154, 0
      %2199 = vmatprep.subr.bf16.mxu0 0
      %2200 = vmatpush1.bf16.msra.mxu0 %v2179
      %2201 = vmatprep.subr.bf16.mxu0 0
      %2202 = vmatpush1.bf16.msra.mxu0 %v2180
      %2203 = vmatprep.subr.bf16.mxu0 0
      %2204 = vmatpush1.bf16.msra.mxu0 %v2181
      %2205 = vmatprep.subr.bf16.mxu0 0
      %2206 = vmatpush1.bf16.msra.mxu0 %v2182
      %2207 = vmatprep.subr.bf16.mxu0 0
      %2208 = vmatpush1.bf16.msra.mxu0 0
      %2209 = vmatprep.subr.bf16.mxu0 0
      %2210 = vmatpush1.bf16.msra.mxu0 0
      %2211 = vmatprep.subr.bf16.mxu0 0
      %2212 = vmatpush1.bf16.msra.mxu0 0
      %2213 = vmatprep.subr.bf16.mxu0 0
      %2214 = vmatpush1.bf16.msra.mxu0 0
      %2215 = vmatprep.subr.bf16.mxu0 0
      %2216 = vmatpush1.bf16.msra.mxu0 0
      %2217 = vmatprep.subr.bf16.mxu0 0
      %2218 = vmatpush1.bf16.msra.mxu0 0
      %2219 = vmatprep.subr.bf16.mxu0 0
      %2220 = vmatpush1.bf16.msra.mxu0 0
      %2221 = vmatprep.subr.bf16.mxu0 0
      %2222 = vmatpush1.bf16.msra.mxu0 0
      %2223 = vmatprep.subr.bf16.mxu0 0
      %2224 = vmatpush1.bf16.msra.mxu0 0
      %2225 = vmatprep.subr.bf16.mxu0 0
      %2226 = vmatpush1.bf16.msra.mxu0 0
      %2227 = vmatprep.subr.bf16.mxu0 0
      %2228 = vmatpush1.bf16.msra.mxu0 0
      %2229 = vmatprep.subr.bf16.mxu0 0
      %2230 = vmatpush1.bf16.msra.mxu0 0
      %2231 = vmatprep.mubr.bf16.mxu0 0
      %2232 = vmatmul.mubr.bf16.gmra.mrb[0].mxu0 %v2188
      %v2233 = vpop.f32.mrb[0].mxu0
      %v2234 = vadd.f32 0.0, %v2233
      %v2235 = vpop.f32.mrb[0].mxu0
      %v2236 = vpop.f32.mrb[0].mxu0
      %v2237 = vadd.f32 0.0, %v2236
      %v2238 = vpop.f32.mrb[0].mxu0
      %2239 = vmatprep.mubr.bf16.mxu0 0
      %2240 = vmatmul.mubr.bf16.gmra.mrb[0].mxu0 %v2191
      %v2241 = vpop.f32.mrb[0].mxu0
      %v2242 = vadd.f32 0.0, %v2241
      %v2243 = vpop.f32.mrb[0].mxu0
      %v2244 = vpop.f32.mrb[0].mxu0
      %v2245 = vadd.f32 0.0, %v2244
      %v2246 = vpop.f32.mrb[0].mxu0
      %2247 = vmatprep.mubr.bf16.mxu0 0
      %2248 = vmatmul.mubr.bf16.gmra.mrb[0].mxu0 %v2194
      %v2249 = vpop.f32.mrb[0].mxu0
      %v2250 = vadd.f32 0.0, %v2249
      %v2251 = vpop.f32.mrb[0].mxu0
      %v2252 = vpop.f32.mrb[0].mxu0
      %v2253 = vadd.f32 0.0, %v2252
      %v2254 = vpop.f32.mrb[0].mxu0
      %2255 = vmatprep.mubr.bf16.mxu0 0
      %2256 = vmatmul.mubr.bf16.gmra.mrb[0].mxu0 %v2197
      %v2257 = vpop.f32.mrb[0].mxu0
      %v2258 = vadd.f32 0.0, %v2257
      %v2259 = vpop.f32.mrb[0].mxu0
      %v2260 = vpop.f32.mrb[0].mxu0
      %v2261 = vadd.f32 0.0, %v2260
      %v2262 = vpop.f32.mrb[0].mxu0
      %2263 = vdwg.mxu0
      %v2264 = vadd.f32 %v1914, %v2234
      %v2265 = vadd.f32 %v1917, %v2237
      %v2266 = vadd.f32 %v1922, %v2242
      %v2267 = vadd.f32 %v1925, %v2245
      %v2268 = vadd.f32 %v1930, %v2250
      %v2269 = vadd.f32 %v1933, %v2253
      %v2270 = vadd.f32 %v1938, %v2258
      %v2271 = vadd.f32 %v1941, %v2261
      %v2272 = vld [vmem:[%s7 + $0x40] sm:$0xf]
      %v2273 = vld [vmem:[%s7 + $0x44] sm:$0xf]
      %v2274 = vld [vmem:[%s7 + $0x48] sm:$0xf]
      %v2275 = vld [vmem:[%s7 + $0x4c] sm:$0xf]
      %v2276 = vld [vmem:[%s7 + $0x50] sm:$0xf]
      %v2277 = vld [vmem:[%s7 + $0x54] sm:$0xf]
      %v2278 = vld [vmem:[%s7 + $0x58] sm:$0xf]
      %v2279 = vld [vmem:[%s7 + $0x5c] sm:$0xf]
      %v2288 = vunpack.c.l.b16 %v2272
      %v2289 = vunpack.c.l.b16 %v2273
      %v2290 = vunpack.c.l.b16 %v2274
      %v2291 = vunpack.c.l.b16 %v2275
      %v2292 = vunpack.c.l.b16 %v2276
      %v2293 = vunpack.c.l.b16 %v2277
      %v2294 = vunpack.c.l.b16 %v2278
      %v2295 = vunpack.c.l.b16 %v2279
      %v2296 = vpack.c.b16 %v2289, %v2288
      %v2297 = vpack.c.b16 %v2291, %v2290
      %v2298 = vpack.c.b16 %v2293, %v2292
      %v2299 = vpack.c.b16 %v2295, %v2294
      %2304 = vmatprep.subr.bf16.mxu0 0
      %2305 = vmatpush1.bf16.msra.mxu0 %v2296
      %2306 = vmatprep.subr.bf16.mxu0 0
      %2307 = vmatpush1.bf16.msra.mxu0 %v2297
      %2308 = vmatprep.subr.bf16.mxu0 0
      %2309 = vmatpush1.bf16.msra.mxu0 %v2298
      %2310 = vmatprep.subr.bf16.mxu0 0
      %2311 = vmatpush1.bf16.msra.mxu0 %v2299
      %2312 = vmatprep.subr.bf16.mxu0 0
      %2313 = vmatpush1.bf16.msra.mxu0 0
      %2314 = vmatprep.subr.bf16.mxu0 0
      %2315 = vmatpush1.bf16.msra.mxu0 0
      %2316 = vmatprep.subr.bf16.mxu0 0
      %2317 = vmatpush1.bf16.msra.mxu0 0
      %2318 = vmatprep.subr.bf16.mxu0 0
      %2319 = vmatpush1.bf16.msra.mxu0 0
      %2320 = vmatprep.subr.bf16.mxu0 0
      %2321 = vmatpush1.bf16.msra.mxu0 0
      %2322 = vmatprep.subr.bf16.mxu0 0
      %2323 = vmatpush1.bf16.msra.mxu0 0
      %2324 = vmatprep.subr.bf16.mxu0 0
      %2325 = vmatpush1.bf16.msra.mxu0 0
      %2326 = vmatprep.subr.bf16.mxu0 0
      %2327 = vmatpush1.bf16.msra.mxu0 0
      %2328 = vmatprep.subr.bf16.mxu0 0
      %2329 = vmatpush1.bf16.msra.mxu0 0
      %2330 = vmatprep.subr.bf16.mxu0 0
      %2331 = vmatpush1.bf16.msra.mxu0 0
      %2332 = vmatprep.subr.bf16.mxu0 0
      %2333 = vmatpush1.bf16.msra.mxu0 0
      %2334 = vmatprep.subr.bf16.mxu0 0
      %2335 = vmatpush1.bf16.msra.mxu0 0
      %2336 = vmatprep.mubr.bf16.mxu0 0
      %2337 = vmatmul.mubr.bf16.gmra.mrb[0].mxu0 %v2188
      %v2338 = vpop.f32.mrb[0].mxu0
      %v2339 = vadd.f32 0.0, %v2338
      %v2340 = vpop.f32.mrb[0].mxu0
      %v2341 = vpop.f32.mrb[0].mxu0
      %v2342 = vadd.f32 0.0, %v2341
      %v2343 = vpop.f32.mrb[0].mxu0
      %2344 = vmatprep.mubr.bf16.mxu0 0
      %2345 = vmatmul.mubr.bf16.gmra.mrb[0].mxu0 %v2191
      %v2346 = vpop.f32.mrb[0].mxu0
      %v2347 = vadd.f32 0.0, %v2346
      %v2348 = vpop.f32.mrb[0].mxu0
      %v2349 = vpop.f32.mrb[0].mxu0
      %v2350 = vadd.f32 0.0, %v2349
      %v2351 = vpop.f32.mrb[0].mxu0
      %2352 = vmatprep.mubr.bf16.mxu0 0
      %2353 = vmatmul.mubr.bf16.gmra.mrb[0].mxu0 %v2194
      %v2354 = vpop.f32.mrb[0].mxu0
      %v2355 = vadd.f32 0.0, %v2354
      %v2356 = vpop.f32.mrb[0].mxu0
      %v2357 = vpop.f32.mrb[0].mxu0
      %v2358 = vadd.f32 0.0, %v2357
      %v2359 = vpop.f32.mrb[0].mxu0
      %2360 = vmatprep.mubr.bf16.mxu0 0
      %2361 = vmatmul.mubr.bf16.gmra.mrb[0].mxu0 %v2197
      %v2362 = vpop.f32.mrb[0].mxu0
      %v2363 = vadd.f32 0.0, %v2362
      %v2364 = vpop.f32.mrb[0].mxu0
      %v2365 = vpop.f32.mrb[0].mxu0
      %v2366 = vadd.f32 0.0, %v2365
      %v2367 = vpop.f32.mrb[0].mxu0
      %2368 = vdwg.mxu0
      %v2369 = vadd.f32 %v2100, %v2339
      %v2370 = vadd.f32 %v2103, %v2342
      %v2371 = vadd.f32 %v2108, %v2347
      %v2372 = vadd.f32 %v2111, %v2350
      %v2373 = vadd.f32 %v2116, %v2355
      %v2374 = vadd.f32 %v2119, %v2358
      %v2375 = vadd.f32 %v2124, %v2363
      %v2376 = vadd.f32 %v2127, %v2366
      %v2378 = vrot.slane %v1681, 7
      %v2380 = vsel %vm546, 0.0, %v2378
      %v2381 = vpack.c.bf16 %v1704, %v1703
      %v2382 = vpack.c.bf16 %v1706, %v1705
      %v2383 = vpack.c.bf16 %v1708, %v1707
      %v2384 = vpack.c.bf16 %v2380, %v1709
      %v2385 = vld [vmem:[%s6 + $0x60] sm:$0xf]
      %v2386 = vld [vmem:[%s6 + $0x64] sm:$0xf]
      %v2387 = vld [vmem:[%s6 + $0x68] sm:$0xf]
      %v2388 = vld [vmem:[%s6 + $0x6c] sm:$0xf]
      %v2389 = vld [vmem:[%s6 + $0x70] sm:$0xf]
      %v2390 = vld [vmem:[%s6 + $0x74] sm:$0xf]
      %v2391 = vld [vmem:[%s6 + $0x78] sm:$0xf]
      %v2392 = vld [vmem:[%s6 + $0x7c] sm:$0xf]
      %v2401 = vunpack.c.l.b16 %v2385
      %v2402 = vunpack.c.l.b16 %v2386
      %v2403 = vunpack.c.l.b16 %v2387
      %v2404 = vunpack.c.l.b16 %v2388
      %v2405 = vunpack.c.l.b16 %v2389
      %v2406 = vunpack.c.l.b16 %v2390
      %v2407 = vunpack.c.l.b16 %v2391
      %v2408 = vunpack.c.l.b16 %v2392
      %v2409 = vpack.c.b16 %v2402, %v2401
      %v2410 = vpack.c.b16 %v2404, %v2403
      %v2411 = vpack.c.b16 %v2406, %v2405
      %v2412 = vpack.c.b16 %v2408, %v2407
      %v2418 = vsel %vm603, %v2381, 0
      %v2421 = vsel %vm603, %v2382, 0
      %v2424 = vsel %vm603, %v2383, 0
      %v2427 = vsel %vm603, %v2384, 0
      %2429 = vmatprep.subr.bf16.mxu0 0
      %2430 = vmatpush1.bf16.msra.mxu0 %v2409
      %2431 = vmatprep.subr.bf16.mxu0 0
      %2432 = vmatpush1.bf16.msra.mxu0 %v2410
      %2433 = vmatprep.subr.bf16.mxu0 0
      %2434 = vmatpush1.bf16.msra.mxu0 %v2411
      %2435 = vmatprep.subr.bf16.mxu0 0
      %2436 = vmatpush1.bf16.msra.mxu0 %v2412
      %2437 = vmatprep.subr.bf16.mxu0 0
      %2438 = vmatpush1.bf16.msra.mxu0 0
      %2439 = vmatprep.subr.bf16.mxu0 0
      %2440 = vmatpush1.bf16.msra.mxu0 0
      %2441 = vmatprep.subr.bf16.mxu0 0
      %2442 = vmatpush1.bf16.msra.mxu0 0
      %2443 = vmatprep.subr.bf16.mxu0 0
      %2444 = vmatpush1.bf16.msra.mxu0 0
      %2445 = vmatprep.subr.bf16.mxu0 0
      %2446 = vmatpush1.bf16.msra.mxu0 0
      %2447 = vmatprep.subr.bf16.mxu0 0
      %2448 = vmatpush1.bf16.msra.mxu0 0
      %2449 = vmatprep.subr.bf16.mxu0 0
      %2450 = vmatpush1.bf16.msra.mxu0 0
      %2451 = vmatprep.subr.bf16.mxu0 0
      %2452 = vmatpush1.bf16.msra.mxu0 0
      %2453 = vmatprep.subr.bf16.mxu0 0
      %2454 = vmatpush1.bf16.msra.mxu0 0
      %2455 = vmatprep.subr.bf16.mxu0 0
      %2456 = vmatpush1.bf16.msra.mxu0 0
      %2457 = vmatprep.subr.bf16.mxu0 0
      %2458 = vmatpush1.bf16.msra.mxu0 0
      %2459 = vmatprep.subr.bf16.mxu0 0
      %2460 = vmatpush1.bf16.msra.mxu0 0
      %2461 = vmatprep.mubr.bf16.mxu0 0
      %2462 = vmatmul.mubr.bf16.gmra.mrb[0].mxu0 %v2418
      %v2463 = vpop.f32.mrb[0].mxu0
      %v2464 = vadd.f32 0.0, %v2463
      %v2465 = vpop.f32.mrb[0].mxu0
      %v2466 = vpop.f32.mrb[0].mxu0
      %v2467 = vadd.f32 0.0, %v2466
      %v2468 = vpop.f32.mrb[0].mxu0
      %2469 = vmatprep.mubr.bf16.mxu0 0
      %2470 = vmatmul.mubr.bf16.gmra.mrb[0].mxu0 %v2421
      %v2471 = vpop.f32.mrb[0].mxu0
      %v2472 = vadd.f32 0.0, %v2471
      %v2473 = vpop.f32.mrb[0].mxu0
      %v2474 = vpop.f32.mrb[0].mxu0
      %v2475 = vadd.f32 0.0, %v2474
      %v2476 = vpop.f32.mrb[0].mxu0
      %2477 = vmatprep.mubr.bf16.mxu0 0
      %2478 = vmatmul.mubr.bf16.gmra.mrb[0].mxu0 %v2424
      %v2479 = vpop.f32.mrb[0].mxu0
      %v2480 = vadd.f32 0.0, %v2479
      %v2481 = vpop.f32.mrb[0].mxu0
      %v2482 = vpop.f32.mrb[0].mxu0
      %v2483 = vadd.f32 0.0, %v2482
      %v2484 = vpop.f32.mrb[0].mxu0
      %2485 = vmatprep.mubr.bf16.mxu0 0
      %2486 = vmatmul.mubr.bf16.gmra.mrb[0].mxu0 %v2427
      %v2487 = vpop.f32.mrb[0].mxu0
      %v2488 = vadd.f32 0.0, %v2487
      %v2489 = vpop.f32.mrb[0].mxu0
      %v2490 = vpop.f32.mrb[0].mxu0
      %v2491 = vadd.f32 0.0, %v2490
      %v2492 = vpop.f32.mrb[0].mxu0
      %2493 = vdwg.mxu0
      %v2494 = vadd.f32 %v2264, %v2464
      %v2495 = vadd.f32 %v2265, %v2467
      %v2496 = vadd.f32 %v2266, %v2472
      %v2497 = vadd.f32 %v2267, %v2475
      %v2498 = vadd.f32 %v2268, %v2480
      %v2499 = vadd.f32 %v2269, %v2483
      %v2500 = vadd.f32 %v2270, %v2488
      %v2501 = vadd.f32 %v2271, %v2491
      %v2502 = vld [vmem:[%s7 + $0x60] sm:$0xf]
      %v2503 = vld [vmem:[%s7 + $0x64] sm:$0xf]
      %v2504 = vld [vmem:[%s7 + $0x68] sm:$0xf]
      %v2505 = vld [vmem:[%s7 + $0x6c] sm:$0xf]
      %v2506 = vld [vmem:[%s7 + $0x70] sm:$0xf]
      %v2507 = vld [vmem:[%s7 + $0x74] sm:$0xf]
      %v2508 = vld [vmem:[%s7 + $0x78] sm:$0xf]
      %v2509 = vld [vmem:[%s7 + $0x7c] sm:$0xf]
      %v2518 = vunpack.c.l.b16 %v2502
      %v2519 = vunpack.c.l.b16 %v2503
      %v2520 = vunpack.c.l.b16 %v2504
      %v2521 = vunpack.c.l.b16 %v2505
      %v2522 = vunpack.c.l.b16 %v2506
      %v2523 = vunpack.c.l.b16 %v2507
      %v2524 = vunpack.c.l.b16 %v2508
      %v2525 = vunpack.c.l.b16 %v2509
      %v2526 = vpack.c.b16 %v2519, %v2518
      %v2527 = vpack.c.b16 %v2521, %v2520
      %v2528 = vpack.c.b16 %v2523, %v2522
      %v2529 = vpack.c.b16 %v2525, %v2524
      %2534 = vmatprep.subr.bf16.mxu0 0
      %2535 = vmatpush1.bf16.msra.mxu0 %v2526
      %2536 = vmatprep.subr.bf16.mxu0 0
      %2537 = vmatpush1.bf16.msra.mxu0 %v2527
      %2538 = vmatprep.subr.bf16.mxu0 0
      %2539 = vmatpush1.bf16.msra.mxu0 %v2528
      %2540 = vmatprep.subr.bf16.mxu0 0
      %2541 = vmatpush1.bf16.msra.mxu0 %v2529
      %2542 = vmatprep.subr.bf16.mxu0 0
      %2543 = vmatpush1.bf16.msra.mxu0 0
      %2544 = vmatprep.subr.bf16.mxu0 0
      %2545 = vmatpush1.bf16.msra.mxu0 0
      %2546 = vmatprep.subr.bf16.mxu0 0
      %2547 = vmatpush1.bf16.msra.mxu0 0
      %2548 = vmatprep.subr.bf16.mxu0 0
      %2549 = vmatpush1.bf16.msra.mxu0 0
      %2550 = vmatprep.subr.bf16.mxu0 0
      %2551 = vmatpush1.bf16.msra.mxu0 0
      %2552 = vmatprep.subr.bf16.mxu0 0
      %2553 = vmatpush1.bf16.msra.mxu0 0
      %2554 = vmatprep.subr.bf16.mxu0 0
      %2555 = vmatpush1.bf16.msra.mxu0 0
      %2556 = vmatprep.subr.bf16.mxu0 0
      %2557 = vmatpush1.bf16.msra.mxu0 0
      %2558 = vmatprep.subr.bf16.mxu0 0
      %2559 = vmatpush1.bf16.msra.mxu0 0
      %2560 = vmatprep.subr.bf16.mxu0 0
      %2561 = vmatpush1.bf16.msra.mxu0 0
      %2562 = vmatprep.subr.bf16.mxu0 0
      %2563 = vmatpush1.bf16.msra.mxu0 0
      %2564 = vmatprep.subr.bf16.mxu0 0
      %2565 = vmatpush1.bf16.msra.mxu0 0
      %2566 = vmatprep.mubr.bf16.mxu0 0
      %2567 = vmatmul.mubr.bf16.gmra.mrb[0].mxu0 %v2418
      %v2568 = vpop.f32.mrb[0].mxu0
      %v2569 = vadd.f32 0.0, %v2568
      %v2570 = vpop.f32.mrb[0].mxu0
      %v2571 = vpop.f32.mrb[0].mxu0
      %v2572 = vadd.f32 0.0, %v2571
      %v2573 = vpop.f32.mrb[0].mxu0
      %2574 = vmatprep.mubr.bf16.mxu0 0
      %2575 = vmatmul.mubr.bf16.gmra.mrb[0].mxu0 %v2421
      %v2576 = vpop.f32.mrb[0].mxu0
      %v2577 = vadd.f32 0.0, %v2576
      %v2578 = vpop.f32.mrb[0].mxu0
      %v2579 = vpop.f32.mrb[0].mxu0
      %v2580 = vadd.f32 0.0, %v2579
      %v2581 = vpop.f32.mrb[0].mxu0
      %2582 = vmatprep.mubr.bf16.mxu0 0
      %2583 = vmatmul.mubr.bf16.gmra.mrb[0].mxu0 %v2424
      %v2584 = vpop.f32.mrb[0].mxu0
      %v2585 = vadd.f32 0.0, %v2584
      %v2586 = vpop.f32.mrb[0].mxu0
      %v2587 = vpop.f32.mrb[0].mxu0
      %v2588 = vadd.f32 0.0, %v2587
      %v2589 = vpop.f32.mrb[0].mxu0
      %2590 = vmatprep.mubr.bf16.mxu0 0
      %2591 = vmatmul.mubr.bf16.gmra.mrb[0].mxu0 %v2427
      %v2592 = vpop.f32.mrb[0].mxu0
      %v2593 = vadd.f32 0.0, %v2592
      %v2594 = vpop.f32.mrb[0].mxu0
      %v2595 = vpop.f32.mrb[0].mxu0
      %v2596 = vadd.f32 0.0, %v2595
      %v2597 = vpop.f32.mrb[0].mxu0
      %2598 = vdwg.mxu0
      %v2599 = vadd.f32 %v2369, %v2569
      %v2600 = vadd.f32 %v2370, %v2572
      %v2601 = vadd.f32 %v2371, %v2577
      %v2602 = vadd.f32 %v2372, %v2580
      %v2603 = vadd.f32 %v2373, %v2585
      %v2604 = vadd.f32 %v2374, %v2588
      %v2605 = vadd.f32 %v2375, %v2593
      %v2606 = vadd.f32 %v2376, %v2596
      %v2607 = vpack.c.bf16 %v1675, %v1674
      %v2608 = vpack.c.bf16 %v1677, %v1676
      %v2609 = vpack.c.bf16 %v1679, %v1678
      %v2610 = vpack.c.bf16 %v1681, %v1680
      %v2611 = vld [vmem:[%s6 + $0x80] sm:$0xf]
      %v2612 = vld [vmem:[%s6 + $0x84] sm:$0xf]
      %v2613 = vld [vmem:[%s6 + $0x88] sm:$0xf]
      %v2614 = vld [vmem:[%s6 + $0x8c] sm:$0xf]
      %v2615 = vld [vmem:[%s6 + $0x90] sm:$0xf]
      %v2616 = vld [vmem:[%s6 + $0x94] sm:$0xf]
      %v2617 = vld [vmem:[%s6 + $0x98] sm:$0xf]
      %v2618 = vld [vmem:[%s6 + $0x9c] sm:$0xf]
      %v2627 = vunpack.c.l.b16 %v2611
      %v2628 = vunpack.c.l.b16 %v2612
      %v2629 = vunpack.c.l.b16 %v2613
      %v2630 = vunpack.c.l.b16 %v2614
      %v2631 = vunpack.c.l.b16 %v2615
      %v2632 = vunpack.c.l.b16 %v2616
      %v2633 = vunpack.c.l.b16 %v2617
      %v2634 = vunpack.c.l.b16 %v2618
      %v2635 = vpack.c.b16 %v2628, %v2627
      %v2636 = vpack.c.b16 %v2630, %v2629
      %v2637 = vpack.c.b16 %v2632, %v2631
      %v2638 = vpack.c.b16 %v2634, %v2633
      %v2644 = vsel %vm603, %v2607, 0
      %v2647 = vsel %vm603, %v2608, 0
      %v2650 = vsel %vm603, %v2609, 0
      %v2653 = vsel %vm603, %v2610, 0
      %2655 = vmatprep.subr.bf16.mxu0 0
      %2656 = vmatpush1.bf16.msra.mxu0 %v2635
      %2657 = vmatprep.subr.bf16.mxu0 0
      %2658 = vmatpush1.bf16.msra.mxu0 %v2636
      %2659 = vmatprep.subr.bf16.mxu0 0
      %2660 = vmatpush1.bf16.msra.mxu0 %v2637
      %2661 = vmatprep.subr.bf16.mxu0 0
      %2662 = vmatpush1.bf16.msra.mxu0 %v2638
      %2663 = vmatprep.subr.bf16.mxu0 0
      %2664 = vmatpush1.bf16.msra.mxu0 0
      %2665 = vmatprep.subr.bf16.mxu0 0
      %2666 = vmatpush1.bf16.msra.mxu0 0
      %2667 = vmatprep.subr.bf16.mxu0 0
      %2668 = vmatpush1.bf16.msra.mxu0 0
      %2669 = vmatprep.subr.bf16.mxu0 0
      %2670 = vmatpush1.bf16.msra.mxu0 0
      %2671 = vmatprep.subr.bf16.mxu0 0
      %2672 = vmatpush1.bf16.msra.mxu0 0
      %2673 = vmatprep.subr.bf16.mxu0 0
      %2674 = vmatpush1.bf16.msra.mxu0 0
      %2675 = vmatprep.subr.bf16.mxu0 0
      %2676 = vmatpush1.bf16.msra.mxu0 0
      %2677 = vmatprep.subr.bf16.mxu0 0
      %2678 = vmatpush1.bf16.msra.mxu0 0
      %2679 = vmatprep.subr.bf16.mxu0 0
      %2680 = vmatpush1.bf16.msra.mxu0 0
      %2681 = vmatprep.subr.bf16.mxu0 0
      %2682 = vmatpush1.bf16.msra.mxu0 0
      %2683 = vmatprep.subr.bf16.mxu0 0
      %2684 = vmatpush1.bf16.msra.mxu0 0
      %2685 = vmatprep.subr.bf16.mxu0 0
      %2686 = vmatpush1.bf16.msra.mxu0 0
      %2687 = vmatprep.mubr.bf16.mxu0 0
      %2688 = vmatmul.mubr.bf16.gmra.mrb[0].mxu0 %v2644
      %v2689 = vpop.f32.mrb[0].mxu0
      %v2690 = vadd.f32 0.0, %v2689
      %v2691 = vpop.f32.mrb[0].mxu0
      %v2692 = vpop.f32.mrb[0].mxu0
      %v2693 = vadd.f32 0.0, %v2692
      %v2694 = vpop.f32.mrb[0].mxu0
      %2695 = vmatprep.mubr.bf16.mxu0 0
      %2696 = vmatmul.mubr.bf16.gmra.mrb[0].mxu0 %v2647
      %v2697 = vpop.f32.mrb[0].mxu0
      %v2698 = vadd.f32 0.0, %v2697
      %v2699 = vpop.f32.mrb[0].mxu0
      %v2700 = vpop.f32.mrb[0].mxu0
      %v2701 = vadd.f32 0.0, %v2700
      %v2702 = vpop.f32.mrb[0].mxu0
      %2703 = vmatprep.mubr.bf16.mxu0 0
      %2704 = vmatmul.mubr.bf16.gmra.mrb[0].mxu0 %v2650
      %v2705 = vpop.f32.mrb[0].mxu0
      %v2706 = vadd.f32 0.0, %v2705
      %v2707 = vpop.f32.mrb[0].mxu0
      %v2708 = vpop.f32.mrb[0].mxu0
      %v2709 = vadd.f32 0.0, %v2708
      %v2710 = vpop.f32.mrb[0].mxu0
      %2711 = vmatprep.mubr.bf16.mxu0 0
      %2712 = vmatmul.mubr.bf16.gmra.mrb[0].mxu0 %v2653
      %v2713 = vpop.f32.mrb[0].mxu0
      %v2714 = vadd.f32 0.0, %v2713
      %v2715 = vpop.f32.mrb[0].mxu0
      %v2716 = vpop.f32.mrb[0].mxu0
      %v2717 = vadd.f32 0.0, %v2716
      %v2718 = vpop.f32.mrb[0].mxu0
      %2719 = vdwg.mxu0
      %v2720 = vadd.f32 %v2494, %v2690
      %v2721 = vadd.f32 %v2495, %v2693
      %v2722 = vadd.f32 %v2496, %v2698
      %v2723 = vadd.f32 %v2497, %v2701
      %v2724 = vadd.f32 %v2498, %v2706
      %v2725 = vadd.f32 %v2499, %v2709
      %v2726 = vadd.f32 %v2500, %v2714
      %v2727 = vadd.f32 %v2501, %v2717
      %v2728 = vld [vmem:[%s7 + $0x80] sm:$0xf]
      %v2729 = vld [vmem:[%s7 + $0x84] sm:$0xf]
      %v2730 = vld [vmem:[%s7 + $0x88] sm:$0xf]
      %v2731 = vld [vmem:[%s7 + $0x8c] sm:$0xf]
      %v2732 = vld [vmem:[%s7 + $0x90] sm:$0xf]
      %v2733 = vld [vmem:[%s7 + $0x94] sm:$0xf]
      %v2734 = vld [vmem:[%s7 + $0x98] sm:$0xf]
      %v2735 = vld [vmem:[%s7 + $0x9c] sm:$0xf]
      %v2744 = vunpack.c.l.b16 %v2728
      %v2745 = vunpack.c.l.b16 %v2729
      %v2746 = vunpack.c.l.b16 %v2730
      %v2747 = vunpack.c.l.b16 %v2731
      %v2748 = vunpack.c.l.b16 %v2732
      %v2749 = vunpack.c.l.b16 %v2733
      %v2750 = vunpack.c.l.b16 %v2734
      %v2751 = vunpack.c.l.b16 %v2735
      %v2752 = vpack.c.b16 %v2745, %v2744
      %v2753 = vpack.c.b16 %v2747, %v2746
      %v2754 = vpack.c.b16 %v2749, %v2748
      %v2755 = vpack.c.b16 %v2751, %v2750
      %2760 = vmatprep.subr.bf16.mxu0 0
      %2761 = vmatpush1.bf16.msra.mxu0 %v2752
      %2762 = vmatprep.subr.bf16.mxu0 0
      %2763 = vmatpush1.bf16.msra.mxu0 %v2753
      %2764 = vmatprep.subr.bf16.mxu0 0
      %2765 = vmatpush1.bf16.msra.mxu0 %v2754
      %2766 = vmatprep.subr.bf16.mxu0 0
      %2767 = vmatpush1.bf16.msra.mxu0 %v2755
      %2768 = vmatprep.subr.bf16.mxu0 0
      %2769 = vmatpush1.bf16.msra.mxu0 0
      %2770 = vmatprep.subr.bf16.mxu0 0
      %2771 = vmatpush1.bf16.msra.mxu0 0
      %2772 = vmatprep.subr.bf16.mxu0 0
      %2773 = vmatpush1.bf16.msra.mxu0 0
      %2774 = vmatprep.subr.bf16.mxu0 0
      %2775 = vmatpush1.bf16.msra.mxu0 0
      %2776 = vmatprep.subr.bf16.mxu0 0
      %2777 = vmatpush1.bf16.msra.mxu0 0
      %2778 = vmatprep.subr.bf16.mxu0 0
      %2779 = vmatpush1.bf16.msra.mxu0 0
      %2780 = vmatprep.subr.bf16.mxu0 0
      %2781 = vmatpush1.bf16.msra.mxu0 0
      %2782 = vmatprep.subr.bf16.mxu0 0
      %2783 = vmatpush1.bf16.msra.mxu0 0
      %2784 = vmatprep.subr.bf16.mxu0 0
      %2785 = vmatpush1.bf16.msra.mxu0 0
      %2786 = vmatprep.subr.bf16.mxu0 0
      %2787 = vmatpush1.bf16.msra.mxu0 0
      %2788 = vmatprep.subr.bf16.mxu0 0
      %2789 = vmatpush1.bf16.msra.mxu0 0
      %2790 = vmatprep.subr.bf16.mxu0 0
      %2791 = vmatpush1.bf16.msra.mxu0 0
      %2792 = vmatprep.mubr.bf16.mxu0 0
      %2793 = vmatmul.mubr.bf16.gmra.mrb[0].mxu0 %v2644
      %v2794 = vpop.f32.mrb[0].mxu0
      %v2795 = vadd.f32 0.0, %v2794
      %v2796 = vpop.f32.mrb[0].mxu0
      %v2797 = vpop.f32.mrb[0].mxu0
      %v2798 = vadd.f32 0.0, %v2797
      %v2799 = vpop.f32.mrb[0].mxu0
      %2800 = vmatprep.mubr.bf16.mxu0 0
      %2801 = vmatmul.mubr.bf16.gmra.mrb[0].mxu0 %v2647
      %v2802 = vpop.f32.mrb[0].mxu0
      %v2803 = vadd.f32 0.0, %v2802
      %v2804 = vpop.f32.mrb[0].mxu0
      %v2805 = vpop.f32.mrb[0].mxu0
      %v2806 = vadd.f32 0.0, %v2805
      %v2807 = vpop.f32.mrb[0].mxu0
      %2808 = vmatprep.mubr.bf16.mxu0 0
      %2809 = vmatmul.mubr.bf16.gmra.mrb[0].mxu0 %v2650
      %v2810 = vpop.f32.mrb[0].mxu0
      %v2811 = vadd.f32 0.0, %v2810
      %v2812 = vpop.f32.mrb[0].mxu0
      %v2813 = vpop.f32.mrb[0].mxu0
      %v2814 = vadd.f32 0.0, %v2813
      %v2815 = vpop.f32.mrb[0].mxu0
      %2816 = vmatprep.mubr.bf16.mxu0 0
      %2817 = vmatmul.mubr.bf16.gmra.mrb[0].mxu0 %v2653
      %v2818 = vpop.f32.mrb[0].mxu0
      %v2819 = vadd.f32 0.0, %v2818
      %v2820 = vpop.f32.mrb[0].mxu0
      %v2821 = vpop.f32.mrb[0].mxu0
      %v2822 = vadd.f32 0.0, %v2821
      %v2823 = vpop.f32.mrb[0].mxu0
      %2824 = vdwg.mxu0
      %v2825 = vadd.f32 %v2599, %v2795
      %v2826 = vadd.f32 %v2600, %v2798
      %v2827 = vadd.f32 %v2601, %v2803
      %v2828 = vadd.f32 %v2602, %v2806
      %v2829 = vadd.f32 %v2603, %v2811
      %v2830 = vadd.f32 %v2604, %v2814
      %v2831 = vadd.f32 %v2605, %v2819
      %v2832 = vadd.f32 %v2606, %v2822
      %v2833 = vrot.slane %v1681, 1
      %v2835 = vsel %vm798, %v2833, 0.0
      %v2836 = vpack.c.bf16 %v2145, %v2144
      %v2837 = vpack.c.bf16 %v2147, %v2146
      %v2838 = vpack.c.bf16 %v2149, %v2148
      %v2839 = vpack.c.bf16 %v2835, %v2150
      %v2840 = vld [vmem:[%s6 + $0xa0] sm:$0xf]
      %v2841 = vld [vmem:[%s6 + $0xa4] sm:$0xf]
      %v2842 = vld [vmem:[%s6 + $0xa8] sm:$0xf]
      %v2843 = vld [vmem:[%s6 + $0xac] sm:$0xf]
      %v2844 = vld [vmem:[%s6 + $0xb0] sm:$0xf]
      %v2845 = vld [vmem:[%s6 + $0xb4] sm:$0xf]
      %v2846 = vld [vmem:[%s6 + $0xb8] sm:$0xf]
      %v2847 = vld [vmem:[%s6 + $0xbc] sm:$0xf]
      %v2856 = vunpack.c.l.b16 %v2840
      %v2857 = vunpack.c.l.b16 %v2841
      %v2858 = vunpack.c.l.b16 %v2842
      %v2859 = vunpack.c.l.b16 %v2843
      %v2860 = vunpack.c.l.b16 %v2844
      %v2861 = vunpack.c.l.b16 %v2845
      %v2862 = vunpack.c.l.b16 %v2846
      %v2863 = vunpack.c.l.b16 %v2847
      %v2864 = vpack.c.b16 %v2857, %v2856
      %v2865 = vpack.c.b16 %v2859, %v2858
      %v2866 = vpack.c.b16 %v2861, %v2860
      %v2867 = vpack.c.b16 %v2863, %v2862
      %v2873 = vsel %vm603, %v2836, 0
      %v2876 = vsel %vm603, %v2837, 0
      %v2879 = vsel %vm603, %v2838, 0
      %v2882 = vsel %vm603, %v2839, 0
      %2884 = vmatprep.subr.bf16.mxu0 0
      %2885 = vmatpush1.bf16.msra.mxu0 %v2864
      %2886 = vmatprep.subr.bf16.mxu0 0
      %2887 = vmatpush1.bf16.msra.mxu0 %v2865
      %2888 = vmatprep.subr.bf16.mxu0 0
      %2889 = vmatpush1.bf16.msra.mxu0 %v2866
      %2890 = vmatprep.subr.bf16.mxu0 0
      %2891 = vmatpush1.bf16.msra.mxu0 %v2867
      %2892 = vmatprep.subr.bf16.mxu0 0
      %2893 = vmatpush1.bf16.msra.mxu0 0
      %2894 = vmatprep.subr.bf16.mxu0 0
      %2895 = vmatpush1.bf16.msra.mxu0 0
      %2896 = vmatprep.subr.bf16.mxu0 0
      %2897 = vmatpush1.bf16.msra.mxu0 0
      %2898 = vmatprep.subr.bf16.mxu0 0
      %2899 = vmatpush1.bf16.msra.mxu0 0
      %2900 = vmatprep.subr.bf16.mxu0 0
      %2901 = vmatpush1.bf16.msra.mxu0 0
      %2902 = vmatprep.subr.bf16.mxu0 0
      %2903 = vmatpush1.bf16.msra.mxu0 0
      %2904 = vmatprep.subr.bf16.mxu0 0
      %2905 = vmatpush1.bf16.msra.mxu0 0
      %2906 = vmatprep.subr.bf16.mxu0 0
      %2907 = vmatpush1.bf16.msra.mxu0 0
      %2908 = vmatprep.subr.bf16.mxu0 0
      %2909 = vmatpush1.bf16.msra.mxu0 0
      %2910 = vmatprep.subr.bf16.mxu0 0
      %2911 = vmatpush1.bf16.msra.mxu0 0
      %2912 = vmatprep.subr.bf16.mxu0 0
      %2913 = vmatpush1.bf16.msra.mxu0 0
      %2914 = vmatprep.subr.bf16.mxu0 0
      %2915 = vmatpush1.bf16.msra.mxu0 0
      %2916 = vmatprep.mubr.bf16.mxu0 0
      %2917 = vmatmul.mubr.bf16.gmra.mrb[0].mxu0 %v2873
      %v2918 = vpop.f32.mrb[0].mxu0
      %v2919 = vadd.f32 0.0, %v2918
      %v2920 = vpop.f32.mrb[0].mxu0
      %v2921 = vpop.f32.mrb[0].mxu0
      %v2922 = vadd.f32 0.0, %v2921
      %v2923 = vpop.f32.mrb[0].mxu0
      %2924 = vmatprep.mubr.bf16.mxu0 0
      %2925 = vmatmul.mubr.bf16.gmra.mrb[0].mxu0 %v2876
      %v2926 = vpop.f32.mrb[0].mxu0
      %v2927 = vadd.f32 0.0, %v2926
      %v2928 = vpop.f32.mrb[0].mxu0
      %v2929 = vpop.f32.mrb[0].mxu0
      %v2930 = vadd.f32 0.0, %v2929
      %v2931 = vpop.f32.mrb[0].mxu0
      %2932 = vmatprep.mubr.bf16.mxu0 0
      %2933 = vmatmul.mubr.bf16.gmra.mrb[0].mxu0 %v2879
      %v2934 = vpop.f32.mrb[0].mxu0
      %v2935 = vadd.f32 0.0, %v2934
      %v2936 = vpop.f32.mrb[0].mxu0
      %v2937 = vpop.f32.mrb[0].mxu0
      %v2938 = vadd.f32 0.0, %v2937
      %v2939 = vpop.f32.mrb[0].mxu0
      %2940 = vmatprep.mubr.bf16.mxu0 0
      %2941 = vmatmul.mubr.bf16.gmra.mrb[0].mxu0 %v2882
      %v2942 = vpop.f32.mrb[0].mxu0
      %v2943 = vadd.f32 0.0, %v2942
      %v2944 = vpop.f32.mrb[0].mxu0
      %v2945 = vpop.f32.mrb[0].mxu0
      %v2946 = vadd.f32 0.0, %v2945
      %v2947 = vpop.f32.mrb[0].mxu0
      %2948 = vdwg.mxu0
      %v2949 = vadd.f32 %v2720, %v2919
      %v2950 = vadd.f32 %v2721, %v2922
      %v2951 = vadd.f32 %v2722, %v2927
      %v2952 = vadd.f32 %v2723, %v2930
      %v2953 = vadd.f32 %v2724, %v2935
      %v2954 = vadd.f32 %v2725, %v2938
      %v2955 = vadd.f32 %v2726, %v2943
      %v2956 = vadd.f32 %v2727, %v2946
      %v2957 = vld [vmem:[%s7 + $0xa0] sm:$0xf]
      %v2958 = vld [vmem:[%s7 + $0xa4] sm:$0xf]
      %v2959 = vld [vmem:[%s7 + $0xa8] sm:$0xf]
      %v2960 = vld [vmem:[%s7 + $0xac] sm:$0xf]
      %v2961 = vld [vmem:[%s7 + $0xb0] sm:$0xf]
      %v2962 = vld [vmem:[%s7 + $0xb4] sm:$0xf]
      %v2963 = vld [vmem:[%s7 + $0xb8] sm:$0xf]
      %v2964 = vld [vmem:[%s7 + $0xbc] sm:$0xf]
      %v2973 = vunpack.c.l.b16 %v2957
      %v2974 = vunpack.c.l.b16 %v2958
      %v2975 = vunpack.c.l.b16 %v2959
      %v2976 = vunpack.c.l.b16 %v2960
      %v2977 = vunpack.c.l.b16 %v2961
      %v2978 = vunpack.c.l.b16 %v2962
      %v2979 = vunpack.c.l.b16 %v2963
      %v2980 = vunpack.c.l.b16 %v2964
      %v2981 = vpack.c.b16 %v2974, %v2973
      %v2982 = vpack.c.b16 %v2976, %v2975
      %v2983 = vpack.c.b16 %v2978, %v2977
      %v2984 = vpack.c.b16 %v2980, %v2979
      %2989 = vmatprep.subr.bf16.mxu0 0
      %2990 = vmatpush1.bf16.msra.mxu0 %v2981
      %2991 = vmatprep.subr.bf16.mxu0 0
      %2992 = vmatpush1.bf16.msra.mxu0 %v2982
      %2993 = vmatprep.subr.bf16.mxu0 0
      %2994 = vmatpush1.bf16.msra.mxu0 %v2983
      %2995 = vmatprep.subr.bf16.mxu0 0
      %2996 = vmatpush1.bf16.msra.mxu0 %v2984
      %2997 = vmatprep.subr.bf16.mxu0 0
      %2998 = vmatpush1.bf16.msra.mxu0 0
      %2999 = vmatprep.subr.bf16.mxu0 0
      %3000 = vmatpush1.bf16.msra.mxu0 0
      %3001 = vmatprep.subr.bf16.mxu0 0
      %3002 = vmatpush1.bf16.msra.mxu0 0
      %3003 = vmatprep.subr.bf16.mxu0 0
      %3004 = vmatpush1.bf16.msra.mxu0 0
      %3005 = vmatprep.subr.bf16.mxu0 0
      %3006 = vmatpush1.bf16.msra.mxu0 0
      %3007 = vmatprep.subr.bf16.mxu0 0
      %3008 = vmatpush1.bf16.msra.mxu0 0
      %3009 = vmatprep.subr.bf16.mxu0 0
      %3010 = vmatpush1.bf16.msra.mxu0 0
      %3011 = vmatprep.subr.bf16.mxu0 0
      %3012 = vmatpush1.bf16.msra.mxu0 0
      %3013 = vmatprep.subr.bf16.mxu0 0
      %3014 = vmatpush1.bf16.msra.mxu0 0
      %3015 = vmatprep.subr.bf16.mxu0 0
      %3016 = vmatpush1.bf16.msra.mxu0 0
      %3017 = vmatprep.subr.bf16.mxu0 0
      %3018 = vmatpush1.bf16.msra.mxu0 0
      %3019 = vmatprep.subr.bf16.mxu0 0
      %3020 = vmatpush1.bf16.msra.mxu0 0
      %3021 = vmatprep.mubr.bf16.mxu0 0
      %3022 = vmatmul.mubr.bf16.gmra.mrb[0].mxu0 %v2873
      %v3023 = vpop.f32.mrb[0].mxu0
      %v3024 = vadd.f32 0.0, %v3023
      %v3025 = vpop.f32.mrb[0].mxu0
      %v3026 = vpop.f32.mrb[0].mxu0
      %v3027 = vadd.f32 0.0, %v3026
      %v3028 = vpop.f32.mrb[0].mxu0
      %3029 = vmatprep.mubr.bf16.mxu0 0
      %3030 = vmatmul.mubr.bf16.gmra.mrb[0].mxu0 %v2876
      %v3031 = vpop.f32.mrb[0].mxu0
      %v3032 = vadd.f32 0.0, %v3031
      %v3033 = vpop.f32.mrb[0].mxu0
      %v3034 = vpop.f32.mrb[0].mxu0
      %v3035 = vadd.f32 0.0, %v3034
      %v3036 = vpop.f32.mrb[0].mxu0
      %3037 = vmatprep.mubr.bf16.mxu0 0
      %3038 = vmatmul.mubr.bf16.gmra.mrb[0].mxu0 %v2879
      %v3039 = vpop.f32.mrb[0].mxu0
      %v3040 = vadd.f32 0.0, %v3039
      %v3041 = vpop.f32.mrb[0].mxu0
      %v3042 = vpop.f32.mrb[0].mxu0
      %v3043 = vadd.f32 0.0, %v3042
      %v3044 = vpop.f32.mrb[0].mxu0
      %3045 = vmatprep.mubr.bf16.mxu0 0
      %3046 = vmatmul.mubr.bf16.gmra.mrb[0].mxu0 %v2882
      %v3047 = vpop.f32.mrb[0].mxu0
      %v3048 = vadd.f32 0.0, %v3047
      %v3049 = vpop.f32.mrb[0].mxu0
      %v3050 = vpop.f32.mrb[0].mxu0
      %v3051 = vadd.f32 0.0, %v3050
      %v3052 = vpop.f32.mrb[0].mxu0
      %3053 = vdwg.mxu0
      %v3054 = vadd.f32 %v2825, %v3024
      %v3055 = vadd.f32 %v2826, %v3027
      %v3056 = vadd.f32 %v2827, %v3032
      %v3057 = vadd.f32 %v2828, %v3035
      %v3058 = vadd.f32 %v2829, %v3040
      %v3059 = vadd.f32 %v2830, %v3043
      %v3060 = vadd.f32 %v2831, %v3048
      %v3061 = vadd.f32 %v2832, %v3051
      %v3062 = vld [vmem:[%s8] sm:$0x1]
      %v3064 = vlaneseq
      %v3065 = vshrl.u32 %v3064, 7
      %v3066 = vsub.s32 0, %v3065
      %v3067 = vrot.slane %v3062, %v3066
      %v3069 = vadd.f32 %v2949, %v3067
      %v3070 = vadd.f32 %v2950, %v3067
      %v3071 = vadd.f32 %v2951, %v3067
      %v3072 = vadd.f32 %v2952, %v3067
      %v3073 = vadd.f32 %v2953, %v3067
      %v3074 = vadd.f32 %v2954, %v3067
      %v3075 = vadd.f32 %v2955, %v3067
      %v3076 = vadd.f32 %v2956, %v3067
      %v3077 = vld [vmem:[%s9] sm:$0x1]
      %v3079 = vlaneseq
      %v3080 = vshrl.u32 %v3079, 7
      %v3081 = vsub.s32 0, %v3080
      %v3082 = vrot.slane %v3077, %v3081
      %v3084 = vadd.f32 %v3054, %v3082
      %v3085 = vadd.f32 %v3055, %v3082
      %v3086 = vadd.f32 %v3056, %v3082
      %v3087 = vadd.f32 %v3057, %v3082
      %v3088 = vadd.f32 %v3058, %v3082
      %v3089 = vadd.f32 %v3059, %v3082
      %v3090 = vadd.f32 %v3060, %v3082
      %v3091 = vadd.f32 %v3061, %v3082
      %v3092 = vxor.u32 %v3084, 2147483648
      %v3093 = vxor.u32 %v3085, 2147483648
      %v3094 = vxor.u32 %v3086, 2147483648
      %v3095 = vxor.u32 %v3087, 2147483648
      %v3096 = vxor.u32 %v3088, 2147483648
      %v3097 = vxor.u32 %v3089, 2147483648
      %v3098 = vxor.u32 %v3090, 2147483648
      %v3099 = vxor.u32 %v3091, 2147483648
      %v3100 = vmul.f32 %v3092, 1.442695
      %v3101 = vpow.pop %v3100
      %v3102 = vmul.f32 %v3093, 1.442695
      %v3103 = vpow.pop %v3102
      %v3104 = vmul.f32 %v3094, 1.442695
      %v3105 = vpow.pop %v3104
      %v3106 = vmul.f32 %v3095, 1.442695
      %v3107 = vpow.pop %v3106
      %v3108 = vmul.f32 %v3096, 1.442695
      %v3109 = vpow.pop %v3108
      %v3110 = vmul.f32 %v3097, 1.442695
      %v3111 = vpow.pop %v3110
      %v3112 = vmul.f32 %v3098, 1.442695
      %v3113 = vpow.pop %v3112
      %v3114 = vmul.f32 %v3099, 1.442695
      %v3115 = vpow.pop %v3114
      %v3116 = vadd.f32 %v3101, 1.0
      %v3117 = vadd.f32 %v3103, 1.0
      %v3118 = vadd.f32 %v3105, 1.0
      %v3119 = vadd.f32 %v3107, 1.0
      %v3120 = vadd.f32 %v3109, 1.0
      %v3121 = vadd.f32 %v3111, 1.0
      %v3122 = vadd.f32 %v3113, 1.0
      %v3123 = vadd.f32 %v3115, 1.0
      %v3124 = vrcp.pop %v3116
      %v3125 = vmul.f32 1.0, %v3124
      %v3126 = vrcp.pop %v3117
      %v3127 = vmul.f32 1.0, %v3126
      %v3128 = vrcp.pop %v3118
      %v3129 = vmul.f32 1.0, %v3128
      %v3130 = vrcp.pop %v3119
      %v3131 = vmul.f32 1.0, %v3130
      %v3132 = vrcp.pop %v3120
      %v3133 = vmul.f32 1.0, %v3132
      %v3134 = vrcp.pop %v3121
      %v3135 = vmul.f32 1.0, %v3134
      %v3136 = vrcp.pop %v3122
      %v3137 = vmul.f32 1.0, %v3136
      %v3138 = vrcp.pop %v3123
      %v3139 = vmul.f32 1.0, %v3138
      %v3140 = vmul.f32 %v3069, %v3125
      %v3141 = vmul.f32 %v3070, %v3127
      %v3142 = vmul.f32 %v3071, %v3129
      %v3143 = vmul.f32 %v3072, %v3131
      %v3144 = vmul.f32 %v3073, %v3133
      %v3145 = vmul.f32 %v3074, %v3135
      %v3146 = vmul.f32 %v3075, %v3137
      %v3147 = vmul.f32 %v3076, %v3139
      %v3148 = vadd.f32 %v401, %v3140
      %v3149 = vadd.f32 %v402, %v3141
      %v3150 = vadd.f32 %v403, %v3142
      %v3151 = vadd.f32 %v404, %v3143
      %v3152 = vadd.f32 %v405, %v3144
      %v3153 = vadd.f32 %v406, %v3145
      %v3154 = vadd.f32 %v407, %v3146
      %v3155 = vadd.f32 %v408, %v3147
      %3156 = vst.msk [vmem:[%s399] sm:$0xff] %vm513, %v3148
      %3157 = vst.msk [vmem:[%s399 + $0x8] sm:$0xff] %vm513, %v3149
      %3158 = vst.msk [vmem:[%s399 + $0x10] sm:$0xff] %vm513, %v3150
      %3159 = vst.msk [vmem:[%s399 + $0x18] sm:$0xff] %vm513, %v3151
      %3160 = vst.msk [vmem:[%s399 + $0x20] sm:$0xff] %vm513, %v3152
      %3161 = vst.msk [vmem:[%s399 + $0x28] sm:$0xff] %vm513, %v3153
      %3162 = vst.msk [vmem:[%s399 + $0x30] sm:$0xff] %vm513, %v3154
      %3163 = vst.msk [vmem:[%s399 + $0x38] sm:$0xff] %vm513, %v3155
      %p3164 = scmp.lt.s32.totalorder %s21, 1
      %s3165 = scalar_select %p3164, %s21, 1
      %s3166 = smul.addr %s3165, 8
      %s3167 = smul.addr %s3166, 8
      %s3168 = scalar_lea.vmem %s10, %s3167
      // Predicated region
      $region61: #{pixelcnn_layer_down.7} parent=59 // pred_check
        %p3169 = pneg %p264
      $region62: #{pixelcnn_layer_down.7} parent=59 // pred_check_branch
        %3171 = sbr.rel (%p3169) target = $region64
      $region63: #{pixelcnn_layer_down.7} parent=59 // pred_region
        _
      $region64: #{pixelcnn_layer_down.7} parent=59 // pred_fallthru
        _
    $region60: #{pixelcnn_layer_down.7} parent=5 // pred_fallthru
      _
    %p3172 = scmp.le.s32.totalorder 2, %s16
    // Predicated region
    $region65: #{pixelcnn_layer_down.7} parent=5 // pred_check
      %p3173 = pneg %p3172
    $region66: #{pixelcnn_layer_down.7} parent=5 // pred_check_branch
      %3175 = sbr.rel (%p3173) target = $region68
    $region67: #{pixelcnn_layer_down.7} parent=5 // pred_region
      %s3176 = ssub.s32 %s16, 2
      // Predicated region
      $region69: #{pixelcnn_layer_down.7} parent=67 // pred_check
        %p3177 = pneg %p270
      $region70: #{pixelcnn_layer_down.7} parent=67 // pred_check_branch
        %3179 = sbr.rel (%p3177) target = $region72
      $region71: #{pixelcnn_layer_down.7} parent=67 // pred_region
        %p3180 = scmp.lt.s32.totalorder %s22, 1
        %s3181 = scalar_select %p3180, %s22, 1
        %s3182 = smul.addr %s3181, 8
        %s3183 = smul.addr %s3182, 8
        %s3184 = scalar_lea.vmem %s10, %s3183
      $region72: #{pixelcnn_layer_down.7} parent=67 // pred_fallthru
        _
    $region68: #{pixelcnn_layer_down.7} parent=5 // pred_fallthru
      _
  $region6: #{pixelcnn_layer_down.7} parent=0 // loop_footer
    %s20 = sadd.s32 1, %s16
  $region7: #{pixelcnn_layer_down.7} parent=0 // loop_footer_branch
    %15 = sbr.rel target = $region3
  $region8: #{pixelcnn_layer_down.7} parent=0 // loop_exit
    _

// kernel: pixelcnn_layer_down.8
$region0: #{pixelcnn_layer_down.8}
  #allocation0 [shape = 'u32[]', space=smem, size = 0x4, offset = 0x4, fixed_abs, tag = 'smem constant byte address 0x4 - core index']
  #allocation1 [shape = 'u32[144,128]{1,0:T(1,128)}', space=vmem, size = 0x12000, scoped, tag = 'internal scratch']
  %s0 = inlined_call_operand.vmem [shape: f32[2,8,8,32], index: 0, kind: input, shape index: {}]
  %s1 = inlined_call_operand.vmem [shape: f32[2,8,8,32], index: 1, kind: input, shape index: {}]
  %s2 = inlined_call_operand.vmem [shape: f32[2,8,8,32], index: 2, kind: input, shape index: {}]
  %s3 = inlined_call_operand.vmem [shape: f32[2,8,8,32], index: 3, kind: input, shape index: {}]
  %s4 = inlined_call_operand.vmem [shape: bf16[256,32], index: 4, kind: input, shape index: {}]
  %s5 = inlined_call_operand.vmem [shape: bf16[64,32], index: 5, kind: input, shape index: {}]
  %s6 = inlined_call_operand.vmem [shape: bf16[64,32], index: 6, kind: input, shape index: {}]
  %s7 = inlined_call_operand.vmem [shape: f32[1,32], index: 7, kind: input, shape index: {}]
  %s8 = inlined_call_operand.vmem [shape: bf16[256,32], index: 8, kind: input, shape index: {}]
  %s9 = inlined_call_operand.vmem [shape: bf16[256,32], index: 9, kind: input, shape index: {}]
  %s10 = inlined_call_operand.vmem [shape: f32[1,32], index: 10, kind: input, shape index: {}]
  %s11 = inlined_call_operand.vmem [shape: f32[1,32], index: 11, kind: input, shape index: {}]
  %s12 = inlined_call_operand.vmem [shape: f32[2,8,8,32], index: 12, kind: output, shape index: {}]
  %s13 = sld [smem:[#allocation0]]
  $region81: #{pixelcnn_layer_down.8} parent=0
    _
  %s15 = ssub.s32 1, %s13
  %s16 = scalar_select 0, %s15, %s13
  loop: start=0, step=1, limit=4
  $region2: #{pixelcnn_layer_down.8} parent=0 // loop_pre_header
    _
  $region3: #{pixelcnn_layer_down.8} parent=0 // loop_header
    %s18 = sphi 0, %s22
    %p19 = scmp.ge.s32.totalorder %s18, 4
    %s28 = sphi 0, %s30
    %s31 = sphi 0, %s28
    %s32 = sphi 0, %s31
    %s48 = sphi 0, %s32
    %s54 = sphi 0, %s56
    %s57 = sphi 0, %s54
    %s58 = sphi 0, %s57
    %s74 = sphi 0, %s58
    %s80 = sphi 0, %s82
    %s83 = sphi 0, %s80
    %s84 = sphi 0, %s83
    %s100 = sphi 0, %s84
    %s106 = sphi 0, %s108
    %s109 = sphi 0, %s106
    %s110 = sphi 0, %s109
    %s126 = sphi 0, %s110
    %s130 = sphi 0, %s130
    %s132 = sphi 0, %s130
    %s133 = sphi 0, %s132
    %s147 = sphi 0, %s133
    %s151 = sphi 0, %s151
    %s153 = sphi 0, %s151
    %s154 = sphi 0, %s153
    %s168 = sphi 0, %s154
    %s172 = sphi 0, %s172
    %s174 = sphi 0, %s172
    %s175 = sphi 0, %s174
    %s189 = sphi 0, %s175
    %s193 = sphi 0, %s193
    %s195 = sphi 0, %s193
    %s196 = sphi 0, %s195
    %s210 = sphi 0, %s196
    %s214 = sphi 0, %s214
    %s216 = sphi 0, %s214
    %s217 = sphi 0, %s216
    %s231 = sphi 0, %s217
    %s235 = sphi 0, %s235
    %s237 = sphi 0, %s235
    %s238 = sphi 0, %s237
    %s252 = sphi 0, %s238
    %s256 = sphi 0, %s256
    %s258 = sphi 0, %s256
    %s259 = sphi 0, %s258
    %s273 = sphi 0, %s259
    %s277 = sphi 0, %s277
    %s279 = sphi 0, %s277
    %s280 = sphi 0, %s279
    %s294 = sphi 0, %s280
    %s300 = sphi 0, %s302
    %s303 = sphi 0, %s300
    %s304 = sphi 0, %s303
    %s320 = sphi 0, %s304
  $region4: #{pixelcnn_layer_down.8} parent=0 // loop_header_branch
    %21 = sbr.rel (%p19) target = $region8
  $region5: #{pixelcnn_layer_down.8} parent=0 // loop_body
    %s23 = ssub.s32 %s18, 1
    %s24 = ssub.s32 %s18, 2
    %s25 = sadd.s32 %s18, 1
    %s26 = ssub.s32 %s18, %s25
    %p27 = scmp.eq.s32.totalorder %s26, 0
    %s29 = sadd.s32 %s28, 1
    %s30 = scalar_select %p27, %s28, %s29
    %p33 = pneg %p27
    %p34 = scmp.eq.s32.totalorder %s18, 1
    %p35 = por %p33, %p34
    %p36 = scmp.ne.s32.totalorder %s28, %s31
    %p37 = scmp.eq.s32.totalorder %s18, 0
    %p38 = por %p36, %p37
    %p39 = scmp.ne.s32.totalorder %s28, %s31
    %p40 = scmp.eq.s32.totalorder %s23, 1
    %p41 = por %p39, %p40
    %p42 = scmp.ne.s32.totalorder %s31, %s32
    %p43 = scmp.eq.s32.totalorder %s23, 0
    %p44 = por %p42, %p43
    %p45 = scmp.ne.s32.totalorder %s31, %s32
    %p46 = scmp.eq.s32.totalorder %s24, 1
    %p47 = por %p45, %p46
    %p49 = scmp.ne.s32.totalorder %s32, %s48
    %p50 = scmp.eq.s32.totalorder %s24, 0
    %p51 = por %p49, %p50
    %s52 = ssub.s32 %s18, %s25
    %p53 = scmp.eq.s32.totalorder %s52, 0
    %s55 = sadd.s32 %s54, 1
    %s56 = scalar_select %p53, %s54, %s55
    %p59 = pneg %p53
    %p60 = scmp.eq.s32.totalorder %s18, 1
    %p61 = por %p59, %p60
    %p62 = scmp.ne.s32.totalorder %s54, %s57
    %p63 = scmp.eq.s32.totalorder %s18, 0
    %p64 = por %p62, %p63
    %p65 = scmp.ne.s32.totalorder %s54, %s57
    %p66 = scmp.eq.s32.totalorder %s23, 1
    %p67 = por %p65, %p66
    %p68 = scmp.ne.s32.totalorder %s57, %s58
    %p69 = scmp.eq.s32.totalorder %s23, 0
    %p70 = por %p68, %p69
    %p71 = scmp.ne.s32.totalorder %s57, %s58
    %p72 = scmp.eq.s32.totalorder %s24, 1
    %p73 = por %p71, %p72
    %p75 = scmp.ne.s32.totalorder %s58, %s74
    %p76 = scmp.eq.s32.totalorder %s24, 0
    %p77 = por %p75, %p76
    %s78 = ssub.s32 %s18, %s25
    %p79 = scmp.eq.s32.totalorder %s78, 0
    %s81 = sadd.s32 %s80, 1
    %s82 = scalar_select %p79, %s80, %s81
    %p85 = pneg %p79
    %p86 = scmp.eq.s32.totalorder %s18, 1
    %p87 = por %p85, %p86
    %p88 = scmp.ne.s32.totalorder %s80, %s83
    %p89 = scmp.eq.s32.totalorder %s18, 0
    %p90 = por %p88, %p89
    %p91 = scmp.ne.s32.totalorder %s80, %s83
    %p92 = scmp.eq.s32.totalorder %s23, 1
    %p93 = por %p91, %p92
    %p94 = scmp.ne.s32.totalorder %s83, %s84
    %p95 = scmp.eq.s32.totalorder %s23, 0
    %p96 = por %p94, %p95
    %p97 = scmp.ne.s32.totalorder %s83, %s84
    %p98 = scmp.eq.s32.totalorder %s24, 1
    %p99 = por %p97, %p98
    %p101 = scmp.ne.s32.totalorder %s84, %s100
    %p102 = scmp.eq.s32.totalorder %s24, 0
    %p103 = por %p101, %p102
    %s104 = ssub.s32 %s18, %s25
    %p105 = scmp.eq.s32.totalorder %s104, 0
    %s107 = sadd.s32 %s106, 1
    %s108 = scalar_select %p105, %s106, %s107
    %p111 = pneg %p105
    %p112 = scmp.eq.s32.totalorder %s18, 1
    %p113 = por %p111, %p112
    %p114 = scmp.ne.s32.totalorder %s106, %s109
    %p115 = scmp.eq.s32.totalorder %s18, 0
    %p116 = por %p114, %p115
    %p117 = scmp.ne.s32.totalorder %s106, %s109
    %p118 = scmp.eq.s32.totalorder %s23, 1
    %p119 = por %p117, %p118
    %p120 = scmp.ne.s32.totalorder %s109, %s110
    %p121 = scmp.eq.s32.totalorder %s23, 0
    %p122 = por %p120, %p121
    %p123 = scmp.ne.s32.totalorder %s109, %s110
    %p124 = scmp.eq.s32.totalorder %s24, 1
    %p125 = por %p123, %p124
    %p127 = scmp.ne.s32.totalorder %s110, %s126
    %p128 = scmp.eq.s32.totalorder %s24, 0
    %p129 = por %p127, %p128
    %s131 = sadd.s32 %s130, 1
    %p134 = scmp.eq.s32.totalorder %s18, 1
    %p135 = scmp.ne.s32.totalorder %s130, %s132
    %p136 = scmp.eq.s32.totalorder %s18, 0
    %p137 = por %p135, %p136
    %p138 = scmp.ne.s32.totalorder %s130, %s132
    %p139 = scmp.eq.s32.totalorder %s23, 1
    %p140 = por %p138, %p139
    %p141 = scmp.ne.s32.totalorder %s132, %s133
    %p142 = scmp.eq.s32.totalorder %s23, 0
    %p143 = por %p141, %p142
    %p144 = scmp.ne.s32.totalorder %s132, %s133
    %p145 = scmp.eq.s32.totalorder %s24, 1
    %p146 = por %p144, %p145
    %p148 = scmp.ne.s32.totalorder %s133, %s147
    %p149 = scmp.eq.s32.totalorder %s24, 0
    %p150 = por %p148, %p149
    %s152 = sadd.s32 %s151, 1
    %p155 = scmp.eq.s32.totalorder %s18, 1
    %p156 = scmp.ne.s32.totalorder %s151, %s153
    %p157 = scmp.eq.s32.totalorder %s18, 0
    %p158 = por %p156, %p157
    %p159 = scmp.ne.s32.totalorder %s151, %s153
    %p160 = scmp.eq.s32.totalorder %s23, 1
    %p161 = por %p159, %p160
    %p162 = scmp.ne.s32.totalorder %s153, %s154
    %p163 = scmp.eq.s32.totalorder %s23, 0
    %p164 = por %p162, %p163
    %p165 = scmp.ne.s32.totalorder %s153, %s154
    %p166 = scmp.eq.s32.totalorder %s24, 1
    %p167 = por %p165, %p166
    %p169 = scmp.ne.s32.totalorder %s154, %s168
    %p170 = scmp.eq.s32.totalorder %s24, 0
    %p171 = por %p169, %p170
    %s173 = sadd.s32 %s172, 1
    %p176 = scmp.eq.s32.totalorder %s18, 1
    %p177 = scmp.ne.s32.totalorder %s172, %s174
    %p178 = scmp.eq.s32.totalorder %s18, 0
    %p179 = por %p177, %p178
    %p180 = scmp.ne.s32.totalorder %s172, %s174
    %p181 = scmp.eq.s32.totalorder %s23, 1
    %p182 = por %p180, %p181
    %p183 = scmp.ne.s32.totalorder %s174, %s175
    %p184 = scmp.eq.s32.totalorder %s23, 0
    %p185 = por %p183, %p184
    %p186 = scmp.ne.s32.totalorder %s174, %s175
    %p187 = scmp.eq.s32.totalorder %s24, 1
    %p188 = por %p186, %p187
    %p190 = scmp.ne.s32.totalorder %s175, %s189
    %p191 = scmp.eq.s32.totalorder %s24, 0
    %p192 = por %p190, %p191
    %s194 = sadd.s32 %s193, 1
    %p197 = scmp.eq.s32.totalorder %s18, 1
    %p198 = scmp.ne.s32.totalorder %s193, %s195
    %p199 = scmp.eq.s32.totalorder %s18, 0
    %p200 = por %p198, %p199
    %p201 = scmp.ne.s32.totalorder %s193, %s195
    %p202 = scmp.eq.s32.totalorder %s23, 1
    %p203 = por %p201, %p202
    %p204 = scmp.ne.s32.totalorder %s195, %s196
    %p205 = scmp.eq.s32.totalorder %s23, 0
    %p206 = por %p204, %p205
    %p207 = scmp.ne.s32.totalorder %s195, %s196
    %p208 = scmp.eq.s32.totalorder %s24, 1
    %p209 = por %p207, %p208
    %p211 = scmp.ne.s32.totalorder %s196, %s210
    %p212 = scmp.eq.s32.totalorder %s24, 0
    %p213 = por %p211, %p212
    %s215 = sadd.s32 %s214, 1
    %p218 = scmp.eq.s32.totalorder %s18, 1
    %p219 = scmp.ne.s32.totalorder %s214, %s216
    %p220 = scmp.eq.s32.totalorder %s18, 0
    %p221 = por %p219, %p220
    %p222 = scmp.ne.s32.totalorder %s214, %s216
    %p223 = scmp.eq.s32.totalorder %s23, 1
    %p224 = por %p222, %p223
    %p225 = scmp.ne.s32.totalorder %s216, %s217
    %p226 = scmp.eq.s32.totalorder %s23, 0
    %p227 = por %p225, %p226
    %p228 = scmp.ne.s32.totalorder %s216, %s217
    %p229 = scmp.eq.s32.totalorder %s24, 1
    %p230 = por %p228, %p229
    %p232 = scmp.ne.s32.totalorder %s217, %s231
    %p233 = scmp.eq.s32.totalorder %s24, 0
    %p234 = por %p232, %p233
    %s236 = sadd.s32 %s235, 1
    %p239 = scmp.eq.s32.totalorder %s18, 1
    %p240 = scmp.ne.s32.totalorder %s235, %s237
    %p241 = scmp.eq.s32.totalorder %s18, 0
    %p242 = por %p240, %p241
    %p243 = scmp.ne.s32.totalorder %s235, %s237
    %p244 = scmp.eq.s32.totalorder %s23, 1
    %p245 = por %p243, %p244
    %p246 = scmp.ne.s32.totalorder %s237, %s238
    %p247 = scmp.eq.s32.totalorder %s23, 0
    %p248 = por %p246, %p247
    %p249 = scmp.ne.s32.totalorder %s237, %s238
    %p250 = scmp.eq.s32.totalorder %s24, 1
    %p251 = por %p249, %p250
    %p253 = scmp.ne.s32.totalorder %s238, %s252
    %p254 = scmp.eq.s32.totalorder %s24, 0
    %p255 = por %p253, %p254
    %s257 = sadd.s32 %s256, 1
    %p260 = scmp.eq.s32.totalorder %s18, 1
    %p261 = scmp.ne.s32.totalorder %s256, %s258
    %p262 = scmp.eq.s32.totalorder %s18, 0
    %p263 = por %p261, %p262
    %p264 = scmp.ne.s32.totalorder %s256, %s258
    %p265 = scmp.eq.s32.totalorder %s23, 1
    %p266 = por %p264, %p265
    %p267 = scmp.ne.s32.totalorder %s258, %s259
    %p268 = scmp.eq.s32.totalorder %s23, 0
    %p269 = por %p267, %p268
    %p270 = scmp.ne.s32.totalorder %s258, %s259
    %p271 = scmp.eq.s32.totalorder %s24, 1
    %p272 = por %p270, %p271
    %p274 = scmp.ne.s32.totalorder %s259, %s273
    %p275 = scmp.eq.s32.totalorder %s24, 0
    %p276 = por %p274, %p275
    %s278 = sadd.s32 %s277, 1
    %p281 = scmp.eq.s32.totalorder %s18, 1
    %p282 = scmp.ne.s32.totalorder %s277, %s279
    %p283 = scmp.eq.s32.totalorder %s18, 0
    %p284 = por %p282, %p283
    %p285 = scmp.ne.s32.totalorder %s277, %s279
    %p286 = scmp.eq.s32.totalorder %s23, 1
    %p287 = por %p285, %p286
    %p288 = scmp.ne.s32.totalorder %s279, %s280
    %p289 = scmp.eq.s32.totalorder %s23, 0
    %p290 = por %p288, %p289
    %p291 = scmp.ne.s32.totalorder %s279, %s280
    %p292 = scmp.eq.s32.totalorder %s24, 1
    %p293 = por %p291, %p292
    %p295 = scmp.ne.s32.totalorder %s280, %s294
    %p296 = scmp.eq.s32.totalorder %s24, 0
    %p297 = por %p295, %p296
    %s298 = ssub.s32 %s18, %s25
    %p299 = scmp.eq.s32.totalorder %s298, 0
    %s301 = sadd.s32 %s300, 1
    %s302 = scalar_select %p299, %s300, %s301
    %p305 = pneg %p299
    %p306 = scmp.eq.s32.totalorder %s18, 1
    %p307 = por %p305, %p306
    %p308 = scmp.ne.s32.totalorder %s300, %s303
    %p309 = scmp.eq.s32.totalorder %s18, 0
    %p310 = por %p308, %p309
    %p311 = scmp.ne.s32.totalorder %s300, %s303
    %p312 = scmp.eq.s32.totalorder %s23, 1
    %p313 = por %p311, %p312
    %p314 = scmp.ne.s32.totalorder %s303, %s304
    %p315 = scmp.eq.s32.totalorder %s23, 0
    %p316 = por %p314, %p315
    %p317 = scmp.ne.s32.totalorder %s303, %s304
    %p318 = scmp.eq.s32.totalorder %s24, 1
    %p319 = por %p317, %p318
    %p321 = scmp.ne.s32.totalorder %s304, %s320
    %p322 = scmp.eq.s32.totalorder %s24, 0
    %p323 = por %p321, %p322
    %p324 = scmp.le.s32.totalorder 1, %s18
    %p325 = scmp.lt.s32.totalorder %s18, 3
    %p326 = pnand %p324, %p325
    %p327 = pneg %p326
    // Predicated region
    $region9: #{pixelcnn_layer_down.8} parent=5 // pred_check
      _
    $region10: #{pixelcnn_layer_down.8} parent=5 // pred_check_branch
      %329 = sbr.rel (%p326) target = $region12
    $region11: #{pixelcnn_layer_down.8} parent=5 // pred_region
      %s330 = ssub.s32 %s18, 1
      // Predicated region
      $region13: #{pixelcnn_layer_down.8} parent=11 // pred_check
        %p331 = pneg %p143
      $region14: #{pixelcnn_layer_down.8} parent=11 // pred_check_branch
        %333 = sbr.rel (%p331) target = $region16
      $region15: #{pixelcnn_layer_down.8} parent=11 // pred_region
        _
      $region16: #{pixelcnn_layer_down.8} parent=11 // pred_fallthru
        _
      // Predicated region
      $region17: #{pixelcnn_layer_down.8} parent=11 // pred_check
        %p334 = pneg %p164
      $region18: #{pixelcnn_layer_down.8} parent=11 // pred_check_branch
        %336 = sbr.rel (%p334) target = $region20
      $region19: #{pixelcnn_layer_down.8} parent=11 // pred_region
        _
      $region20: #{pixelcnn_layer_down.8} parent=11 // pred_fallthru
        _
      // Predicated region
      $region21: #{pixelcnn_layer_down.8} parent=11 // pred_check
        %p337 = pneg %p185
      $region22: #{pixelcnn_layer_down.8} parent=11 // pred_check_branch
        %339 = sbr.rel (%p337) target = $region24
      $region23: #{pixelcnn_layer_down.8} parent=11 // pred_region
        _
      $region24: #{pixelcnn_layer_down.8} parent=11 // pred_fallthru
        _
      // Predicated region
      $region25: #{pixelcnn_layer_down.8} parent=11 // pred_check
        %p340 = pneg %p206
      $region26: #{pixelcnn_layer_down.8} parent=11 // pred_check_branch
        %342 = sbr.rel (%p340) target = $region28
      $region27: #{pixelcnn_layer_down.8} parent=11 // pred_region
        _
      $region28: #{pixelcnn_layer_down.8} parent=11 // pred_fallthru
        _
      // Predicated region
      $region29: #{pixelcnn_layer_down.8} parent=11 // pred_check
        %p343 = pneg %p227
      $region30: #{pixelcnn_layer_down.8} parent=11 // pred_check_branch
        %345 = sbr.rel (%p343) target = $region32
      $region31: #{pixelcnn_layer_down.8} parent=11 // pred_region
        _
      $region32: #{pixelcnn_layer_down.8} parent=11 // pred_fallthru
        _
      // Predicated region
      $region33: #{pixelcnn_layer_down.8} parent=11 // pred_check
        %p346 = pneg %p248
      $region34: #{pixelcnn_layer_down.8} parent=11 // pred_check_branch
        %348 = sbr.rel (%p346) target = $region36
      $region35: #{pixelcnn_layer_down.8} parent=11 // pred_region
        _
      $region36: #{pixelcnn_layer_down.8} parent=11 // pred_fallthru
        _
      // Predicated region
      $region37: #{pixelcnn_layer_down.8} parent=11 // pred_check
        %p349 = pneg %p269
      $region38: #{pixelcnn_layer_down.8} parent=11 // pred_check_branch
        %351 = sbr.rel (%p349) target = $region40
      $region39: #{pixelcnn_layer_down.8} parent=11 // pred_region
        _
      $region40: #{pixelcnn_layer_down.8} parent=11 // pred_fallthru
        _
      // Predicated region
      $region41: #{pixelcnn_layer_down.8} parent=11 // pred_check
        %p352 = pneg %p290
      $region42: #{pixelcnn_layer_down.8} parent=11 // pred_check_branch
        %354 = sbr.rel (%p352) target = $region44
      $region43: #{pixelcnn_layer_down.8} parent=11 // pred_region
        _
      $region44: #{pixelcnn_layer_down.8} parent=11 // pred_fallthru
        _
    $region12: #{pixelcnn_layer_down.8} parent=5 // pred_fallthru
      _
    %p355 = scmp.lt.s32.totalorder %s18, 2
    // Predicated region
    $region45: #{pixelcnn_layer_down.8} parent=5 // pred_check
      %p356 = pneg %p355
    $region46: #{pixelcnn_layer_down.8} parent=5 // pred_check_branch
      %358 = sbr.rel (%p356) target = $region48
    $region47: #{pixelcnn_layer_down.8} parent=5 // pred_region
      // Predicated region
      $region49: #{pixelcnn_layer_down.8} parent=47 // pred_check
        %p359 = pneg %p38
      $region50: #{pixelcnn_layer_down.8} parent=47 // pred_check_branch
        %361 = sbr.rel (%p359) target = $region52
      $region51: #{pixelcnn_layer_down.8} parent=47 // pred_region
        %p362 = scmp.lt.s32.totalorder %s18, 1
        %s363 = scalar_select %p362, %s18, 1
        %s364 = smul.addr %s363, 8
        %s365 = smul.addr %s364, 8
        %s366 = scalar_lea.vmem %s0, %s365
      $region52: #{pixelcnn_layer_down.8} parent=47 // pred_fallthru
        _
      // Predicated region
      $region53: #{pixelcnn_layer_down.8} parent=47 // pred_check
        %p367 = pneg %p64
      $region54: #{pixelcnn_layer_down.8} parent=47 // pred_check_branch
        %369 = sbr.rel (%p367) target = $region56
      $region55: #{pixelcnn_layer_down.8} parent=47 // pred_region
        %p370 = scmp.lt.s32.totalorder %s18, 1
        %s371 = scalar_select %p370, %s18, 1
        %s372 = smul.addr %s371, 8
        %s373 = smul.addr %s372, 8
        %s374 = scalar_lea.vmem %s1, %s373
      $region56: #{pixelcnn_layer_down.8} parent=47 // pred_fallthru
        _
      // Predicated region
      $region57: #{pixelcnn_layer_down.8} parent=47 // pred_check
        %p375 = pneg %p90
      $region58: #{pixelcnn_layer_down.8} parent=47 // pred_check_branch
        %377 = sbr.rel (%p375) target = $region60
      $region59: #{pixelcnn_layer_down.8} parent=47 // pred_region
        %p378 = scmp.lt.s32.totalorder %s18, 1
        %s379 = scalar_select %p378, %s18, 1
        %s380 = smul.addr %s379, 8
        %s381 = smul.addr %s380, 8
        %s382 = scalar_lea.vmem %s2, %s381
      $region60: #{pixelcnn_layer_down.8} parent=47 // pred_fallthru
        _
      // Predicated region
      $region61: #{pixelcnn_layer_down.8} parent=47 // pred_check
        %p383 = pneg %p116
      $region62: #{pixelcnn_layer_down.8} parent=47 // pred_check_branch
        %385 = sbr.rel (%p383) target = $region64
      $region63: #{pixelcnn_layer_down.8} parent=47 // pred_region
        %p386 = scmp.lt.s32.totalorder %s18, 1
        %s387 = scalar_select %p386, %s18, 1
        %s388 = smul.addr %s387, 8
        %s389 = smul.addr %s388, 8
        %s390 = scalar_lea.vmem %s3, %s389
      $region64: #{pixelcnn_layer_down.8} parent=47 // pred_fallthru
        _
    $region48: #{pixelcnn_layer_down.8} parent=5 // pred_fallthru
      _
    %p391 = scmp.le.s32.totalorder 1, %s18
    %p392 = scmp.lt.s32.totalorder %s18, 3
    %p393 = pnand %p391, %p392
    %p394 = pneg %p393
    // Predicated region
    $region65: #{pixelcnn_layer_down.8} parent=5 // pred_check
      _
    $region66: #{pixelcnn_layer_down.8} parent=5 // pred_check_branch
      %396 = sbr.rel (%p393) target = $region68
    $region67: #{pixelcnn_layer_down.8} parent=5 // pred_region
      %s397 = ssub.s32 %s18, 1
      %p398 = scmp.lt.s32.totalorder %s23, 1
      %s399 = scalar_select %p398, %s23, 1
      %s400 = smul.addr %s399, 8
      %s401 = smul.addr %s400, 8
      %s402 = scalar_lea.vmem %s0, %s401
      %p403 = pneg %p44
      %p404 = pneg %p41
      %p405 = scmp.lt.s32.totalorder %s23, 1
      %s406 = scalar_select %p405, %s23, 1
      %s407 = smul.addr %s406, 8
      %s408 = smul.addr %s407, 8
      %s409 = scalar_lea.vmem %s1, %s408
      %p410 = pneg %p70
      %p411 = pneg %p67
      %p412 = scmp.lt.s32.totalorder %s23, 1
      %s413 = scalar_select %p412, %s23, 1
      %s414 = smul.addr %s413, 8
      %s415 = smul.addr %s414, 8
      %s416 = scalar_lea.vmem %s2, %s415
      %p417 = pneg %p96
      %p418 = pneg %p93
      %p419 = scmp.lt.s32.totalorder %s23, 1
      %s420 = scalar_select %p419, %s23, 1
      %s421 = smul.addr %s420, 8
      %s422 = smul.addr %s421, 8
      %s423 = scalar_lea.vmem %s3, %s422
      %p424 = pneg %p122
      %p425 = pneg %p119
      %p426 = pneg %p143
      %p427 = pneg %p140
      %p428 = pneg %p164
      %p429 = pneg %p161
      %p430 = pneg %p185
      %p431 = pneg %p182
      %p432 = pneg %p206
      %p433 = pneg %p203
      %p434 = pneg %p227
      %p435 = pneg %p224
      %p436 = pneg %p248
      %p437 = pneg %p245
      %p438 = pneg %p269
      %p439 = pneg %p266
      %p440 = pneg %p290
      %p441 = pneg %p287
      %p442 = pneg %p316
      %p443 = pneg %p313
      %p444 = scmp.lt.s32.totalorder %s23, 1
      %s445 = scalar_select %p444, %s23, 1
      %s446 = smul.addr %s445, 8
      %s447 = smul.addr %s446, 8
      %s448 = scalar_lea.vmem %s12, %s447
      %p449 = scmp.lt.s32.totalorder %s23, 1
      %s450 = scalar_select %p449, %s23, 1
      %s451 = smul.addr %s450, 8
      %s452 = smul.addr %s451, 8
      %s453 = scalar_lea.vmem %s0, %s452
      %p454 = scmp.lt.s32.totalorder %s23, 1
      %s455 = scalar_select %p454, %s23, 1
      %s456 = smul.addr %s455, 8
      %s457 = smul.addr %s456, 8
      %s458 = scalar_lea.vmem %s1, %s457
      %p459 = scmp.lt.s32.totalorder %s23, 1
      %s460 = scalar_select %p459, %s23, 1
      %s461 = smul.addr %s460, 8
      %s462 = smul.addr %s461, 8
      %s463 = scalar_lea.vmem %s2, %s462
      %p464 = scmp.lt.s32.totalorder %s23, 1
      %s465 = scalar_select %p464, %s23, 1
      %s466 = smul.addr %s465, 8
      %s467 = smul.addr %s466, 8
      %s468 = scalar_lea.vmem %s3, %s467
      %p469 = scmp.lt.s32.totalorder %s23, 1
      %s470 = scalar_select %p469, %s23, 1
      %s471 = smul.addr %s470, 8
      %s472 = smul.addr %s471, 8
      %s473 = scalar_lea.vmem %s12, %s472
      %v475 = vld [vmem:[%s453] sm:$0xff]
      %v476 = vld [vmem:[%s453 + $0x8] sm:$0xff]
      %v477 = vld [vmem:[%s453 + $0x10] sm:$0xff]
      %v478 = vld [vmem:[%s453 + $0x18] sm:$0xff]
      %v479 = vld [vmem:[%s453 + $0x20] sm:$0xff]
      %v480 = vld [vmem:[%s453 + $0x28] sm:$0xff]
      %v481 = vld [vmem:[%s453 + $0x30] sm:$0xff]
      %v482 = vld [vmem:[%s453 + $0x38] sm:$0xff]
      %v483 = vand.u32 2147483647, %v475
      %v484 = vand.u32 2147483647, %v476
      %v485 = vand.u32 2147483647, %v477
      %v486 = vand.u32 2147483647, %v478
      %v487 = vand.u32 2147483647, %v479
      %v488 = vand.u32 2147483647, %v480
      %v489 = vand.u32 2147483647, %v481
      %v490 = vand.u32 2147483647, %v482
      %v491 = vsub.f32 0.0, %v483
      %v492 = vsub.f32 0.0, %v484
      %v493 = vsub.f32 0.0, %v485
      %v494 = vsub.f32 0.0, %v486
      %v495 = vsub.f32 0.0, %v487
      %v496 = vsub.f32 0.0, %v488
      %v497 = vsub.f32 0.0, %v489
      %v498 = vsub.f32 0.0, %v490
      %v499 = vmul.f32 %v491, 1.442695
      %v500 = vpow.pop %v499
      %v501 = vmul.f32 %v492, 1.442695
      %v502 = vpow.pop %v501
      %v503 = vmul.f32 %v493, 1.442695
      %v504 = vpow.pop %v503
      %v505 = vmul.f32 %v494, 1.442695
      %v506 = vpow.pop %v505
      %v507 = vmul.f32 %v495, 1.442695
      %v508 = vpow.pop %v507
      %v509 = vmul.f32 %v496, 1.442695
      %v510 = vpow.pop %v509
      %v511 = vmul.f32 %v497, 1.442695
      %v512 = vpow.pop %v511
      %v513 = vmul.f32 %v498, 1.442695
      %v514 = vpow.pop %v513
      %v515 = vsub.f32 %v500, 1.0
      %v516 = vsub.f32 %v502, 1.0
      %v517 = vsub.f32 %v504, 1.0
      %v518 = vsub.f32 %v506, 1.0
      %v519 = vsub.f32 %v508, 1.0
      %v520 = vsub.f32 %v510, 1.0
      %v521 = vsub.f32 %v512, 1.0
      %v522 = vsub.f32 %v514, 1.0
      %vm523 = vcmp.gt.f32.partialorder %v475, 0.0
      %vm524 = vcmp.gt.f32.partialorder %v476, 0.0
      %vm525 = vcmp.gt.f32.partialorder %v477, 0.0
      %vm526 = vcmp.gt.f32.partialorder %v478, 0.0
      %vm527 = vcmp.gt.f32.partialorder %v479, 0.0
      %vm528 = vcmp.gt.f32.partialorder %v480, 0.0
      %vm529 = vcmp.gt.f32.partialorder %v481, 0.0
      %vm530 = vcmp.gt.f32.partialorder %v482, 0.0
      %v531 = vsel %vm523, %v475, %v515
      %v532 = vsel %vm524, %v476, %v516
      %v533 = vsel %vm525, %v477, %v517
      %v534 = vsel %vm526, %v478, %v518
      %v535 = vsel %vm527, %v479, %v519
      %v536 = vsel %vm528, %v480, %v520
      %v537 = vsel %vm529, %v481, %v521
      %v538 = vsel %vm530, %v482, %v522
      %v539 = vsub.f32 0.0, %v475
      %v540 = vsub.f32 0.0, %v476
      %v541 = vsub.f32 0.0, %v477
      %v542 = vsub.f32 0.0, %v478
      %v543 = vsub.f32 0.0, %v479
      %v544 = vsub.f32 0.0, %v480
      %v545 = vsub.f32 0.0, %v481
      %v546 = vsub.f32 0.0, %v482
      %v547 = vsel %vm523, %v515, %v539
      %v548 = vsel %vm524, %v516, %v540
      %v549 = vsel %vm525, %v517, %v541
      %v550 = vsel %vm526, %v518, %v542
      %v551 = vsel %vm527, %v519, %v543
      %v552 = vsel %vm528, %v520, %v544
      %v553 = vsel %vm529, %v521, %v545
      %v554 = vsel %vm530, %v522, %v546
      %563 = vrot.lane.b32.xlu0 %v547, 32
      %v564 = vpop.permute.xlu0 %563
      %565 = vrot.lane.b32.xlu0 %v548, 32
      %v566 = vpop.permute.xlu0 %565
      %567 = vrot.lane.b32.xlu0 %v549, 32
      %v568 = vpop.permute.xlu0 %567
      %569 = vrot.lane.b32.xlu0 %v550, 32
      %v570 = vpop.permute.xlu0 %569
      %571 = vrot.lane.b32.xlu0 %v551, 32
      %v572 = vpop.permute.xlu0 %571
      %573 = vrot.lane.b32.xlu0 %v552, 32
      %v574 = vpop.permute.xlu0 %573
      %575 = vrot.lane.b32.xlu0 %v553, 32
      %v576 = vpop.permute.xlu0 %575
      %577 = vrot.lane.b32.xlu0 %v554, 32
      %v578 = vpop.permute.xlu0 %577
      %vm587 = vcmask 261120
      %v588 = vsel %vm587, %v531, %v564
      %v589 = vsel %vm587, %v532, %v566
      %v590 = vsel %vm587, %v533, %v568
      %v591 = vsel %vm587, %v534, %v570
      %v592 = vsel %vm587, %v535, %v572
      %v593 = vsel %vm587, %v536, %v574
      %v594 = vsel %vm587, %v537, %v576
      %v595 = vsel %vm587, %v538, %v578
      %v604 = vrot.slane 0.0, 7
      %v605 = vrot.slane %v588, 7
      %v606 = vrot.slane %v589, 7
      %v607 = vrot.slane %v590, 7
      %v608 = vrot.slane %v591, 7
      %v609 = vrot.slane %v592, 7
      %v610 = vrot.slane %v593, 7
      %v611 = vrot.slane %v594, 7
      %vm620 = vcmask 1040384
      %v621 = vsel %vm620, 0.0, %v604
      %v622 = vsel %vm620, 0.0, %v605
      %v623 = vsel %vm620, 0.0, %v606
      %v624 = vsel %vm620, 0.0, %v607
      %v625 = vsel %vm620, 0.0, %v608
      %v626 = vsel %vm620, 0.0, %v609
      %v627 = vsel %vm620, 0.0, %v610
      %v628 = vsel %vm620, 0.0, %v611
      %v629 = vpack.c.bf16 %v622, %v621
      %v630 = vpack.c.bf16 %v624, %v623
      %v631 = vpack.c.bf16 %v626, %v625
      %v632 = vpack.c.bf16 %v628, %v627
      %v633 = vld [vmem:[%s4] sm:$0xf]
      %v634 = vld [vmem:[%s4 + $0x4] sm:$0xf]
      %v635 = vld [vmem:[%s4 + $0x8] sm:$0xf]
      %v636 = vld [vmem:[%s4 + $0xc] sm:$0xf]
      %v637 = vld [vmem:[%s4 + $0x10] sm:$0xf]
      %v638 = vld [vmem:[%s4 + $0x14] sm:$0xf]
      %v639 = vld [vmem:[%s4 + $0x18] sm:$0xf]
      %v640 = vld [vmem:[%s4 + $0x1c] sm:$0xf]
      %v641 = vpack.c.bf16 %v588, 0.0
      %v642 = vpack.c.bf16 %v590, %v589
      %v643 = vpack.c.bf16 %v592, %v591
      %v644 = vpack.c.bf16 %v594, %v593
      %v645 = vld [vmem:[%s4 + $0x20] sm:$0xf]
      %v646 = vld [vmem:[%s4 + $0x24] sm:$0xf]
      %v647 = vld [vmem:[%s4 + $0x28] sm:$0xf]
      %v648 = vld [vmem:[%s4 + $0x2c] sm:$0xf]
      %v649 = vld [vmem:[%s4 + $0x30] sm:$0xf]
      %v650 = vld [vmem:[%s4 + $0x34] sm:$0xf]
      %v651 = vld [vmem:[%s4 + $0x38] sm:$0xf]
      %v652 = vld [vmem:[%s4 + $0x3c] sm:$0xf]
      %v661 = vunpack.c.l.b16 %v645
      %v662 = vunpack.c.l.b16 %v646
      %v663 = vunpack.c.l.b16 %v647
      %v664 = vunpack.c.l.b16 %v648
      %v665 = vunpack.c.l.b16 %v649
      %v666 = vunpack.c.l.b16 %v650
      %v667 = vunpack.c.l.b16 %v651
      %v668 = vunpack.c.l.b16 %v652
      %v669 = vpack.c.b16 %v662, %v661
      %v670 = vpack.c.b16 %v664, %v663
      %v671 = vpack.c.b16 %v666, %v665
      %v672 = vpack.c.b16 %v668, %v667
      %vm677 = vcmask 523264
      %v679 = vsel %vm677, %v641, 0
      %v682 = vsel %vm677, %v642, 0
      %v685 = vsel %vm677, %v643, 0
      %v688 = vsel %vm677, %v644, 0
      %690 = vmatprep.subr.bf16.mxu0 0
      %691 = vmatpush1.bf16.msra.mxu0 %v669
      %692 = vmatprep.subr.bf16.mxu0 0
      %693 = vmatpush1.bf16.msra.mxu0 %v670
      %694 = vmatprep.subr.bf16.mxu0 0
      %695 = vmatpush1.bf16.msra.mxu0 %v671
      %696 = vmatprep.subr.bf16.mxu0 0
      %697 = vmatpush1.bf16.msra.mxu0 %v672
      %698 = vmatprep.subr.bf16.mxu0 0
      %699 = vmatpush1.bf16.msra.mxu0 0
      %700 = vmatprep.subr.bf16.mxu0 0
      %701 = vmatpush1.bf16.msra.mxu0 0
      %702 = vmatprep.subr.bf16.mxu0 0
      %703 = vmatpush1.bf16.msra.mxu0 0
      %704 = vmatprep.subr.bf16.mxu0 0
      %705 = vmatpush1.bf16.msra.mxu0 0
      %706 = vmatprep.subr.bf16.mxu0 0
      %707 = vmatpush1.bf16.msra.mxu0 0
      %708 = vmatprep.subr.bf16.mxu0 0
      %709 = vmatpush1.bf16.msra.mxu0 0
      %710 = vmatprep.subr.bf16.mxu0 0
      %711 = vmatpush1.bf16.msra.mxu0 0
      %712 = vmatprep.subr.bf16.mxu0 0
      %713 = vmatpush1.bf16.msra.mxu0 0
      %714 = vmatprep.subr.bf16.mxu0 0
      %715 = vmatpush1.bf16.msra.mxu0 0
      %716 = vmatprep.subr.bf16.mxu0 0
      %717 = vmatpush1.bf16.msra.mxu0 0
      %718 = vmatprep.subr.bf16.mxu0 0
      %719 = vmatpush1.bf16.msra.mxu0 0
      %720 = vmatprep.subr.bf16.mxu0 0
      %721 = vmatpush1.bf16.msra.mxu0 0
      %722 = vmatprep.mubr.bf16.mxu0 0
      %723 = vmatmul.mubr.bf16.gmra.mrb[0].mxu0 %v679
      %v724 = vpop.f32.mrb[0].mxu0
      %v725 = vadd.f32 0.0, %v724
      %v726 = vpop.f32.mrb[0].mxu0
      %v727 = vpop.f32.mrb[0].mxu0
      %v728 = vadd.f32 0.0, %v727
      %v729 = vpop.f32.mrb[0].mxu0
      %730 = vmatprep.mubr.bf16.mxu0 0
      %731 = vmatmul.mubr.bf16.gmra.mrb[0].mxu0 %v682
      %v732 = vpop.f32.mrb[0].mxu0
      %v733 = vadd.f32 0.0, %v732
      %v734 = vpop.f32.mrb[0].mxu0
      %v735 = vpop.f32.mrb[0].mxu0
      %v736 = vadd.f32 0.0, %v735
      %v737 = vpop.f32.mrb[0].mxu0
      %738 = vmatprep.mubr.bf16.mxu0 0
      %739 = vmatmul.mubr.bf16.gmra.mrb[0].mxu0 %v685
      %v740 = vpop.f32.mrb[0].mxu0
      %v741 = vadd.f32 0.0, %v740
      %v742 = vpop.f32.mrb[0].mxu0
      %v743 = vpop.f32.mrb[0].mxu0
      %v744 = vadd.f32 0.0, %v743
      %v745 = vpop.f32.mrb[0].mxu0
      %746 = vmatprep.mubr.bf16.mxu0 0
      %747 = vmatmul.mubr.bf16.gmra.mrb[0].mxu0 %v688
      %v748 = vpop.f32.mrb[0].mxu0
      %v749 = vadd.f32 0.0, %v748
      %v750 = vpop.f32.mrb[0].mxu0
      %v751 = vpop.f32.mrb[0].mxu0
      %v752 = vadd.f32 0.0, %v751
      %v753 = vpop.f32.mrb[0].mxu0
      %754 = vdwg.mxu0
      %v763 = vunpack.c.l.b16 %v633
      %v764 = vunpack.c.l.b16 %v634
      %v765 = vunpack.c.l.b16 %v635
      %v766 = vunpack.c.l.b16 %v636
      %v767 = vunpack.c.l.b16 %v637
      %v768 = vunpack.c.l.b16 %v638
      %v769 = vunpack.c.l.b16 %v639
      %v770 = vunpack.c.l.b16 %v640
      %v771 = vpack.c.b16 %v764, %v763
      %v772 = vpack.c.b16 %v766, %v765
      %v773 = vpack.c.b16 %v768, %v767
      %v774 = vpack.c.b16 %v770, %v769
      %v780 = vsel %vm677, %v629, 0
      %v783 = vsel %vm677, %v630, 0
      %v786 = vsel %vm677, %v631, 0
      %v789 = vsel %vm677, %v632, 0
      %791 = vmatprep.subr.bf16.mxu0 0
      %792 = vmatpush1.bf16.msra.mxu0 %v771
      %793 = vmatprep.subr.bf16.mxu0 0
      %794 = vmatpush1.bf16.msra.mxu0 %v772
      %795 = vmatprep.subr.bf16.mxu0 0
      %796 = vmatpush1.bf16.msra.mxu0 %v773
      %797 = vmatprep.subr.bf16.mxu0 0
      %798 = vmatpush1.bf16.msra.mxu0 %v774
      %799 = vmatprep.subr.bf16.mxu0 0
      %800 = vmatpush1.bf16.msra.mxu0 0
      %801 = vmatprep.subr.bf16.mxu0 0
      %802 = vmatpush1.bf16.msra.mxu0 0
      %803 = vmatprep.subr.bf16.mxu0 0
      %804 = vmatpush1.bf16.msra.mxu0 0
      %805 = vmatprep.subr.bf16.mxu0 0
      %806 = vmatpush1.bf16.msra.mxu0 0
      %807 = vmatprep.subr.bf16.mxu0 0
      %808 = vmatpush1.bf16.msra.mxu0 0
      %809 = vmatprep.subr.bf16.mxu0 0
      %810 = vmatpush1.bf16.msra.mxu0 0
      %811 = vmatprep.subr.bf16.mxu0 0
      %812 = vmatpush1.bf16.msra.mxu0 0
      %813 = vmatprep.subr.bf16.mxu0 0
      %814 = vmatpush1.bf16.msra.mxu0 0
      %815 = vmatprep.subr.bf16.mxu0 0
      %816 = vmatpush1.bf16.msra.mxu0 0
      %817 = vmatprep.subr.bf16.mxu0 0
      %818 = vmatpush1.bf16.msra.mxu0 0
      %819 = vmatprep.subr.bf16.mxu0 0
      %820 = vmatpush1.bf16.msra.mxu0 0
      %821 = vmatprep.subr.bf16.mxu0 0
      %822 = vmatpush1.bf16.msra.mxu0 0
      %823 = vmatprep.mubr.bf16.mxu0 0
      %824 = vmatmul.mubr.bf16.gmra.mrb[0].mxu0 %v780
      %v825 = vpop.f32.mrb[0].mxu0
      %v826 = vadd.f32 %v725, %v825
      %v827 = vpop.f32.mrb[0].mxu0
      %v828 = vpop.f32.mrb[0].mxu0
      %v829 = vadd.f32 %v728, %v828
      %v830 = vpop.f32.mrb[0].mxu0
      %831 = vmatprep.mubr.bf16.mxu0 0
      %832 = vmatmul.mubr.bf16.gmra.mrb[0].mxu0 %v783
      %v833 = vpop.f32.mrb[0].mxu0
      %v834 = vadd.f32 %v733, %v833
      %v835 = vpop.f32.mrb[0].mxu0
      %v836 = vpop.f32.mrb[0].mxu0
      %v837 = vadd.f32 %v736, %v836
      %v838 = vpop.f32.mrb[0].mxu0
      %839 = vmatprep.mubr.bf16.mxu0 0
      %840 = vmatmul.mubr.bf16.gmra.mrb[0].mxu0 %v786
      %v841 = vpop.f32.mrb[0].mxu0
      %v842 = vadd.f32 %v741, %v841
      %v843 = vpop.f32.mrb[0].mxu0
      %v844 = vpop.f32.mrb[0].mxu0
      %v845 = vadd.f32 %v744, %v844
      %v846 = vpop.f32.mrb[0].mxu0
      %847 = vmatprep.mubr.bf16.mxu0 0
      %848 = vmatmul.mubr.bf16.gmra.mrb[0].mxu0 %v789
      %v849 = vpop.f32.mrb[0].mxu0
      %v850 = vadd.f32 %v749, %v849
      %v851 = vpop.f32.mrb[0].mxu0
      %v852 = vpop.f32.mrb[0].mxu0
      %v853 = vadd.f32 %v752, %v852
      %v854 = vpop.f32.mrb[0].mxu0
      %855 = vdwg.mxu0
      %v857 = vrot.slane %v595, 7
      %v859 = vsel %vm620, 0.0, %v857
      %v860 = vpack.c.bf16 %v623, %v622
      %v861 = vpack.c.bf16 %v625, %v624
      %v862 = vpack.c.bf16 %v627, %v626
      %v863 = vpack.c.bf16 %v859, %v628
      %v864 = vld [vmem:[%s4 + $0x40] sm:$0xf]
      %v865 = vld [vmem:[%s4 + $0x44] sm:$0xf]
      %v866 = vld [vmem:[%s4 + $0x48] sm:$0xf]
      %v867 = vld [vmem:[%s4 + $0x4c] sm:$0xf]
      %v868 = vld [vmem:[%s4 + $0x50] sm:$0xf]
      %v869 = vld [vmem:[%s4 + $0x54] sm:$0xf]
      %v870 = vld [vmem:[%s4 + $0x58] sm:$0xf]
      %v871 = vld [vmem:[%s4 + $0x5c] sm:$0xf]
      %v880 = vunpack.c.l.b16 %v864
      %v881 = vunpack.c.l.b16 %v865
      %v882 = vunpack.c.l.b16 %v866
      %v883 = vunpack.c.l.b16 %v867
      %v884 = vunpack.c.l.b16 %v868
      %v885 = vunpack.c.l.b16 %v869
      %v886 = vunpack.c.l.b16 %v870
      %v887 = vunpack.c.l.b16 %v871
      %v888 = vpack.c.b16 %v881, %v880
      %v889 = vpack.c.b16 %v883, %v882
      %v890 = vpack.c.b16 %v885, %v884
      %v891 = vpack.c.b16 %v887, %v886
      %v897 = vsel %vm677, %v860, 0
      %v900 = vsel %vm677, %v861, 0
      %v903 = vsel %vm677, %v862, 0
      %v906 = vsel %vm677, %v863, 0
      %908 = vmatprep.subr.bf16.mxu0 0
      %909 = vmatpush1.bf16.msra.mxu0 %v888
      %910 = vmatprep.subr.bf16.mxu0 0
      %911 = vmatpush1.bf16.msra.mxu0 %v889
      %912 = vmatprep.subr.bf16.mxu0 0
      %913 = vmatpush1.bf16.msra.mxu0 %v890
      %914 = vmatprep.subr.bf16.mxu0 0
      %915 = vmatpush1.bf16.msra.mxu0 %v891
      %916 = vmatprep.subr.bf16.mxu0 0
      %917 = vmatpush1.bf16.msra.mxu0 0
      %918 = vmatprep.subr.bf16.mxu0 0
      %919 = vmatpush1.bf16.msra.mxu0 0
      %920 = vmatprep.subr.bf16.mxu0 0
      %921 = vmatpush1.bf16.msra.mxu0 0
      %922 = vmatprep.subr.bf16.mxu0 0
      %923 = vmatpush1.bf16.msra.mxu0 0
      %924 = vmatprep.subr.bf16.mxu0 0
      %925 = vmatpush1.bf16.msra.mxu0 0
      %926 = vmatprep.subr.bf16.mxu0 0
      %927 = vmatpush1.bf16.msra.mxu0 0
      %928 = vmatprep.subr.bf16.mxu0 0
      %929 = vmatpush1.bf16.msra.mxu0 0
      %930 = vmatprep.subr.bf16.mxu0 0
      %931 = vmatpush1.bf16.msra.mxu0 0
      %932 = vmatprep.subr.bf16.mxu0 0
      %933 = vmatpush1.bf16.msra.mxu0 0
      %934 = vmatprep.subr.bf16.mxu0 0
      %935 = vmatpush1.bf16.msra.mxu0 0
      %936 = vmatprep.subr.bf16.mxu0 0
      %937 = vmatpush1.bf16.msra.mxu0 0
      %938 = vmatprep.subr.bf16.mxu0 0
      %939 = vmatpush1.bf16.msra.mxu0 0
      %940 = vmatprep.mubr.bf16.mxu0 0
      %941 = vmatmul.mubr.bf16.gmra.mrb[0].mxu0 %v897
      %v942 = vpop.f32.mrb[0].mxu0
      %v943 = vadd.f32 0.0, %v942
      %v944 = vpop.f32.mrb[0].mxu0
      %v945 = vpop.f32.mrb[0].mxu0
      %v946 = vadd.f32 0.0, %v945
      %v947 = vpop.f32.mrb[0].mxu0
      %948 = vmatprep.mubr.bf16.mxu0 0
      %949 = vmatmul.mubr.bf16.gmra.mrb[0].mxu0 %v900
      %v950 = vpop.f32.mrb[0].mxu0
      %v951 = vadd.f32 0.0, %v950
      %v952 = vpop.f32.mrb[0].mxu0
      %v953 = vpop.f32.mrb[0].mxu0
      %v954 = vadd.f32 0.0, %v953
      %v955 = vpop.f32.mrb[0].mxu0
      %956 = vmatprep.mubr.bf16.mxu0 0
      %957 = vmatmul.mubr.bf16.gmra.mrb[0].mxu0 %v903
      %v958 = vpop.f32.mrb[0].mxu0
      %v959 = vadd.f32 0.0, %v958
      %v960 = vpop.f32.mrb[0].mxu0
      %v961 = vpop.f32.mrb[0].mxu0
      %v962 = vadd.f32 0.0, %v961
      %v963 = vpop.f32.mrb[0].mxu0
      %964 = vmatprep.mubr.bf16.mxu0 0
      %965 = vmatmul.mubr.bf16.gmra.mrb[0].mxu0 %v906
      %v966 = vpop.f32.mrb[0].mxu0
      %v967 = vadd.f32 0.0, %v966
      %v968 = vpop.f32.mrb[0].mxu0
      %v969 = vpop.f32.mrb[0].mxu0
      %v970 = vadd.f32 0.0, %v969
      %v971 = vpop.f32.mrb[0].mxu0
      %972 = vdwg.mxu0
      %v973 = vadd.f32 %v826, %v943
      %v974 = vadd.f32 %v829, %v946
      %v975 = vadd.f32 %v834, %v951
      %v976 = vadd.f32 %v837, %v954
      %v977 = vadd.f32 %v842, %v959
      %v978 = vadd.f32 %v845, %v962
      %v979 = vadd.f32 %v850, %v967
      %v980 = vadd.f32 %v853, %v970
      %v981 = vpack.c.bf16 %v589, %v588
      %v982 = vpack.c.bf16 %v591, %v590
      %v983 = vpack.c.bf16 %v593, %v592
      %v984 = vpack.c.bf16 %v595, %v594
      %v985 = vld [vmem:[%s4 + $0x60] sm:$0xf]
      %v986 = vld [vmem:[%s4 + $0x64] sm:$0xf]
      %v987 = vld [vmem:[%s4 + $0x68] sm:$0xf]
      %v988 = vld [vmem:[%s4 + $0x6c] sm:$0xf]
      %v989 = vld [vmem:[%s4 + $0x70] sm:$0xf]
      %v990 = vld [vmem:[%s4 + $0x74] sm:$0xf]
      %v991 = vld [vmem:[%s4 + $0x78] sm:$0xf]
      %v992 = vld [vmem:[%s4 + $0x7c] sm:$0xf]
      %v1001 = vunpack.c.l.b16 %v985
      %v1002 = vunpack.c.l.b16 %v986
      %v1003 = vunpack.c.l.b16 %v987
      %v1004 = vunpack.c.l.b16 %v988
      %v1005 = vunpack.c.l.b16 %v989
      %v1006 = vunpack.c.l.b16 %v990
      %v1007 = vunpack.c.l.b16 %v991
      %v1008 = vunpack.c.l.b16 %v992
      %v1009 = vpack.c.b16 %v1002, %v1001
      %v1010 = vpack.c.b16 %v1004, %v1003
      %v1011 = vpack.c.b16 %v1006, %v1005
      %v1012 = vpack.c.b16 %v1008, %v1007
      %v1018 = vsel %vm677, %v981, 0
      %v1021 = vsel %vm677, %v982, 0
      %v1024 = vsel %vm677, %v983, 0
      %v1027 = vsel %vm677, %v984, 0
      %1029 = vmatprep.subr.bf16.mxu0 0
      %1030 = vmatpush1.bf16.msra.mxu0 %v1009
      %1031 = vmatprep.subr.bf16.mxu0 0
      %1032 = vmatpush1.bf16.msra.mxu0 %v1010
      %1033 = vmatprep.subr.bf16.mxu0 0
      %1034 = vmatpush1.bf16.msra.mxu0 %v1011
      %1035 = vmatprep.subr.bf16.mxu0 0
      %1036 = vmatpush1.bf16.msra.mxu0 %v1012
      %1037 = vmatprep.subr.bf16.mxu0 0
      %1038 = vmatpush1.bf16.msra.mxu0 0
      %1039 = vmatprep.subr.bf16.mxu0 0
      %1040 = vmatpush1.bf16.msra.mxu0 0
      %1041 = vmatprep.subr.bf16.mxu0 0
      %1042 = vmatpush1.bf16.msra.mxu0 0
      %1043 = vmatprep.subr.bf16.mxu0 0
      %1044 = vmatpush1.bf16.msra.mxu0 0
      %1045 = vmatprep.subr.bf16.mxu0 0
      %1046 = vmatpush1.bf16.msra.mxu0 0
      %1047 = vmatprep.subr.bf16.mxu0 0
      %1048 = vmatpush1.bf16.msra.mxu0 0
      %1049 = vmatprep.subr.bf16.mxu0 0
      %1050 = vmatpush1.bf16.msra.mxu0 0
      %1051 = vmatprep.subr.bf16.mxu0 0
      %1052 = vmatpush1.bf16.msra.mxu0 0
      %1053 = vmatprep.subr.bf16.mxu0 0
      %1054 = vmatpush1.bf16.msra.mxu0 0
      %1055 = vmatprep.subr.bf16.mxu0 0
      %1056 = vmatpush1.bf16.msra.mxu0 0
      %1057 = vmatprep.subr.bf16.mxu0 0
      %1058 = vmatpush1.bf16.msra.mxu0 0
      %1059 = vmatprep.subr.bf16.mxu0 0
      %1060 = vmatpush1.bf16.msra.mxu0 0
      %1061 = vmatprep.mubr.bf16.mxu0 0
      %1062 = vmatmul.mubr.bf16.gmra.mrb[0].mxu0 %v1018
      %v1063 = vpop.f32.mrb[0].mxu0
      %v1064 = vadd.f32 0.0, %v1063
      %v1065 = vpop.f32.mrb[0].mxu0
      %v1066 = vpop.f32.mrb[0].mxu0
      %v1067 = vadd.f32 0.0, %v1066
      %v1068 = vpop.f32.mrb[0].mxu0
      %1069 = vmatprep.mubr.bf16.mxu0 0
      %1070 = vmatmul.mubr.bf16.gmra.mrb[0].mxu0 %v1021
      %v1071 = vpop.f32.mrb[0].mxu0
      %v1072 = vadd.f32 0.0, %v1071
      %v1073 = vpop.f32.mrb[0].mxu0
      %v1074 = vpop.f32.mrb[0].mxu0
      %v1075 = vadd.f32 0.0, %v1074
      %v1076 = vpop.f32.mrb[0].mxu0
      %1077 = vmatprep.mubr.bf16.mxu0 0
      %1078 = vmatmul.mubr.bf16.gmra.mrb[0].mxu0 %v1024
      %v1079 = vpop.f32.mrb[0].mxu0
      %v1080 = vadd.f32 0.0, %v1079
      %v1081 = vpop.f32.mrb[0].mxu0
      %v1082 = vpop.f32.mrb[0].mxu0
      %v1083 = vadd.f32 0.0, %v1082
      %v1084 = vpop.f32.mrb[0].mxu0
      %1085 = vmatprep.mubr.bf16.mxu0 0
      %1086 = vmatmul.mubr.bf16.gmra.mrb[0].mxu0 %v1027
      %v1087 = vpop.f32.mrb[0].mxu0
      %v1088 = vadd.f32 0.0, %v1087
      %v1089 = vpop.f32.mrb[0].mxu0
      %v1090 = vpop.f32.mrb[0].mxu0
      %v1091 = vadd.f32 0.0, %v1090
      %v1092 = vpop.f32.mrb[0].mxu0
      %1093 = vdwg.mxu0
      %v1094 = vadd.f32 %v973, %v1064
      %v1095 = vadd.f32 %v974, %v1067
      %v1096 = vadd.f32 %v975, %v1072
      %v1097 = vadd.f32 %v976, %v1075
      %v1098 = vadd.f32 %v977, %v1080
      %v1099 = vadd.f32 %v978, %v1083
      %v1100 = vadd.f32 %v979, %v1088
      %v1101 = vadd.f32 %v980, %v1091
      %v1102 = vld [vmem:[%s458] sm:$0xff]
      %v1103 = vld [vmem:[%s458 + $0x8] sm:$0xff]
      %v1104 = vld [vmem:[%s458 + $0x10] sm:$0xff]
      %v1105 = vld [vmem:[%s458 + $0x18] sm:$0xff]
      %v1106 = vld [vmem:[%s458 + $0x20] sm:$0xff]
      %v1107 = vld [vmem:[%s458 + $0x28] sm:$0xff]
      %v1108 = vld [vmem:[%s458 + $0x30] sm:$0xff]
      %v1109 = vld [vmem:[%s458 + $0x38] sm:$0xff]
      %v1110 = vand.u32 2147483647, %v1102
      %v1111 = vand.u32 2147483647, %v1103
      %v1112 = vand.u32 2147483647, %v1104
      %v1113 = vand.u32 2147483647, %v1105
      %v1114 = vand.u32 2147483647, %v1106
      %v1115 = vand.u32 2147483647, %v1107
      %v1116 = vand.u32 2147483647, %v1108
      %v1117 = vand.u32 2147483647, %v1109
      %v1118 = vsub.f32 0.0, %v1110
      %v1119 = vsub.f32 0.0, %v1111
      %v1120 = vsub.f32 0.0, %v1112
      %v1121 = vsub.f32 0.0, %v1113
      %v1122 = vsub.f32 0.0, %v1114
      %v1123 = vsub.f32 0.0, %v1115
      %v1124 = vsub.f32 0.0, %v1116
      %v1125 = vsub.f32 0.0, %v1117
      %v1126 = vmul.f32 %v1118, 1.442695
      %v1127 = vpow.pop %v1126
      %v1128 = vmul.f32 %v1119, 1.442695
      %v1129 = vpow.pop %v1128
      %v1130 = vmul.f32 %v1120, 1.442695
      %v1131 = vpow.pop %v1130
      %v1132 = vmul.f32 %v1121, 1.442695
      %v1133 = vpow.pop %v1132
      %v1134 = vmul.f32 %v1122, 1.442695
      %v1135 = vpow.pop %v1134
      %v1136 = vmul.f32 %v1123, 1.442695
      %v1137 = vpow.pop %v1136
      %v1138 = vmul.f32 %v1124, 1.442695
      %v1139 = vpow.pop %v1138
      %v1140 = vmul.f32 %v1125, 1.442695
      %v1141 = vpow.pop %v1140
      %v1142 = vsub.f32 %v1127, 1.0
      %v1143 = vsub.f32 %v1129, 1.0
      %v1144 = vsub.f32 %v1131, 1.0
      %v1145 = vsub.f32 %v1133, 1.0
      %v1146 = vsub.f32 %v1135, 1.0
      %v1147 = vsub.f32 %v1137, 1.0
      %v1148 = vsub.f32 %v1139, 1.0
      %v1149 = vsub.f32 %v1141, 1.0
      %vm1150 = vcmp.gt.f32.partialorder %v1102, 0.0
      %vm1151 = vcmp.gt.f32.partialorder %v1103, 0.0
      %vm1152 = vcmp.gt.f32.partialorder %v1104, 0.0
      %vm1153 = vcmp.gt.f32.partialorder %v1105, 0.0
      %vm1154 = vcmp.gt.f32.partialorder %v1106, 0.0
      %vm1155 = vcmp.gt.f32.partialorder %v1107, 0.0
      %vm1156 = vcmp.gt.f32.partialorder %v1108, 0.0
      %vm1157 = vcmp.gt.f32.partialorder %v1109, 0.0
      %v1158 = vsel %vm1150, %v1102, %v1142
      %v1159 = vsel %vm1151, %v1103, %v1143
      %v1160 = vsel %vm1152, %v1104, %v1144
      %v1161 = vsel %vm1153, %v1105, %v1145
      %v1162 = vsel %vm1154, %v1106, %v1146
      %v1163 = vsel %vm1155, %v1107, %v1147
      %v1164 = vsel %vm1156, %v1108, %v1148
      %v1165 = vsel %vm1157, %v1109, %v1149
      %v1166 = vsub.f32 0.0, %v1102
      %v1167 = vsub.f32 0.0, %v1103
      %v1168 = vsub.f32 0.0, %v1104
      %v1169 = vsub.f32 0.0, %v1105
      %v1170 = vsub.f32 0.0, %v1106
      %v1171 = vsub.f32 0.0, %v1107
      %v1172 = vsub.f32 0.0, %v1108
      %v1173 = vsub.f32 0.0, %v1109
      %v1174 = vsel %vm1150, %v1142, %v1166
      %v1175 = vsel %vm1151, %v1143, %v1167
      %v1176 = vsel %vm1152, %v1144, %v1168
      %v1177 = vsel %vm1153, %v1145, %v1169
      %v1178 = vsel %vm1154, %v1146, %v1170
      %v1179 = vsel %vm1155, %v1147, %v1171
      %v1180 = vsel %vm1156, %v1148, %v1172
      %v1181 = vsel %vm1157, %v1149, %v1173
      %1190 = vrot.lane.b32.xlu0 %v1174, 32
      %v1191 = vpop.permute.xlu0 %1190
      %1192 = vrot.lane.b32.xlu0 %v1175, 32
      %v1193 = vpop.permute.xlu0 %1192
      %1194 = vrot.lane.b32.xlu0 %v1176, 32
      %v1195 = vpop.permute.xlu0 %1194
      %1196 = vrot.lane.b32.xlu0 %v1177, 32
      %v1197 = vpop.permute.xlu0 %1196
      %1198 = vrot.lane.b32.xlu0 %v1178, 32
      %v1199 = vpop.permute.xlu0 %1198
      %1200 = vrot.lane.b32.xlu0 %v1179, 32
      %v1201 = vpop.permute.xlu0 %1200
      %1202 = vrot.lane.b32.xlu0 %v1180, 32
      %v1203 = vpop.permute.xlu0 %1202
      %1204 = vrot.lane.b32.xlu0 %v1181, 32
      %v1205 = vpop.permute.xlu0 %1204
      %v1214 = vsel %vm587, %v1158, %v1191
      %v1215 = vsel %vm587, %v1159, %v1193
      %v1216 = vsel %vm587, %v1160, %v1195
      %v1217 = vsel %vm587, %v1161, %v1197
      %v1218 = vsel %vm587, %v1162, %v1199
      %v1219 = vsel %vm587, %v1163, %v1201
      %v1220 = vsel %vm587, %v1164, %v1203
      %v1221 = vsel %vm587, %v1165, %v1205
      %v1222 = vpack.c.bf16 %v1215, %v1214
      %v1223 = vpack.c.bf16 %v1217, %v1216
      %v1224 = vpack.c.bf16 %v1219, %v1218
      %v1225 = vpack.c.bf16 %v1221, %v1220
      %v1226 = vld [vmem:[%s5] sm:$0xf]
      %v1227 = vld [vmem:[%s5 + $0x4] sm:$0xf]
      %v1228 = vld [vmem:[%s5 + $0x8] sm:$0xf]
      %v1229 = vld [vmem:[%s5 + $0xc] sm:$0xf]
      %v1230 = vld [vmem:[%s5 + $0x10] sm:$0xf]
      %v1231 = vld [vmem:[%s5 + $0x14] sm:$0xf]
      %v1232 = vld [vmem:[%s5 + $0x18] sm:$0xf]
      %v1233 = vld [vmem:[%s5 + $0x1c] sm:$0xf]
      %v1242 = vunpack.c.l.b16 %v1226
      %v1243 = vunpack.c.l.b16 %v1227
      %v1244 = vunpack.c.l.b16 %v1228
      %v1245 = vunpack.c.l.b16 %v1229
      %v1246 = vunpack.c.l.b16 %v1230
      %v1247 = vunpack.c.l.b16 %v1231
      %v1248 = vunpack.c.l.b16 %v1232
      %v1249 = vunpack.c.l.b16 %v1233
      %v1250 = vpack.c.b16 %v1243, %v1242
      %v1251 = vpack.c.b16 %v1245, %v1244
      %v1252 = vpack.c.b16 %v1247, %v1246
      %v1253 = vpack.c.b16 %v1249, %v1248
      %v1259 = vsel %vm677, %v1222, 0
      %v1262 = vsel %vm677, %v1223, 0
      %v1265 = vsel %vm677, %v1224, 0
      %v1268 = vsel %vm677, %v1225, 0
      %1270 = vmatprep.subr.bf16.mxu0 0
      %1271 = vmatpush1.bf16.msra.mxu0 %v1250
      %1272 = vmatprep.subr.bf16.mxu0 0
      %1273 = vmatpush1.bf16.msra.mxu0 %v1251
      %1274 = vmatprep.subr.bf16.mxu0 0
      %1275 = vmatpush1.bf16.msra.mxu0 %v1252
      %1276 = vmatprep.subr.bf16.mxu0 0
      %1277 = vmatpush1.bf16.msra.mxu0 %v1253
      %1278 = vmatprep.subr.bf16.mxu0 0
      %1279 = vmatpush1.bf16.msra.mxu0 0
      %1280 = vmatprep.subr.bf16.mxu0 0
      %1281 = vmatpush1.bf16.msra.mxu0 0
      %1282 = vmatprep.subr.bf16.mxu0 0
      %1283 = vmatpush1.bf16.msra.mxu0 0
      %1284 = vmatprep.subr.bf16.mxu0 0
      %1285 = vmatpush1.bf16.msra.mxu0 0
      %1286 = vmatprep.subr.bf16.mxu0 0
      %1287 = vmatpush1.bf16.msra.mxu0 0
      %1288 = vmatprep.subr.bf16.mxu0 0
      %1289 = vmatpush1.bf16.msra.mxu0 0
      %1290 = vmatprep.subr.bf16.mxu0 0
      %1291 = vmatpush1.bf16.msra.mxu0 0
      %1292 = vmatprep.subr.bf16.mxu0 0
      %1293 = vmatpush1.bf16.msra.mxu0 0
      %1294 = vmatprep.subr.bf16.mxu0 0
      %1295 = vmatpush1.bf16.msra.mxu0 0
      %1296 = vmatprep.subr.bf16.mxu0 0
      %1297 = vmatpush1.bf16.msra.mxu0 0
      %1298 = vmatprep.subr.bf16.mxu0 0
      %1299 = vmatpush1.bf16.msra.mxu0 0
      %1300 = vmatprep.subr.bf16.mxu0 0
      %1301 = vmatpush1.bf16.msra.mxu0 0
      %1302 = vmatprep.mubr.bf16.mxu0 0
      %1303 = vmatmul.mubr.bf16.gmra.mrb[0].mxu0 %v1259
      %v1304 = vpop.f32.mrb[0].mxu0
      %v1305 = vadd.f32 0.0, %v1304
      %v1306 = vpop.f32.mrb[0].mxu0
      %v1307 = vpop.f32.mrb[0].mxu0
      %v1308 = vadd.f32 0.0, %v1307
      %v1309 = vpop.f32.mrb[0].mxu0
      %1310 = vmatprep.mubr.bf16.mxu0 0
      %1311 = vmatmul.mubr.bf16.gmra.mrb[0].mxu0 %v1262
      %v1312 = vpop.f32.mrb[0].mxu0
      %v1313 = vadd.f32 0.0, %v1312
      %v1314 = vpop.f32.mrb[0].mxu0
      %v1315 = vpop.f32.mrb[0].mxu0
      %v1316 = vadd.f32 0.0, %v1315
      %v1317 = vpop.f32.mrb[0].mxu0
      %1318 = vmatprep.mubr.bf16.mxu0 0
      %1319 = vmatmul.mubr.bf16.gmra.mrb[0].mxu0 %v1265
      %v1320 = vpop.f32.mrb[0].mxu0
      %v1321 = vadd.f32 0.0, %v1320
      %v1322 = vpop.f32.mrb[0].mxu0
      %v1323 = vpop.f32.mrb[0].mxu0
      %v1324 = vadd.f32 0.0, %v1323
      %v1325 = vpop.f32.mrb[0].mxu0
      %1326 = vmatprep.mubr.bf16.mxu0 0
      %1327 = vmatmul.mubr.bf16.gmra.mrb[0].mxu0 %v1268
      %v1328 = vpop.f32.mrb[0].mxu0
      %v1329 = vadd.f32 0.0, %v1328
      %v1330 = vpop.f32.mrb[0].mxu0
      %v1331 = vpop.f32.mrb[0].mxu0
      %v1332 = vadd.f32 0.0, %v1331
      %v1333 = vpop.f32.mrb[0].mxu0
      %1334 = vdwg.mxu0
      %v1335 = vadd.f32 %v1094, %v1305
      %v1336 = vadd.f32 %v1095, %v1308
      %v1337 = vadd.f32 %v1096, %v1313
      %v1338 = vadd.f32 %v1097, %v1316
      %v1339 = vadd.f32 %v1098, %v1321
      %v1340 = vadd.f32 %v1099, %v1324
      %v1341 = vadd.f32 %v1100, %v1329
      %v1342 = vadd.f32 %v1101, %v1332
      %v1343 = vld [vmem:[%s463] sm:$0xff]
      %v1344 = vld [vmem:[%s463 + $0x8] sm:$0xff]
      %v1345 = vld [vmem:[%s463 + $0x10] sm:$0xff]
      %v1346 = vld [vmem:[%s463 + $0x18] sm:$0xff]
      %v1347 = vld [vmem:[%s463 + $0x20] sm:$0xff]
      %v1348 = vld [vmem:[%s463 + $0x28] sm:$0xff]
      %v1349 = vld [vmem:[%s463 + $0x30] sm:$0xff]
      %v1350 = vld [vmem:[%s463 + $0x38] sm:$0xff]
      %v1351 = vand.u32 2147483647, %v1343
      %v1352 = vand.u32 2147483647, %v1344
      %v1353 = vand.u32 2147483647, %v1345
      %v1354 = vand.u32 2147483647, %v1346
      %v1355 = vand.u32 2147483647, %v1347
      %v1356 = vand.u32 2147483647, %v1348
      %v1357 = vand.u32 2147483647, %v1349
      %v1358 = vand.u32 2147483647, %v1350
      %v1359 = vsub.f32 0.0, %v1351
      %v1360 = vsub.f32 0.0, %v1352
      %v1361 = vsub.f32 0.0, %v1353
      %v1362 = vsub.f32 0.0, %v1354
      %v1363 = vsub.f32 0.0, %v1355
      %v1364 = vsub.f32 0.0, %v1356
      %v1365 = vsub.f32 0.0, %v1357
      %v1366 = vsub.f32 0.0, %v1358
      %v1367 = vmul.f32 %v1359, 1.442695
      %v1368 = vpow.pop %v1367
      %v1369 = vmul.f32 %v1360, 1.442695
      %v1370 = vpow.pop %v1369
      %v1371 = vmul.f32 %v1361, 1.442695
      %v1372 = vpow.pop %v1371
      %v1373 = vmul.f32 %v1362, 1.442695
      %v1374 = vpow.pop %v1373
      %v1375 = vmul.f32 %v1363, 1.442695
      %v1376 = vpow.pop %v1375
      %v1377 = vmul.f32 %v1364, 1.442695
      %v1378 = vpow.pop %v1377
      %v1379 = vmul.f32 %v1365, 1.442695
      %v1380 = vpow.pop %v1379
      %v1381 = vmul.f32 %v1366, 1.442695
      %v1382 = vpow.pop %v1381
      %v1383 = vsub.f32 %v1368, 1.0
      %v1384 = vsub.f32 %v1370, 1.0
      %v1385 = vsub.f32 %v1372, 1.0
      %v1386 = vsub.f32 %v1374, 1.0
      %v1387 = vsub.f32 %v1376, 1.0
      %v1388 = vsub.f32 %v1378, 1.0
      %v1389 = vsub.f32 %v1380, 1.0
      %v1390 = vsub.f32 %v1382, 1.0
      %vm1391 = vcmp.gt.f32.partialorder %v1343, 0.0
      %vm1392 = vcmp.gt.f32.partialorder %v1344, 0.0
      %vm1393 = vcmp.gt.f32.partialorder %v1345, 0.0
      %vm1394 = vcmp.gt.f32.partialorder %v1346, 0.0
      %vm1395 = vcmp.gt.f32.partialorder %v1347, 0.0
      %vm1396 = vcmp.gt.f32.partialorder %v1348, 0.0
      %vm1397 = vcmp.gt.f32.partialorder %v1349, 0.0
      %vm1398 = vcmp.gt.f32.partialorder %v1350, 0.0
      %v1399 = vsel %vm1391, %v1343, %v1383
      %v1400 = vsel %vm1392, %v1344, %v1384
      %v1401 = vsel %vm1393, %v1345, %v1385
      %v1402 = vsel %vm1394, %v1346, %v1386
      %v1403 = vsel %vm1395, %v1347, %v1387
      %v1404 = vsel %vm1396, %v1348, %v1388
      %v1405 = vsel %vm1397, %v1349, %v1389
      %v1406 = vsel %vm1398, %v1350, %v1390
      %v1407 = vsub.f32 0.0, %v1343
      %v1408 = vsub.f32 0.0, %v1344
      %v1409 = vsub.f32 0.0, %v1345
      %v1410 = vsub.f32 0.0, %v1346
      %v1411 = vsub.f32 0.0, %v1347
      %v1412 = vsub.f32 0.0, %v1348
      %v1413 = vsub.f32 0.0, %v1349
      %v1414 = vsub.f32 0.0, %v1350
      %v1415 = vsel %vm1391, %v1383, %v1407
      %v1416 = vsel %vm1392, %v1384, %v1408
      %v1417 = vsel %vm1393, %v1385, %v1409
      %v1418 = vsel %vm1394, %v1386, %v1410
      %v1419 = vsel %vm1395, %v1387, %v1411
      %v1420 = vsel %vm1396, %v1388, %v1412
      %v1421 = vsel %vm1397, %v1389, %v1413
      %v1422 = vsel %vm1398, %v1390, %v1414
      %1431 = vrot.lane.b32.xlu0 %v1415, 32
      %v1432 = vpop.permute.xlu0 %1431
      %1433 = vrot.lane.b32.xlu0 %v1416, 32
      %v1434 = vpop.permute.xlu0 %1433
      %1435 = vrot.lane.b32.xlu0 %v1417, 32
      %v1436 = vpop.permute.xlu0 %1435
      %1437 = vrot.lane.b32.xlu0 %v1418, 32
      %v1438 = vpop.permute.xlu0 %1437
      %1439 = vrot.lane.b32.xlu0 %v1419, 32
      %v1440 = vpop.permute.xlu0 %1439
      %1441 = vrot.lane.b32.xlu0 %v1420, 32
      %v1442 = vpop.permute.xlu0 %1441
      %1443 = vrot.lane.b32.xlu0 %v1421, 32
      %v1444 = vpop.permute.xlu0 %1443
      %1445 = vrot.lane.b32.xlu0 %v1422, 32
      %v1446 = vpop.permute.xlu0 %1445
      %v1455 = vsel %vm587, %v1399, %v1432
      %v1456 = vsel %vm587, %v1400, %v1434
      %v1457 = vsel %vm587, %v1401, %v1436
      %v1458 = vsel %vm587, %v1402, %v1438
      %v1459 = vsel %vm587, %v1403, %v1440
      %v1460 = vsel %vm587, %v1404, %v1442
      %v1461 = vsel %vm587, %v1405, %v1444
      %v1462 = vsel %vm587, %v1406, %v1446
      %v1463 = vpack.c.bf16 %v1456, %v1455
      %v1464 = vpack.c.bf16 %v1458, %v1457
      %v1465 = vpack.c.bf16 %v1460, %v1459
      %v1466 = vpack.c.bf16 %v1462, %v1461
      %v1467 = vld [vmem:[%s6] sm:$0xf]
      %v1468 = vld [vmem:[%s6 + $0x4] sm:$0xf]
      %v1469 = vld [vmem:[%s6 + $0x8] sm:$0xf]
      %v1470 = vld [vmem:[%s6 + $0xc] sm:$0xf]
      %v1471 = vld [vmem:[%s6 + $0x10] sm:$0xf]
      %v1472 = vld [vmem:[%s6 + $0x14] sm:$0xf]
      %v1473 = vld [vmem:[%s6 + $0x18] sm:$0xf]
      %v1474 = vld [vmem:[%s6 + $0x1c] sm:$0xf]
      %v1483 = vunpack.c.l.b16 %v1467
      %v1484 = vunpack.c.l.b16 %v1468
      %v1485 = vunpack.c.l.b16 %v1469
      %v1486 = vunpack.c.l.b16 %v1470
      %v1487 = vunpack.c.l.b16 %v1471
      %v1488 = vunpack.c.l.b16 %v1472
      %v1489 = vunpack.c.l.b16 %v1473
      %v1490 = vunpack.c.l.b16 %v1474
      %v1491 = vpack.c.b16 %v1484, %v1483
      %v1492 = vpack.c.b16 %v1486, %v1485
      %v1493 = vpack.c.b16 %v1488, %v1487
      %v1494 = vpack.c.b16 %v1490, %v1489
      %v1500 = vsel %vm677, %v1463, 0
      %v1503 = vsel %vm677, %v1464, 0
      %v1506 = vsel %vm677, %v1465, 0
      %v1509 = vsel %vm677, %v1466, 0
      %1511 = vmatprep.subr.bf16.mxu0 0
      %1512 = vmatpush1.bf16.msra.mxu0 %v1491
      %1513 = vmatprep.subr.bf16.mxu0 0
      %1514 = vmatpush1.bf16.msra.mxu0 %v1492
      %1515 = vmatprep.subr.bf16.mxu0 0
      %1516 = vmatpush1.bf16.msra.mxu0 %v1493
      %1517 = vmatprep.subr.bf16.mxu0 0
      %1518 = vmatpush1.bf16.msra.mxu0 %v1494
      %1519 = vmatprep.subr.bf16.mxu0 0
      %1520 = vmatpush1.bf16.msra.mxu0 0
      %1521 = vmatprep.subr.bf16.mxu0 0
      %1522 = vmatpush1.bf16.msra.mxu0 0
      %1523 = vmatprep.subr.bf16.mxu0 0
      %1524 = vmatpush1.bf16.msra.mxu0 0
      %1525 = vmatprep.subr.bf16.mxu0 0
      %1526 = vmatpush1.bf16.msra.mxu0 0
      %1527 = vmatprep.subr.bf16.mxu0 0
      %1528 = vmatpush1.bf16.msra.mxu0 0
      %1529 = vmatprep.subr.bf16.mxu0 0
      %1530 = vmatpush1.bf16.msra.mxu0 0
      %1531 = vmatprep.subr.bf16.mxu0 0
      %1532 = vmatpush1.bf16.msra.mxu0 0
      %1533 = vmatprep.subr.bf16.mxu0 0
      %1534 = vmatpush1.bf16.msra.mxu0 0
      %1535 = vmatprep.subr.bf16.mxu0 0
      %1536 = vmatpush1.bf16.msra.mxu0 0
      %1537 = vmatprep.subr.bf16.mxu0 0
      %1538 = vmatpush1.bf16.msra.mxu0 0
      %1539 = vmatprep.subr.bf16.mxu0 0
      %1540 = vmatpush1.bf16.msra.mxu0 0
      %1541 = vmatprep.subr.bf16.mxu0 0
      %1542 = vmatpush1.bf16.msra.mxu0 0
      %1543 = vmatprep.mubr.bf16.mxu0 0
      %1544 = vmatmul.mubr.bf16.gmra.mrb[0].mxu0 %v1500
      %v1545 = vpop.f32.mrb[0].mxu0
      %v1546 = vadd.f32 0.0, %v1545
      %v1547 = vpop.f32.mrb[0].mxu0
      %v1548 = vpop.f32.mrb[0].mxu0
      %v1549 = vadd.f32 0.0, %v1548
      %v1550 = vpop.f32.mrb[0].mxu0
      %1551 = vmatprep.mubr.bf16.mxu0 0
      %1552 = vmatmul.mubr.bf16.gmra.mrb[0].mxu0 %v1503
      %v1553 = vpop.f32.mrb[0].mxu0
      %v1554 = vadd.f32 0.0, %v1553
      %v1555 = vpop.f32.mrb[0].mxu0
      %v1556 = vpop.f32.mrb[0].mxu0
      %v1557 = vadd.f32 0.0, %v1556
      %v1558 = vpop.f32.mrb[0].mxu0
      %1559 = vmatprep.mubr.bf16.mxu0 0
      %1560 = vmatmul.mubr.bf16.gmra.mrb[0].mxu0 %v1506
      %v1561 = vpop.f32.mrb[0].mxu0
      %v1562 = vadd.f32 0.0, %v1561
      %v1563 = vpop.f32.mrb[0].mxu0
      %v1564 = vpop.f32.mrb[0].mxu0
      %v1565 = vadd.f32 0.0, %v1564
      %v1566 = vpop.f32.mrb[0].mxu0
      %1567 = vmatprep.mubr.bf16.mxu0 0
      %1568 = vmatmul.mubr.bf16.gmra.mrb[0].mxu0 %v1509
      %v1569 = vpop.f32.mrb[0].mxu0
      %v1570 = vadd.f32 0.0, %v1569
      %v1571 = vpop.f32.mrb[0].mxu0
      %v1572 = vpop.f32.mrb[0].mxu0
      %v1573 = vadd.f32 0.0, %v1572
      %v1574 = vpop.f32.mrb[0].mxu0
      %1575 = vdwg.mxu0
      %v1576 = vadd.f32 %v1335, %v1546
      %v1577 = vadd.f32 %v1336, %v1549
      %v1578 = vadd.f32 %v1337, %v1554
      %v1579 = vadd.f32 %v1338, %v1557
      %v1580 = vadd.f32 %v1339, %v1562
      %v1581 = vadd.f32 %v1340, %v1565
      %v1582 = vadd.f32 %v1341, %v1570
      %v1583 = vadd.f32 %v1342, %v1573
      %v1584 = vld [vmem:[%s7] sm:$0x1]
      %v1586 = vlaneseq
      %v1587 = vshrl.u32 %v1586, 7
      %v1588 = vsub.s32 0, %v1587
      %v1589 = vrot.slane %v1584, %v1588
      %v1591 = vadd.f32 %v1576, %v1589
      %v1592 = vadd.f32 %v1577, %v1589
      %v1593 = vadd.f32 %v1578, %v1589
      %v1594 = vadd.f32 %v1579, %v1589
      %v1595 = vadd.f32 %v1580, %v1589
      %v1596 = vadd.f32 %v1581, %v1589
      %v1597 = vadd.f32 %v1582, %v1589
      %v1598 = vadd.f32 %v1583, %v1589
      %v1599 = vld [vmem:[%s468] sm:$0xff]
      %v1600 = vld [vmem:[%s468 + $0x8] sm:$0xff]
      %v1601 = vld [vmem:[%s468 + $0x10] sm:$0xff]
      %v1602 = vld [vmem:[%s468 + $0x18] sm:$0xff]
      %v1603 = vld [vmem:[%s468 + $0x20] sm:$0xff]
      %v1604 = vld [vmem:[%s468 + $0x28] sm:$0xff]
      %v1605 = vld [vmem:[%s468 + $0x30] sm:$0xff]
      %v1606 = vld [vmem:[%s468 + $0x38] sm:$0xff]
      %v1607 = vadd.f32 %v1591, %v1599
      %v1608 = vadd.f32 %v1592, %v1600
      %v1609 = vadd.f32 %v1593, %v1601
      %v1610 = vadd.f32 %v1594, %v1602
      %v1611 = vadd.f32 %v1595, %v1603
      %v1612 = vadd.f32 %v1596, %v1604
      %v1613 = vadd.f32 %v1597, %v1605
      %v1614 = vadd.f32 %v1598, %v1606
      %v1615 = vand.u32 2147483647, %v1607
      %v1616 = vand.u32 2147483647, %v1608
      %v1617 = vand.u32 2147483647, %v1609
      %v1618 = vand.u32 2147483647, %v1610
      %v1619 = vand.u32 2147483647, %v1611
      %v1620 = vand.u32 2147483647, %v1612
      %v1621 = vand.u32 2147483647, %v1613
      %v1622 = vand.u32 2147483647, %v1614
      %v1623 = vsub.f32 0.0, %v1615
      %v1624 = vsub.f32 0.0, %v1616
      %v1625 = vsub.f32 0.0, %v1617
      %v1626 = vsub.f32 0.0, %v1618
      %v1627 = vsub.f32 0.0, %v1619
      %v1628 = vsub.f32 0.0, %v1620
      %v1629 = vsub.f32 0.0, %v1621
      %v1630 = vsub.f32 0.0, %v1622
      %v1631 = vmul.f32 %v1623, 1.442695
      %v1632 = vpow.pop %v1631
      %v1633 = vmul.f32 %v1624, 1.442695
      %v1634 = vpow.pop %v1633
      %v1635 = vmul.f32 %v1625, 1.442695
      %v1636 = vpow.pop %v1635
      %v1637 = vmul.f32 %v1626, 1.442695
      %v1638 = vpow.pop %v1637
      %v1639 = vmul.f32 %v1627, 1.442695
      %v1640 = vpow.pop %v1639
      %v1641 = vmul.f32 %v1628, 1.442695
      %v1642 = vpow.pop %v1641
      %v1643 = vmul.f32 %v1629, 1.442695
      %v1644 = vpow.pop %v1643
      %v1645 = vmul.f32 %v1630, 1.442695
      %v1646 = vpow.pop %v1645
      %v1647 = vsub.f32 %v1632, 1.0
      %v1648 = vsub.f32 %v1634, 1.0
      %v1649 = vsub.f32 %v1636, 1.0
      %v1650 = vsub.f32 %v1638, 1.0
      %v1651 = vsub.f32 %v1640, 1.0
      %v1652 = vsub.f32 %v1642, 1.0
      %v1653 = vsub.f32 %v1644, 1.0
      %v1654 = vsub.f32 %v1646, 1.0
      %vm1655 = vcmp.gt.f32.partialorder %v1607, 0.0
      %vm1656 = vcmp.gt.f32.partialorder %v1608, 0.0
      %vm1657 = vcmp.gt.f32.partialorder %v1609, 0.0
      %vm1658 = vcmp.gt.f32.partialorder %v1610, 0.0
      %vm1659 = vcmp.gt.f32.partialorder %v1611, 0.0
      %vm1660 = vcmp.gt.f32.partialorder %v1612, 0.0
      %vm1661 = vcmp.gt.f32.partialorder %v1613, 0.0
      %vm1662 = vcmp.gt.f32.partialorder %v1614, 0.0
      %v1663 = vsel %vm1655, %v1607, %v1647
      %v1664 = vsel %vm1656, %v1608, %v1648
      %v1665 = vsel %vm1657, %v1609, %v1649
      %v1666 = vsel %vm1658, %v1610, %v1650
      %v1667 = vsel %vm1659, %v1611, %v1651
      %v1668 = vsel %vm1660, %v1612, %v1652
      %v1669 = vsel %vm1661, %v1613, %v1653
      %v1670 = vsel %vm1662, %v1614, %v1654
      %v1671 = vsub.f32 0.0, %v1607
      %v1672 = vsub.f32 0.0, %v1608
      %v1673 = vsub.f32 0.0, %v1609
      %v1674 = vsub.f32 0.0, %v1610
      %v1675 = vsub.f32 0.0, %v1611
      %v1676 = vsub.f32 0.0, %v1612
      %v1677 = vsub.f32 0.0, %v1613
      %v1678 = vsub.f32 0.0, %v1614
      %v1679 = vsel %vm1655, %v1647, %v1671
      %v1680 = vsel %vm1656, %v1648, %v1672
      %v1681 = vsel %vm1657, %v1649, %v1673
      %v1682 = vsel %vm1658, %v1650, %v1674
      %v1683 = vsel %vm1659, %v1651, %v1675
      %v1684 = vsel %vm1660, %v1652, %v1676
      %v1685 = vsel %vm1661, %v1653, %v1677
      %v1686 = vsel %vm1662, %v1654, %v1678
      %1695 = vrot.lane.b32.xlu0 %v1679, 32
      %v1696 = vpop.permute.xlu0 %1695
      %1697 = vrot.lane.b32.xlu0 %v1680, 32
      %v1698 = vpop.permute.xlu0 %1697
      %1699 = vrot.lane.b32.xlu0 %v1681, 32
      %v1700 = vpop.permute.xlu0 %1699
      %1701 = vrot.lane.b32.xlu0 %v1682, 32
      %v1702 = vpop.permute.xlu0 %1701
      %1703 = vrot.lane.b32.xlu0 %v1683, 32
      %v1704 = vpop.permute.xlu0 %1703
      %1705 = vrot.lane.b32.xlu0 %v1684, 32
      %v1706 = vpop.permute.xlu0 %1705
      %1707 = vrot.lane.b32.xlu0 %v1685, 32
      %v1708 = vpop.permute.xlu0 %1707
      %1709 = vrot.lane.b32.xlu0 %v1686, 32
      %v1710 = vpop.permute.xlu0 %1709
      %v1719 = vsel %vm587, %v1663, %v1696
      %v1720 = vsel %vm587, %v1664, %v1698
      %v1721 = vsel %vm587, %v1665, %v1700
      %v1722 = vsel %vm587, %v1666, %v1702
      %v1723 = vsel %vm587, %v1667, %v1704
      %v1724 = vsel %vm587, %v1668, %v1706
      %v1725 = vsel %vm587, %v1669, %v1708
      %v1726 = vsel %vm587, %v1670, %v1710
      %v1734 = vrot.slane %v1719, 7
      %v1735 = vrot.slane %v1720, 7
      %v1736 = vrot.slane %v1721, 7
      %v1737 = vrot.slane %v1722, 7
      %v1738 = vrot.slane %v1723, 7
      %v1739 = vrot.slane %v1724, 7
      %v1740 = vrot.slane %v1725, 7
      %v1748 = vsel %vm620, 0.0, %v1734
      %v1749 = vsel %vm620, 0.0, %v1735
      %v1750 = vsel %vm620, 0.0, %v1736
      %v1751 = vsel %vm620, 0.0, %v1737
      %v1752 = vsel %vm620, 0.0, %v1738
      %v1753 = vsel %vm620, 0.0, %v1739
      %v1754 = vsel %vm620, 0.0, %v1740
      %v1755 = vpack.c.bf16 %v1748, %v621
      %v1756 = vpack.c.bf16 %v1750, %v1749
      %v1757 = vpack.c.bf16 %v1752, %v1751
      %v1758 = vpack.c.bf16 %v1754, %v1753
      %v1759 = vld [vmem:[%s8] sm:$0xf]
      %v1760 = vld [vmem:[%s8 + $0x4] sm:$0xf]
      %v1761 = vld [vmem:[%s8 + $0x8] sm:$0xf]
      %v1762 = vld [vmem:[%s8 + $0xc] sm:$0xf]
      %v1763 = vld [vmem:[%s8 + $0x10] sm:$0xf]
      %v1764 = vld [vmem:[%s8 + $0x14] sm:$0xf]
      %v1765 = vld [vmem:[%s8 + $0x18] sm:$0xf]
      %v1766 = vld [vmem:[%s8 + $0x1c] sm:$0xf]
      %v1767 = vld [vmem:[%s9] sm:$0xf]
      %v1768 = vld [vmem:[%s9 + $0x4] sm:$0xf]
      %v1769 = vld [vmem:[%s9 + $0x8] sm:$0xf]
      %v1770 = vld [vmem:[%s9 + $0xc] sm:$0xf]
      %v1771 = vld [vmem:[%s9 + $0x10] sm:$0xf]
      %v1772 = vld [vmem:[%s9 + $0x14] sm:$0xf]
      %v1773 = vld [vmem:[%s9 + $0x18] sm:$0xf]
      %v1774 = vld [vmem:[%s9 + $0x1c] sm:$0xf]
      %v1775 = vpack.c.bf16 %v1719, 0.0
      %v1776 = vpack.c.bf16 %v1721, %v1720
      %v1777 = vpack.c.bf16 %v1723, %v1722
      %v1778 = vpack.c.bf16 %v1725, %v1724
      %v1779 = vld [vmem:[%s8 + $0x20] sm:$0xf]
      %v1780 = vld [vmem:[%s8 + $0x24] sm:$0xf]
      %v1781 = vld [vmem:[%s8 + $0x28] sm:$0xf]
      %v1782 = vld [vmem:[%s8 + $0x2c] sm:$0xf]
      %v1783 = vld [vmem:[%s8 + $0x30] sm:$0xf]
      %v1784 = vld [vmem:[%s8 + $0x34] sm:$0xf]
      %v1785 = vld [vmem:[%s8 + $0x38] sm:$0xf]
      %v1786 = vld [vmem:[%s8 + $0x3c] sm:$0xf]
      %v1795 = vunpack.c.l.b16 %v1779
      %v1796 = vunpack.c.l.b16 %v1780
      %v1797 = vunpack.c.l.b16 %v1781
      %v1798 = vunpack.c.l.b16 %v1782
      %v1799 = vunpack.c.l.b16 %v1783
      %v1800 = vunpack.c.l.b16 %v1784
      %v1801 = vunpack.c.l.b16 %v1785
      %v1802 = vunpack.c.l.b16 %v1786
      %v1803 = vpack.c.b16 %v1796, %v1795
      %v1804 = vpack.c.b16 %v1798, %v1797
      %v1805 = vpack.c.b16 %v1800, %v1799
      %v1806 = vpack.c.b16 %v1802, %v1801
      %v1812 = vsel %vm677, %v1775, 0
      %v1815 = vsel %vm677, %v1776, 0
      %v1818 = vsel %vm677, %v1777, 0
      %v1821 = vsel %vm677, %v1778, 0
      %1823 = vmatprep.subr.bf16.mxu0 0
      %1824 = vmatpush1.bf16.msra.mxu0 %v1803
      %1825 = vmatprep.subr.bf16.mxu0 0
      %1826 = vmatpush1.bf16.msra.mxu0 %v1804
      %1827 = vmatprep.subr.bf16.mxu0 0
      %1828 = vmatpush1.bf16.msra.mxu0 %v1805
      %1829 = vmatprep.subr.bf16.mxu0 0
      %1830 = vmatpush1.bf16.msra.mxu0 %v1806
      %1831 = vmatprep.subr.bf16.mxu0 0
      %1832 = vmatpush1.bf16.msra.mxu0 0
      %1833 = vmatprep.subr.bf16.mxu0 0
      %1834 = vmatpush1.bf16.msra.mxu0 0
      %1835 = vmatprep.subr.bf16.mxu0 0
      %1836 = vmatpush1.bf16.msra.mxu0 0
      %1837 = vmatprep.subr.bf16.mxu0 0
      %1838 = vmatpush1.bf16.msra.mxu0 0
      %1839 = vmatprep.subr.bf16.mxu0 0
      %1840 = vmatpush1.bf16.msra.mxu0 0
      %1841 = vmatprep.subr.bf16.mxu0 0
      %1842 = vmatpush1.bf16.msra.mxu0 0
      %1843 = vmatprep.subr.bf16.mxu0 0
      %1844 = vmatpush1.bf16.msra.mxu0 0
      %1845 = vmatprep.subr.bf16.mxu0 0
      %1846 = vmatpush1.bf16.msra.mxu0 0
      %1847 = vmatprep.subr.bf16.mxu0 0
      %1848 = vmatpush1.bf16.msra.mxu0 0
      %1849 = vmatprep.subr.bf16.mxu0 0
      %1850 = vmatpush1.bf16.msra.mxu0 0
      %1851 = vmatprep.subr.bf16.mxu0 0
      %1852 = vmatpush1.bf16.msra.mxu0 0
      %1853 = vmatprep.subr.bf16.mxu0 0
      %1854 = vmatpush1.bf16.msra.mxu0 0
      %1855 = vmatprep.mubr.bf16.mxu0 0
      %1856 = vmatmul.mubr.bf16.gmra.mrb[0].mxu0 %v1812
      %v1857 = vpop.f32.mrb[0].mxu0
      %v1858 = vadd.f32 0.0, %v1857
      %v1859 = vpop.f32.mrb[0].mxu0
      %v1860 = vpop.f32.mrb[0].mxu0
      %v1861 = vadd.f32 0.0, %v1860
      %v1862 = vpop.f32.mrb[0].mxu0
      %1863 = vmatprep.mubr.bf16.mxu0 0
      %1864 = vmatmul.mubr.bf16.gmra.mrb[0].mxu0 %v1815
      %v1865 = vpop.f32.mrb[0].mxu0
      %v1866 = vadd.f32 0.0, %v1865
      %v1867 = vpop.f32.mrb[0].mxu0
      %v1868 = vpop.f32.mrb[0].mxu0
      %v1869 = vadd.f32 0.0, %v1868
      %v1870 = vpop.f32.mrb[0].mxu0
      %1871 = vmatprep.mubr.bf16.mxu0 0
      %1872 = vmatmul.mubr.bf16.gmra.mrb[0].mxu0 %v1818
      %v1873 = vpop.f32.mrb[0].mxu0
      %v1874 = vadd.f32 0.0, %v1873
      %v1875 = vpop.f32.mrb[0].mxu0
      %v1876 = vpop.f32.mrb[0].mxu0
      %v1877 = vadd.f32 0.0, %v1876
      %v1878 = vpop.f32.mrb[0].mxu0
      %1879 = vmatprep.mubr.bf16.mxu0 0
      %1880 = vmatmul.mubr.bf16.gmra.mrb[0].mxu0 %v1821
      %v1881 = vpop.f32.mrb[0].mxu0
      %v1882 = vadd.f32 0.0, %v1881
      %v1883 = vpop.f32.mrb[0].mxu0
      %v1884 = vpop.f32.mrb[0].mxu0
      %v1885 = vadd.f32 0.0, %v1884
      %v1886 = vpop.f32.mrb[0].mxu0
      %1887 = vdwg.mxu0
      %v1896 = vunpack.c.l.b16 %v1759
      %v1897 = vunpack.c.l.b16 %v1760
      %v1898 = vunpack.c.l.b16 %v1761
      %v1899 = vunpack.c.l.b16 %v1762
      %v1900 = vunpack.c.l.b16 %v1763
      %v1901 = vunpack.c.l.b16 %v1764
      %v1902 = vunpack.c.l.b16 %v1765
      %v1903 = vunpack.c.l.b16 %v1766
      %v1904 = vpack.c.b16 %v1897, %v1896
      %v1905 = vpack.c.b16 %v1899, %v1898
      %v1906 = vpack.c.b16 %v1901, %v1900
      %v1907 = vpack.c.b16 %v1903, %v1902
      %v1913 = vsel %vm677, %v1755, 0
      %v1916 = vsel %vm677, %v1756, 0
      %v1919 = vsel %vm677, %v1757, 0
      %v1922 = vsel %vm677, %v1758, 0
      %1924 = vmatprep.subr.bf16.mxu0 0
      %1925 = vmatpush1.bf16.msra.mxu0 %v1904
      %1926 = vmatprep.subr.bf16.mxu0 0
      %1927 = vmatpush1.bf16.msra.mxu0 %v1905
      %1928 = vmatprep.subr.bf16.mxu0 0
      %1929 = vmatpush1.bf16.msra.mxu0 %v1906
      %1930 = vmatprep.subr.bf16.mxu0 0
      %1931 = vmatpush1.bf16.msra.mxu0 %v1907
      %1932 = vmatprep.subr.bf16.mxu0 0
      %1933 = vmatpush1.bf16.msra.mxu0 0
      %1934 = vmatprep.subr.bf16.mxu0 0
      %1935 = vmatpush1.bf16.msra.mxu0 0
      %1936 = vmatprep.subr.bf16.mxu0 0
      %1937 = vmatpush1.bf16.msra.mxu0 0
      %1938 = vmatprep.subr.bf16.mxu0 0
      %1939 = vmatpush1.bf16.msra.mxu0 0
      %1940 = vmatprep.subr.bf16.mxu0 0
      %1941 = vmatpush1.bf16.msra.mxu0 0
      %1942 = vmatprep.subr.bf16.mxu0 0
      %1943 = vmatpush1.bf16.msra.mxu0 0
      %1944 = vmatprep.subr.bf16.mxu0 0
      %1945 = vmatpush1.bf16.msra.mxu0 0
      %1946 = vmatprep.subr.bf16.mxu0 0
      %1947 = vmatpush1.bf16.msra.mxu0 0
      %1948 = vmatprep.subr.bf16.mxu0 0
      %1949 = vmatpush1.bf16.msra.mxu0 0
      %1950 = vmatprep.subr.bf16.mxu0 0
      %1951 = vmatpush1.bf16.msra.mxu0 0
      %1952 = vmatprep.subr.bf16.mxu0 0
      %1953 = vmatpush1.bf16.msra.mxu0 0
      %1954 = vmatprep.subr.bf16.mxu0 0
      %1955 = vmatpush1.bf16.msra.mxu0 0
      %1956 = vmatprep.mubr.bf16.mxu0 0
      %1957 = vmatmul.mubr.bf16.gmra.mrb[0].mxu0 %v1913
      %v1958 = vpop.f32.mrb[0].mxu0
      %v1959 = vadd.f32 %v1858, %v1958
      %v1960 = vpop.f32.mrb[0].mxu0
      %v1961 = vpop.f32.mrb[0].mxu0
      %v1962 = vadd.f32 %v1861, %v1961
      %v1963 = vpop.f32.mrb[0].mxu0
      %1964 = vmatprep.mubr.bf16.mxu0 0
      %1965 = vmatmul.mubr.bf16.gmra.mrb[0].mxu0 %v1916
      %v1966 = vpop.f32.mrb[0].mxu0
      %v1967 = vadd.f32 %v1866, %v1966
      %v1968 = vpop.f32.mrb[0].mxu0
      %v1969 = vpop.f32.mrb[0].mxu0
      %v1970 = vadd.f32 %v1869, %v1969
      %v1971 = vpop.f32.mrb[0].mxu0
      %1972 = vmatprep.mubr.bf16.mxu0 0
      %1973 = vmatmul.mubr.bf16.gmra.mrb[0].mxu0 %v1919
      %v1974 = vpop.f32.mrb[0].mxu0
      %v1975 = vadd.f32 %v1874, %v1974
      %v1976 = vpop.f32.mrb[0].mxu0
      %v1977 = vpop.f32.mrb[0].mxu0
      %v1978 = vadd.f32 %v1877, %v1977
      %v1979 = vpop.f32.mrb[0].mxu0
      %1980 = vmatprep.mubr.bf16.mxu0 0
      %1981 = vmatmul.mubr.bf16.gmra.mrb[0].mxu0 %v1922
      %v1982 = vpop.f32.mrb[0].mxu0
      %v1983 = vadd.f32 %v1882, %v1982
      %v1984 = vpop.f32.mrb[0].mxu0
      %v1985 = vpop.f32.mrb[0].mxu0
      %v1986 = vadd.f32 %v1885, %v1985
      %v1987 = vpop.f32.mrb[0].mxu0
      %1988 = vdwg.mxu0
      %v1989 = vld [vmem:[%s9 + $0x20] sm:$0xf]
      %v1990 = vld [vmem:[%s9 + $0x24] sm:$0xf]
      %v1991 = vld [vmem:[%s9 + $0x28] sm:$0xf]
      %v1992 = vld [vmem:[%s9 + $0x2c] sm:$0xf]
      %v1993 = vld [vmem:[%s9 + $0x30] sm:$0xf]
      %v1994 = vld [vmem:[%s9 + $0x34] sm:$0xf]
      %v1995 = vld [vmem:[%s9 + $0x38] sm:$0xf]
      %v1996 = vld [vmem:[%s9 + $0x3c] sm:$0xf]
      %v2005 = vunpack.c.l.b16 %v1989
      %v2006 = vunpack.c.l.b16 %v1990
      %v2007 = vunpack.c.l.b16 %v1991
      %v2008 = vunpack.c.l.b16 %v1992
      %v2009 = vunpack.c.l.b16 %v1993
      %v2010 = vunpack.c.l.b16 %v1994
      %v2011 = vunpack.c.l.b16 %v1995
      %v2012 = vunpack.c.l.b16 %v1996
      %v2013 = vpack.c.b16 %v2006, %v2005
      %v2014 = vpack.c.b16 %v2008, %v2007
      %v2015 = vpack.c.b16 %v2010, %v2009
      %v2016 = vpack.c.b16 %v2012, %v2011
      %2021 = vmatprep.subr.bf16.mxu0 0
      %2022 = vmatpush1.bf16.msra.mxu0 %v2013
      %2023 = vmatprep.subr.bf16.mxu0 0
      %2024 = vmatpush1.bf16.msra.mxu0 %v2014
      %2025 = vmatprep.subr.bf16.mxu0 0
      %2026 = vmatpush1.bf16.msra.mxu0 %v2015
      %2027 = vmatprep.subr.bf16.mxu0 0
      %2028 = vmatpush1.bf16.msra.mxu0 %v2016
      %2029 = vmatprep.subr.bf16.mxu0 0
      %2030 = vmatpush1.bf16.msra.mxu0 0
      %2031 = vmatprep.subr.bf16.mxu0 0
      %2032 = vmatpush1.bf16.msra.mxu0 0
      %2033 = vmatprep.subr.bf16.mxu0 0
      %2034 = vmatpush1.bf16.msra.mxu0 0
      %2035 = vmatprep.subr.bf16.mxu0 0
      %2036 = vmatpush1.bf16.msra.mxu0 0
      %2037 = vmatprep.subr.bf16.mxu0 0
      %2038 = vmatpush1.bf16.msra.mxu0 0
      %2039 = vmatprep.subr.bf16.mxu0 0
      %2040 = vmatpush1.bf16.msra.mxu0 0
      %2041 = vmatprep.subr.bf16.mxu0 0
      %2042 = vmatpush1.bf16.msra.mxu0 0
      %2043 = vmatprep.subr.bf16.mxu0 0
      %2044 = vmatpush1.bf16.msra.mxu0 0
      %2045 = vmatprep.subr.bf16.mxu0 0
      %2046 = vmatpush1.bf16.msra.mxu0 0
      %2047 = vmatprep.subr.bf16.mxu0 0
      %2048 = vmatpush1.bf16.msra.mxu0 0
      %2049 = vmatprep.subr.bf16.mxu0 0
      %2050 = vmatpush1.bf16.msra.mxu0 0
      %2051 = vmatprep.subr.bf16.mxu0 0
      %2052 = vmatpush1.bf16.msra.mxu0 0
      %2053 = vmatprep.mubr.bf16.mxu0 0
      %2054 = vmatmul.mubr.bf16.gmra.mrb[0].mxu0 %v1812
      %v2055 = vpop.f32.mrb[0].mxu0
      %v2056 = vadd.f32 0.0, %v2055
      %v2057 = vpop.f32.mrb[0].mxu0
      %v2058 = vpop.f32.mrb[0].mxu0
      %v2059 = vadd.f32 0.0, %v2058
      %v2060 = vpop.f32.mrb[0].mxu0
      %2061 = vmatprep.mubr.bf16.mxu0 0
      %2062 = vmatmul.mubr.bf16.gmra.mrb[0].mxu0 %v1815
      %v2063 = vpop.f32.mrb[0].mxu0
      %v2064 = vadd.f32 0.0, %v2063
      %v2065 = vpop.f32.mrb[0].mxu0
      %v2066 = vpop.f32.mrb[0].mxu0
      %v2067 = vadd.f32 0.0, %v2066
      %v2068 = vpop.f32.mrb[0].mxu0
      %2069 = vmatprep.mubr.bf16.mxu0 0
      %2070 = vmatmul.mubr.bf16.gmra.mrb[0].mxu0 %v1818
      %v2071 = vpop.f32.mrb[0].mxu0
      %v2072 = vadd.f32 0.0, %v2071
      %v2073 = vpop.f32.mrb[0].mxu0
      %v2074 = vpop.f32.mrb[0].mxu0
      %v2075 = vadd.f32 0.0, %v2074
      %v2076 = vpop.f32.mrb[0].mxu0
      %2077 = vmatprep.mubr.bf16.mxu0 0
      %2078 = vmatmul.mubr.bf16.gmra.mrb[0].mxu0 %v1821
      %v2079 = vpop.f32.mrb[0].mxu0
      %v2080 = vadd.f32 0.0, %v2079
      %v2081 = vpop.f32.mrb[0].mxu0
      %v2082 = vpop.f32.mrb[0].mxu0
      %v2083 = vadd.f32 0.0, %v2082
      %v2084 = vpop.f32.mrb[0].mxu0
      %2085 = vdwg.mxu0
      %v2094 = vunpack.c.l.b16 %v1767
      %v2095 = vunpack.c.l.b16 %v1768
      %v2096 = vunpack.c.l.b16 %v1769
      %v2097 = vunpack.c.l.b16 %v1770
      %v2098 = vunpack.c.l.b16 %v1771
      %v2099 = vunpack.c.l.b16 %v1772
      %v2100 = vunpack.c.l.b16 %v1773
      %v2101 = vunpack.c.l.b16 %v1774
      %v2102 = vpack.c.b16 %v2095, %v2094
      %v2103 = vpack.c.b16 %v2097, %v2096
      %v2104 = vpack.c.b16 %v2099, %v2098
      %v2105 = vpack.c.b16 %v2101, %v2100
      %2110 = vmatprep.subr.bf16.mxu0 0
      %2111 = vmatpush1.bf16.msra.mxu0 %v2102
      %2112 = vmatprep.subr.bf16.mxu0 0
      %2113 = vmatpush1.bf16.msra.mxu0 %v2103
      %2114 = vmatprep.subr.bf16.mxu0 0
      %2115 = vmatpush1.bf16.msra.mxu0 %v2104
      %2116 = vmatprep.subr.bf16.mxu0 0
      %2117 = vmatpush1.bf16.msra.mxu0 %v2105
      %2118 = vmatprep.subr.bf16.mxu0 0
      %2119 = vmatpush1.bf16.msra.mxu0 0
      %2120 = vmatprep.subr.bf16.mxu0 0
      %2121 = vmatpush1.bf16.msra.mxu0 0
      %2122 = vmatprep.subr.bf16.mxu0 0
      %2123 = vmatpush1.bf16.msra.mxu0 0
      %2124 = vmatprep.subr.bf16.mxu0 0
      %2125 = vmatpush1.bf16.msra.mxu0 0
      %2126 = vmatprep.subr.bf16.mxu0 0
      %2127 = vmatpush1.bf16.msra.mxu0 0
      %2128 = vmatprep.subr.bf16.mxu0 0
      %2129 = vmatpush1.bf16.msra.mxu0 0
      %2130 = vmatprep.subr.bf16.mxu0 0
      %2131 = vmatpush1.bf16.msra.mxu0 0
      %2132 = vmatprep.subr.bf16.mxu0 0
      %2133 = vmatpush1.bf16.msra.mxu0 0
      %2134 = vmatprep.subr.bf16.mxu0 0
      %2135 = vmatpush1.bf16.msra.mxu0 0
      %2136 = vmatprep.subr.bf16.mxu0 0
      %2137 = vmatpush1.bf16.msra.mxu0 0
      %2138 = vmatprep.subr.bf16.mxu0 0
      %2139 = vmatpush1.bf16.msra.mxu0 0
      %2140 = vmatprep.subr.bf16.mxu0 0
      %2141 = vmatpush1.bf16.msra.mxu0 0
      %2142 = vmatprep.mubr.bf16.mxu0 0
      %2143 = vmatmul.mubr.bf16.gmra.mrb[0].mxu0 %v1913
      %v2144 = vpop.f32.mrb[0].mxu0
      %v2145 = vadd.f32 %v2056, %v2144
      %v2146 = vpop.f32.mrb[0].mxu0
      %v2147 = vpop.f32.mrb[0].mxu0
      %v2148 = vadd.f32 %v2059, %v2147
      %v2149 = vpop.f32.mrb[0].mxu0
      %2150 = vmatprep.mubr.bf16.mxu0 0
      %2151 = vmatmul.mubr.bf16.gmra.mrb[0].mxu0 %v1916
      %v2152 = vpop.f32.mrb[0].mxu0
      %v2153 = vadd.f32 %v2064, %v2152
      %v2154 = vpop.f32.mrb[0].mxu0
      %v2155 = vpop.f32.mrb[0].mxu0
      %v2156 = vadd.f32 %v2067, %v2155
      %v2157 = vpop.f32.mrb[0].mxu0
      %2158 = vmatprep.mubr.bf16.mxu0 0
      %2159 = vmatmul.mubr.bf16.gmra.mrb[0].mxu0 %v1919
      %v2160 = vpop.f32.mrb[0].mxu0
      %v2161 = vadd.f32 %v2072, %v2160
      %v2162 = vpop.f32.mrb[0].mxu0
      %v2163 = vpop.f32.mrb[0].mxu0
      %v2164 = vadd.f32 %v2075, %v2163
      %v2165 = vpop.f32.mrb[0].mxu0
      %2166 = vmatprep.mubr.bf16.mxu0 0
      %2167 = vmatmul.mubr.bf16.gmra.mrb[0].mxu0 %v1922
      %v2168 = vpop.f32.mrb[0].mxu0
      %v2169 = vadd.f32 %v2080, %v2168
      %v2170 = vpop.f32.mrb[0].mxu0
      %v2171 = vpop.f32.mrb[0].mxu0
      %v2172 = vadd.f32 %v2083, %v2171
      %v2173 = vpop.f32.mrb[0].mxu0
      %2174 = vdwg.mxu0
      %v2176 = vrot.slane %v1726, 7
      %v2178 = vsel %vm620, 0.0, %v2176
      %v2179 = vpack.c.bf16 %v1749, %v1748
      %v2180 = vpack.c.bf16 %v1751, %v1750
      %v2181 = vpack.c.bf16 %v1753, %v1752
      %v2182 = vpack.c.bf16 %v2178, %v1754
      %v2183 = vld [vmem:[%s8 + $0x40] sm:$0xf]
      %v2184 = vld [vmem:[%s8 + $0x44] sm:$0xf]
      %v2185 = vld [vmem:[%s8 + $0x48] sm:$0xf]
      %v2186 = vld [vmem:[%s8 + $0x4c] sm:$0xf]
      %v2187 = vld [vmem:[%s8 + $0x50] sm:$0xf]
      %v2188 = vld [vmem:[%s8 + $0x54] sm:$0xf]
      %v2189 = vld [vmem:[%s8 + $0x58] sm:$0xf]
      %v2190 = vld [vmem:[%s8 + $0x5c] sm:$0xf]
      %v2199 = vunpack.c.l.b16 %v2183
      %v2200 = vunpack.c.l.b16 %v2184
      %v2201 = vunpack.c.l.b16 %v2185
      %v2202 = vunpack.c.l.b16 %v2186
      %v2203 = vunpack.c.l.b16 %v2187
      %v2204 = vunpack.c.l.b16 %v2188
      %v2205 = vunpack.c.l.b16 %v2189
      %v2206 = vunpack.c.l.b16 %v2190
      %v2207 = vpack.c.b16 %v2200, %v2199
      %v2208 = vpack.c.b16 %v2202, %v2201
      %v2209 = vpack.c.b16 %v2204, %v2203
      %v2210 = vpack.c.b16 %v2206, %v2205
      %v2216 = vsel %vm677, %v2179, 0
      %v2219 = vsel %vm677, %v2180, 0
      %v2222 = vsel %vm677, %v2181, 0
      %v2225 = vsel %vm677, %v2182, 0
      %2227 = vmatprep.subr.bf16.mxu0 0
      %2228 = vmatpush1.bf16.msra.mxu0 %v2207
      %2229 = vmatprep.subr.bf16.mxu0 0
      %2230 = vmatpush1.bf16.msra.mxu0 %v2208
      %2231 = vmatprep.subr.bf16.mxu0 0
      %2232 = vmatpush1.bf16.msra.mxu0 %v2209
      %2233 = vmatprep.subr.bf16.mxu0 0
      %2234 = vmatpush1.bf16.msra.mxu0 %v2210
      %2235 = vmatprep.subr.bf16.mxu0 0
      %2236 = vmatpush1.bf16.msra.mxu0 0
      %2237 = vmatprep.subr.bf16.mxu0 0
      %2238 = vmatpush1.bf16.msra.mxu0 0
      %2239 = vmatprep.subr.bf16.mxu0 0
      %2240 = vmatpush1.bf16.msra.mxu0 0
      %2241 = vmatprep.subr.bf16.mxu0 0
      %2242 = vmatpush1.bf16.msra.mxu0 0
      %2243 = vmatprep.subr.bf16.mxu0 0
      %2244 = vmatpush1.bf16.msra.mxu0 0
      %2245 = vmatprep.subr.bf16.mxu0 0
      %2246 = vmatpush1.bf16.msra.mxu0 0
      %2247 = vmatprep.subr.bf16.mxu0 0
      %2248 = vmatpush1.bf16.msra.mxu0 0
      %2249 = vmatprep.subr.bf16.mxu0 0
      %2250 = vmatpush1.bf16.msra.mxu0 0
      %2251 = vmatprep.subr.bf16.mxu0 0
      %2252 = vmatpush1.bf16.msra.mxu0 0
      %2253 = vmatprep.subr.bf16.mxu0 0
      %2254 = vmatpush1.bf16.msra.mxu0 0
      %2255 = vmatprep.subr.bf16.mxu0 0
      %2256 = vmatpush1.bf16.msra.mxu0 0
      %2257 = vmatprep.subr.bf16.mxu0 0
      %2258 = vmatpush1.bf16.msra.mxu0 0
      %2259 = vmatprep.mubr.bf16.mxu0 0
      %2260 = vmatmul.mubr.bf16.gmra.mrb[0].mxu0 %v2216
      %v2261 = vpop.f32.mrb[0].mxu0
      %v2262 = vadd.f32 0.0, %v2261
      %v2263 = vpop.f32.mrb[0].mxu0
      %v2264 = vpop.f32.mrb[0].mxu0
      %v2265 = vadd.f32 0.0, %v2264
      %v2266 = vpop.f32.mrb[0].mxu0
      %2267 = vmatprep.mubr.bf16.mxu0 0
      %2268 = vmatmul.mubr.bf16.gmra.mrb[0].mxu0 %v2219
      %v2269 = vpop.f32.mrb[0].mxu0
      %v2270 = vadd.f32 0.0, %v2269
      %v2271 = vpop.f32.mrb[0].mxu0
      %v2272 = vpop.f32.mrb[0].mxu0
      %v2273 = vadd.f32 0.0, %v2272
      %v2274 = vpop.f32.mrb[0].mxu0
      %2275 = vmatprep.mubr.bf16.mxu0 0
      %2276 = vmatmul.mubr.bf16.gmra.mrb[0].mxu0 %v2222
      %v2277 = vpop.f32.mrb[0].mxu0
      %v2278 = vadd.f32 0.0, %v2277
      %v2279 = vpop.f32.mrb[0].mxu0
      %v2280 = vpop.f32.mrb[0].mxu0
      %v2281 = vadd.f32 0.0, %v2280
      %v2282 = vpop.f32.mrb[0].mxu0
      %2283 = vmatprep.mubr.bf16.mxu0 0
      %2284 = vmatmul.mubr.bf16.gmra.mrb[0].mxu0 %v2225
      %v2285 = vpop.f32.mrb[0].mxu0
      %v2286 = vadd.f32 0.0, %v2285
      %v2287 = vpop.f32.mrb[0].mxu0
      %v2288 = vpop.f32.mrb[0].mxu0
      %v2289 = vadd.f32 0.0, %v2288
      %v2290 = vpop.f32.mrb[0].mxu0
      %2291 = vdwg.mxu0
      %v2292 = vadd.f32 %v1959, %v2262
      %v2293 = vadd.f32 %v1962, %v2265
      %v2294 = vadd.f32 %v1967, %v2270
      %v2295 = vadd.f32 %v1970, %v2273
      %v2296 = vadd.f32 %v1975, %v2278
      %v2297 = vadd.f32 %v1978, %v2281
      %v2298 = vadd.f32 %v1983, %v2286
      %v2299 = vadd.f32 %v1986, %v2289
      %v2300 = vld [vmem:[%s9 + $0x40] sm:$0xf]
      %v2301 = vld [vmem:[%s9 + $0x44] sm:$0xf]
      %v2302 = vld [vmem:[%s9 + $0x48] sm:$0xf]
      %v2303 = vld [vmem:[%s9 + $0x4c] sm:$0xf]
      %v2304 = vld [vmem:[%s9 + $0x50] sm:$0xf]
      %v2305 = vld [vmem:[%s9 + $0x54] sm:$0xf]
      %v2306 = vld [vmem:[%s9 + $0x58] sm:$0xf]
      %v2307 = vld [vmem:[%s9 + $0x5c] sm:$0xf]
      %v2316 = vunpack.c.l.b16 %v2300
      %v2317 = vunpack.c.l.b16 %v2301
      %v2318 = vunpack.c.l.b16 %v2302
      %v2319 = vunpack.c.l.b16 %v2303
      %v2320 = vunpack.c.l.b16 %v2304
      %v2321 = vunpack.c.l.b16 %v2305
      %v2322 = vunpack.c.l.b16 %v2306
      %v2323 = vunpack.c.l.b16 %v2307
      %v2324 = vpack.c.b16 %v2317, %v2316
      %v2325 = vpack.c.b16 %v2319, %v2318
      %v2326 = vpack.c.b16 %v2321, %v2320
      %v2327 = vpack.c.b16 %v2323, %v2322
      %2332 = vmatprep.subr.bf16.mxu0 0
      %2333 = vmatpush1.bf16.msra.mxu0 %v2324
      %2334 = vmatprep.subr.bf16.mxu0 0
      %2335 = vmatpush1.bf16.msra.mxu0 %v2325
      %2336 = vmatprep.subr.bf16.mxu0 0
      %2337 = vmatpush1.bf16.msra.mxu0 %v2326
      %2338 = vmatprep.subr.bf16.mxu0 0
      %2339 = vmatpush1.bf16.msra.mxu0 %v2327
      %2340 = vmatprep.subr.bf16.mxu0 0
      %2341 = vmatpush1.bf16.msra.mxu0 0
      %2342 = vmatprep.subr.bf16.mxu0 0
      %2343 = vmatpush1.bf16.msra.mxu0 0
      %2344 = vmatprep.subr.bf16.mxu0 0
      %2345 = vmatpush1.bf16.msra.mxu0 0
      %2346 = vmatprep.subr.bf16.mxu0 0
      %2347 = vmatpush1.bf16.msra.mxu0 0
      %2348 = vmatprep.subr.bf16.mxu0 0
      %2349 = vmatpush1.bf16.msra.mxu0 0
      %2350 = vmatprep.subr.bf16.mxu0 0
      %2351 = vmatpush1.bf16.msra.mxu0 0
      %2352 = vmatprep.subr.bf16.mxu0 0
      %2353 = vmatpush1.bf16.msra.mxu0 0
      %2354 = vmatprep.subr.bf16.mxu0 0
      %2355 = vmatpush1.bf16.msra.mxu0 0
      %2356 = vmatprep.subr.bf16.mxu0 0
      %2357 = vmatpush1.bf16.msra.mxu0 0
      %2358 = vmatprep.subr.bf16.mxu0 0
      %2359 = vmatpush1.bf16.msra.mxu0 0
      %2360 = vmatprep.subr.bf16.mxu0 0
      %2361 = vmatpush1.bf16.msra.mxu0 0
      %2362 = vmatprep.subr.bf16.mxu0 0
      %2363 = vmatpush1.bf16.msra.mxu0 0
      %2364 = vmatprep.mubr.bf16.mxu0 0
      %2365 = vmatmul.mubr.bf16.gmra.mrb[0].mxu0 %v2216
      %v2366 = vpop.f32.mrb[0].mxu0
      %v2367 = vadd.f32 0.0, %v2366
      %v2368 = vpop.f32.mrb[0].mxu0
      %v2369 = vpop.f32.mrb[0].mxu0
      %v2370 = vadd.f32 0.0, %v2369
      %v2371 = vpop.f32.mrb[0].mxu0
      %2372 = vmatprep.mubr.bf16.mxu0 0
      %2373 = vmatmul.mubr.bf16.gmra.mrb[0].mxu0 %v2219
      %v2374 = vpop.f32.mrb[0].mxu0
      %v2375 = vadd.f32 0.0, %v2374
      %v2376 = vpop.f32.mrb[0].mxu0
      %v2377 = vpop.f32.mrb[0].mxu0
      %v2378 = vadd.f32 0.0, %v2377
      %v2379 = vpop.f32.mrb[0].mxu0
      %2380 = vmatprep.mubr.bf16.mxu0 0
      %2381 = vmatmul.mubr.bf16.gmra.mrb[0].mxu0 %v2222
      %v2382 = vpop.f32.mrb[0].mxu0
      %v2383 = vadd.f32 0.0, %v2382
      %v2384 = vpop.f32.mrb[0].mxu0
      %v2385 = vpop.f32.mrb[0].mxu0
      %v2386 = vadd.f32 0.0, %v2385
      %v2387 = vpop.f32.mrb[0].mxu0
      %2388 = vmatprep.mubr.bf16.mxu0 0
      %2389 = vmatmul.mubr.bf16.gmra.mrb[0].mxu0 %v2225
      %v2390 = vpop.f32.mrb[0].mxu0
      %v2391 = vadd.f32 0.0, %v2390
      %v2392 = vpop.f32.mrb[0].mxu0
      %v2393 = vpop.f32.mrb[0].mxu0
      %v2394 = vadd.f32 0.0, %v2393
      %v2395 = vpop.f32.mrb[0].mxu0
      %2396 = vdwg.mxu0
      %v2397 = vadd.f32 %v2145, %v2367
      %v2398 = vadd.f32 %v2148, %v2370
      %v2399 = vadd.f32 %v2153, %v2375
      %v2400 = vadd.f32 %v2156, %v2378
      %v2401 = vadd.f32 %v2161, %v2383
      %v2402 = vadd.f32 %v2164, %v2386
      %v2403 = vadd.f32 %v2169, %v2391
      %v2404 = vadd.f32 %v2172, %v2394
      %v2405 = vpack.c.bf16 %v1720, %v1719
      %v2406 = vpack.c.bf16 %v1722, %v1721
      %v2407 = vpack.c.bf16 %v1724, %v1723
      %v2408 = vpack.c.bf16 %v1726, %v1725
      %v2409 = vld [vmem:[%s8 + $0x60] sm:$0xf]
      %v2410 = vld [vmem:[%s8 + $0x64] sm:$0xf]
      %v2411 = vld [vmem:[%s8 + $0x68] sm:$0xf]
      %v2412 = vld [vmem:[%s8 + $0x6c] sm:$0xf]
      %v2413 = vld [vmem:[%s8 + $0x70] sm:$0xf]
      %v2414 = vld [vmem:[%s8 + $0x74] sm:$0xf]
      %v2415 = vld [vmem:[%s8 + $0x78] sm:$0xf]
      %v2416 = vld [vmem:[%s8 + $0x7c] sm:$0xf]
      %v2425 = vunpack.c.l.b16 %v2409
      %v2426 = vunpack.c.l.b16 %v2410
      %v2427 = vunpack.c.l.b16 %v2411
      %v2428 = vunpack.c.l.b16 %v2412
      %v2429 = vunpack.c.l.b16 %v2413
      %v2430 = vunpack.c.l.b16 %v2414
      %v2431 = vunpack.c.l.b16 %v2415
      %v2432 = vunpack.c.l.b16 %v2416
      %v2433 = vpack.c.b16 %v2426, %v2425
      %v2434 = vpack.c.b16 %v2428, %v2427
      %v2435 = vpack.c.b16 %v2430, %v2429
      %v2436 = vpack.c.b16 %v2432, %v2431
      %v2442 = vsel %vm677, %v2405, 0
      %v2445 = vsel %vm677, %v2406, 0
      %v2448 = vsel %vm677, %v2407, 0
      %v2451 = vsel %vm677, %v2408, 0
      %2453 = vmatprep.subr.bf16.mxu0 0
      %2454 = vmatpush1.bf16.msra.mxu0 %v2433
      %2455 = vmatprep.subr.bf16.mxu0 0
      %2456 = vmatpush1.bf16.msra.mxu0 %v2434
      %2457 = vmatprep.subr.bf16.mxu0 0
      %2458 = vmatpush1.bf16.msra.mxu0 %v2435
      %2459 = vmatprep.subr.bf16.mxu0 0
      %2460 = vmatpush1.bf16.msra.mxu0 %v2436
      %2461 = vmatprep.subr.bf16.mxu0 0
      %2462 = vmatpush1.bf16.msra.mxu0 0
      %2463 = vmatprep.subr.bf16.mxu0 0
      %2464 = vmatpush1.bf16.msra.mxu0 0
      %2465 = vmatprep.subr.bf16.mxu0 0
      %2466 = vmatpush1.bf16.msra.mxu0 0
      %2467 = vmatprep.subr.bf16.mxu0 0
      %2468 = vmatpush1.bf16.msra.mxu0 0
      %2469 = vmatprep.subr.bf16.mxu0 0
      %2470 = vmatpush1.bf16.msra.mxu0 0
      %2471 = vmatprep.subr.bf16.mxu0 0
      %2472 = vmatpush1.bf16.msra.mxu0 0
      %2473 = vmatprep.subr.bf16.mxu0 0
      %2474 = vmatpush1.bf16.msra.mxu0 0
      %2475 = vmatprep.subr.bf16.mxu0 0
      %2476 = vmatpush1.bf16.msra.mxu0 0
      %2477 = vmatprep.subr.bf16.mxu0 0
      %2478 = vmatpush1.bf16.msra.mxu0 0
      %2479 = vmatprep.subr.bf16.mxu0 0
      %2480 = vmatpush1.bf16.msra.mxu0 0
      %2481 = vmatprep.subr.bf16.mxu0 0
      %2482 = vmatpush1.bf16.msra.mxu0 0
      %2483 = vmatprep.subr.bf16.mxu0 0
      %2484 = vmatpush1.bf16.msra.mxu0 0
      %2485 = vmatprep.mubr.bf16.mxu0 0
      %2486 = vmatmul.mubr.bf16.gmra.mrb[0].mxu0 %v2442
      %v2487 = vpop.f32.mrb[0].mxu0
      %v2488 = vadd.f32 0.0, %v2487
      %v2489 = vpop.f32.mrb[0].mxu0
      %v2490 = vpop.f32.mrb[0].mxu0
      %v2491 = vadd.f32 0.0, %v2490
      %v2492 = vpop.f32.mrb[0].mxu0
      %2493 = vmatprep.mubr.bf16.mxu0 0
      %2494 = vmatmul.mubr.bf16.gmra.mrb[0].mxu0 %v2445
      %v2495 = vpop.f32.mrb[0].mxu0
      %v2496 = vadd.f32 0.0, %v2495
      %v2497 = vpop.f32.mrb[0].mxu0
      %v2498 = vpop.f32.mrb[0].mxu0
      %v2499 = vadd.f32 0.0, %v2498
      %v2500 = vpop.f32.mrb[0].mxu0
      %2501 = vmatprep.mubr.bf16.mxu0 0
      %2502 = vmatmul.mubr.bf16.gmra.mrb[0].mxu0 %v2448
      %v2503 = vpop.f32.mrb[0].mxu0
      %v2504 = vadd.f32 0.0, %v2503
      %v2505 = vpop.f32.mrb[0].mxu0
      %v2506 = vpop.f32.mrb[0].mxu0
      %v2507 = vadd.f32 0.0, %v2506
      %v2508 = vpop.f32.mrb[0].mxu0
      %2509 = vmatprep.mubr.bf16.mxu0 0
      %2510 = vmatmul.mubr.bf16.gmra.mrb[0].mxu0 %v2451
      %v2511 = vpop.f32.mrb[0].mxu0
      %v2512 = vadd.f32 0.0, %v2511
      %v2513 = vpop.f32.mrb[0].mxu0
      %v2514 = vpop.f32.mrb[0].mxu0
      %v2515 = vadd.f32 0.0, %v2514
      %v2516 = vpop.f32.mrb[0].mxu0
      %2517 = vdwg.mxu0
      %v2518 = vadd.f32 %v2292, %v2488
      %v2519 = vadd.f32 %v2293, %v2491
      %v2520 = vadd.f32 %v2294, %v2496
      %v2521 = vadd.f32 %v2295, %v2499
      %v2522 = vadd.f32 %v2296, %v2504
      %v2523 = vadd.f32 %v2297, %v2507
      %v2524 = vadd.f32 %v2298, %v2512
      %v2525 = vadd.f32 %v2299, %v2515
      %v2526 = vld [vmem:[%s9 + $0x60] sm:$0xf]
      %v2527 = vld [vmem:[%s9 + $0x64] sm:$0xf]
      %v2528 = vld [vmem:[%s9 + $0x68] sm:$0xf]
      %v2529 = vld [vmem:[%s9 + $0x6c] sm:$0xf]
      %v2530 = vld [vmem:[%s9 + $0x70] sm:$0xf]
      %v2531 = vld [vmem:[%s9 + $0x74] sm:$0xf]
      %v2532 = vld [vmem:[%s9 + $0x78] sm:$0xf]
      %v2533 = vld [vmem:[%s9 + $0x7c] sm:$0xf]
      %v2542 = vunpack.c.l.b16 %v2526
      %v2543 = vunpack.c.l.b16 %v2527
      %v2544 = vunpack.c.l.b16 %v2528
      %v2545 = vunpack.c.l.b16 %v2529
      %v2546 = vunpack.c.l.b16 %v2530
      %v2547 = vunpack.c.l.b16 %v2531
      %v2548 = vunpack.c.l.b16 %v2532
      %v2549 = vunpack.c.l.b16 %v2533
      %v2550 = vpack.c.b16 %v2543, %v2542
      %v2551 = vpack.c.b16 %v2545, %v2544
      %v2552 = vpack.c.b16 %v2547, %v2546
      %v2553 = vpack.c.b16 %v2549, %v2548
      %2558 = vmatprep.subr.bf16.mxu0 0
      %2559 = vmatpush1.bf16.msra.mxu0 %v2550
      %2560 = vmatprep.subr.bf16.mxu0 0
      %2561 = vmatpush1.bf16.msra.mxu0 %v2551
      %2562 = vmatprep.subr.bf16.mxu0 0
      %2563 = vmatpush1.bf16.msra.mxu0 %v2552
      %2564 = vmatprep.subr.bf16.mxu0 0
      %2565 = vmatpush1.bf16.msra.mxu0 %v2553
      %2566 = vmatprep.subr.bf16.mxu0 0
      %2567 = vmatpush1.bf16.msra.mxu0 0
      %2568 = vmatprep.subr.bf16.mxu0 0
      %2569 = vmatpush1.bf16.msra.mxu0 0
      %2570 = vmatprep.subr.bf16.mxu0 0
      %2571 = vmatpush1.bf16.msra.mxu0 0
      %2572 = vmatprep.subr.bf16.mxu0 0
      %2573 = vmatpush1.bf16.msra.mxu0 0
      %2574 = vmatprep.subr.bf16.mxu0 0
      %2575 = vmatpush1.bf16.msra.mxu0 0
      %2576 = vmatprep.subr.bf16.mxu0 0
      %2577 = vmatpush1.bf16.msra.mxu0 0
      %2578 = vmatprep.subr.bf16.mxu0 0
      %2579 = vmatpush1.bf16.msra.mxu0 0
      %2580 = vmatprep.subr.bf16.mxu0 0
      %2581 = vmatpush1.bf16.msra.mxu0 0
      %2582 = vmatprep.subr.bf16.mxu0 0
      %2583 = vmatpush1.bf16.msra.mxu0 0
      %2584 = vmatprep.subr.bf16.mxu0 0
      %2585 = vmatpush1.bf16.msra.mxu0 0
      %2586 = vmatprep.subr.bf16.mxu0 0
      %2587 = vmatpush1.bf16.msra.mxu0 0
      %2588 = vmatprep.subr.bf16.mxu0 0
      %2589 = vmatpush1.bf16.msra.mxu0 0
      %2590 = vmatprep.mubr.bf16.mxu0 0
      %2591 = vmatmul.mubr.bf16.gmra.mrb[0].mxu0 %v2442
      %v2592 = vpop.f32.mrb[0].mxu0
      %v2593 = vadd.f32 0.0, %v2592
      %v2594 = vpop.f32.mrb[0].mxu0
      %v2595 = vpop.f32.mrb[0].mxu0
      %v2596 = vadd.f32 0.0, %v2595
      %v2597 = vpop.f32.mrb[0].mxu0
      %2598 = vmatprep.mubr.bf16.mxu0 0
      %2599 = vmatmul.mubr.bf16.gmra.mrb[0].mxu0 %v2445
      %v2600 = vpop.f32.mrb[0].mxu0
      %v2601 = vadd.f32 0.0, %v2600
      %v2602 = vpop.f32.mrb[0].mxu0
      %v2603 = vpop.f32.mrb[0].mxu0
      %v2604 = vadd.f32 0.0, %v2603
      %v2605 = vpop.f32.mrb[0].mxu0
      %2606 = vmatprep.mubr.bf16.mxu0 0
      %2607 = vmatmul.mubr.bf16.gmra.mrb[0].mxu0 %v2448
      %v2608 = vpop.f32.mrb[0].mxu0
      %v2609 = vadd.f32 0.0, %v2608
      %v2610 = vpop.f32.mrb[0].mxu0
      %v2611 = vpop.f32.mrb[0].mxu0
      %v2612 = vadd.f32 0.0, %v2611
      %v2613 = vpop.f32.mrb[0].mxu0
      %2614 = vmatprep.mubr.bf16.mxu0 0
      %2615 = vmatmul.mubr.bf16.gmra.mrb[0].mxu0 %v2451
      %v2616 = vpop.f32.mrb[0].mxu0
      %v2617 = vadd.f32 0.0, %v2616
      %v2618 = vpop.f32.mrb[0].mxu0
      %v2619 = vpop.f32.mrb[0].mxu0
      %v2620 = vadd.f32 0.0, %v2619
      %v2621 = vpop.f32.mrb[0].mxu0
      %2622 = vdwg.mxu0
      %v2623 = vadd.f32 %v2397, %v2593
      %v2624 = vadd.f32 %v2398, %v2596
      %v2625 = vadd.f32 %v2399, %v2601
      %v2626 = vadd.f32 %v2400, %v2604
      %v2627 = vadd.f32 %v2401, %v2609
      %v2628 = vadd.f32 %v2402, %v2612
      %v2629 = vadd.f32 %v2403, %v2617
      %v2630 = vadd.f32 %v2404, %v2620
      %v2631 = vld [vmem:[%s10] sm:$0x1]
      %v2633 = vlaneseq
      %v2634 = vshrl.u32 %v2633, 7
      %v2635 = vsub.s32 0, %v2634
      %v2636 = vrot.slane %v2631, %v2635
      %v2638 = vadd.f32 %v2518, %v2636
      %v2639 = vadd.f32 %v2519, %v2636
      %v2640 = vadd.f32 %v2520, %v2636
      %v2641 = vadd.f32 %v2521, %v2636
      %v2642 = vadd.f32 %v2522, %v2636
      %v2643 = vadd.f32 %v2523, %v2636
      %v2644 = vadd.f32 %v2524, %v2636
      %v2645 = vadd.f32 %v2525, %v2636
      %v2646 = vld [vmem:[%s11] sm:$0x1]
      %v2648 = vlaneseq
      %v2649 = vshrl.u32 %v2648, 7
      %v2650 = vsub.s32 0, %v2649
      %v2651 = vrot.slane %v2646, %v2650
      %v2653 = vadd.f32 %v2623, %v2651
      %v2654 = vadd.f32 %v2624, %v2651
      %v2655 = vadd.f32 %v2625, %v2651
      %v2656 = vadd.f32 %v2626, %v2651
      %v2657 = vadd.f32 %v2627, %v2651
      %v2658 = vadd.f32 %v2628, %v2651
      %v2659 = vadd.f32 %v2629, %v2651
      %v2660 = vadd.f32 %v2630, %v2651
      %v2661 = vxor.u32 %v2653, 2147483648
      %v2662 = vxor.u32 %v2654, 2147483648
      %v2663 = vxor.u32 %v2655, 2147483648
      %v2664 = vxor.u32 %v2656, 2147483648
      %v2665 = vxor.u32 %v2657, 2147483648
      %v2666 = vxor.u32 %v2658, 2147483648
      %v2667 = vxor.u32 %v2659, 2147483648
      %v2668 = vxor.u32 %v2660, 2147483648
      %v2669 = vmul.f32 %v2661, 1.442695
      %v2670 = vpow.pop %v2669
      %v2671 = vmul.f32 %v2662, 1.442695
      %v2672 = vpow.pop %v2671
      %v2673 = vmul.f32 %v2663, 1.442695
      %v2674 = vpow.pop %v2673
      %v2675 = vmul.f32 %v2664, 1.442695
      %v2676 = vpow.pop %v2675
      %v2677 = vmul.f32 %v2665, 1.442695
      %v2678 = vpow.pop %v2677
      %v2679 = vmul.f32 %v2666, 1.442695
      %v2680 = vpow.pop %v2679
      %v2681 = vmul.f32 %v2667, 1.442695
      %v2682 = vpow.pop %v2681
      %v2683 = vmul.f32 %v2668, 1.442695
      %v2684 = vpow.pop %v2683
      %v2685 = vadd.f32 %v2670, 1.0
      %v2686 = vadd.f32 %v2672, 1.0
      %v2687 = vadd.f32 %v2674, 1.0
      %v2688 = vadd.f32 %v2676, 1.0
      %v2689 = vadd.f32 %v2678, 1.0
      %v2690 = vadd.f32 %v2680, 1.0
      %v2691 = vadd.f32 %v2682, 1.0
      %v2692 = vadd.f32 %v2684, 1.0
      %v2693 = vrcp.pop %v2685
      %v2694 = vmul.f32 1.0, %v2693
      %v2695 = vrcp.pop %v2686
      %v2696 = vmul.f32 1.0, %v2695
      %v2697 = vrcp.pop %v2687
      %v2698 = vmul.f32 1.0, %v2697
      %v2699 = vrcp.pop %v2688
      %v2700 = vmul.f32 1.0, %v2699
      %v2701 = vrcp.pop %v2689
      %v2702 = vmul.f32 1.0, %v2701
      %v2703 = vrcp.pop %v2690
      %v2704 = vmul.f32 1.0, %v2703
      %v2705 = vrcp.pop %v2691
      %v2706 = vmul.f32 1.0, %v2705
      %v2707 = vrcp.pop %v2692
      %v2708 = vmul.f32 1.0, %v2707
      %v2709 = vmul.f32 %v2638, %v2694
      %v2710 = vmul.f32 %v2639, %v2696
      %v2711 = vmul.f32 %v2640, %v2698
      %v2712 = vmul.f32 %v2641, %v2700
      %v2713 = vmul.f32 %v2642, %v2702
      %v2714 = vmul.f32 %v2643, %v2704
      %v2715 = vmul.f32 %v2644, %v2706
      %v2716 = vmul.f32 %v2645, %v2708
      %v2717 = vadd.f32 %v475, %v2709
      %v2718 = vadd.f32 %v476, %v2710
      %v2719 = vadd.f32 %v477, %v2711
      %v2720 = vadd.f32 %v478, %v2712
      %v2721 = vadd.f32 %v479, %v2713
      %v2722 = vadd.f32 %v480, %v2714
      %v2723 = vadd.f32 %v481, %v2715
      %v2724 = vadd.f32 %v482, %v2716
      %2725 = vst.msk [vmem:[%s473] sm:$0xff] %vm587, %v2717
      %2726 = vst.msk [vmem:[%s473 + $0x8] sm:$0xff] %vm587, %v2718
      %2727 = vst.msk [vmem:[%s473 + $0x10] sm:$0xff] %vm587, %v2719
      %2728 = vst.msk [vmem:[%s473 + $0x18] sm:$0xff] %vm587, %v2720
      %2729 = vst.msk [vmem:[%s473 + $0x20] sm:$0xff] %vm587, %v2721
      %2730 = vst.msk [vmem:[%s473 + $0x28] sm:$0xff] %vm587, %v2722
      %2731 = vst.msk [vmem:[%s473 + $0x30] sm:$0xff] %vm587, %v2723
      %2732 = vst.msk [vmem:[%s473 + $0x38] sm:$0xff] %vm587, %v2724
      %p2733 = scmp.lt.s32.totalorder %s23, 1
      %s2734 = scalar_select %p2733, %s23, 1
      %s2735 = smul.addr %s2734, 8
      %s2736 = smul.addr %s2735, 8
      %s2737 = scalar_lea.vmem %s12, %s2736
      // Predicated region
      $region69: #{pixelcnn_layer_down.8} parent=67 // pred_check
        %p2738 = pneg %p313
      $region70: #{pixelcnn_layer_down.8} parent=67 // pred_check_branch
        %2740 = sbr.rel (%p2738) target = $region72
      $region71: #{pixelcnn_layer_down.8} parent=67 // pred_region
        _
      $region72: #{pixelcnn_layer_down.8} parent=67 // pred_fallthru
        _
    $region68: #{pixelcnn_layer_down.8} parent=5 // pred_fallthru
      _
    %p2741 = scmp.le.s32.totalorder 2, %s18
    // Predicated region
    $region73: #{pixelcnn_layer_down.8} parent=5 // pred_check
      %p2742 = pneg %p2741
    $region74: #{pixelcnn_layer_down.8} parent=5 // pred_check_branch
      %2744 = sbr.rel (%p2742) target = $region76
    $region75: #{pixelcnn_layer_down.8} parent=5 // pred_region
      %s2745 = ssub.s32 %s18, 2
      // Predicated region
      $region77: #{pixelcnn_layer_down.8} parent=75 // pred_check
        %p2746 = pneg %p319
      $region78: #{pixelcnn_layer_down.8} parent=75 // pred_check_branch
        %2748 = sbr.rel (%p2746) target = $region80
      $region79: #{pixelcnn_layer_down.8} parent=75 // pred_region
        %p2749 = scmp.lt.s32.totalorder %s24, 1
        %s2750 = scalar_select %p2749, %s24, 1
        %s2751 = smul.addr %s2750, 8
        %s2752 = smul.addr %s2751, 8
        %s2753 = scalar_lea.vmem %s12, %s2752
      $region80: #{pixelcnn_layer_down.8} parent=75 // pred_fallthru
        _
    $region76: #{pixelcnn_layer_down.8} parent=5 // pred_fallthru
      _
  $region6: #{pixelcnn_layer_down.8} parent=0 // loop_footer
    %s22 = sadd.s32 1, %s18
  $region7: #{pixelcnn_layer_down.8} parent=0 // loop_footer_branch
    %17 = sbr.rel target = $region3
  $region8: #{pixelcnn_layer_down.8} parent=0 // loop_exit
    _

// kernel: pixelcnn_layer_down.11
$region0: #{pixelcnn_layer_down.11}
  #allocation0 [shape = 'u32[]', space=smem, size = 0x4, offset = 0x4, fixed_abs, tag = 'smem constant byte address 0x4 - core index']
  #allocation1 [shape = 'u32[144,128]{1,0:T(1,128)}', space=vmem, size = 0x12000, scoped, tag = 'internal scratch']
  %s0 = inlined_call_operand.vmem [shape: f32[2,8,8,32], index: 0, kind: input, shape index: {}]
  %s1 = inlined_call_operand.vmem [shape: f32[2,8,8,32], index: 1, kind: input, shape index: {}]
  %s2 = inlined_call_operand.vmem [shape: f32[2,8,8,32], index: 2, kind: input, shape index: {}]
  %s3 = inlined_call_operand.vmem [shape: f32[2,8,8,32], index: 3, kind: input, shape index: {}]
  %s4 = inlined_call_operand.vmem [shape: bf16[256,32], index: 4, kind: input, shape index: {}]
  %s5 = inlined_call_operand.vmem [shape: bf16[64,32], index: 5, kind: input, shape index: {}]
  %s6 = inlined_call_operand.vmem [shape: bf16[64,32], index: 6, kind: input, shape index: {}]
  %s7 = inlined_call_operand.vmem [shape: f32[1,32], index: 7, kind: input, shape index: {}]
  %s8 = inlined_call_operand.vmem [shape: bf16[256,32], index: 8, kind: input, shape index: {}]
  %s9 = inlined_call_operand.vmem [shape: bf16[256,32], index: 9, kind: input, shape index: {}]
  %s10 = inlined_call_operand.vmem [shape: f32[1,32], index: 10, kind: input, shape index: {}]
  %s11 = inlined_call_operand.vmem [shape: f32[1,32], index: 11, kind: input, shape index: {}]
  %s12 = inlined_call_operand.hbm [shape: f32[2,8,8,32], index: 12, kind: output, shape index: {}]
  %s13 = sld [smem:[#allocation0]]
  $region81: #{pixelcnn_layer_down.11} parent=0
    _
  %s15 = ssub.s32 1, %s13
  %s16 = scalar_select 0, %s15, %s13
  $region1: #{pixelcnn_layer_down.11} parent=0
    #allocation2 [shape = 'u8[65536]{0}', space=vmem, size = 0x10000, scoped, tag = 'output window, operand 0']
    #allocation3 [shape = 's32[2]{0}', space=sflag, size = 0x8, scoped, tag = 'scoped memory for pixelcnn_layer_down.11']
    %17 = vsyncpa [#allocation3], 0
    %s18 = scalar_lea.sflag [#allocation3], 1
    %19 = vsyncpa %s18, 0
    loop: start=0, step=1, limit=4
    $region2: #{pixelcnn_layer_down.11} parent=1 // loop_pre_header
      _
    $region3: #{pixelcnn_layer_down.11} parent=1 // loop_header
      %s21 = sphi 0, %s25
      %p22 = scmp.ge.s32.totalorder %s21, 4
      %s31 = sphi 0, %s33
      %s34 = sphi 0, %s31
      %s35 = sphi 0, %s34
      %s51 = sphi 0, %s35
      %s57 = sphi 0, %s59
      %s60 = sphi 0, %s57
      %s61 = sphi 0, %s60
      %s77 = sphi 0, %s61
      %s83 = sphi 0, %s85
      %s86 = sphi 0, %s83
      %s87 = sphi 0, %s86
      %s103 = sphi 0, %s87
      %s109 = sphi 0, %s111
      %s112 = sphi 0, %s109
      %s113 = sphi 0, %s112
      %s129 = sphi 0, %s113
      %s133 = sphi 0, %s133
      %s135 = sphi 0, %s133
      %s136 = sphi 0, %s135
      %s150 = sphi 0, %s136
      %s154 = sphi 0, %s154
      %s156 = sphi 0, %s154
      %s157 = sphi 0, %s156
      %s171 = sphi 0, %s157
      %s175 = sphi 0, %s175
      %s177 = sphi 0, %s175
      %s178 = sphi 0, %s177
      %s192 = sphi 0, %s178
      %s196 = sphi 0, %s196
      %s198 = sphi 0, %s196
      %s199 = sphi 0, %s198
      %s213 = sphi 0, %s199
      %s217 = sphi 0, %s217
      %s219 = sphi 0, %s217
      %s220 = sphi 0, %s219
      %s234 = sphi 0, %s220
      %s238 = sphi 0, %s238
      %s240 = sphi 0, %s238
      %s241 = sphi 0, %s240
      %s255 = sphi 0, %s241
      %s259 = sphi 0, %s259
      %s261 = sphi 0, %s259
      %s262 = sphi 0, %s261
      %s276 = sphi 0, %s262
      %s280 = sphi 0, %s280
      %s282 = sphi 0, %s280
      %s283 = sphi 0, %s282
      %s297 = sphi 0, %s283
      %s303 = sphi 0, %s305
      %s306 = sphi 0, %s303
      %s307 = sphi 0, %s306
      %s323 = sphi 0, %s307
    $region4: #{pixelcnn_layer_down.11} parent=1 // loop_header_branch
      %24 = sbr.rel (%p22) target = $region8
    $region5: #{pixelcnn_layer_down.11} parent=1 // loop_body
      %s26 = ssub.s32 %s21, 1
      %s27 = ssub.s32 %s21, 2
      %s28 = sadd.s32 %s21, 1
      %s29 = ssub.s32 %s21, %s28
      %p30 = scmp.eq.s32.totalorder %s29, 0
      %s32 = sadd.s32 %s31, 1
      %s33 = scalar_select %p30, %s31, %s32
      %p36 = pneg %p30
      %p37 = scmp.eq.s32.totalorder %s21, 1
      %p38 = por %p36, %p37
      %p39 = scmp.ne.s32.totalorder %s31, %s34
      %p40 = scmp.eq.s32.totalorder %s21, 0
      %p41 = por %p39, %p40
      %p42 = scmp.ne.s32.totalorder %s31, %s34
      %p43 = scmp.eq.s32.totalorder %s26, 1
      %p44 = por %p42, %p43
      %p45 = scmp.ne.s32.totalorder %s34, %s35
      %p46 = scmp.eq.s32.totalorder %s26, 0
      %p47 = por %p45, %p46
      %p48 = scmp.ne.s32.totalorder %s34, %s35
      %p49 = scmp.eq.s32.totalorder %s27, 1
      %p50 = por %p48, %p49
      %p52 = scmp.ne.s32.totalorder %s35, %s51
      %p53 = scmp.eq.s32.totalorder %s27, 0
      %p54 = por %p52, %p53
      %s55 = ssub.s32 %s21, %s28
      %p56 = scmp.eq.s32.totalorder %s55, 0
      %s58 = sadd.s32 %s57, 1
      %s59 = scalar_select %p56, %s57, %s58
      %p62 = pneg %p56
      %p63 = scmp.eq.s32.totalorder %s21, 1
      %p64 = por %p62, %p63
      %p65 = scmp.ne.s32.totalorder %s57, %s60
      %p66 = scmp.eq.s32.totalorder %s21, 0
      %p67 = por %p65, %p66
      %p68 = scmp.ne.s32.totalorder %s57, %s60
      %p69 = scmp.eq.s32.totalorder %s26, 1
      %p70 = por %p68, %p69
      %p71 = scmp.ne.s32.totalorder %s60, %s61
      %p72 = scmp.eq.s32.totalorder %s26, 0
      %p73 = por %p71, %p72
      %p74 = scmp.ne.s32.totalorder %s60, %s61
      %p75 = scmp.eq.s32.totalorder %s27, 1
      %p76 = por %p74, %p75
      %p78 = scmp.ne.s32.totalorder %s61, %s77
      %p79 = scmp.eq.s32.totalorder %s27, 0
      %p80 = por %p78, %p79
      %s81 = ssub.s32 %s21, %s28
      %p82 = scmp.eq.s32.totalorder %s81, 0
      %s84 = sadd.s32 %s83, 1
      %s85 = scalar_select %p82, %s83, %s84
      %p88 = pneg %p82
      %p89 = scmp.eq.s32.totalorder %s21, 1
      %p90 = por %p88, %p89
      %p91 = scmp.ne.s32.totalorder %s83, %s86
      %p92 = scmp.eq.s32.totalorder %s21, 0
      %p93 = por %p91, %p92
      %p94 = scmp.ne.s32.totalorder %s83, %s86
      %p95 = scmp.eq.s32.totalorder %s26, 1
      %p96 = por %p94, %p95
      %p97 = scmp.ne.s32.totalorder %s86, %s87
      %p98 = scmp.eq.s32.totalorder %s26, 0
      %p99 = por %p97, %p98
      %p100 = scmp.ne.s32.totalorder %s86, %s87
      %p101 = scmp.eq.s32.totalorder %s27, 1
      %p102 = por %p100, %p101
      %p104 = scmp.ne.s32.totalorder %s87, %s103
      %p105 = scmp.eq.s32.totalorder %s27, 0
      %p106 = por %p104, %p105
      %s107 = ssub.s32 %s21, %s28
      %p108 = scmp.eq.s32.totalorder %s107, 0
      %s110 = sadd.s32 %s109, 1
      %s111 = scalar_select %p108, %s109, %s110
      %p114 = pneg %p108
      %p115 = scmp.eq.s32.totalorder %s21, 1
      %p116 = por %p114, %p115
      %p117 = scmp.ne.s32.totalorder %s109, %s112
      %p118 = scmp.eq.s32.totalorder %s21, 0
      %p119 = por %p117, %p118
      %p120 = scmp.ne.s32.totalorder %s109, %s112
      %p121 = scmp.eq.s32.totalorder %s26, 1
      %p122 = por %p120, %p121
      %p123 = scmp.ne.s32.totalorder %s112, %s113
      %p124 = scmp.eq.s32.totalorder %s26, 0
      %p125 = por %p123, %p124
      %p126 = scmp.ne.s32.totalorder %s112, %s113
      %p127 = scmp.eq.s32.totalorder %s27, 1
      %p128 = por %p126, %p127
      %p130 = scmp.ne.s32.totalorder %s113, %s129
      %p131 = scmp.eq.s32.totalorder %s27, 0
      %p132 = por %p130, %p131
      %s134 = sadd.s32 %s133, 1
      %p137 = scmp.eq.s32.totalorder %s21, 1
      %p138 = scmp.ne.s32.totalorder %s133, %s135
      %p139 = scmp.eq.s32.totalorder %s21, 0
      %p140 = por %p138, %p139
      %p141 = scmp.ne.s32.totalorder %s133, %s135
      %p142 = scmp.eq.s32.totalorder %s26, 1
      %p143 = por %p141, %p142
      %p144 = scmp.ne.s32.totalorder %s135, %s136
      %p145 = scmp.eq.s32.totalorder %s26, 0
      %p146 = por %p144, %p145
      %p147 = scmp.ne.s32.totalorder %s135, %s136
      %p148 = scmp.eq.s32.totalorder %s27, 1
      %p149 = por %p147, %p148
      %p151 = scmp.ne.s32.totalorder %s136, %s150
      %p152 = scmp.eq.s32.totalorder %s27, 0
      %p153 = por %p151, %p152
      %s155 = sadd.s32 %s154, 1
      %p158 = scmp.eq.s32.totalorder %s21, 1
      %p159 = scmp.ne.s32.totalorder %s154, %s156
      %p160 = scmp.eq.s32.totalorder %s21, 0
      %p161 = por %p159, %p160
      %p162 = scmp.ne.s32.totalorder %s154, %s156
      %p163 = scmp.eq.s32.totalorder %s26, 1
      %p164 = por %p162, %p163
      %p165 = scmp.ne.s32.totalorder %s156, %s157
      %p166 = scmp.eq.s32.totalorder %s26, 0
      %p167 = por %p165, %p166
      %p168 = scmp.ne.s32.totalorder %s156, %s157
      %p169 = scmp.eq.s32.totalorder %s27, 1
      %p170 = por %p168, %p169
      %p172 = scmp.ne.s32.totalorder %s157, %s171
      %p173 = scmp.eq.s32.totalorder %s27, 0
      %p174 = por %p172, %p173
      %s176 = sadd.s32 %s175, 1
      %p179 = scmp.eq.s32.totalorder %s21, 1
      %p180 = scmp.ne.s32.totalorder %s175, %s177
      %p181 = scmp.eq.s32.totalorder %s21, 0
      %p182 = por %p180, %p181
      %p183 = scmp.ne.s32.totalorder %s175, %s177
      %p184 = scmp.eq.s32.totalorder %s26, 1
      %p185 = por %p183, %p184
      %p186 = scmp.ne.s32.totalorder %s177, %s178
      %p187 = scmp.eq.s32.totalorder %s26, 0
      %p188 = por %p186, %p187
      %p189 = scmp.ne.s32.totalorder %s177, %s178
      %p190 = scmp.eq.s32.totalorder %s27, 1
      %p191 = por %p189, %p190
      %p193 = scmp.ne.s32.totalorder %s178, %s192
      %p194 = scmp.eq.s32.totalorder %s27, 0
      %p195 = por %p193, %p194
      %s197 = sadd.s32 %s196, 1
      %p200 = scmp.eq.s32.totalorder %s21, 1
      %p201 = scmp.ne.s32.totalorder %s196, %s198
      %p202 = scmp.eq.s32.totalorder %s21, 0
      %p203 = por %p201, %p202
      %p204 = scmp.ne.s32.totalorder %s196, %s198
      %p205 = scmp.eq.s32.totalorder %s26, 1
      %p206 = por %p204, %p205
      %p207 = scmp.ne.s32.totalorder %s198, %s199
      %p208 = scmp.eq.s32.totalorder %s26, 0
      %p209 = por %p207, %p208
      %p210 = scmp.ne.s32.totalorder %s198, %s199
      %p211 = scmp.eq.s32.totalorder %s27, 1
      %p212 = por %p210, %p211
      %p214 = scmp.ne.s32.totalorder %s199, %s213
      %p215 = scmp.eq.s32.totalorder %s27, 0
      %p216 = por %p214, %p215
      %s218 = sadd.s32 %s217, 1
      %p221 = scmp.eq.s32.totalorder %s21, 1
      %p222 = scmp.ne.s32.totalorder %s217, %s219
      %p223 = scmp.eq.s32.totalorder %s21, 0
      %p224 = por %p222, %p223
      %p225 = scmp.ne.s32.totalorder %s217, %s219
      %p226 = scmp.eq.s32.totalorder %s26, 1
      %p227 = por %p225, %p226
      %p228 = scmp.ne.s32.totalorder %s219, %s220
      %p229 = scmp.eq.s32.totalorder %s26, 0
      %p230 = por %p228, %p229
      %p231 = scmp.ne.s32.totalorder %s219, %s220
      %p232 = scmp.eq.s32.totalorder %s27, 1
      %p233 = por %p231, %p232
      %p235 = scmp.ne.s32.totalorder %s220, %s234
      %p236 = scmp.eq.s32.totalorder %s27, 0
      %p237 = por %p235, %p236
      %s239 = sadd.s32 %s238, 1
      %p242 = scmp.eq.s32.totalorder %s21, 1
      %p243 = scmp.ne.s32.totalorder %s238, %s240
      %p244 = scmp.eq.s32.totalorder %s21, 0
      %p245 = por %p243, %p244
      %p246 = scmp.ne.s32.totalorder %s238, %s240
      %p247 = scmp.eq.s32.totalorder %s26, 1
      %p248 = por %p246, %p247
      %p249 = scmp.ne.s32.totalorder %s240, %s241
      %p250 = scmp.eq.s32.totalorder %s26, 0
      %p251 = por %p249, %p250
      %p252 = scmp.ne.s32.totalorder %s240, %s241
      %p253 = scmp.eq.s32.totalorder %s27, 1
      %p254 = por %p252, %p253
      %p256 = scmp.ne.s32.totalorder %s241, %s255
      %p257 = scmp.eq.s32.totalorder %s27, 0
      %p258 = por %p256, %p257
      %s260 = sadd.s32 %s259, 1
      %p263 = scmp.eq.s32.totalorder %s21, 1
      %p264 = scmp.ne.s32.totalorder %s259, %s261
      %p265 = scmp.eq.s32.totalorder %s21, 0
      %p266 = por %p264, %p265
      %p267 = scmp.ne.s32.totalorder %s259, %s261
      %p268 = scmp.eq.s32.totalorder %s26, 1
      %p269 = por %p267, %p268
      %p270 = scmp.ne.s32.totalorder %s261, %s262
      %p271 = scmp.eq.s32.totalorder %s26, 0
      %p272 = por %p270, %p271
      %p273 = scmp.ne.s32.totalorder %s261, %s262
      %p274 = scmp.eq.s32.totalorder %s27, 1
      %p275 = por %p273, %p274
      %p277 = scmp.ne.s32.totalorder %s262, %s276
      %p278 = scmp.eq.s32.totalorder %s27, 0
      %p279 = por %p277, %p278
      %s281 = sadd.s32 %s280, 1
      %p284 = scmp.eq.s32.totalorder %s21, 1
      %p285 = scmp.ne.s32.totalorder %s280, %s282
      %p286 = scmp.eq.s32.totalorder %s21, 0
      %p287 = por %p285, %p286
      %p288 = scmp.ne.s32.totalorder %s280, %s282
      %p289 = scmp.eq.s32.totalorder %s26, 1
      %p290 = por %p288, %p289
      %p291 = scmp.ne.s32.totalorder %s282, %s283
      %p292 = scmp.eq.s32.totalorder %s26, 0
      %p293 = por %p291, %p292
      %p294 = scmp.ne.s32.totalorder %s282, %s283
      %p295 = scmp.eq.s32.totalorder %s27, 1
      %p296 = por %p294, %p295
      %p298 = scmp.ne.s32.totalorder %s283, %s297
      %p299 = scmp.eq.s32.totalorder %s27, 0
      %p300 = por %p298, %p299
      %s301 = ssub.s32 %s21, %s28
      %p302 = scmp.eq.s32.totalorder %s301, 0
      %s304 = sadd.s32 %s303, 1
      %s305 = scalar_select %p302, %s303, %s304
      %p308 = pneg %p302
      %p309 = scmp.eq.s32.totalorder %s21, 1
      %p310 = por %p308, %p309
      %p311 = scmp.ne.s32.totalorder %s303, %s306
      %p312 = scmp.eq.s32.totalorder %s21, 0
      %p313 = por %p311, %p312
      %p314 = scmp.ne.s32.totalorder %s303, %s306
      %p315 = scmp.eq.s32.totalorder %s26, 1
      %p316 = por %p314, %p315
      %p317 = scmp.ne.s32.totalorder %s306, %s307
      %p318 = scmp.eq.s32.totalorder %s26, 0
      %p319 = por %p317, %p318
      %p320 = scmp.ne.s32.totalorder %s306, %s307
      %p321 = scmp.eq.s32.totalorder %s27, 1
      %p322 = por %p320, %p321
      %p324 = scmp.ne.s32.totalorder %s307, %s323
      %p325 = scmp.eq.s32.totalorder %s27, 0
      %p326 = por %p324, %p325
      %p327 = scmp.le.s32.totalorder 1, %s21
      %p328 = scmp.lt.s32.totalorder %s21, 3
      %p329 = pnand %p327, %p328
      %p330 = pneg %p329
      // Predicated region
      $region9: #{pixelcnn_layer_down.11} parent=5 // pred_check
        _
      $region10: #{pixelcnn_layer_down.11} parent=5 // pred_check_branch
        %332 = sbr.rel (%p329) target = $region12
      $region11: #{pixelcnn_layer_down.11} parent=5 // pred_region
        %s333 = ssub.s32 %s21, 1
        // Predicated region
        $region13: #{pixelcnn_layer_down.11} parent=11 // pred_check
          %p334 = pneg %p146
        $region14: #{pixelcnn_layer_down.11} parent=11 // pred_check_branch
          %336 = sbr.rel (%p334) target = $region16
        $region15: #{pixelcnn_layer_down.11} parent=11 // pred_region
          _
        $region16: #{pixelcnn_layer_down.11} parent=11 // pred_fallthru
          _
        // Predicated region
        $region17: #{pixelcnn_layer_down.11} parent=11 // pred_check
          %p337 = pneg %p167
        $region18: #{pixelcnn_layer_down.11} parent=11 // pred_check_branch
          %339 = sbr.rel (%p337) target = $region20
        $region19: #{pixelcnn_layer_down.11} parent=11 // pred_region
          _
        $region20: #{pixelcnn_layer_down.11} parent=11 // pred_fallthru
          _
        // Predicated region
        $region21: #{pixelcnn_layer_down.11} parent=11 // pred_check
          %p340 = pneg %p188
        $region22: #{pixelcnn_layer_down.11} parent=11 // pred_check_branch
          %342 = sbr.rel (%p340) target = $region24
        $region23: #{pixelcnn_layer_down.11} parent=11 // pred_region
          _
        $region24: #{pixelcnn_layer_down.11} parent=11 // pred_fallthru
          _
        // Predicated region
        $region25: #{pixelcnn_layer_down.11} parent=11 // pred_check
          %p343 = pneg %p209
        $region26: #{pixelcnn_layer_down.11} parent=11 // pred_check_branch
          %345 = sbr.rel (%p343) target = $region28
        $region27: #{pixelcnn_layer_down.11} parent=11 // pred_region
          _
        $region28: #{pixelcnn_layer_down.11} parent=11 // pred_fallthru
          _
        // Predicated region
        $region29: #{pixelcnn_layer_down.11} parent=11 // pred_check
          %p346 = pneg %p230
        $region30: #{pixelcnn_layer_down.11} parent=11 // pred_check_branch
          %348 = sbr.rel (%p346) target = $region32
        $region31: #{pixelcnn_layer_down.11} parent=11 // pred_region
          _
        $region32: #{pixelcnn_layer_down.11} parent=11 // pred_fallthru
          _
        // Predicated region
        $region33: #{pixelcnn_layer_down.11} parent=11 // pred_check
          %p349 = pneg %p251
        $region34: #{pixelcnn_layer_down.11} parent=11 // pred_check_branch
          %351 = sbr.rel (%p349) target = $region36
        $region35: #{pixelcnn_layer_down.11} parent=11 // pred_region
          _
        $region36: #{pixelcnn_layer_down.11} parent=11 // pred_fallthru
          _
        // Predicated region
        $region37: #{pixelcnn_layer_down.11} parent=11 // pred_check
          %p352 = pneg %p272
        $region38: #{pixelcnn_layer_down.11} parent=11 // pred_check_branch
          %354 = sbr.rel (%p352) target = $region40
        $region39: #{pixelcnn_layer_down.11} parent=11 // pred_region
          _
        $region40: #{pixelcnn_layer_down.11} parent=11 // pred_fallthru
          _
        // Predicated region
        $region41: #{pixelcnn_layer_down.11} parent=11 // pred_check
          %p355 = pneg %p293
        $region42: #{pixelcnn_layer_down.11} parent=11 // pred_check_branch
          %357 = sbr.rel (%p355) target = $region44
        $region43: #{pixelcnn_layer_down.11} parent=11 // pred_region
          _
        $region44: #{pixelcnn_layer_down.11} parent=11 // pred_fallthru
          _
      $region12: #{pixelcnn_layer_down.11} parent=5 // pred_fallthru
        _
      %p358 = scmp.lt.s32.totalorder %s21, 2
      // Predicated region
      $region45: #{pixelcnn_layer_down.11} parent=5 // pred_check
        %p359 = pneg %p358
      $region46: #{pixelcnn_layer_down.11} parent=5 // pred_check_branch
        %361 = sbr.rel (%p359) target = $region48
      $region47: #{pixelcnn_layer_down.11} parent=5 // pred_region
        // Predicated region
        $region49: #{pixelcnn_layer_down.11} parent=47 // pred_check
          %p362 = pneg %p41
        $region50: #{pixelcnn_layer_down.11} parent=47 // pred_check_branch
          %364 = sbr.rel (%p362) target = $region52
        $region51: #{pixelcnn_layer_down.11} parent=47 // pred_region
          %p365 = scmp.lt.s32.totalorder %s21, 1
          %s366 = scalar_select %p365, %s21, 1
          %s367 = smul.addr %s366, 8
          %s368 = smul.addr %s367, 8
          %s369 = scalar_lea.vmem %s0, %s368
        $region52: #{pixelcnn_layer_down.11} parent=47 // pred_fallthru
          _
        // Predicated region
        $region53: #{pixelcnn_layer_down.11} parent=47 // pred_check
          %p370 = pneg %p67
        $region54: #{pixelcnn_layer_down.11} parent=47 // pred_check_branch
          %372 = sbr.rel (%p370) target = $region56
        $region55: #{pixelcnn_layer_down.11} parent=47 // pred_region
          %p373 = scmp.lt.s32.totalorder %s21, 1
          %s374 = scalar_select %p373, %s21, 1
          %s375 = smul.addr %s374, 8
          %s376 = smul.addr %s375, 8
          %s377 = scalar_lea.vmem %s1, %s376
        $region56: #{pixelcnn_layer_down.11} parent=47 // pred_fallthru
          _
        // Predicated region
        $region57: #{pixelcnn_layer_down.11} parent=47 // pred_check
          %p378 = pneg %p93
        $region58: #{pixelcnn_layer_down.11} parent=47 // pred_check_branch
          %380 = sbr.rel (%p378) target = $region60
        $region59: #{pixelcnn_layer_down.11} parent=47 // pred_region
          %p381 = scmp.lt.s32.totalorder %s21, 1
          %s382 = scalar_select %p381, %s21, 1
          %s383 = smul.addr %s382, 8
          %s384 = smul.addr %s383, 8
          %s385 = scalar_lea.vmem %s2, %s384
        $region60: #{pixelcnn_layer_down.11} parent=47 // pred_fallthru
          _
        // Predicated region
        $region61: #{pixelcnn_layer_down.11} parent=47 // pred_check
          %p386 = pneg %p119
        $region62: #{pixelcnn_layer_down.11} parent=47 // pred_check_branch
          %388 = sbr.rel (%p386) target = $region64
        $region63: #{pixelcnn_layer_down.11} parent=47 // pred_region
          %p389 = scmp.lt.s32.totalorder %s21, 1
          %s390 = scalar_select %p389, %s21, 1
          %s391 = smul.addr %s390, 8
          %s392 = smul.addr %s391, 8
          %s393 = scalar_lea.vmem %s3, %s392
        $region64: #{pixelcnn_layer_down.11} parent=47 // pred_fallthru
          _
      $region48: #{pixelcnn_layer_down.11} parent=5 // pred_fallthru
        _
      %p394 = scmp.le.s32.totalorder 1, %s21
      %p395 = scmp.lt.s32.totalorder %s21, 3
      %p396 = pnand %p394, %p395
      %p397 = pneg %p396
      // Predicated region
      $region65: #{pixelcnn_layer_down.11} parent=5 // pred_check
        _
      $region66: #{pixelcnn_layer_down.11} parent=5 // pred_check_branch
        %399 = sbr.rel (%p396) target = $region68
      $region67: #{pixelcnn_layer_down.11} parent=5 // pred_region
        %s400 = ssub.s32 %s21, 1
        %p401 = scmp.lt.s32.totalorder %s26, 1
        %s402 = scalar_select %p401, %s26, 1
        %s403 = smul.addr %s402, 8
        %s404 = smul.addr %s403, 8
        %s405 = scalar_lea.vmem %s0, %s404
        %p406 = pneg %p47
        %p407 = pneg %p44
        %p408 = scmp.lt.s32.totalorder %s26, 1
        %s409 = scalar_select %p408, %s26, 1
        %s410 = smul.addr %s409, 8
        %s411 = smul.addr %s410, 8
        %s412 = scalar_lea.vmem %s1, %s411
        %p413 = pneg %p73
        %p414 = pneg %p70
        %p415 = scmp.lt.s32.totalorder %s26, 1
        %s416 = scalar_select %p415, %s26, 1
        %s417 = smul.addr %s416, 8
        %s418 = smul.addr %s417, 8
        %s419 = scalar_lea.vmem %s2, %s418
        %p420 = pneg %p99
        %p421 = pneg %p96
        %p422 = scmp.lt.s32.totalorder %s26, 1
        %s423 = scalar_select %p422, %s26, 1
        %s424 = smul.addr %s423, 8
        %s425 = smul.addr %s424, 8
        %s426 = scalar_lea.vmem %s3, %s425
        %p427 = pneg %p125
        %p428 = pneg %p122
        %p429 = pneg %p146
        %p430 = pneg %p143
        %p431 = pneg %p167
        %p432 = pneg %p164
        %p433 = pneg %p188
        %p434 = pneg %p185
        %p435 = pneg %p209
        %p436 = pneg %p206
        %p437 = pneg %p230
        %p438 = pneg %p227
        %p439 = pneg %p251
        %p440 = pneg %p248
        %p441 = pneg %p272
        %p442 = pneg %p269
        %p443 = pneg %p293
        %p444 = pneg %p290
        %p445 = pneg %p319
        %p446 = pneg %p316
        %s447 = sand.u32 %s306, 1
        %s448 = scalar_lea.sflag [#allocation3], %s447
        %s449 = sand.u32 %s306, 1
        %s450 = smul.addr %s449, 64
        %s451 = scalar_lea.vmem [#allocation2], %s450
        %p452 = scmp.lt.s32.totalorder %s26, 1
        %s453 = scalar_select %p452, %s26, 1
        %s454 = smul.addr %s453, 8
        %s455 = smul.addr %s454, 8
        %s456 = scalar_lea.vmem %s0, %s455
        %p457 = scmp.lt.s32.totalorder %s26, 1
        %s458 = scalar_select %p457, %s26, 1
        %s459 = smul.addr %s458, 8
        %s460 = smul.addr %s459, 8
        %s461 = scalar_lea.vmem %s1, %s460
        %p462 = scmp.lt.s32.totalorder %s26, 1
        %s463 = scalar_select %p462, %s26, 1
        %s464 = smul.addr %s463, 8
        %s465 = smul.addr %s464, 8
        %s466 = scalar_lea.vmem %s2, %s465
        %p467 = scmp.lt.s32.totalorder %s26, 1
        %s468 = scalar_select %p467, %s26, 1
        %s469 = smul.addr %s468, 8
        %s470 = smul.addr %s469, 8
        %s471 = scalar_lea.vmem %s3, %s470
        %v473 = vld [vmem:[%s456] sm:$0xff]
        %v474 = vld [vmem:[%s456 + $0x8] sm:$0xff]
        %v475 = vld [vmem:[%s456 + $0x10] sm:$0xff]
        %v476 = vld [vmem:[%s456 + $0x18] sm:$0xff]
        %v477 = vld [vmem:[%s456 + $0x20] sm:$0xff]
        %v478 = vld [vmem:[%s456 + $0x28] sm:$0xff]
        %v479 = vld [vmem:[%s456 + $0x30] sm:$0xff]
        %v480 = vld [vmem:[%s456 + $0x38] sm:$0xff]
        %v481 = vand.u32 2147483647, %v473
        %v482 = vand.u32 2147483647, %v474
        %v483 = vand.u32 2147483647, %v475
        %v484 = vand.u32 2147483647, %v476
        %v485 = vand.u32 2147483647, %v477
        %v486 = vand.u32 2147483647, %v478
        %v487 = vand.u32 2147483647, %v479
        %v488 = vand.u32 2147483647, %v480
        %v489 = vsub.f32 0.0, %v481
        %v490 = vsub.f32 0.0, %v482
        %v491 = vsub.f32 0.0, %v483
        %v492 = vsub.f32 0.0, %v484
        %v493 = vsub.f32 0.0, %v485
        %v494 = vsub.f32 0.0, %v486
        %v495 = vsub.f32 0.0, %v487
        %v496 = vsub.f32 0.0, %v488
        %v497 = vmul.f32 %v489, 1.442695
        %v498 = vpow.pop %v497
        %v499 = vmul.f32 %v490, 1.442695
        %v500 = vpow.pop %v499
        %v501 = vmul.f32 %v491, 1.442695
        %v502 = vpow.pop %v501
        %v503 = vmul.f32 %v492, 1.442695
        %v504 = vpow.pop %v503
        %v505 = vmul.f32 %v493, 1.442695
        %v506 = vpow.pop %v505
        %v507 = vmul.f32 %v494, 1.442695
        %v508 = vpow.pop %v507
        %v509 = vmul.f32 %v495, 1.442695
        %v510 = vpow.pop %v509
        %v511 = vmul.f32 %v496, 1.442695
        %v512 = vpow.pop %v511
        %v513 = vsub.f32 %v498, 1.0
        %v514 = vsub.f32 %v500, 1.0
        %v515 = vsub.f32 %v502, 1.0
        %v516 = vsub.f32 %v504, 1.0
        %v517 = vsub.f32 %v506, 1.0
        %v518 = vsub.f32 %v508, 1.0
        %v519 = vsub.f32 %v510, 1.0
        %v520 = vsub.f32 %v512, 1.0
        %vm521 = vcmp.gt.f32.partialorder %v473, 0.0
        %vm522 = vcmp.gt.f32.partialorder %v474, 0.0
        %vm523 = vcmp.gt.f32.partialorder %v475, 0.0
        %vm524 = vcmp.gt.f32.partialorder %v476, 0.0
        %vm525 = vcmp.gt.f32.partialorder %v477, 0.0
        %vm526 = vcmp.gt.f32.partialorder %v478, 0.0
        %vm527 = vcmp.gt.f32.partialorder %v479, 0.0
        %vm528 = vcmp.gt.f32.partialorder %v480, 0.0
        %v529 = vsel %vm521, %v473, %v513
        %v530 = vsel %vm522, %v474, %v514
        %v531 = vsel %vm523, %v475, %v515
        %v532 = vsel %vm524, %v476, %v516
        %v533 = vsel %vm525, %v477, %v517
        %v534 = vsel %vm526, %v478, %v518
        %v535 = vsel %vm527, %v479, %v519
        %v536 = vsel %vm528, %v480, %v520
        %v537 = vsub.f32 0.0, %v473
        %v538 = vsub.f32 0.0, %v474
        %v539 = vsub.f32 0.0, %v475
        %v540 = vsub.f32 0.0, %v476
        %v541 = vsub.f32 0.0, %v477
        %v542 = vsub.f32 0.0, %v478
        %v543 = vsub.f32 0.0, %v479
        %v544 = vsub.f32 0.0, %v480
        %v545 = vsel %vm521, %v513, %v537
        %v546 = vsel %vm522, %v514, %v538
        %v547 = vsel %vm523, %v515, %v539
        %v548 = vsel %vm524, %v516, %v540
        %v549 = vsel %vm525, %v517, %v541
        %v550 = vsel %vm526, %v518, %v542
        %v551 = vsel %vm527, %v519, %v543
        %v552 = vsel %vm528, %v520, %v544
        %561 = vrot.lane.b32.xlu0 %v545, 32
        %v562 = vpop.permute.xlu0 %561
        %563 = vrot.lane.b32.xlu0 %v546, 32
        %v564 = vpop.permute.xlu0 %563
        %565 = vrot.lane.b32.xlu0 %v547, 32
        %v566 = vpop.permute.xlu0 %565
        %567 = vrot.lane.b32.xlu0 %v548, 32
        %v568 = vpop.permute.xlu0 %567
        %569 = vrot.lane.b32.xlu0 %v549, 32
        %v570 = vpop.permute.xlu0 %569
        %571 = vrot.lane.b32.xlu0 %v550, 32
        %v572 = vpop.permute.xlu0 %571
        %573 = vrot.lane.b32.xlu0 %v551, 32
        %v574 = vpop.permute.xlu0 %573
        %575 = vrot.lane.b32.xlu0 %v552, 32
        %v576 = vpop.permute.xlu0 %575
        %vm585 = vcmask 261120
        %v586 = vsel %vm585, %v529, %v562
        %v587 = vsel %vm585, %v530, %v564
        %v588 = vsel %vm585, %v531, %v566
        %v589 = vsel %vm585, %v532, %v568
        %v590 = vsel %vm585, %v533, %v570
        %v591 = vsel %vm585, %v534, %v572
        %v592 = vsel %vm585, %v535, %v574
        %v593 = vsel %vm585, %v536, %v576
        %v602 = vrot.slane 0.0, 7
        %v603 = vrot.slane %v586, 7
        %v604 = vrot.slane %v587, 7
        %v605 = vrot.slane %v588, 7
        %v606 = vrot.slane %v589, 7
        %v607 = vrot.slane %v590, 7
        %v608 = vrot.slane %v591, 7
        %v609 = vrot.slane %v592, 7
        %vm618 = vcmask 1040384
        %v619 = vsel %vm618, 0.0, %v602
        %v620 = vsel %vm618, 0.0, %v603
        %v621 = vsel %vm618, 0.0, %v604
        %v622 = vsel %vm618, 0.0, %v605
        %v623 = vsel %vm618, 0.0, %v606
        %v624 = vsel %vm618, 0.0, %v607
        %v625 = vsel %vm618, 0.0, %v608
        %v626 = vsel %vm618, 0.0, %v609
        %v627 = vpack.c.bf16 %v620, %v619
        %v628 = vpack.c.bf16 %v622, %v621
        %v629 = vpack.c.bf16 %v624, %v623
        %v630 = vpack.c.bf16 %v626, %v625
        %v631 = vld [vmem:[%s4] sm:$0xf]
        %v632 = vld [vmem:[%s4 + $0x4] sm:$0xf]
        %v633 = vld [vmem:[%s4 + $0x8] sm:$0xf]
        %v634 = vld [vmem:[%s4 + $0xc] sm:$0xf]
        %v635 = vld [vmem:[%s4 + $0x10] sm:$0xf]
        %v636 = vld [vmem:[%s4 + $0x14] sm:$0xf]
        %v637 = vld [vmem:[%s4 + $0x18] sm:$0xf]
        %v638 = vld [vmem:[%s4 + $0x1c] sm:$0xf]
        %v639 = vpack.c.bf16 %v586, 0.0
        %v640 = vpack.c.bf16 %v588, %v587
        %v641 = vpack.c.bf16 %v590, %v589
        %v642 = vpack.c.bf16 %v592, %v591
        %v643 = vld [vmem:[%s4 + $0x20] sm:$0xf]
        %v644 = vld [vmem:[%s4 + $0x24] sm:$0xf]
        %v645 = vld [vmem:[%s4 + $0x28] sm:$0xf]
        %v646 = vld [vmem:[%s4 + $0x2c] sm:$0xf]
        %v647 = vld [vmem:[%s4 + $0x30] sm:$0xf]
        %v648 = vld [vmem:[%s4 + $0x34] sm:$0xf]
        %v649 = vld [vmem:[%s4 + $0x38] sm:$0xf]
        %v650 = vld [vmem:[%s4 + $0x3c] sm:$0xf]
        %v659 = vunpack.c.l.b16 %v643
        %v660 = vunpack.c.l.b16 %v644
        %v661 = vunpack.c.l.b16 %v645
        %v662 = vunpack.c.l.b16 %v646
        %v663 = vunpack.c.l.b16 %v647
        %v664 = vunpack.c.l.b16 %v648
        %v665 = vunpack.c.l.b16 %v649
        %v666 = vunpack.c.l.b16 %v650
        %v667 = vpack.c.b16 %v660, %v659
        %v668 = vpack.c.b16 %v662, %v661
        %v669 = vpack.c.b16 %v664, %v663
        %v670 = vpack.c.b16 %v666, %v665
        %vm675 = vcmask 523264
        %v677 = vsel %vm675, %v639, 0
        %v680 = vsel %vm675, %v640, 0
        %v683 = vsel %vm675, %v641, 0
        %v686 = vsel %vm675, %v642, 0
        %688 = vmatprep.subr.bf16.mxu0 0
        %689 = vmatpush1.bf16.msra.mxu0 %v667
        %690 = vmatprep.subr.bf16.mxu0 0
        %691 = vmatpush1.bf16.msra.mxu0 %v668
        %692 = vmatprep.subr.bf16.mxu0 0
        %693 = vmatpush1.bf16.msra.mxu0 %v669
        %694 = vmatprep.subr.bf16.mxu0 0
        %695 = vmatpush1.bf16.msra.mxu0 %v670
        %696 = vmatprep.subr.bf16.mxu0 0
        %697 = vmatpush1.bf16.msra.mxu0 0
        %698 = vmatprep.subr.bf16.mxu0 0
        %699 = vmatpush1.bf16.msra.mxu0 0
        %700 = vmatprep.subr.bf16.mxu0 0
        %701 = vmatpush1.bf16.msra.mxu0 0
        %702 = vmatprep.subr.bf16.mxu0 0
        %703 = vmatpush1.bf16.msra.mxu0 0
        %704 = vmatprep.subr.bf16.mxu0 0
        %705 = vmatpush1.bf16.msra.mxu0 0
        %706 = vmatprep.subr.bf16.mxu0 0
        %707 = vmatpush1.bf16.msra.mxu0 0
        %708 = vmatprep.subr.bf16.mxu0 0
        %709 = vmatpush1.bf16.msra.mxu0 0
        %710 = vmatprep.subr.bf16.mxu0 0
        %711 = vmatpush1.bf16.msra.mxu0 0
        %712 = vmatprep.subr.bf16.mxu0 0
        %713 = vmatpush1.bf16.msra.mxu0 0
        %714 = vmatprep.subr.bf16.mxu0 0
        %715 = vmatpush1.bf16.msra.mxu0 0
        %716 = vmatprep.subr.bf16.mxu0 0
        %717 = vmatpush1.bf16.msra.mxu0 0
        %718 = vmatprep.subr.bf16.mxu0 0
        %719 = vmatpush1.bf16.msra.mxu0 0
        %720 = vmatprep.mubr.bf16.mxu0 0
        %721 = vmatmul.mubr.bf16.gmra.mrb[0].mxu0 %v677
        %v722 = vpop.f32.mrb[0].mxu0
        %v723 = vadd.f32 0.0, %v722
        %v724 = vpop.f32.mrb[0].mxu0
        %v725 = vpop.f32.mrb[0].mxu0
        %v726 = vadd.f32 0.0, %v725
        %v727 = vpop.f32.mrb[0].mxu0
        %728 = vmatprep.mubr.bf16.mxu0 0
        %729 = vmatmul.mubr.bf16.gmra.mrb[0].mxu0 %v680
        %v730 = vpop.f32.mrb[0].mxu0
        %v731 = vadd.f32 0.0, %v730
        %v732 = vpop.f32.mrb[0].mxu0
        %v733 = vpop.f32.mrb[0].mxu0
        %v734 = vadd.f32 0.0, %v733
        %v735 = vpop.f32.mrb[0].mxu0
        %736 = vmatprep.mubr.bf16.mxu0 0
        %737 = vmatmul.mubr.bf16.gmra.mrb[0].mxu0 %v683
        %v738 = vpop.f32.mrb[0].mxu0
        %v739 = vadd.f32 0.0, %v738
        %v740 = vpop.f32.mrb[0].mxu0
        %v741 = vpop.f32.mrb[0].mxu0
        %v742 = vadd.f32 0.0, %v741
        %v743 = vpop.f32.mrb[0].mxu0
        %744 = vmatprep.mubr.bf16.mxu0 0
        %745 = vmatmul.mubr.bf16.gmra.mrb[0].mxu0 %v686
        %v746 = vpop.f32.mrb[0].mxu0
        %v747 = vadd.f32 0.0, %v746
        %v748 = vpop.f32.mrb[0].mxu0
        %v749 = vpop.f32.mrb[0].mxu0
        %v750 = vadd.f32 0.0, %v749
        %v751 = vpop.f32.mrb[0].mxu0
        %752 = vdwg.mxu0
        %v761 = vunpack.c.l.b16 %v631
        %v762 = vunpack.c.l.b16 %v632
        %v763 = vunpack.c.l.b16 %v633
        %v764 = vunpack.c.l.b16 %v634
        %v765 = vunpack.c.l.b16 %v635
        %v766 = vunpack.c.l.b16 %v636
        %v767 = vunpack.c.l.b16 %v637
        %v768 = vunpack.c.l.b16 %v638
        %v769 = vpack.c.b16 %v762, %v761
        %v770 = vpack.c.b16 %v764, %v763
        %v771 = vpack.c.b16 %v766, %v765
        %v772 = vpack.c.b16 %v768, %v767
        %v778 = vsel %vm675, %v627, 0
        %v781 = vsel %vm675, %v628, 0
        %v784 = vsel %vm675, %v629, 0
        %v787 = vsel %vm675, %v630, 0
        %789 = vmatprep.subr.bf16.mxu0 0
        %790 = vmatpush1.bf16.msra.mxu0 %v769
        %791 = vmatprep.subr.bf16.mxu0 0
        %792 = vmatpush1.bf16.msra.mxu0 %v770
        %793 = vmatprep.subr.bf16.mxu0 0
        %794 = vmatpush1.bf16.msra.mxu0 %v771
        %795 = vmatprep.subr.bf16.mxu0 0
        %796 = vmatpush1.bf16.msra.mxu0 %v772
        %797 = vmatprep.subr.bf16.mxu0 0
        %798 = vmatpush1.bf16.msra.mxu0 0
        %799 = vmatprep.subr.bf16.mxu0 0
        %800 = vmatpush1.bf16.msra.mxu0 0
        %801 = vmatprep.subr.bf16.mxu0 0
        %802 = vmatpush1.bf16.msra.mxu0 0
        %803 = vmatprep.subr.bf16.mxu0 0
        %804 = vmatpush1.bf16.msra.mxu0 0
        %805 = vmatprep.subr.bf16.mxu0 0
        %806 = vmatpush1.bf16.msra.mxu0 0
        %807 = vmatprep.subr.bf16.mxu0 0
        %808 = vmatpush1.bf16.msra.mxu0 0
        %809 = vmatprep.subr.bf16.mxu0 0
        %810 = vmatpush1.bf16.msra.mxu0 0
        %811 = vmatprep.subr.bf16.mxu0 0
        %812 = vmatpush1.bf16.msra.mxu0 0
        %813 = vmatprep.subr.bf16.mxu0 0
        %814 = vmatpush1.bf16.msra.mxu0 0
        %815 = vmatprep.subr.bf16.mxu0 0
        %816 = vmatpush1.bf16.msra.mxu0 0
        %817 = vmatprep.subr.bf16.mxu0 0
        %818 = vmatpush1.bf16.msra.mxu0 0
        %819 = vmatprep.subr.bf16.mxu0 0
        %820 = vmatpush1.bf16.msra.mxu0 0
        %821 = vmatprep.mubr.bf16.mxu0 0
        %822 = vmatmul.mubr.bf16.gmra.mrb[0].mxu0 %v778
        %v823 = vpop.f32.mrb[0].mxu0
        %v824 = vadd.f32 %v723, %v823
        %v825 = vpop.f32.mrb[0].mxu0
        %v826 = vpop.f32.mrb[0].mxu0
        %v827 = vadd.f32 %v726, %v826
        %v828 = vpop.f32.mrb[0].mxu0
        %829 = vmatprep.mubr.bf16.mxu0 0
        %830 = vmatmul.mubr.bf16.gmra.mrb[0].mxu0 %v781
        %v831 = vpop.f32.mrb[0].mxu0
        %v832 = vadd.f32 %v731, %v831
        %v833 = vpop.f32.mrb[0].mxu0
        %v834 = vpop.f32.mrb[0].mxu0
        %v835 = vadd.f32 %v734, %v834
        %v836 = vpop.f32.mrb[0].mxu0
        %837 = vmatprep.mubr.bf16.mxu0 0
        %838 = vmatmul.mubr.bf16.gmra.mrb[0].mxu0 %v784
        %v839 = vpop.f32.mrb[0].mxu0
        %v840 = vadd.f32 %v739, %v839
        %v841 = vpop.f32.mrb[0].mxu0
        %v842 = vpop.f32.mrb[0].mxu0
        %v843 = vadd.f32 %v742, %v842
        %v844 = vpop.f32.mrb[0].mxu0
        %845 = vmatprep.mubr.bf16.mxu0 0
        %846 = vmatmul.mubr.bf16.gmra.mrb[0].mxu0 %v787
        %v847 = vpop.f32.mrb[0].mxu0
        %v848 = vadd.f32 %v747, %v847
        %v849 = vpop.f32.mrb[0].mxu0
        %v850 = vpop.f32.mrb[0].mxu0
        %v851 = vadd.f32 %v750, %v850
        %v852 = vpop.f32.mrb[0].mxu0
        %853 = vdwg.mxu0
        %v855 = vrot.slane %v593, 7
        %v857 = vsel %vm618, 0.0, %v855
        %v858 = vpack.c.bf16 %v621, %v620
        %v859 = vpack.c.bf16 %v623, %v622
        %v860 = vpack.c.bf16 %v625, %v624
        %v861 = vpack.c.bf16 %v857, %v626
        %v862 = vld [vmem:[%s4 + $0x40] sm:$0xf]
        %v863 = vld [vmem:[%s4 + $0x44] sm:$0xf]
        %v864 = vld [vmem:[%s4 + $0x48] sm:$0xf]
        %v865 = vld [vmem:[%s4 + $0x4c] sm:$0xf]
        %v866 = vld [vmem:[%s4 + $0x50] sm:$0xf]
        %v867 = vld [vmem:[%s4 + $0x54] sm:$0xf]
        %v868 = vld [vmem:[%s4 + $0x58] sm:$0xf]
        %v869 = vld [vmem:[%s4 + $0x5c] sm:$0xf]
        %v878 = vunpack.c.l.b16 %v862
        %v879 = vunpack.c.l.b16 %v863
        %v880 = vunpack.c.l.b16 %v864
        %v881 = vunpack.c.l.b16 %v865
        %v882 = vunpack.c.l.b16 %v866
        %v883 = vunpack.c.l.b16 %v867
        %v884 = vunpack.c.l.b16 %v868
        %v885 = vunpack.c.l.b16 %v869
        %v886 = vpack.c.b16 %v879, %v878
        %v887 = vpack.c.b16 %v881, %v880
        %v888 = vpack.c.b16 %v883, %v882
        %v889 = vpack.c.b16 %v885, %v884
        %v895 = vsel %vm675, %v858, 0
        %v898 = vsel %vm675, %v859, 0
        %v901 = vsel %vm675, %v860, 0
        %v904 = vsel %vm675, %v861, 0
        %906 = vmatprep.subr.bf16.mxu0 0
        %907 = vmatpush1.bf16.msra.mxu0 %v886
        %908 = vmatprep.subr.bf16.mxu0 0
        %909 = vmatpush1.bf16.msra.mxu0 %v887
        %910 = vmatprep.subr.bf16.mxu0 0
        %911 = vmatpush1.bf16.msra.mxu0 %v888
        %912 = vmatprep.subr.bf16.mxu0 0
        %913 = vmatpush1.bf16.msra.mxu0 %v889
        %914 = vmatprep.subr.bf16.mxu0 0
        %915 = vmatpush1.bf16.msra.mxu0 0
        %916 = vmatprep.subr.bf16.mxu0 0
        %917 = vmatpush1.bf16.msra.mxu0 0
        %918 = vmatprep.subr.bf16.mxu0 0
        %919 = vmatpush1.bf16.msra.mxu0 0
        %920 = vmatprep.subr.bf16.mxu0 0
        %921 = vmatpush1.bf16.msra.mxu0 0
        %922 = vmatprep.subr.bf16.mxu0 0
        %923 = vmatpush1.bf16.msra.mxu0 0
        %924 = vmatprep.subr.bf16.mxu0 0
        %925 = vmatpush1.bf16.msra.mxu0 0
        %926 = vmatprep.subr.bf16.mxu0 0
        %927 = vmatpush1.bf16.msra.mxu0 0
        %928 = vmatprep.subr.bf16.mxu0 0
        %929 = vmatpush1.bf16.msra.mxu0 0
        %930 = vmatprep.subr.bf16.mxu0 0
        %931 = vmatpush1.bf16.msra.mxu0 0
        %932 = vmatprep.subr.bf16.mxu0 0
        %933 = vmatpush1.bf16.msra.mxu0 0
        %934 = vmatprep.subr.bf16.mxu0 0
        %935 = vmatpush1.bf16.msra.mxu0 0
        %936 = vmatprep.subr.bf16.mxu0 0
        %937 = vmatpush1.bf16.msra.mxu0 0
        %938 = vmatprep.mubr.bf16.mxu0 0
        %939 = vmatmul.mubr.bf16.gmra.mrb[0].mxu0 %v895
        %v940 = vpop.f32.mrb[0].mxu0
        %v941 = vadd.f32 0.0, %v940
        %v942 = vpop.f32.mrb[0].mxu0
        %v943 = vpop.f32.mrb[0].mxu0
        %v944 = vadd.f32 0.0, %v943
        %v945 = vpop.f32.mrb[0].mxu0
        %946 = vmatprep.mubr.bf16.mxu0 0
        %947 = vmatmul.mubr.bf16.gmra.mrb[0].mxu0 %v898
        %v948 = vpop.f32.mrb[0].mxu0
        %v949 = vadd.f32 0.0, %v948
        %v950 = vpop.f32.mrb[0].mxu0
        %v951 = vpop.f32.mrb[0].mxu0
        %v952 = vadd.f32 0.0, %v951
        %v953 = vpop.f32.mrb[0].mxu0
        %954 = vmatprep.mubr.bf16.mxu0 0
        %955 = vmatmul.mubr.bf16.gmra.mrb[0].mxu0 %v901
        %v956 = vpop.f32.mrb[0].mxu0
        %v957 = vadd.f32 0.0, %v956
        %v958 = vpop.f32.mrb[0].mxu0
        %v959 = vpop.f32.mrb[0].mxu0
        %v960 = vadd.f32 0.0, %v959
        %v961 = vpop.f32.mrb[0].mxu0
        %962 = vmatprep.mubr.bf16.mxu0 0
        %963 = vmatmul.mubr.bf16.gmra.mrb[0].mxu0 %v904
        %v964 = vpop.f32.mrb[0].mxu0
        %v965 = vadd.f32 0.0, %v964
        %v966 = vpop.f32.mrb[0].mxu0
        %v967 = vpop.f32.mrb[0].mxu0
        %v968 = vadd.f32 0.0, %v967
        %v969 = vpop.f32.mrb[0].mxu0
        %970 = vdwg.mxu0
        %v971 = vadd.f32 %v824, %v941
        %v972 = vadd.f32 %v827, %v944
        %v973 = vadd.f32 %v832, %v949
        %v974 = vadd.f32 %v835, %v952
        %v975 = vadd.f32 %v840, %v957
        %v976 = vadd.f32 %v843, %v960
        %v977 = vadd.f32 %v848, %v965
        %v978 = vadd.f32 %v851, %v968
        %v979 = vpack.c.bf16 %v587, %v586
        %v980 = vpack.c.bf16 %v589, %v588
        %v981 = vpack.c.bf16 %v591, %v590
        %v982 = vpack.c.bf16 %v593, %v592
        %v983 = vld [vmem:[%s4 + $0x60] sm:$0xf]
        %v984 = vld [vmem:[%s4 + $0x64] sm:$0xf]
        %v985 = vld [vmem:[%s4 + $0x68] sm:$0xf]
        %v986 = vld [vmem:[%s4 + $0x6c] sm:$0xf]
        %v987 = vld [vmem:[%s4 + $0x70] sm:$0xf]
        %v988 = vld [vmem:[%s4 + $0x74] sm:$0xf]
        %v989 = vld [vmem:[%s4 + $0x78] sm:$0xf]
        %v990 = vld [vmem:[%s4 + $0x7c] sm:$0xf]
        %v999 = vunpack.c.l.b16 %v983
        %v1000 = vunpack.c.l.b16 %v984
        %v1001 = vunpack.c.l.b16 %v985
        %v1002 = vunpack.c.l.b16 %v986
        %v1003 = vunpack.c.l.b16 %v987
        %v1004 = vunpack.c.l.b16 %v988
        %v1005 = vunpack.c.l.b16 %v989
        %v1006 = vunpack.c.l.b16 %v990
        %v1007 = vpack.c.b16 %v1000, %v999
        %v1008 = vpack.c.b16 %v1002, %v1001
        %v1009 = vpack.c.b16 %v1004, %v1003
        %v1010 = vpack.c.b16 %v1006, %v1005
        %v1016 = vsel %vm675, %v979, 0
        %v1019 = vsel %vm675, %v980, 0
        %v1022 = vsel %vm675, %v981, 0
        %v1025 = vsel %vm675, %v982, 0
        %1027 = vmatprep.subr.bf16.mxu0 0
        %1028 = vmatpush1.bf16.msra.mxu0 %v1007
        %1029 = vmatprep.subr.bf16.mxu0 0
        %1030 = vmatpush1.bf16.msra.mxu0 %v1008
        %1031 = vmatprep.subr.bf16.mxu0 0
        %1032 = vmatpush1.bf16.msra.mxu0 %v1009
        %1033 = vmatprep.subr.bf16.mxu0 0
        %1034 = vmatpush1.bf16.msra.mxu0 %v1010
        %1035 = vmatprep.subr.bf16.mxu0 0
        %1036 = vmatpush1.bf16.msra.mxu0 0
        %1037 = vmatprep.subr.bf16.mxu0 0
        %1038 = vmatpush1.bf16.msra.mxu0 0
        %1039 = vmatprep.subr.bf16.mxu0 0
        %1040 = vmatpush1.bf16.msra.mxu0 0
        %1041 = vmatprep.subr.bf16.mxu0 0
        %1042 = vmatpush1.bf16.msra.mxu0 0
        %1043 = vmatprep.subr.bf16.mxu0 0
        %1044 = vmatpush1.bf16.msra.mxu0 0
        %1045 = vmatprep.subr.bf16.mxu0 0
        %1046 = vmatpush1.bf16.msra.mxu0 0
        %1047 = vmatprep.subr.bf16.mxu0 0
        %1048 = vmatpush1.bf16.msra.mxu0 0
        %1049 = vmatprep.subr.bf16.mxu0 0
        %1050 = vmatpush1.bf16.msra.mxu0 0
        %1051 = vmatprep.subr.bf16.mxu0 0
        %1052 = vmatpush1.bf16.msra.mxu0 0
        %1053 = vmatprep.subr.bf16.mxu0 0
        %1054 = vmatpush1.bf16.msra.mxu0 0
        %1055 = vmatprep.subr.bf16.mxu0 0
        %1056 = vmatpush1.bf16.msra.mxu0 0
        %1057 = vmatprep.subr.bf16.mxu0 0
        %1058 = vmatpush1.bf16.msra.mxu0 0
        %1059 = vmatprep.mubr.bf16.mxu0 0
        %1060 = vmatmul.mubr.bf16.gmra.mrb[0].mxu0 %v1016
        %v1061 = vpop.f32.mrb[0].mxu0
        %v1062 = vadd.f32 0.0, %v1061
        %v1063 = vpop.f32.mrb[0].mxu0
        %v1064 = vpop.f32.mrb[0].mxu0
        %v1065 = vadd.f32 0.0, %v1064
        %v1066 = vpop.f32.mrb[0].mxu0
        %1067 = vmatprep.mubr.bf16.mxu0 0
        %1068 = vmatmul.mubr.bf16.gmra.mrb[0].mxu0 %v1019
        %v1069 = vpop.f32.mrb[0].mxu0
        %v1070 = vadd.f32 0.0, %v1069
        %v1071 = vpop.f32.mrb[0].mxu0
        %v1072 = vpop.f32.mrb[0].mxu0
        %v1073 = vadd.f32 0.0, %v1072
        %v1074 = vpop.f32.mrb[0].mxu0
        %1075 = vmatprep.mubr.bf16.mxu0 0
        %1076 = vmatmul.mubr.bf16.gmra.mrb[0].mxu0 %v1022
        %v1077 = vpop.f32.mrb[0].mxu0
        %v1078 = vadd.f32 0.0, %v1077
        %v1079 = vpop.f32.mrb[0].mxu0
        %v1080 = vpop.f32.mrb[0].mxu0
        %v1081 = vadd.f32 0.0, %v1080
        %v1082 = vpop.f32.mrb[0].mxu0
        %1083 = vmatprep.mubr.bf16.mxu0 0
        %1084 = vmatmul.mubr.bf16.gmra.mrb[0].mxu0 %v1025
        %v1085 = vpop.f32.mrb[0].mxu0
        %v1086 = vadd.f32 0.0, %v1085
        %v1087 = vpop.f32.mrb[0].mxu0
        %v1088 = vpop.f32.mrb[0].mxu0
        %v1089 = vadd.f32 0.0, %v1088
        %v1090 = vpop.f32.mrb[0].mxu0
        %1091 = vdwg.mxu0
        %v1092 = vadd.f32 %v971, %v1062
        %v1093 = vadd.f32 %v972, %v1065
        %v1094 = vadd.f32 %v973, %v1070
        %v1095 = vadd.f32 %v974, %v1073
        %v1096 = vadd.f32 %v975, %v1078
        %v1097 = vadd.f32 %v976, %v1081
        %v1098 = vadd.f32 %v977, %v1086
        %v1099 = vadd.f32 %v978, %v1089
        %v1100 = vld [vmem:[%s461] sm:$0xff]
        %v1101 = vld [vmem:[%s461 + $0x8] sm:$0xff]
        %v1102 = vld [vmem:[%s461 + $0x10] sm:$0xff]
        %v1103 = vld [vmem:[%s461 + $0x18] sm:$0xff]
        %v1104 = vld [vmem:[%s461 + $0x20] sm:$0xff]
        %v1105 = vld [vmem:[%s461 + $0x28] sm:$0xff]
        %v1106 = vld [vmem:[%s461 + $0x30] sm:$0xff]
        %v1107 = vld [vmem:[%s461 + $0x38] sm:$0xff]
        %v1108 = vand.u32 2147483647, %v1100
        %v1109 = vand.u32 2147483647, %v1101
        %v1110 = vand.u32 2147483647, %v1102
        %v1111 = vand.u32 2147483647, %v1103
        %v1112 = vand.u32 2147483647, %v1104
        %v1113 = vand.u32 2147483647, %v1105
        %v1114 = vand.u32 2147483647, %v1106
        %v1115 = vand.u32 2147483647, %v1107
        %v1116 = vsub.f32 0.0, %v1108
        %v1117 = vsub.f32 0.0, %v1109
        %v1118 = vsub.f32 0.0, %v1110
        %v1119 = vsub.f32 0.0, %v1111
        %v1120 = vsub.f32 0.0, %v1112
        %v1121 = vsub.f32 0.0, %v1113
        %v1122 = vsub.f32 0.0, %v1114
        %v1123 = vsub.f32 0.0, %v1115
        %v1124 = vmul.f32 %v1116, 1.442695
        %v1125 = vpow.pop %v1124
        %v1126 = vmul.f32 %v1117, 1.442695
        %v1127 = vpow.pop %v1126
        %v1128 = vmul.f32 %v1118, 1.442695
        %v1129 = vpow.pop %v1128
        %v1130 = vmul.f32 %v1119, 1.442695
        %v1131 = vpow.pop %v1130
        %v1132 = vmul.f32 %v1120, 1.442695
        %v1133 = vpow.pop %v1132
        %v1134 = vmul.f32 %v1121, 1.442695
        %v1135 = vpow.pop %v1134
        %v1136 = vmul.f32 %v1122, 1.442695
        %v1137 = vpow.pop %v1136
        %v1138 = vmul.f32 %v1123, 1.442695
        %v1139 = vpow.pop %v1138
        %v1140 = vsub.f32 %v1125, 1.0
        %v1141 = vsub.f32 %v1127, 1.0
        %v1142 = vsub.f32 %v1129, 1.0
        %v1143 = vsub.f32 %v1131, 1.0
        %v1144 = vsub.f32 %v1133, 1.0
        %v1145 = vsub.f32 %v1135, 1.0
        %v1146 = vsub.f32 %v1137, 1.0
        %v1147 = vsub.f32 %v1139, 1.0
        %vm1148 = vcmp.gt.f32.partialorder %v1100, 0.0
        %vm1149 = vcmp.gt.f32.partialorder %v1101, 0.0
        %vm1150 = vcmp.gt.f32.partialorder %v1102, 0.0
        %vm1151 = vcmp.gt.f32.partialorder %v1103, 0.0
        %vm1152 = vcmp.gt.f32.partialorder %v1104, 0.0
        %vm1153 = vcmp.gt.f32.partialorder %v1105, 0.0
        %vm1154 = vcmp.gt.f32.partialorder %v1106, 0.0
        %vm1155 = vcmp.gt.f32.partialorder %v1107, 0.0
        %v1156 = vsel %vm1148, %v1100, %v1140
        %v1157 = vsel %vm1149, %v1101, %v1141
        %v1158 = vsel %vm1150, %v1102, %v1142
        %v1159 = vsel %vm1151, %v1103, %v1143
        %v1160 = vsel %vm1152, %v1104, %v1144
        %v1161 = vsel %vm1153, %v1105, %v1145
        %v1162 = vsel %vm1154, %v1106, %v1146
        %v1163 = vsel %vm1155, %v1107, %v1147
        %v1164 = vsub.f32 0.0, %v1100
        %v1165 = vsub.f32 0.0, %v1101
        %v1166 = vsub.f32 0.0, %v1102
        %v1167 = vsub.f32 0.0, %v1103
        %v1168 = vsub.f32 0.0, %v1104
        %v1169 = vsub.f32 0.0, %v1105
        %v1170 = vsub.f32 0.0, %v1106
        %v1171 = vsub.f32 0.0, %v1107
        %v1172 = vsel %vm1148, %v1140, %v1164
        %v1173 = vsel %vm1149, %v1141, %v1165
        %v1174 = vsel %vm1150, %v1142, %v1166
        %v1175 = vsel %vm1151, %v1143, %v1167
        %v1176 = vsel %vm1152, %v1144, %v1168
        %v1177 = vsel %vm1153, %v1145, %v1169
        %v1178 = vsel %vm1154, %v1146, %v1170
        %v1179 = vsel %vm1155, %v1147, %v1171
        %1188 = vrot.lane.b32.xlu0 %v1172, 32
        %v1189 = vpop.permute.xlu0 %1188
        %1190 = vrot.lane.b32.xlu0 %v1173, 32
        %v1191 = vpop.permute.xlu0 %1190
        %1192 = vrot.lane.b32.xlu0 %v1174, 32
        %v1193 = vpop.permute.xlu0 %1192
        %1194 = vrot.lane.b32.xlu0 %v1175, 32
        %v1195 = vpop.permute.xlu0 %1194
        %1196 = vrot.lane.b32.xlu0 %v1176, 32
        %v1197 = vpop.permute.xlu0 %1196
        %1198 = vrot.lane.b32.xlu0 %v1177, 32
        %v1199 = vpop.permute.xlu0 %1198
        %1200 = vrot.lane.b32.xlu0 %v1178, 32
        %v1201 = vpop.permute.xlu0 %1200
        %1202 = vrot.lane.b32.xlu0 %v1179, 32
        %v1203 = vpop.permute.xlu0 %1202
        %v1212 = vsel %vm585, %v1156, %v1189
        %v1213 = vsel %vm585, %v1157, %v1191
        %v1214 = vsel %vm585, %v1158, %v1193
        %v1215 = vsel %vm585, %v1159, %v1195
        %v1216 = vsel %vm585, %v1160, %v1197
        %v1217 = vsel %vm585, %v1161, %v1199
        %v1218 = vsel %vm585, %v1162, %v1201
        %v1219 = vsel %vm585, %v1163, %v1203
        %v1220 = vpack.c.bf16 %v1213, %v1212
        %v1221 = vpack.c.bf16 %v1215, %v1214
        %v1222 = vpack.c.bf16 %v1217, %v1216
        %v1223 = vpack.c.bf16 %v1219, %v1218
        %v1224 = vld [vmem:[%s5] sm:$0xf]
        %v1225 = vld [vmem:[%s5 + $0x4] sm:$0xf]
        %v1226 = vld [vmem:[%s5 + $0x8] sm:$0xf]
        %v1227 = vld [vmem:[%s5 + $0xc] sm:$0xf]
        %v1228 = vld [vmem:[%s5 + $0x10] sm:$0xf]
        %v1229 = vld [vmem:[%s5 + $0x14] sm:$0xf]
        %v1230 = vld [vmem:[%s5 + $0x18] sm:$0xf]
        %v1231 = vld [vmem:[%s5 + $0x1c] sm:$0xf]
        %v1240 = vunpack.c.l.b16 %v1224
        %v1241 = vunpack.c.l.b16 %v1225
        %v1242 = vunpack.c.l.b16 %v1226
        %v1243 = vunpack.c.l.b16 %v1227
        %v1244 = vunpack.c.l.b16 %v1228
        %v1245 = vunpack.c.l.b16 %v1229
        %v1246 = vunpack.c.l.b16 %v1230
        %v1247 = vunpack.c.l.b16 %v1231
        %v1248 = vpack.c.b16 %v1241, %v1240
        %v1249 = vpack.c.b16 %v1243, %v1242
        %v1250 = vpack.c.b16 %v1245, %v1244
        %v1251 = vpack.c.b16 %v1247, %v1246
        %v1257 = vsel %vm675, %v1220, 0
        %v1260 = vsel %vm675, %v1221, 0
        %v1263 = vsel %vm675, %v1222, 0
        %v1266 = vsel %vm675, %v1223, 0
        %1268 = vmatprep.subr.bf16.mxu0 0
        %1269 = vmatpush1.bf16.msra.mxu0 %v1248
        %1270 = vmatprep.subr.bf16.mxu0 0
        %1271 = vmatpush1.bf16.msra.mxu0 %v1249
        %1272 = vmatprep.subr.bf16.mxu0 0
        %1273 = vmatpush1.bf16.msra.mxu0 %v1250
        %1274 = vmatprep.subr.bf16.mxu0 0
        %1275 = vmatpush1.bf16.msra.mxu0 %v1251
        %1276 = vmatprep.subr.bf16.mxu0 0
        %1277 = vmatpush1.bf16.msra.mxu0 0
        %1278 = vmatprep.subr.bf16.mxu0 0
        %1279 = vmatpush1.bf16.msra.mxu0 0
        %1280 = vmatprep.subr.bf16.mxu0 0
        %1281 = vmatpush1.bf16.msra.mxu0 0
        %1282 = vmatprep.subr.bf16.mxu0 0
        %1283 = vmatpush1.bf16.msra.mxu0 0
        %1284 = vmatprep.subr.bf16.mxu0 0
        %1285 = vmatpush1.bf16.msra.mxu0 0
        %1286 = vmatprep.subr.bf16.mxu0 0
        %1287 = vmatpush1.bf16.msra.mxu0 0
        %1288 = vmatprep.subr.bf16.mxu0 0
        %1289 = vmatpush1.bf16.msra.mxu0 0
        %1290 = vmatprep.subr.bf16.mxu0 0
        %1291 = vmatpush1.bf16.msra.mxu0 0
        %1292 = vmatprep.subr.bf16.mxu0 0
        %1293 = vmatpush1.bf16.msra.mxu0 0
        %1294 = vmatprep.subr.bf16.mxu0 0
        %1295 = vmatpush1.bf16.msra.mxu0 0
        %1296 = vmatprep.subr.bf16.mxu0 0
        %1297 = vmatpush1.bf16.msra.mxu0 0
        %1298 = vmatprep.subr.bf16.mxu0 0
        %1299 = vmatpush1.bf16.msra.mxu0 0
        %1300 = vmatprep.mubr.bf16.mxu0 0
        %1301 = vmatmul.mubr.bf16.gmra.mrb[0].mxu0 %v1257
        %v1302 = vpop.f32.mrb[0].mxu0
        %v1303 = vadd.f32 0.0, %v1302
        %v1304 = vpop.f32.mrb[0].mxu0
        %v1305 = vpop.f32.mrb[0].mxu0
        %v1306 = vadd.f32 0.0, %v1305
        %v1307 = vpop.f32.mrb[0].mxu0
        %1308 = vmatprep.mubr.bf16.mxu0 0
        %1309 = vmatmul.mubr.bf16.gmra.mrb[0].mxu0 %v1260
        %v1310 = vpop.f32.mrb[0].mxu0
        %v1311 = vadd.f32 0.0, %v1310
        %v1312 = vpop.f32.mrb[0].mxu0
        %v1313 = vpop.f32.mrb[0].mxu0
        %v1314 = vadd.f32 0.0, %v1313
        %v1315 = vpop.f32.mrb[0].mxu0
        %1316 = vmatprep.mubr.bf16.mxu0 0
        %1317 = vmatmul.mubr.bf16.gmra.mrb[0].mxu0 %v1263
        %v1318 = vpop.f32.mrb[0].mxu0
        %v1319 = vadd.f32 0.0, %v1318
        %v1320 = vpop.f32.mrb[0].mxu0
        %v1321 = vpop.f32.mrb[0].mxu0
        %v1322 = vadd.f32 0.0, %v1321
        %v1323 = vpop.f32.mrb[0].mxu0
        %1324 = vmatprep.mubr.bf16.mxu0 0
        %1325 = vmatmul.mubr.bf16.gmra.mrb[0].mxu0 %v1266
        %v1326 = vpop.f32.mrb[0].mxu0
        %v1327 = vadd.f32 0.0, %v1326
        %v1328 = vpop.f32.mrb[0].mxu0
        %v1329 = vpop.f32.mrb[0].mxu0
        %v1330 = vadd.f32 0.0, %v1329
        %v1331 = vpop.f32.mrb[0].mxu0
        %1332 = vdwg.mxu0
        %v1333 = vadd.f32 %v1092, %v1303
        %v1334 = vadd.f32 %v1093, %v1306
        %v1335 = vadd.f32 %v1094, %v1311
        %v1336 = vadd.f32 %v1095, %v1314
        %v1337 = vadd.f32 %v1096, %v1319
        %v1338 = vadd.f32 %v1097, %v1322
        %v1339 = vadd.f32 %v1098, %v1327
        %v1340 = vadd.f32 %v1099, %v1330
        %v1341 = vld [vmem:[%s466] sm:$0xff]
        %v1342 = vld [vmem:[%s466 + $0x8] sm:$0xff]
        %v1343 = vld [vmem:[%s466 + $0x10] sm:$0xff]
        %v1344 = vld [vmem:[%s466 + $0x18] sm:$0xff]
        %v1345 = vld [vmem:[%s466 + $0x20] sm:$0xff]
        %v1346 = vld [vmem:[%s466 + $0x28] sm:$0xff]
        %v1347 = vld [vmem:[%s466 + $0x30] sm:$0xff]
        %v1348 = vld [vmem:[%s466 + $0x38] sm:$0xff]
        %v1349 = vand.u32 2147483647, %v1341
        %v1350 = vand.u32 2147483647, %v1342
        %v1351 = vand.u32 2147483647, %v1343
        %v1352 = vand.u32 2147483647, %v1344
        %v1353 = vand.u32 2147483647, %v1345
        %v1354 = vand.u32 2147483647, %v1346
        %v1355 = vand.u32 2147483647, %v1347
        %v1356 = vand.u32 2147483647, %v1348
        %v1357 = vsub.f32 0.0, %v1349
        %v1358 = vsub.f32 0.0, %v1350
        %v1359 = vsub.f32 0.0, %v1351
        %v1360 = vsub.f32 0.0, %v1352
        %v1361 = vsub.f32 0.0, %v1353
        %v1362 = vsub.f32 0.0, %v1354
        %v1363 = vsub.f32 0.0, %v1355
        %v1364 = vsub.f32 0.0, %v1356
        %v1365 = vmul.f32 %v1357, 1.442695
        %v1366 = vpow.pop %v1365
        %v1367 = vmul.f32 %v1358, 1.442695
        %v1368 = vpow.pop %v1367
        %v1369 = vmul.f32 %v1359, 1.442695
        %v1370 = vpow.pop %v1369
        %v1371 = vmul.f32 %v1360, 1.442695
        %v1372 = vpow.pop %v1371
        %v1373 = vmul.f32 %v1361, 1.442695
        %v1374 = vpow.pop %v1373
        %v1375 = vmul.f32 %v1362, 1.442695
        %v1376 = vpow.pop %v1375
        %v1377 = vmul.f32 %v1363, 1.442695
        %v1378 = vpow.pop %v1377
        %v1379 = vmul.f32 %v1364, 1.442695
        %v1380 = vpow.pop %v1379
        %v1381 = vsub.f32 %v1366, 1.0
        %v1382 = vsub.f32 %v1368, 1.0
        %v1383 = vsub.f32 %v1370, 1.0
        %v1384 = vsub.f32 %v1372, 1.0
        %v1385 = vsub.f32 %v1374, 1.0
        %v1386 = vsub.f32 %v1376, 1.0
        %v1387 = vsub.f32 %v1378, 1.0
        %v1388 = vsub.f32 %v1380, 1.0
        %vm1389 = vcmp.gt.f32.partialorder %v1341, 0.0
        %vm1390 = vcmp.gt.f32.partialorder %v1342, 0.0
        %vm1391 = vcmp.gt.f32.partialorder %v1343, 0.0
        %vm1392 = vcmp.gt.f32.partialorder %v1344, 0.0
        %vm1393 = vcmp.gt.f32.partialorder %v1345, 0.0
        %vm1394 = vcmp.gt.f32.partialorder %v1346, 0.0
        %vm1395 = vcmp.gt.f32.partialorder %v1347, 0.0
        %vm1396 = vcmp.gt.f32.partialorder %v1348, 0.0
        %v1397 = vsel %vm1389, %v1341, %v1381
        %v1398 = vsel %vm1390, %v1342, %v1382
        %v1399 = vsel %vm1391, %v1343, %v1383
        %v1400 = vsel %vm1392, %v1344, %v1384
        %v1401 = vsel %vm1393, %v1345, %v1385
        %v1402 = vsel %vm1394, %v1346, %v1386
        %v1403 = vsel %vm1395, %v1347, %v1387
        %v1404 = vsel %vm1396, %v1348, %v1388
        %v1405 = vsub.f32 0.0, %v1341
        %v1406 = vsub.f32 0.0, %v1342
        %v1407 = vsub.f32 0.0, %v1343
        %v1408 = vsub.f32 0.0, %v1344
        %v1409 = vsub.f32 0.0, %v1345
        %v1410 = vsub.f32 0.0, %v1346
        %v1411 = vsub.f32 0.0, %v1347
        %v1412 = vsub.f32 0.0, %v1348
        %v1413 = vsel %vm1389, %v1381, %v1405
        %v1414 = vsel %vm1390, %v1382, %v1406
        %v1415 = vsel %vm1391, %v1383, %v1407
        %v1416 = vsel %vm1392, %v1384, %v1408
        %v1417 = vsel %vm1393, %v1385, %v1409
        %v1418 = vsel %vm1394, %v1386, %v1410
        %v1419 = vsel %vm1395, %v1387, %v1411
        %v1420 = vsel %vm1396, %v1388, %v1412
        %1429 = vrot.lane.b32.xlu0 %v1413, 32
        %v1430 = vpop.permute.xlu0 %1429
        %1431 = vrot.lane.b32.xlu0 %v1414, 32
        %v1432 = vpop.permute.xlu0 %1431
        %1433 = vrot.lane.b32.xlu0 %v1415, 32
        %v1434 = vpop.permute.xlu0 %1433
        %1435 = vrot.lane.b32.xlu0 %v1416, 32
        %v1436 = vpop.permute.xlu0 %1435
        %1437 = vrot.lane.b32.xlu0 %v1417, 32
        %v1438 = vpop.permute.xlu0 %1437
        %1439 = vrot.lane.b32.xlu0 %v1418, 32
        %v1440 = vpop.permute.xlu0 %1439
        %1441 = vrot.lane.b32.xlu0 %v1419, 32
        %v1442 = vpop.permute.xlu0 %1441
        %1443 = vrot.lane.b32.xlu0 %v1420, 32
        %v1444 = vpop.permute.xlu0 %1443
        %v1453 = vsel %vm585, %v1397, %v1430
        %v1454 = vsel %vm585, %v1398, %v1432
        %v1455 = vsel %vm585, %v1399, %v1434
        %v1456 = vsel %vm585, %v1400, %v1436
        %v1457 = vsel %vm585, %v1401, %v1438
        %v1458 = vsel %vm585, %v1402, %v1440
        %v1459 = vsel %vm585, %v1403, %v1442
        %v1460 = vsel %vm585, %v1404, %v1444
        %v1461 = vpack.c.bf16 %v1454, %v1453
        %v1462 = vpack.c.bf16 %v1456, %v1455
        %v1463 = vpack.c.bf16 %v1458, %v1457
        %v1464 = vpack.c.bf16 %v1460, %v1459
        %v1465 = vld [vmem:[%s6] sm:$0xf]
        %v1466 = vld [vmem:[%s6 + $0x4] sm:$0xf]
        %v1467 = vld [vmem:[%s6 + $0x8] sm:$0xf]
        %v1468 = vld [vmem:[%s6 + $0xc] sm:$0xf]
        %v1469 = vld [vmem:[%s6 + $0x10] sm:$0xf]
        %v1470 = vld [vmem:[%s6 + $0x14] sm:$0xf]
        %v1471 = vld [vmem:[%s6 + $0x18] sm:$0xf]
        %v1472 = vld [vmem:[%s6 + $0x1c] sm:$0xf]
        %v1481 = vunpack.c.l.b16 %v1465
        %v1482 = vunpack.c.l.b16 %v1466
        %v1483 = vunpack.c.l.b16 %v1467
        %v1484 = vunpack.c.l.b16 %v1468
        %v1485 = vunpack.c.l.b16 %v1469
        %v1486 = vunpack.c.l.b16 %v1470
        %v1487 = vunpack.c.l.b16 %v1471
        %v1488 = vunpack.c.l.b16 %v1472
        %v1489 = vpack.c.b16 %v1482, %v1481
        %v1490 = vpack.c.b16 %v1484, %v1483
        %v1491 = vpack.c.b16 %v1486, %v1485
        %v1492 = vpack.c.b16 %v1488, %v1487
        %v1498 = vsel %vm675, %v1461, 0
        %v1501 = vsel %vm675, %v1462, 0
        %v1504 = vsel %vm675, %v1463, 0
        %v1507 = vsel %vm675, %v1464, 0
        %1509 = vmatprep.subr.bf16.mxu0 0
        %1510 = vmatpush1.bf16.msra.mxu0 %v1489
        %1511 = vmatprep.subr.bf16.mxu0 0
        %1512 = vmatpush1.bf16.msra.mxu0 %v1490
        %1513 = vmatprep.subr.bf16.mxu0 0
        %1514 = vmatpush1.bf16.msra.mxu0 %v1491
        %1515 = vmatprep.subr.bf16.mxu0 0
        %1516 = vmatpush1.bf16.msra.mxu0 %v1492
        %1517 = vmatprep.subr.bf16.mxu0 0
        %1518 = vmatpush1.bf16.msra.mxu0 0
        %1519 = vmatprep.subr.bf16.mxu0 0
        %1520 = vmatpush1.bf16.msra.mxu0 0
        %1521 = vmatprep.subr.bf16.mxu0 0
        %1522 = vmatpush1.bf16.msra.mxu0 0
        %1523 = vmatprep.subr.bf16.mxu0 0
        %1524 = vmatpush1.bf16.msra.mxu0 0
        %1525 = vmatprep.subr.bf16.mxu0 0
        %1526 = vmatpush1.bf16.msra.mxu0 0
        %1527 = vmatprep.subr.bf16.mxu0 0
        %1528 = vmatpush1.bf16.msra.mxu0 0
        %1529 = vmatprep.subr.bf16.mxu0 0
        %1530 = vmatpush1.bf16.msra.mxu0 0
        %1531 = vmatprep.subr.bf16.mxu0 0
        %1532 = vmatpush1.bf16.msra.mxu0 0
        %1533 = vmatprep.subr.bf16.mxu0 0
        %1534 = vmatpush1.bf16.msra.mxu0 0
        %1535 = vmatprep.subr.bf16.mxu0 0
        %1536 = vmatpush1.bf16.msra.mxu0 0
        %1537 = vmatprep.subr.bf16.mxu0 0
        %1538 = vmatpush1.bf16.msra.mxu0 0
        %1539 = vmatprep.subr.bf16.mxu0 0
        %1540 = vmatpush1.bf16.msra.mxu0 0
        %1541 = vmatprep.mubr.bf16.mxu0 0
        %1542 = vmatmul.mubr.bf16.gmra.mrb[0].mxu0 %v1498
        %v1543 = vpop.f32.mrb[0].mxu0
        %v1544 = vadd.f32 0.0, %v1543
        %v1545 = vpop.f32.mrb[0].mxu0
        %v1546 = vpop.f32.mrb[0].mxu0
        %v1547 = vadd.f32 0.0, %v1546
        %v1548 = vpop.f32.mrb[0].mxu0
        %1549 = vmatprep.mubr.bf16.mxu0 0
        %1550 = vmatmul.mubr.bf16.gmra.mrb[0].mxu0 %v1501
        %v1551 = vpop.f32.mrb[0].mxu0
        %v1552 = vadd.f32 0.0, %v1551
        %v1553 = vpop.f32.mrb[0].mxu0
        %v1554 = vpop.f32.mrb[0].mxu0
        %v1555 = vadd.f32 0.0, %v1554
        %v1556 = vpop.f32.mrb[0].mxu0
        %1557 = vmatprep.mubr.bf16.mxu0 0
        %1558 = vmatmul.mubr.bf16.gmra.mrb[0].mxu0 %v1504
        %v1559 = vpop.f32.mrb[0].mxu0
        %v1560 = vadd.f32 0.0, %v1559
        %v1561 = vpop.f32.mrb[0].mxu0
        %v1562 = vpop.f32.mrb[0].mxu0
        %v1563 = vadd.f32 0.0, %v1562
        %v1564 = vpop.f32.mrb[0].mxu0
        %1565 = vmatprep.mubr.bf16.mxu0 0
        %1566 = vmatmul.mubr.bf16.gmra.mrb[0].mxu0 %v1507
        %v1567 = vpop.f32.mrb[0].mxu0
        %v1568 = vadd.f32 0.0, %v1567
        %v1569 = vpop.f32.mrb[0].mxu0
        %v1570 = vpop.f32.mrb[0].mxu0
        %v1571 = vadd.f32 0.0, %v1570
        %v1572 = vpop.f32.mrb[0].mxu0
        %1573 = vdwg.mxu0
        %v1574 = vadd.f32 %v1333, %v1544
        %v1575 = vadd.f32 %v1334, %v1547
        %v1576 = vadd.f32 %v1335, %v1552
        %v1577 = vadd.f32 %v1336, %v1555
        %v1578 = vadd.f32 %v1337, %v1560
        %v1579 = vadd.f32 %v1338, %v1563
        %v1580 = vadd.f32 %v1339, %v1568
        %v1581 = vadd.f32 %v1340, %v1571
        %v1582 = vld [vmem:[%s7] sm:$0x1]
        %v1584 = vlaneseq
        %v1585 = vshrl.u32 %v1584, 7
        %v1586 = vsub.s32 0, %v1585
        %v1587 = vrot.slane %v1582, %v1586
        %v1589 = vadd.f32 %v1574, %v1587
        %v1590 = vadd.f32 %v1575, %v1587
        %v1591 = vadd.f32 %v1576, %v1587
        %v1592 = vadd.f32 %v1577, %v1587
        %v1593 = vadd.f32 %v1578, %v1587
        %v1594 = vadd.f32 %v1579, %v1587
        %v1595 = vadd.f32 %v1580, %v1587
        %v1596 = vadd.f32 %v1581, %v1587
        %v1597 = vld [vmem:[%s471] sm:$0xff]
        %v1598 = vld [vmem:[%s471 + $0x8] sm:$0xff]
        %v1599 = vld [vmem:[%s471 + $0x10] sm:$0xff]
        %v1600 = vld [vmem:[%s471 + $0x18] sm:$0xff]
        %v1601 = vld [vmem:[%s471 + $0x20] sm:$0xff]
        %v1602 = vld [vmem:[%s471 + $0x28] sm:$0xff]
        %v1603 = vld [vmem:[%s471 + $0x30] sm:$0xff]
        %v1604 = vld [vmem:[%s471 + $0x38] sm:$0xff]
        %v1605 = vadd.f32 %v1589, %v1597
        %v1606 = vadd.f32 %v1590, %v1598
        %v1607 = vadd.f32 %v1591, %v1599
        %v1608 = vadd.f32 %v1592, %v1600
        %v1609 = vadd.f32 %v1593, %v1601
        %v1610 = vadd.f32 %v1594, %v1602
        %v1611 = vadd.f32 %v1595, %v1603
        %v1612 = vadd.f32 %v1596, %v1604
        %v1613 = vand.u32 2147483647, %v1605
        %v1614 = vand.u32 2147483647, %v1606
        %v1615 = vand.u32 2147483647, %v1607
        %v1616 = vand.u32 2147483647, %v1608
        %v1617 = vand.u32 2147483647, %v1609
        %v1618 = vand.u32 2147483647, %v1610
        %v1619 = vand.u32 2147483647, %v1611
        %v1620 = vand.u32 2147483647, %v1612
        %v1621 = vsub.f32 0.0, %v1613
        %v1622 = vsub.f32 0.0, %v1614
        %v1623 = vsub.f32 0.0, %v1615
        %v1624 = vsub.f32 0.0, %v1616
        %v1625 = vsub.f32 0.0, %v1617
        %v1626 = vsub.f32 0.0, %v1618
        %v1627 = vsub.f32 0.0, %v1619
        %v1628 = vsub.f32 0.0, %v1620
        %v1629 = vmul.f32 %v1621, 1.442695
        %v1630 = vpow.pop %v1629
        %v1631 = vmul.f32 %v1622, 1.442695
        %v1632 = vpow.pop %v1631
        %v1633 = vmul.f32 %v1623, 1.442695
        %v1634 = vpow.pop %v1633
        %v1635 = vmul.f32 %v1624, 1.442695
        %v1636 = vpow.pop %v1635
        %v1637 = vmul.f32 %v1625, 1.442695
        %v1638 = vpow.pop %v1637
        %v1639 = vmul.f32 %v1626, 1.442695
        %v1640 = vpow.pop %v1639
        %v1641 = vmul.f32 %v1627, 1.442695
        %v1642 = vpow.pop %v1641
        %v1643 = vmul.f32 %v1628, 1.442695
        %v1644 = vpow.pop %v1643
        %v1645 = vsub.f32 %v1630, 1.0
        %v1646 = vsub.f32 %v1632, 1.0
        %v1647 = vsub.f32 %v1634, 1.0
        %v1648 = vsub.f32 %v1636, 1.0
        %v1649 = vsub.f32 %v1638, 1.0
        %v1650 = vsub.f32 %v1640, 1.0
        %v1651 = vsub.f32 %v1642, 1.0
        %v1652 = vsub.f32 %v1644, 1.0
        %vm1653 = vcmp.gt.f32.partialorder %v1605, 0.0
        %vm1654 = vcmp.gt.f32.partialorder %v1606, 0.0
        %vm1655 = vcmp.gt.f32.partialorder %v1607, 0.0
        %vm1656 = vcmp.gt.f32.partialorder %v1608, 0.0
        %vm1657 = vcmp.gt.f32.partialorder %v1609, 0.0
        %vm1658 = vcmp.gt.f32.partialorder %v1610, 0.0
        %vm1659 = vcmp.gt.f32.partialorder %v1611, 0.0
        %vm1660 = vcmp.gt.f32.partialorder %v1612, 0.0
        %v1661 = vsel %vm1653, %v1605, %v1645
        %v1662 = vsel %vm1654, %v1606, %v1646
        %v1663 = vsel %vm1655, %v1607, %v1647
        %v1664 = vsel %vm1656, %v1608, %v1648
        %v1665 = vsel %vm1657, %v1609, %v1649
        %v1666 = vsel %vm1658, %v1610, %v1650
        %v1667 = vsel %vm1659, %v1611, %v1651
        %v1668 = vsel %vm1660, %v1612, %v1652
        %v1669 = vsub.f32 0.0, %v1605
        %v1670 = vsub.f32 0.0, %v1606
        %v1671 = vsub.f32 0.0, %v1607
        %v1672 = vsub.f32 0.0, %v1608
        %v1673 = vsub.f32 0.0, %v1609
        %v1674 = vsub.f32 0.0, %v1610
        %v1675 = vsub.f32 0.0, %v1611
        %v1676 = vsub.f32 0.0, %v1612
        %v1677 = vsel %vm1653, %v1645, %v1669
        %v1678 = vsel %vm1654, %v1646, %v1670
        %v1679 = vsel %vm1655, %v1647, %v1671
        %v1680 = vsel %vm1656, %v1648, %v1672
        %v1681 = vsel %vm1657, %v1649, %v1673
        %v1682 = vsel %vm1658, %v1650, %v1674
        %v1683 = vsel %vm1659, %v1651, %v1675
        %v1684 = vsel %vm1660, %v1652, %v1676
        %1693 = vrot.lane.b32.xlu0 %v1677, 32
        %v1694 = vpop.permute.xlu0 %1693
        %1695 = vrot.lane.b32.xlu0 %v1678, 32
        %v1696 = vpop.permute.xlu0 %1695
        %1697 = vrot.lane.b32.xlu0 %v1679, 32
        %v1698 = vpop.permute.xlu0 %1697
        %1699 = vrot.lane.b32.xlu0 %v1680, 32
        %v1700 = vpop.permute.xlu0 %1699
        %1701 = vrot.lane.b32.xlu0 %v1681, 32
        %v1702 = vpop.permute.xlu0 %1701
        %1703 = vrot.lane.b32.xlu0 %v1682, 32
        %v1704 = vpop.permute.xlu0 %1703
        %1705 = vrot.lane.b32.xlu0 %v1683, 32
        %v1706 = vpop.permute.xlu0 %1705
        %1707 = vrot.lane.b32.xlu0 %v1684, 32
        %v1708 = vpop.permute.xlu0 %1707
        %v1717 = vsel %vm585, %v1661, %v1694
        %v1718 = vsel %vm585, %v1662, %v1696
        %v1719 = vsel %vm585, %v1663, %v1698
        %v1720 = vsel %vm585, %v1664, %v1700
        %v1721 = vsel %vm585, %v1665, %v1702
        %v1722 = vsel %vm585, %v1666, %v1704
        %v1723 = vsel %vm585, %v1667, %v1706
        %v1724 = vsel %vm585, %v1668, %v1708
        %v1732 = vrot.slane %v1717, 7
        %v1733 = vrot.slane %v1718, 7
        %v1734 = vrot.slane %v1719, 7
        %v1735 = vrot.slane %v1720, 7
        %v1736 = vrot.slane %v1721, 7
        %v1737 = vrot.slane %v1722, 7
        %v1738 = vrot.slane %v1723, 7
        %v1746 = vsel %vm618, 0.0, %v1732
        %v1747 = vsel %vm618, 0.0, %v1733
        %v1748 = vsel %vm618, 0.0, %v1734
        %v1749 = vsel %vm618, 0.0, %v1735
        %v1750 = vsel %vm618, 0.0, %v1736
        %v1751 = vsel %vm618, 0.0, %v1737
        %v1752 = vsel %vm618, 0.0, %v1738
        %v1753 = vpack.c.bf16 %v1746, %v619
        %v1754 = vpack.c.bf16 %v1748, %v1747
        %v1755 = vpack.c.bf16 %v1750, %v1749
        %v1756 = vpack.c.bf16 %v1752, %v1751
        %v1757 = vld [vmem:[%s8] sm:$0xf]
        %v1758 = vld [vmem:[%s8 + $0x4] sm:$0xf]
        %v1759 = vld [vmem:[%s8 + $0x8] sm:$0xf]
        %v1760 = vld [vmem:[%s8 + $0xc] sm:$0xf]
        %v1761 = vld [vmem:[%s8 + $0x10] sm:$0xf]
        %v1762 = vld [vmem:[%s8 + $0x14] sm:$0xf]
        %v1763 = vld [vmem:[%s8 + $0x18] sm:$0xf]
        %v1764 = vld [vmem:[%s8 + $0x1c] sm:$0xf]
        %v1765 = vld [vmem:[%s9] sm:$0xf]
        %v1766 = vld [vmem:[%s9 + $0x4] sm:$0xf]
        %v1767 = vld [vmem:[%s9 + $0x8] sm:$0xf]
        %v1768 = vld [vmem:[%s9 + $0xc] sm:$0xf]
        %v1769 = vld [vmem:[%s9 + $0x10] sm:$0xf]
        %v1770 = vld [vmem:[%s9 + $0x14] sm:$0xf]
        %v1771 = vld [vmem:[%s9 + $0x18] sm:$0xf]
        %v1772 = vld [vmem:[%s9 + $0x1c] sm:$0xf]
        %v1773 = vpack.c.bf16 %v1717, 0.0
        %v1774 = vpack.c.bf16 %v1719, %v1718
        %v1775 = vpack.c.bf16 %v1721, %v1720
        %v1776 = vpack.c.bf16 %v1723, %v1722
        %v1777 = vld [vmem:[%s8 + $0x20] sm:$0xf]
        %v1778 = vld [vmem:[%s8 + $0x24] sm:$0xf]
        %v1779 = vld [vmem:[%s8 + $0x28] sm:$0xf]
        %v1780 = vld [vmem:[%s8 + $0x2c] sm:$0xf]
        %v1781 = vld [vmem:[%s8 + $0x30] sm:$0xf]
        %v1782 = vld [vmem:[%s8 + $0x34] sm:$0xf]
        %v1783 = vld [vmem:[%s8 + $0x38] sm:$0xf]
        %v1784 = vld [vmem:[%s8 + $0x3c] sm:$0xf]
        %v1793 = vunpack.c.l.b16 %v1777
        %v1794 = vunpack.c.l.b16 %v1778
        %v1795 = vunpack.c.l.b16 %v1779
        %v1796 = vunpack.c.l.b16 %v1780
        %v1797 = vunpack.c.l.b16 %v1781
        %v1798 = vunpack.c.l.b16 %v1782
        %v1799 = vunpack.c.l.b16 %v1783
        %v1800 = vunpack.c.l.b16 %v1784
        %v1801 = vpack.c.b16 %v1794, %v1793
        %v1802 = vpack.c.b16 %v1796, %v1795
        %v1803 = vpack.c.b16 %v1798, %v1797
        %v1804 = vpack.c.b16 %v1800, %v1799
        %v1810 = vsel %vm675, %v1773, 0
        %v1813 = vsel %vm675, %v1774, 0
        %v1816 = vsel %vm675, %v1775, 0
        %v1819 = vsel %vm675, %v1776, 0
        %1821 = vmatprep.subr.bf16.mxu0 0
        %1822 = vmatpush1.bf16.msra.mxu0 %v1801
        %1823 = vmatprep.subr.bf16.mxu0 0
        %1824 = vmatpush1.bf16.msra.mxu0 %v1802
        %1825 = vmatprep.subr.bf16.mxu0 0
        %1826 = vmatpush1.bf16.msra.mxu0 %v1803
        %1827 = vmatprep.subr.bf16.mxu0 0
        %1828 = vmatpush1.bf16.msra.mxu0 %v1804
        %1829 = vmatprep.subr.bf16.mxu0 0
        %1830 = vmatpush1.bf16.msra.mxu0 0
        %1831 = vmatprep.subr.bf16.mxu0 0
        %1832 = vmatpush1.bf16.msra.mxu0 0
        %1833 = vmatprep.subr.bf16.mxu0 0
        %1834 = vmatpush1.bf16.msra.mxu0 0
        %1835 = vmatprep.subr.bf16.mxu0 0
        %1836 = vmatpush1.bf16.msra.mxu0 0
        %1837 = vmatprep.subr.bf16.mxu0 0
        %1838 = vmatpush1.bf16.msra.mxu0 0
        %1839 = vmatprep.subr.bf16.mxu0 0
        %1840 = vmatpush1.bf16.msra.mxu0 0
        %1841 = vmatprep.subr.bf16.mxu0 0
        %1842 = vmatpush1.bf16.msra.mxu0 0
        %1843 = vmatprep.subr.bf16.mxu0 0
        %1844 = vmatpush1.bf16.msra.mxu0 0
        %1845 = vmatprep.subr.bf16.mxu0 0
        %1846 = vmatpush1.bf16.msra.mxu0 0
        %1847 = vmatprep.subr.bf16.mxu0 0
        %1848 = vmatpush1.bf16.msra.mxu0 0
        %1849 = vmatprep.subr.bf16.mxu0 0
        %1850 = vmatpush1.bf16.msra.mxu0 0
        %1851 = vmatprep.subr.bf16.mxu0 0
        %1852 = vmatpush1.bf16.msra.mxu0 0
        %1853 = vmatprep.mubr.bf16.mxu0 0
        %1854 = vmatmul.mubr.bf16.gmra.mrb[0].mxu0 %v1810
        %v1855 = vpop.f32.mrb[0].mxu0
        %v1856 = vadd.f32 0.0, %v1855
        %v1857 = vpop.f32.mrb[0].mxu0
        %v1858 = vpop.f32.mrb[0].mxu0
        %v1859 = vadd.f32 0.0, %v1858
        %v1860 = vpop.f32.mrb[0].mxu0
        %1861 = vmatprep.mubr.bf16.mxu0 0
        %1862 = vmatmul.mubr.bf16.gmra.mrb[0].mxu0 %v1813
        %v1863 = vpop.f32.mrb[0].mxu0
        %v1864 = vadd.f32 0.0, %v1863
        %v1865 = vpop.f32.mrb[0].mxu0
        %v1866 = vpop.f32.mrb[0].mxu0
        %v1867 = vadd.f32 0.0, %v1866
        %v1868 = vpop.f32.mrb[0].mxu0
        %1869 = vmatprep.mubr.bf16.mxu0 0
        %1870 = vmatmul.mubr.bf16.gmra.mrb[0].mxu0 %v1816
        %v1871 = vpop.f32.mrb[0].mxu0
        %v1872 = vadd.f32 0.0, %v1871
        %v1873 = vpop.f32.mrb[0].mxu0
        %v1874 = vpop.f32.mrb[0].mxu0
        %v1875 = vadd.f32 0.0, %v1874
        %v1876 = vpop.f32.mrb[0].mxu0
        %1877 = vmatprep.mubr.bf16.mxu0 0
        %1878 = vmatmul.mubr.bf16.gmra.mrb[0].mxu0 %v1819
        %v1879 = vpop.f32.mrb[0].mxu0
        %v1880 = vadd.f32 0.0, %v1879
        %v1881 = vpop.f32.mrb[0].mxu0
        %v1882 = vpop.f32.mrb[0].mxu0
        %v1883 = vadd.f32 0.0, %v1882
        %v1884 = vpop.f32.mrb[0].mxu0
        %1885 = vdwg.mxu0
        %v1894 = vunpack.c.l.b16 %v1757
        %v1895 = vunpack.c.l.b16 %v1758
        %v1896 = vunpack.c.l.b16 %v1759
        %v1897 = vunpack.c.l.b16 %v1760
        %v1898 = vunpack.c.l.b16 %v1761
        %v1899 = vunpack.c.l.b16 %v1762
        %v1900 = vunpack.c.l.b16 %v1763
        %v1901 = vunpack.c.l.b16 %v1764
        %v1902 = vpack.c.b16 %v1895, %v1894
        %v1903 = vpack.c.b16 %v1897, %v1896
        %v1904 = vpack.c.b16 %v1899, %v1898
        %v1905 = vpack.c.b16 %v1901, %v1900
        %v1911 = vsel %vm675, %v1753, 0
        %v1914 = vsel %vm675, %v1754, 0
        %v1917 = vsel %vm675, %v1755, 0
        %v1920 = vsel %vm675, %v1756, 0
        %1922 = vmatprep.subr.bf16.mxu0 0
        %1923 = vmatpush1.bf16.msra.mxu0 %v1902
        %1924 = vmatprep.subr.bf16.mxu0 0
        %1925 = vmatpush1.bf16.msra.mxu0 %v1903
        %1926 = vmatprep.subr.bf16.mxu0 0
        %1927 = vmatpush1.bf16.msra.mxu0 %v1904
        %1928 = vmatprep.subr.bf16.mxu0 0
        %1929 = vmatpush1.bf16.msra.mxu0 %v1905
        %1930 = vmatprep.subr.bf16.mxu0 0
        %1931 = vmatpush1.bf16.msra.mxu0 0
        %1932 = vmatprep.subr.bf16.mxu0 0
        %1933 = vmatpush1.bf16.msra.mxu0 0
        %1934 = vmatprep.subr.bf16.mxu0 0
        %1935 = vmatpush1.bf16.msra.mxu0 0
        %1936 = vmatprep.subr.bf16.mxu0 0
        %1937 = vmatpush1.bf16.msra.mxu0 0
        %1938 = vmatprep.subr.bf16.mxu0 0
        %1939 = vmatpush1.bf16.msra.mxu0 0
        %1940 = vmatprep.subr.bf16.mxu0 0
        %1941 = vmatpush1.bf16.msra.mxu0 0
        %1942 = vmatprep.subr.bf16.mxu0 0
        %1943 = vmatpush1.bf16.msra.mxu0 0
        %1944 = vmatprep.subr.bf16.mxu0 0
        %1945 = vmatpush1.bf16.msra.mxu0 0
        %1946 = vmatprep.subr.bf16.mxu0 0
        %1947 = vmatpush1.bf16.msra.mxu0 0
        %1948 = vmatprep.subr.bf16.mxu0 0
        %1949 = vmatpush1.bf16.msra.mxu0 0
        %1950 = vmatprep.subr.bf16.mxu0 0
        %1951 = vmatpush1.bf16.msra.mxu0 0
        %1952 = vmatprep.subr.bf16.mxu0 0
        %1953 = vmatpush1.bf16.msra.mxu0 0
        %1954 = vmatprep.mubr.bf16.mxu0 0
        %1955 = vmatmul.mubr.bf16.gmra.mrb[0].mxu0 %v1911
        %v1956 = vpop.f32.mrb[0].mxu0
        %v1957 = vadd.f32 %v1856, %v1956
        %v1958 = vpop.f32.mrb[0].mxu0
        %v1959 = vpop.f32.mrb[0].mxu0
        %v1960 = vadd.f32 %v1859, %v1959
        %v1961 = vpop.f32.mrb[0].mxu0
        %1962 = vmatprep.mubr.bf16.mxu0 0
        %1963 = vmatmul.mubr.bf16.gmra.mrb[0].mxu0 %v1914
        %v1964 = vpop.f32.mrb[0].mxu0
        %v1965 = vadd.f32 %v1864, %v1964
        %v1966 = vpop.f32.mrb[0].mxu0
        %v1967 = vpop.f32.mrb[0].mxu0
        %v1968 = vadd.f32 %v1867, %v1967
        %v1969 = vpop.f32.mrb[0].mxu0
        %1970 = vmatprep.mubr.bf16.mxu0 0
        %1971 = vmatmul.mubr.bf16.gmra.mrb[0].mxu0 %v1917
        %v1972 = vpop.f32.mrb[0].mxu0
        %v1973 = vadd.f32 %v1872, %v1972
        %v1974 = vpop.f32.mrb[0].mxu0
        %v1975 = vpop.f32.mrb[0].mxu0
        %v1976 = vadd.f32 %v1875, %v1975
        %v1977 = vpop.f32.mrb[0].mxu0
        %1978 = vmatprep.mubr.bf16.mxu0 0
        %1979 = vmatmul.mubr.bf16.gmra.mrb[0].mxu0 %v1920
        %v1980 = vpop.f32.mrb[0].mxu0
        %v1981 = vadd.f32 %v1880, %v1980
        %v1982 = vpop.f32.mrb[0].mxu0
        %v1983 = vpop.f32.mrb[0].mxu0
        %v1984 = vadd.f32 %v1883, %v1983
        %v1985 = vpop.f32.mrb[0].mxu0
        %1986 = vdwg.mxu0
        %v1987 = vld [vmem:[%s9 + $0x20] sm:$0xf]
        %v1988 = vld [vmem:[%s9 + $0x24] sm:$0xf]
        %v1989 = vld [vmem:[%s9 + $0x28] sm:$0xf]
        %v1990 = vld [vmem:[%s9 + $0x2c] sm:$0xf]
        %v1991 = vld [vmem:[%s9 + $0x30] sm:$0xf]
        %v1992 = vld [vmem:[%s9 + $0x34] sm:$0xf]
        %v1993 = vld [vmem:[%s9 + $0x38] sm:$0xf]
        %v1994 = vld [vmem:[%s9 + $0x3c] sm:$0xf]
        %v2003 = vunpack.c.l.b16 %v1987
        %v2004 = vunpack.c.l.b16 %v1988
        %v2005 = vunpack.c.l.b16 %v1989
        %v2006 = vunpack.c.l.b16 %v1990
        %v2007 = vunpack.c.l.b16 %v1991
        %v2008 = vunpack.c.l.b16 %v1992
        %v2009 = vunpack.c.l.b16 %v1993
        %v2010 = vunpack.c.l.b16 %v1994
        %v2011 = vpack.c.b16 %v2004, %v2003
        %v2012 = vpack.c.b16 %v2006, %v2005
        %v2013 = vpack.c.b16 %v2008, %v2007
        %v2014 = vpack.c.b16 %v2010, %v2009
        %2019 = vmatprep.subr.bf16.mxu0 0
        %2020 = vmatpush1.bf16.msra.mxu0 %v2011
        %2021 = vmatprep.subr.bf16.mxu0 0
        %2022 = vmatpush1.bf16.msra.mxu0 %v2012
        %2023 = vmatprep.subr.bf16.mxu0 0
        %2024 = vmatpush1.bf16.msra.mxu0 %v2013
        %2025 = vmatprep.subr.bf16.mxu0 0
        %2026 = vmatpush1.bf16.msra.mxu0 %v2014
        %2027 = vmatprep.subr.bf16.mxu0 0
        %2028 = vmatpush1.bf16.msra.mxu0 0
        %2029 = vmatprep.subr.bf16.mxu0 0
        %2030 = vmatpush1.bf16.msra.mxu0 0
        %2031 = vmatprep.subr.bf16.mxu0 0
        %2032 = vmatpush1.bf16.msra.mxu0 0
        %2033 = vmatprep.subr.bf16.mxu0 0
        %2034 = vmatpush1.bf16.msra.mxu0 0
        %2035 = vmatprep.subr.bf16.mxu0 0
        %2036 = vmatpush1.bf16.msra.mxu0 0
        %2037 = vmatprep.subr.bf16.mxu0 0
        %2038 = vmatpush1.bf16.msra.mxu0 0
        %2039 = vmatprep.subr.bf16.mxu0 0
        %2040 = vmatpush1.bf16.msra.mxu0 0
        %2041 = vmatprep.subr.bf16.mxu0 0
        %2042 = vmatpush1.bf16.msra.mxu0 0
        %2043 = vmatprep.subr.bf16.mxu0 0
        %2044 = vmatpush1.bf16.msra.mxu0 0
        %2045 = vmatprep.subr.bf16.mxu0 0
        %2046 = vmatpush1.bf16.msra.mxu0 0
        %2047 = vmatprep.subr.bf16.mxu0 0
        %2048 = vmatpush1.bf16.msra.mxu0 0
        %2049 = vmatprep.subr.bf16.mxu0 0
        %2050 = vmatpush1.bf16.msra.mxu0 0
        %2051 = vmatprep.mubr.bf16.mxu0 0
        %2052 = vmatmul.mubr.bf16.gmra.mrb[0].mxu0 %v1810
        %v2053 = vpop.f32.mrb[0].mxu0
        %v2054 = vadd.f32 0.0, %v2053
        %v2055 = vpop.f32.mrb[0].mxu0
        %v2056 = vpop.f32.mrb[0].mxu0
        %v2057 = vadd.f32 0.0, %v2056
        %v2058 = vpop.f32.mrb[0].mxu0
        %2059 = vmatprep.mubr.bf16.mxu0 0
        %2060 = vmatmul.mubr.bf16.gmra.mrb[0].mxu0 %v1813
        %v2061 = vpop.f32.mrb[0].mxu0
        %v2062 = vadd.f32 0.0, %v2061
        %v2063 = vpop.f32.mrb[0].mxu0
        %v2064 = vpop.f32.mrb[0].mxu0
        %v2065 = vadd.f32 0.0, %v2064
        %v2066 = vpop.f32.mrb[0].mxu0
        %2067 = vmatprep.mubr.bf16.mxu0 0
        %2068 = vmatmul.mubr.bf16.gmra.mrb[0].mxu0 %v1816
        %v2069 = vpop.f32.mrb[0].mxu0
        %v2070 = vadd.f32 0.0, %v2069
        %v2071 = vpop.f32.mrb[0].mxu0
        %v2072 = vpop.f32.mrb[0].mxu0
        %v2073 = vadd.f32 0.0, %v2072
        %v2074 = vpop.f32.mrb[0].mxu0
        %2075 = vmatprep.mubr.bf16.mxu0 0
        %2076 = vmatmul.mubr.bf16.gmra.mrb[0].mxu0 %v1819
        %v2077 = vpop.f32.mrb[0].mxu0
        %v2078 = vadd.f32 0.0, %v2077
        %v2079 = vpop.f32.mrb[0].mxu0
        %v2080 = vpop.f32.mrb[0].mxu0
        %v2081 = vadd.f32 0.0, %v2080
        %v2082 = vpop.f32.mrb[0].mxu0
        %2083 = vdwg.mxu0
        %v2092 = vunpack.c.l.b16 %v1765
        %v2093 = vunpack.c.l.b16 %v1766
        %v2094 = vunpack.c.l.b16 %v1767
        %v2095 = vunpack.c.l.b16 %v1768
        %v2096 = vunpack.c.l.b16 %v1769
        %v2097 = vunpack.c.l.b16 %v1770
        %v2098 = vunpack.c.l.b16 %v1771
        %v2099 = vunpack.c.l.b16 %v1772
        %v2100 = vpack.c.b16 %v2093, %v2092
        %v2101 = vpack.c.b16 %v2095, %v2094
        %v2102 = vpack.c.b16 %v2097, %v2096
        %v2103 = vpack.c.b16 %v2099, %v2098
        %2108 = vmatprep.subr.bf16.mxu0 0
        %2109 = vmatpush1.bf16.msra.mxu0 %v2100
        %2110 = vmatprep.subr.bf16.mxu0 0
        %2111 = vmatpush1.bf16.msra.mxu0 %v2101
        %2112 = vmatprep.subr.bf16.mxu0 0
        %2113 = vmatpush1.bf16.msra.mxu0 %v2102
        %2114 = vmatprep.subr.bf16.mxu0 0
        %2115 = vmatpush1.bf16.msra.mxu0 %v2103
        %2116 = vmatprep.subr.bf16.mxu0 0
        %2117 = vmatpush1.bf16.msra.mxu0 0
        %2118 = vmatprep.subr.bf16.mxu0 0
        %2119 = vmatpush1.bf16.msra.mxu0 0
        %2120 = vmatprep.subr.bf16.mxu0 0
        %2121 = vmatpush1.bf16.msra.mxu0 0
        %2122 = vmatprep.subr.bf16.mxu0 0
        %2123 = vmatpush1.bf16.msra.mxu0 0
        %2124 = vmatprep.subr.bf16.mxu0 0
        %2125 = vmatpush1.bf16.msra.mxu0 0
        %2126 = vmatprep.subr.bf16.mxu0 0
        %2127 = vmatpush1.bf16.msra.mxu0 0
        %2128 = vmatprep.subr.bf16.mxu0 0
        %2129 = vmatpush1.bf16.msra.mxu0 0
        %2130 = vmatprep.subr.bf16.mxu0 0
        %2131 = vmatpush1.bf16.msra.mxu0 0
        %2132 = vmatprep.subr.bf16.mxu0 0
        %2133 = vmatpush1.bf16.msra.mxu0 0
        %2134 = vmatprep.subr.bf16.mxu0 0
        %2135 = vmatpush1.bf16.msra.mxu0 0
        %2136 = vmatprep.subr.bf16.mxu0 0
        %2137 = vmatpush1.bf16.msra.mxu0 0
        %2138 = vmatprep.subr.bf16.mxu0 0
        %2139 = vmatpush1.bf16.msra.mxu0 0
        %2140 = vmatprep.mubr.bf16.mxu0 0
        %2141 = vmatmul.mubr.bf16.gmra.mrb[0].mxu0 %v1911
        %v2142 = vpop.f32.mrb[0].mxu0
        %v2143 = vadd.f32 %v2054, %v2142
        %v2144 = vpop.f32.mrb[0].mxu0
        %v2145 = vpop.f32.mrb[0].mxu0
        %v2146 = vadd.f32 %v2057, %v2145
        %v2147 = vpop.f32.mrb[0].mxu0
        %2148 = vmatprep.mubr.bf16.mxu0 0
        %2149 = vmatmul.mubr.bf16.gmra.mrb[0].mxu0 %v1914
        %v2150 = vpop.f32.mrb[0].mxu0
        %v2151 = vadd.f32 %v2062, %v2150
        %v2152 = vpop.f32.mrb[0].mxu0
        %v2153 = vpop.f32.mrb[0].mxu0
        %v2154 = vadd.f32 %v2065, %v2153
        %v2155 = vpop.f32.mrb[0].mxu0
        %2156 = vmatprep.mubr.bf16.mxu0 0
        %2157 = vmatmul.mubr.bf16.gmra.mrb[0].mxu0 %v1917
        %v2158 = vpop.f32.mrb[0].mxu0
        %v2159 = vadd.f32 %v2070, %v2158
        %v2160 = vpop.f32.mrb[0].mxu0
        %v2161 = vpop.f32.mrb[0].mxu0
        %v2162 = vadd.f32 %v2073, %v2161
        %v2163 = vpop.f32.mrb[0].mxu0
        %2164 = vmatprep.mubr.bf16.mxu0 0
        %2165 = vmatmul.mubr.bf16.gmra.mrb[0].mxu0 %v1920
        %v2166 = vpop.f32.mrb[0].mxu0
        %v2167 = vadd.f32 %v2078, %v2166
        %v2168 = vpop.f32.mrb[0].mxu0
        %v2169 = vpop.f32.mrb[0].mxu0
        %v2170 = vadd.f32 %v2081, %v2169
        %v2171 = vpop.f32.mrb[0].mxu0
        %2172 = vdwg.mxu0
        %v2174 = vrot.slane %v1724, 7
        %v2176 = vsel %vm618, 0.0, %v2174
        %v2177 = vpack.c.bf16 %v1747, %v1746
        %v2178 = vpack.c.bf16 %v1749, %v1748
        %v2179 = vpack.c.bf16 %v1751, %v1750
        %v2180 = vpack.c.bf16 %v2176, %v1752
        %v2181 = vld [vmem:[%s8 + $0x40] sm:$0xf]
        %v2182 = vld [vmem:[%s8 + $0x44] sm:$0xf]
        %v2183 = vld [vmem:[%s8 + $0x48] sm:$0xf]
        %v2184 = vld [vmem:[%s8 + $0x4c] sm:$0xf]
        %v2185 = vld [vmem:[%s8 + $0x50] sm:$0xf]
        %v2186 = vld [vmem:[%s8 + $0x54] sm:$0xf]
        %v2187 = vld [vmem:[%s8 + $0x58] sm:$0xf]
        %v2188 = vld [vmem:[%s8 + $0x5c] sm:$0xf]
        %v2197 = vunpack.c.l.b16 %v2181
        %v2198 = vunpack.c.l.b16 %v2182
        %v2199 = vunpack.c.l.b16 %v2183
        %v2200 = vunpack.c.l.b16 %v2184
        %v2201 = vunpack.c.l.b16 %v2185
        %v2202 = vunpack.c.l.b16 %v2186
        %v2203 = vunpack.c.l.b16 %v2187
        %v2204 = vunpack.c.l.b16 %v2188
        %v2205 = vpack.c.b16 %v2198, %v2197
        %v2206 = vpack.c.b16 %v2200, %v2199
        %v2207 = vpack.c.b16 %v2202, %v2201
        %v2208 = vpack.c.b16 %v2204, %v2203
        %v2214 = vsel %vm675, %v2177, 0
        %v2217 = vsel %vm675, %v2178, 0
        %v2220 = vsel %vm675, %v2179, 0
        %v2223 = vsel %vm675, %v2180, 0
        %2225 = vmatprep.subr.bf16.mxu0 0
        %2226 = vmatpush1.bf16.msra.mxu0 %v2205
        %2227 = vmatprep.subr.bf16.mxu0 0
        %2228 = vmatpush1.bf16.msra.mxu0 %v2206
        %2229 = vmatprep.subr.bf16.mxu0 0
        %2230 = vmatpush1.bf16.msra.mxu0 %v2207
        %2231 = vmatprep.subr.bf16.mxu0 0
        %2232 = vmatpush1.bf16.msra.mxu0 %v2208
        %2233 = vmatprep.subr.bf16.mxu0 0
        %2234 = vmatpush1.bf16.msra.mxu0 0
        %2235 = vmatprep.subr.bf16.mxu0 0
        %2236 = vmatpush1.bf16.msra.mxu0 0
        %2237 = vmatprep.subr.bf16.mxu0 0
        %2238 = vmatpush1.bf16.msra.mxu0 0
        %2239 = vmatprep.subr.bf16.mxu0 0
        %2240 = vmatpush1.bf16.msra.mxu0 0
        %2241 = vmatprep.subr.bf16.mxu0 0
        %2242 = vmatpush1.bf16.msra.mxu0 0
        %2243 = vmatprep.subr.bf16.mxu0 0
        %2244 = vmatpush1.bf16.msra.mxu0 0
        %2245 = vmatprep.subr.bf16.mxu0 0
        %2246 = vmatpush1.bf16.msra.mxu0 0
        %2247 = vmatprep.subr.bf16.mxu0 0
        %2248 = vmatpush1.bf16.msra.mxu0 0
        %2249 = vmatprep.subr.bf16.mxu0 0
        %2250 = vmatpush1.bf16.msra.mxu0 0
        %2251 = vmatprep.subr.bf16.mxu0 0
        %2252 = vmatpush1.bf16.msra.mxu0 0
        %2253 = vmatprep.subr.bf16.mxu0 0
        %2254 = vmatpush1.bf16.msra.mxu0 0
        %2255 = vmatprep.subr.bf16.mxu0 0
        %2256 = vmatpush1.bf16.msra.mxu0 0
        %2257 = vmatprep.mubr.bf16.mxu0 0
        %2258 = vmatmul.mubr.bf16.gmra.mrb[0].mxu0 %v2214
        %v2259 = vpop.f32.mrb[0].mxu0
        %v2260 = vadd.f32 0.0, %v2259
        %v2261 = vpop.f32.mrb[0].mxu0
        %v2262 = vpop.f32.mrb[0].mxu0
        %v2263 = vadd.f32 0.0, %v2262
        %v2264 = vpop.f32.mrb[0].mxu0
        %2265 = vmatprep.mubr.bf16.mxu0 0
        %2266 = vmatmul.mubr.bf16.gmra.mrb[0].mxu0 %v2217
        %v2267 = vpop.f32.mrb[0].mxu0
        %v2268 = vadd.f32 0.0, %v2267
        %v2269 = vpop.f32.mrb[0].mxu0
        %v2270 = vpop.f32.mrb[0].mxu0
        %v2271 = vadd.f32 0.0, %v2270
        %v2272 = vpop.f32.mrb[0].mxu0
        %2273 = vmatprep.mubr.bf16.mxu0 0
        %2274 = vmatmul.mubr.bf16.gmra.mrb[0].mxu0 %v2220
        %v2275 = vpop.f32.mrb[0].mxu0
        %v2276 = vadd.f32 0.0, %v2275
        %v2277 = vpop.f32.mrb[0].mxu0
        %v2278 = vpop.f32.mrb[0].mxu0
        %v2279 = vadd.f32 0.0, %v2278
        %v2280 = vpop.f32.mrb[0].mxu0
        %2281 = vmatprep.mubr.bf16.mxu0 0
        %2282 = vmatmul.mubr.bf16.gmra.mrb[0].mxu0 %v2223
        %v2283 = vpop.f32.mrb[0].mxu0
        %v2284 = vadd.f32 0.0, %v2283
        %v2285 = vpop.f32.mrb[0].mxu0
        %v2286 = vpop.f32.mrb[0].mxu0
        %v2287 = vadd.f32 0.0, %v2286
        %v2288 = vpop.f32.mrb[0].mxu0
        %2289 = vdwg.mxu0
        %v2290 = vadd.f32 %v1957, %v2260
        %v2291 = vadd.f32 %v1960, %v2263
        %v2292 = vadd.f32 %v1965, %v2268
        %v2293 = vadd.f32 %v1968, %v2271
        %v2294 = vadd.f32 %v1973, %v2276
        %v2295 = vadd.f32 %v1976, %v2279
        %v2296 = vadd.f32 %v1981, %v2284
        %v2297 = vadd.f32 %v1984, %v2287
        %v2298 = vld [vmem:[%s9 + $0x40] sm:$0xf]
        %v2299 = vld [vmem:[%s9 + $0x44] sm:$0xf]
        %v2300 = vld [vmem:[%s9 + $0x48] sm:$0xf]
        %v2301 = vld [vmem:[%s9 + $0x4c] sm:$0xf]
        %v2302 = vld [vmem:[%s9 + $0x50] sm:$0xf]
        %v2303 = vld [vmem:[%s9 + $0x54] sm:$0xf]
        %v2304 = vld [vmem:[%s9 + $0x58] sm:$0xf]
        %v2305 = vld [vmem:[%s9 + $0x5c] sm:$0xf]
        %v2314 = vunpack.c.l.b16 %v2298
        %v2315 = vunpack.c.l.b16 %v2299
        %v2316 = vunpack.c.l.b16 %v2300
        %v2317 = vunpack.c.l.b16 %v2301
        %v2318 = vunpack.c.l.b16 %v2302
        %v2319 = vunpack.c.l.b16 %v2303
        %v2320 = vunpack.c.l.b16 %v2304
        %v2321 = vunpack.c.l.b16 %v2305
        %v2322 = vpack.c.b16 %v2315, %v2314
        %v2323 = vpack.c.b16 %v2317, %v2316
        %v2324 = vpack.c.b16 %v2319, %v2318
        %v2325 = vpack.c.b16 %v2321, %v2320
        %2330 = vmatprep.subr.bf16.mxu0 0
        %2331 = vmatpush1.bf16.msra.mxu0 %v2322
        %2332 = vmatprep.subr.bf16.mxu0 0
        %2333 = vmatpush1.bf16.msra.mxu0 %v2323
        %2334 = vmatprep.subr.bf16.mxu0 0
        %2335 = vmatpush1.bf16.msra.mxu0 %v2324
        %2336 = vmatprep.subr.bf16.mxu0 0
        %2337 = vmatpush1.bf16.msra.mxu0 %v2325
        %2338 = vmatprep.subr.bf16.mxu0 0
        %2339 = vmatpush1.bf16.msra.mxu0 0
        %2340 = vmatprep.subr.bf16.mxu0 0
        %2341 = vmatpush1.bf16.msra.mxu0 0
        %2342 = vmatprep.subr.bf16.mxu0 0
        %2343 = vmatpush1.bf16.msra.mxu0 0
        %2344 = vmatprep.subr.bf16.mxu0 0
        %2345 = vmatpush1.bf16.msra.mxu0 0
        %2346 = vmatprep.subr.bf16.mxu0 0
        %2347 = vmatpush1.bf16.msra.mxu0 0
        %2348 = vmatprep.subr.bf16.mxu0 0
        %2349 = vmatpush1.bf16.msra.mxu0 0
        %2350 = vmatprep.subr.bf16.mxu0 0
        %2351 = vmatpush1.bf16.msra.mxu0 0
        %2352 = vmatprep.subr.bf16.mxu0 0
        %2353 = vmatpush1.bf16.msra.mxu0 0
        %2354 = vmatprep.subr.bf16.mxu0 0
        %2355 = vmatpush1.bf16.msra.mxu0 0
        %2356 = vmatprep.subr.bf16.mxu0 0
        %2357 = vmatpush1.bf16.msra.mxu0 0
        %2358 = vmatprep.subr.bf16.mxu0 0
        %2359 = vmatpush1.bf16.msra.mxu0 0
        %2360 = vmatprep.subr.bf16.mxu0 0
        %2361 = vmatpush1.bf16.msra.mxu0 0
        %2362 = vmatprep.mubr.bf16.mxu0 0
        %2363 = vmatmul.mubr.bf16.gmra.mrb[0].mxu0 %v2214
        %v2364 = vpop.f32.mrb[0].mxu0
        %v2365 = vadd.f32 0.0, %v2364
        %v2366 = vpop.f32.mrb[0].mxu0
        %v2367 = vpop.f32.mrb[0].mxu0
        %v2368 = vadd.f32 0.0, %v2367
        %v2369 = vpop.f32.mrb[0].mxu0
        %2370 = vmatprep.mubr.bf16.mxu0 0
        %2371 = vmatmul.mubr.bf16.gmra.mrb[0].mxu0 %v2217
        %v2372 = vpop.f32.mrb[0].mxu0
        %v2373 = vadd.f32 0.0, %v2372
        %v2374 = vpop.f32.mrb[0].mxu0
        %v2375 = vpop.f32.mrb[0].mxu0
        %v2376 = vadd.f32 0.0, %v2375
        %v2377 = vpop.f32.mrb[0].mxu0
        %2378 = vmatprep.mubr.bf16.mxu0 0
        %2379 = vmatmul.mubr.bf16.gmra.mrb[0].mxu0 %v2220
        %v2380 = vpop.f32.mrb[0].mxu0
        %v2381 = vadd.f32 0.0, %v2380
        %v2382 = vpop.f32.mrb[0].mxu0
        %v2383 = vpop.f32.mrb[0].mxu0
        %v2384 = vadd.f32 0.0, %v2383
        %v2385 = vpop.f32.mrb[0].mxu0
        %2386 = vmatprep.mubr.bf16.mxu0 0
        %2387 = vmatmul.mubr.bf16.gmra.mrb[0].mxu0 %v2223
        %v2388 = vpop.f32.mrb[0].mxu0
        %v2389 = vadd.f32 0.0, %v2388
        %v2390 = vpop.f32.mrb[0].mxu0
        %v2391 = vpop.f32.mrb[0].mxu0
        %v2392 = vadd.f32 0.0, %v2391
        %v2393 = vpop.f32.mrb[0].mxu0
        %2394 = vdwg.mxu0
        %v2395 = vadd.f32 %v2143, %v2365
        %v2396 = vadd.f32 %v2146, %v2368
        %v2397 = vadd.f32 %v2151, %v2373
        %v2398 = vadd.f32 %v2154, %v2376
        %v2399 = vadd.f32 %v2159, %v2381
        %v2400 = vadd.f32 %v2162, %v2384
        %v2401 = vadd.f32 %v2167, %v2389
        %v2402 = vadd.f32 %v2170, %v2392
        %v2403 = vpack.c.bf16 %v1718, %v1717
        %v2404 = vpack.c.bf16 %v1720, %v1719
        %v2405 = vpack.c.bf16 %v1722, %v1721
        %v2406 = vpack.c.bf16 %v1724, %v1723
        %v2407 = vld [vmem:[%s8 + $0x60] sm:$0xf]
        %v2408 = vld [vmem:[%s8 + $0x64] sm:$0xf]
        %v2409 = vld [vmem:[%s8 + $0x68] sm:$0xf]
        %v2410 = vld [vmem:[%s8 + $0x6c] sm:$0xf]
        %v2411 = vld [vmem:[%s8 + $0x70] sm:$0xf]
        %v2412 = vld [vmem:[%s8 + $0x74] sm:$0xf]
        %v2413 = vld [vmem:[%s8 + $0x78] sm:$0xf]
        %v2414 = vld [vmem:[%s8 + $0x7c] sm:$0xf]
        %v2423 = vunpack.c.l.b16 %v2407
        %v2424 = vunpack.c.l.b16 %v2408
        %v2425 = vunpack.c.l.b16 %v2409
        %v2426 = vunpack.c.l.b16 %v2410
        %v2427 = vunpack.c.l.b16 %v2411
        %v2428 = vunpack.c.l.b16 %v2412
        %v2429 = vunpack.c.l.b16 %v2413
        %v2430 = vunpack.c.l.b16 %v2414
        %v2431 = vpack.c.b16 %v2424, %v2423
        %v2432 = vpack.c.b16 %v2426, %v2425
        %v2433 = vpack.c.b16 %v2428, %v2427
        %v2434 = vpack.c.b16 %v2430, %v2429
        %v2440 = vsel %vm675, %v2403, 0
        %v2443 = vsel %vm675, %v2404, 0
        %v2446 = vsel %vm675, %v2405, 0
        %v2449 = vsel %vm675, %v2406, 0
        %2451 = vmatprep.subr.bf16.mxu0 0
        %2452 = vmatpush1.bf16.msra.mxu0 %v2431
        %2453 = vmatprep.subr.bf16.mxu0 0
        %2454 = vmatpush1.bf16.msra.mxu0 %v2432
        %2455 = vmatprep.subr.bf16.mxu0 0
        %2456 = vmatpush1.bf16.msra.mxu0 %v2433
        %2457 = vmatprep.subr.bf16.mxu0 0
        %2458 = vmatpush1.bf16.msra.mxu0 %v2434
        %2459 = vmatprep.subr.bf16.mxu0 0
        %2460 = vmatpush1.bf16.msra.mxu0 0
        %2461 = vmatprep.subr.bf16.mxu0 0
        %2462 = vmatpush1.bf16.msra.mxu0 0
        %2463 = vmatprep.subr.bf16.mxu0 0
        %2464 = vmatpush1.bf16.msra.mxu0 0
        %2465 = vmatprep.subr.bf16.mxu0 0
        %2466 = vmatpush1.bf16.msra.mxu0 0
        %2467 = vmatprep.subr.bf16.mxu0 0
        %2468 = vmatpush1.bf16.msra.mxu0 0
        %2469 = vmatprep.subr.bf16.mxu0 0
        %2470 = vmatpush1.bf16.msra.mxu0 0
        %2471 = vmatprep.subr.bf16.mxu0 0
        %2472 = vmatpush1.bf16.msra.mxu0 0
        %2473 = vmatprep.subr.bf16.mxu0 0
        %2474 = vmatpush1.bf16.msra.mxu0 0
        %2475 = vmatprep.subr.bf16.mxu0 0
        %2476 = vmatpush1.bf16.msra.mxu0 0
        %2477 = vmatprep.subr.bf16.mxu0 0
        %2478 = vmatpush1.bf16.msra.mxu0 0
        %2479 = vmatprep.subr.bf16.mxu0 0
        %2480 = vmatpush1.bf16.msra.mxu0 0
        %2481 = vmatprep.subr.bf16.mxu0 0
        %2482 = vmatpush1.bf16.msra.mxu0 0
        %2483 = vmatprep.mubr.bf16.mxu0 0
        %2484 = vmatmul.mubr.bf16.gmra.mrb[0].mxu0 %v2440
        %v2485 = vpop.f32.mrb[0].mxu0
        %v2486 = vadd.f32 0.0, %v2485
        %v2487 = vpop.f32.mrb[0].mxu0
        %v2488 = vpop.f32.mrb[0].mxu0
        %v2489 = vadd.f32 0.0, %v2488
        %v2490 = vpop.f32.mrb[0].mxu0
        %2491 = vmatprep.mubr.bf16.mxu0 0
        %2492 = vmatmul.mubr.bf16.gmra.mrb[0].mxu0 %v2443
        %v2493 = vpop.f32.mrb[0].mxu0
        %v2494 = vadd.f32 0.0, %v2493
        %v2495 = vpop.f32.mrb[0].mxu0
        %v2496 = vpop.f32.mrb[0].mxu0
        %v2497 = vadd.f32 0.0, %v2496
        %v2498 = vpop.f32.mrb[0].mxu0
        %2499 = vmatprep.mubr.bf16.mxu0 0
        %2500 = vmatmul.mubr.bf16.gmra.mrb[0].mxu0 %v2446
        %v2501 = vpop.f32.mrb[0].mxu0
        %v2502 = vadd.f32 0.0, %v2501
        %v2503 = vpop.f32.mrb[0].mxu0
        %v2504 = vpop.f32.mrb[0].mxu0
        %v2505 = vadd.f32 0.0, %v2504
        %v2506 = vpop.f32.mrb[0].mxu0
        %2507 = vmatprep.mubr.bf16.mxu0 0
        %2508 = vmatmul.mubr.bf16.gmra.mrb[0].mxu0 %v2449
        %v2509 = vpop.f32.mrb[0].mxu0
        %v2510 = vadd.f32 0.0, %v2509
        %v2511 = vpop.f32.mrb[0].mxu0
        %v2512 = vpop.f32.mrb[0].mxu0
        %v2513 = vadd.f32 0.0, %v2512
        %v2514 = vpop.f32.mrb[0].mxu0
        %2515 = vdwg.mxu0
        %v2516 = vadd.f32 %v2290, %v2486
        %v2517 = vadd.f32 %v2291, %v2489
        %v2518 = vadd.f32 %v2292, %v2494
        %v2519 = vadd.f32 %v2293, %v2497
        %v2520 = vadd.f32 %v2294, %v2502
        %v2521 = vadd.f32 %v2295, %v2505
        %v2522 = vadd.f32 %v2296, %v2510
        %v2523 = vadd.f32 %v2297, %v2513
        %v2524 = vld [vmem:[%s9 + $0x60] sm:$0xf]
        %v2525 = vld [vmem:[%s9 + $0x64] sm:$0xf]
        %v2526 = vld [vmem:[%s9 + $0x68] sm:$0xf]
        %v2527 = vld [vmem:[%s9 + $0x6c] sm:$0xf]
        %v2528 = vld [vmem:[%s9 + $0x70] sm:$0xf]
        %v2529 = vld [vmem:[%s9 + $0x74] sm:$0xf]
        %v2530 = vld [vmem:[%s9 + $0x78] sm:$0xf]
        %v2531 = vld [vmem:[%s9 + $0x7c] sm:$0xf]
        %v2540 = vunpack.c.l.b16 %v2524
        %v2541 = vunpack.c.l.b16 %v2525
        %v2542 = vunpack.c.l.b16 %v2526
        %v2543 = vunpack.c.l.b16 %v2527
        %v2544 = vunpack.c.l.b16 %v2528
        %v2545 = vunpack.c.l.b16 %v2529
        %v2546 = vunpack.c.l.b16 %v2530
        %v2547 = vunpack.c.l.b16 %v2531
        %v2548 = vpack.c.b16 %v2541, %v2540
        %v2549 = vpack.c.b16 %v2543, %v2542
        %v2550 = vpack.c.b16 %v2545, %v2544
        %v2551 = vpack.c.b16 %v2547, %v2546
        %2556 = vmatprep.subr.bf16.mxu0 0
        %2557 = vmatpush1.bf16.msra.mxu0 %v2548
        %2558 = vmatprep.subr.bf16.mxu0 0
        %2559 = vmatpush1.bf16.msra.mxu0 %v2549
        %2560 = vmatprep.subr.bf16.mxu0 0
        %2561 = vmatpush1.bf16.msra.mxu0 %v2550
        %2562 = vmatprep.subr.bf16.mxu0 0
        %2563 = vmatpush1.bf16.msra.mxu0 %v2551
        %2564 = vmatprep.subr.bf16.mxu0 0
        %2565 = vmatpush1.bf16.msra.mxu0 0
        %2566 = vmatprep.subr.bf16.mxu0 0
        %2567 = vmatpush1.bf16.msra.mxu0 0
        %2568 = vmatprep.subr.bf16.mxu0 0
        %2569 = vmatpush1.bf16.msra.mxu0 0
        %2570 = vmatprep.subr.bf16.mxu0 0
        %2571 = vmatpush1.bf16.msra.mxu0 0
        %2572 = vmatprep.subr.bf16.mxu0 0
        %2573 = vmatpush1.bf16.msra.mxu0 0
        %2574 = vmatprep.subr.bf16.mxu0 0
        %2575 = vmatpush1.bf16.msra.mxu0 0
        %2576 = vmatprep.subr.bf16.mxu0 0
        %2577 = vmatpush1.bf16.msra.mxu0 0
        %2578 = vmatprep.subr.bf16.mxu0 0
        %2579 = vmatpush1.bf16.msra.mxu0 0
        %2580 = vmatprep.subr.bf16.mxu0 0
        %2581 = vmatpush1.bf16.msra.mxu0 0
        %2582 = vmatprep.subr.bf16.mxu0 0
        %2583 = vmatpush1.bf16.msra.mxu0 0
        %2584 = vmatprep.subr.bf16.mxu0 0
        %2585 = vmatpush1.bf16.msra.mxu0 0
        %2586 = vmatprep.subr.bf16.mxu0 0
        %2587 = vmatpush1.bf16.msra.mxu0 0
        %2588 = vmatprep.mubr.bf16.mxu0 0
        %2589 = vmatmul.mubr.bf16.gmra.mrb[0].mxu0 %v2440
        %v2590 = vpop.f32.mrb[0].mxu0
        %v2591 = vadd.f32 0.0, %v2590
        %v2592 = vpop.f32.mrb[0].mxu0
        %v2593 = vpop.f32.mrb[0].mxu0
        %v2594 = vadd.f32 0.0, %v2593
        %v2595 = vpop.f32.mrb[0].mxu0
        %2596 = vmatprep.mubr.bf16.mxu0 0
        %2597 = vmatmul.mubr.bf16.gmra.mrb[0].mxu0 %v2443
        %v2598 = vpop.f32.mrb[0].mxu0
        %v2599 = vadd.f32 0.0, %v2598
        %v2600 = vpop.f32.mrb[0].mxu0
        %v2601 = vpop.f32.mrb[0].mxu0
        %v2602 = vadd.f32 0.0, %v2601
        %v2603 = vpop.f32.mrb[0].mxu0
        %2604 = vmatprep.mubr.bf16.mxu0 0
        %2605 = vmatmul.mubr.bf16.gmra.mrb[0].mxu0 %v2446
        %v2606 = vpop.f32.mrb[0].mxu0
        %v2607 = vadd.f32 0.0, %v2606
        %v2608 = vpop.f32.mrb[0].mxu0
        %v2609 = vpop.f32.mrb[0].mxu0
        %v2610 = vadd.f32 0.0, %v2609
        %v2611 = vpop.f32.mrb[0].mxu0
        %2612 = vmatprep.mubr.bf16.mxu0 0
        %2613 = vmatmul.mubr.bf16.gmra.mrb[0].mxu0 %v2449
        %v2614 = vpop.f32.mrb[0].mxu0
        %v2615 = vadd.f32 0.0, %v2614
        %v2616 = vpop.f32.mrb[0].mxu0
        %v2617 = vpop.f32.mrb[0].mxu0
        %v2618 = vadd.f32 0.0, %v2617
        %v2619 = vpop.f32.mrb[0].mxu0
        %2620 = vdwg.mxu0
        %v2621 = vadd.f32 %v2395, %v2591
        %v2622 = vadd.f32 %v2396, %v2594
        %v2623 = vadd.f32 %v2397, %v2599
        %v2624 = vadd.f32 %v2398, %v2602
        %v2625 = vadd.f32 %v2399, %v2607
        %v2626 = vadd.f32 %v2400, %v2610
        %v2627 = vadd.f32 %v2401, %v2615
        %v2628 = vadd.f32 %v2402, %v2618
        %v2629 = vld [vmem:[%s10] sm:$0x1]
        %v2631 = vlaneseq
        %v2632 = vshrl.u32 %v2631, 7
        %v2633 = vsub.s32 0, %v2632
        %v2634 = vrot.slane %v2629, %v2633
        %v2636 = vadd.f32 %v2516, %v2634
        %v2637 = vadd.f32 %v2517, %v2634
        %v2638 = vadd.f32 %v2518, %v2634
        %v2639 = vadd.f32 %v2519, %v2634
        %v2640 = vadd.f32 %v2520, %v2634
        %v2641 = vadd.f32 %v2521, %v2634
        %v2642 = vadd.f32 %v2522, %v2634
        %v2643 = vadd.f32 %v2523, %v2634
        %v2644 = vld [vmem:[%s11] sm:$0x1]
        %v2646 = vlaneseq
        %v2647 = vshrl.u32 %v2646, 7
        %v2648 = vsub.s32 0, %v2647
        %v2649 = vrot.slane %v2644, %v2648
        %v2651 = vadd.f32 %v2621, %v2649
        %v2652 = vadd.f32 %v2622, %v2649
        %v2653 = vadd.f32 %v2623, %v2649
        %v2654 = vadd.f32 %v2624, %v2649
        %v2655 = vadd.f32 %v2625, %v2649
        %v2656 = vadd.f32 %v2626, %v2649
        %v2657 = vadd.f32 %v2627, %v2649
        %v2658 = vadd.f32 %v2628, %v2649
        %v2659 = vxor.u32 %v2651, 2147483648
        %v2660 = vxor.u32 %v2652, 2147483648
        %v2661 = vxor.u32 %v2653, 2147483648
        %v2662 = vxor.u32 %v2654, 2147483648
        %v2663 = vxor.u32 %v2655, 2147483648
        %v2664 = vxor.u32 %v2656, 2147483648
        %v2665 = vxor.u32 %v2657, 2147483648
        %v2666 = vxor.u32 %v2658, 2147483648
        %v2667 = vmul.f32 %v2659, 1.442695
        %v2668 = vpow.pop %v2667
        %v2669 = vmul.f32 %v2660, 1.442695
        %v2670 = vpow.pop %v2669
        %v2671 = vmul.f32 %v2661, 1.442695
        %v2672 = vpow.pop %v2671
        %v2673 = vmul.f32 %v2662, 1.442695
        %v2674 = vpow.pop %v2673
        %v2675 = vmul.f32 %v2663, 1.442695
        %v2676 = vpow.pop %v2675
        %v2677 = vmul.f32 %v2664, 1.442695
        %v2678 = vpow.pop %v2677
        %v2679 = vmul.f32 %v2665, 1.442695
        %v2680 = vpow.pop %v2679
        %v2681 = vmul.f32 %v2666, 1.442695
        %v2682 = vpow.pop %v2681
        %v2683 = vadd.f32 %v2668, 1.0
        %v2684 = vadd.f32 %v2670, 1.0
        %v2685 = vadd.f32 %v2672, 1.0
        %v2686 = vadd.f32 %v2674, 1.0
        %v2687 = vadd.f32 %v2676, 1.0
        %v2688 = vadd.f32 %v2678, 1.0
        %v2689 = vadd.f32 %v2680, 1.0
        %v2690 = vadd.f32 %v2682, 1.0
        %v2691 = vrcp.pop %v2683
        %v2692 = vmul.f32 1.0, %v2691
        %v2693 = vrcp.pop %v2684
        %v2694 = vmul.f32 1.0, %v2693
        %v2695 = vrcp.pop %v2685
        %v2696 = vmul.f32 1.0, %v2695
        %v2697 = vrcp.pop %v2686
        %v2698 = vmul.f32 1.0, %v2697
        %v2699 = vrcp.pop %v2687
        %v2700 = vmul.f32 1.0, %v2699
        %v2701 = vrcp.pop %v2688
        %v2702 = vmul.f32 1.0, %v2701
        %v2703 = vrcp.pop %v2689
        %v2704 = vmul.f32 1.0, %v2703
        %v2705 = vrcp.pop %v2690
        %v2706 = vmul.f32 1.0, %v2705
        %v2707 = vmul.f32 %v2636, %v2692
        %v2708 = vmul.f32 %v2637, %v2694
        %v2709 = vmul.f32 %v2638, %v2696
        %v2710 = vmul.f32 %v2639, %v2698
        %v2711 = vmul.f32 %v2640, %v2700
        %v2712 = vmul.f32 %v2641, %v2702
        %v2713 = vmul.f32 %v2642, %v2704
        %v2714 = vmul.f32 %v2643, %v2706
        %v2715 = vadd.f32 %v473, %v2707
        %v2716 = vadd.f32 %v474, %v2708
        %v2717 = vadd.f32 %v475, %v2709
        %v2718 = vadd.f32 %v476, %v2710
        %v2719 = vadd.f32 %v477, %v2711
        %v2720 = vadd.f32 %v478, %v2712
        %v2721 = vadd.f32 %v479, %v2713
        %v2722 = vadd.f32 %v480, %v2714
        %2723 = vst.msk [vmem:[%s451] sm:$0xff] %vm585, %v2715
        %2724 = vst.msk [vmem:[%s451 + $0x8] sm:$0xff] %vm585, %v2716
        %2725 = vst.msk [vmem:[%s451 + $0x10] sm:$0xff] %vm585, %v2717
        %2726 = vst.msk [vmem:[%s451 + $0x18] sm:$0xff] %vm585, %v2718
        %2727 = vst.msk [vmem:[%s451 + $0x20] sm:$0xff] %vm585, %v2719
        %2728 = vst.msk [vmem:[%s451 + $0x28] sm:$0xff] %vm585, %v2720
        %2729 = vst.msk [vmem:[%s451 + $0x30] sm:$0xff] %vm585, %v2721
        %2730 = vst.msk [vmem:[%s451 + $0x38] sm:$0xff] %vm585, %v2722
        %s2731 = sand.u32 %s306, 1
        %s2732 = scalar_lea.sflag [#allocation3], %s2731
        %s2733 = sand.u32 %s306, 1
        %s2734 = smul.addr %s2733, 64
        %s2735 = scalar_lea.vmem [#allocation2], %s2734
        // Predicated region
        $region69: #{pixelcnn_layer_down.11} parent=67 // pred_check
          %p2736 = pneg %p316
        $region70: #{pixelcnn_layer_down.11} parent=67 // pred_check_branch
          %2738 = sbr.rel (%p2736) target = $region72
        $region71: #{pixelcnn_layer_down.11} parent=67 // pred_region
          %s2740 = ssub.s32 1024, 1024
          %2741 = vsyncadd %s2732, %s2740
          %s2742 = smul.addr %s26, 8
          %s2743 = smul.addr %s2742, 128
          %s2744 = scalar_lea.hbm %s12, %s2743
          %s2745 = sshll.u32 %s2735, 4
          %s2746 = int_to_ptr.vmem [resolvable:$true] %s2745
          %2751 = dma.vmem_to_hbm [thread:$0]  %s2746, 1024, %s2744, %s2732, 128, 128, 8
        $region72: #{pixelcnn_layer_down.11} parent=67 // pred_fallthru
          _
      $region68: #{pixelcnn_layer_down.11} parent=5 // pred_fallthru
        _
      %p2752 = scmp.le.s32.totalorder 2, %s21
      // Predicated region
      $region73: #{pixelcnn_layer_down.11} parent=5 // pred_check
        %p2753 = pneg %p2752
      $region74: #{pixelcnn_layer_down.11} parent=5 // pred_check_branch
        %2755 = sbr.rel (%p2753) target = $region76
      $region75: #{pixelcnn_layer_down.11} parent=5 // pred_region
        %s2756 = ssub.s32 %s21, 2
        // Predicated region
        $region77: #{pixelcnn_layer_down.11} parent=75 // pred_check
          %p2757 = pneg %p322
        $region78: #{pixelcnn_layer_down.11} parent=75 // pred_check_branch
          %2759 = sbr.rel (%p2757) target = $region80
        $region79: #{pixelcnn_layer_down.11} parent=75 // pred_region
          %s2760 = sand.u32 %s307, 1
          %s2761 = scalar_lea.sflag [#allocation3], %s2760
          %s2762 = sand.u32 %s307, 1
          %s2763 = smul.addr %s2762, 64
          %s2764 = scalar_lea.vmem [#allocation2], %s2763
          %2765 = dma.done %s2761, 1024
        $region80: #{pixelcnn_layer_down.11} parent=75 // pred_fallthru
          _
      $region76: #{pixelcnn_layer_down.11} parent=5 // pred_fallthru
        _
    $region6: #{pixelcnn_layer_down.11} parent=1 // loop_footer
      %s25 = sadd.s32 1, %s21
    $region7: #{pixelcnn_layer_down.11} parent=1 // loop_footer_branch
      %20 = sbr.rel target = $region3
    $region8: #{pixelcnn_layer_down.11} parent=1 // loop_exit
      _
    %2766 = vsyncpa [#allocation3], 1
    %s2767 = scalar_lea.sflag [#allocation3], 1
    %2768 = vsyncpa %s2767, 1

</llo_original>
